<compile_context>
chip_gen: v5e
topology: v5e:2x2
jax: 0.10.0
libtpu: 0.0.40
codegen_flags: <defaults>
</compile_context>

<pallas_src>
import math
import numpy as np
import jax
import jax.numpy as jnp
from jax.experimental import pallas as pl
from jax.experimental.pallas import tpu as pltpu


# ----------------------------------------------------------------------------
# Bilinear (align_corners=False) x2 interpolation matrix, identical to PyTorch.
# ----------------------------------------------------------------------------
def bilinear_matrix_x2(size_in: int) -> np.ndarray:
    size_out = 2 * size_in
    U = np.zeros((size_out, size_in), dtype=np.float32)
    for o in range(size_out):
        src = (o + 0.5) / 2.0 - 0.5
        i0 = int(math.floor(src))
        frac = src - i0
        i0c = min(max(i0, 0), size_in - 1)
        i1c = min(max(i0 + 1, 0), size_in - 1)
        U[o, i0c] += 1.0 - frac
        U[o, i1c] += frac
    return U


def _default_vmem_limit() -> int:
    # ~75% of the per-TensorCore VMEM (leaves headroom for the double-buffered
    # BlockSpec DMAs and compiler scratch): ~48 MiB on v7x, ~96 MiB on v5e/v6e.
    try:
        return int(pltpu.get_tpu_info().vmem_capacity_bytes * 3 // 4)
    except Exception:
        return 48 * 1024 * 1024


# ----------------------------------------------------------------------------
# Fused kernel: upsample(+pad) + conv + bias + leaky_relu*sqrt(2).
# One grid step == one batch image; everything stays in VMEM.
# ----------------------------------------------------------------------------
def _make_fused_kernel(C, H, W, Cout, K, Hp, Wp, Hout, Wout,
                       activate, neg_slope, act_scale, compute_dtype):

    def kernel(x_ref, uwpt_ref, uhp_ref, w_ref, b_ref, o_ref):
        cdt = compute_dtype
        x = x_ref[0].astype(cdt)                                   # (C, H, W)

        # ---- width upsample + zero pad columns: one wide MXU matmul ---------
        # (the conv padding columns are zero columns baked into uwpt)
        xw = jnp.dot(x.reshape(C * H, W), uwpt_ref[...],
                     preferred_element_type=jnp.float32)           # (C*H, Wp)
        xw = xw.astype(cdt).reshape(C, H, Wp)

        # ---- height upsample + zero pad rows: C-batched einsum (no broadcast)
        up = jnp.einsum('oh,chw->cow', uhp_ref[...], xw,
                        preferred_element_type=jnp.float32)        # (C, Hp, Wp)
        up = up.astype(cdt)

        # ---- direct conv: K*K taps, each a single matmul contracting over C,
        #      M = Cout, N = Hout*Wout (lane-dense), f32 accumulation ---------
        acc = jnp.zeros((Cout, Hout, Wout), jnp.float32)
        for ki in range(K):
            for kj in range(K):
                rhs = up[:, ki:ki + Hout, kj:kj + Wout]            # (C, Hout, Wout)
                acc = acc + jnp.einsum('oc,chw->ohw', w_ref[ki, kj], rhs,
                                       preferred_element_type=jnp.float32)

        acc = acc + b_ref[...][:, :, None]                         # (Cout,1,1) bcast
        if activate:
            acc = jnp.where(acc >= 0.0, acc, acc * neg_slope) * act_scale

        o_ref[0] = acc.astype(o_ref.dtype)                         # NCHW block

    return kernel


def conv_up_forward(x, weight, scale, bias_vec, K, stride, padding, activate,
                    neg_slope=0.2, act_scale=math.sqrt(2.0),
                    compute_dtype=jnp.float32):
    """x: NCHW. Returns NCHW output of bilinear_x2 + conv + (bias/act)."""
    N, C, H, W = x.shape
    Cout = weight.shape[0]
    if stride != 1:
        # TODO(synk): stride > 1 needs strided tap slices; GFPGAN uses stride=1.
        raise NotImplementedError("fused ConvUpLayer kernel supports stride=1 only")

    Hup, Wup = 2 * H, 2 * W
    Hp, Wp = Hup + 2 * padding, Wup + 2 * padding
    Hout = Hp - K + 1
    Wout = Wp - K + 1

    # Host-side constants (tiny): padded interpolation matrices + packed weight.
    UW = bilinear_matrix_x2(W)                                     # (Wup, W)
    UWP = np.zeros((Wp, W), dtype=np.float32)
    UWP[padding:padding + Wup, :] = UW
    UWPT = jnp.asarray(UWP.T, compute_dtype)                       # (W, Wp)

    UH = bilinear_matrix_x2(H)                                     # (Hup, H)
    UHP = np.zeros((Hp, H), dtype=np.float32)
    UHP[padding:padding + Hup, :] = UH
    UHPj = jnp.asarray(UHP, compute_dtype)                         # (Hp, H)

    w_np = np.asarray(weight, dtype=np.float32) * scale            # (Cout, C, K, K)
    wpk = jnp.asarray(np.transpose(w_np, (2, 3, 0, 1)), compute_dtype)  # (K, K, Cout, C)
    b2 = jnp.asarray(np.asarray(bias_vec, dtype=np.float32).reshape(Cout, 1))

    kernel = _make_fused_kernel(C, H, W, Cout, K, Hp, Wp, Hout, Wout,
                                activate, neg_slope, act_scale, compute_dtype)

    # NOTE: the constant operands (UWPT/UHP/weight/bias) have constant index
    # maps so they are fetched once; single-buffering them would reclaim a bit
    # more VMEM headroom on v7x if needed.
    out = pl.pallas_call(
        kernel,
        out_shape=jax.ShapeDtypeStruct((N, Cout, Hout, Wout), x.dtype),
        grid=(N,),
        in_specs=[
            pl.BlockSpec((1, C, H, W), lambda n: (n, 0, 0, 0)),    # x (NCHW)
            pl.BlockSpec((W, Wp), lambda n: (0, 0)),               # width upsample+pad
            pl.BlockSpec((Hp, H), lambda n: (0, 0)),               # height upsample+pad
            pl.BlockSpec((K, K, Cout, C), lambda n: (0, 0, 0, 0)),  # packed weight
            pl.BlockSpec((Cout, 1), lambda n: (0, 0)),             # bias
        ],
        out_specs=pl.BlockSpec((1, Cout, Hout, Wout), lambda n: (n, 0, 0, 0)),
        compiler_params=pltpu.CompilerParams(
            dimension_semantics=("parallel",),                     # batch across TCs
            vmem_limit_bytes=_default_vmem_limit(),
        ),
    )(x, UWPT, UHPj, wpk, b2)

    return out                                                     # already NCHW


# ----------------------------------------------------------------------------
# ConvUpLayer (JAX/Pallas port of the PyTorch module)
# ----------------------------------------------------------------------------
class ConvUpLayerPallas:
    def __init__(self, key, in_channels, out_channels, kernel_size, stride=1,
                 padding=0, bias=True, bias_init_val=0.0, activate=True):
        self.in_channels = in_channels
        self.out_channels = out_channels
        self.kernel_size = kernel_size
        self.stride = stride
        self.padding = padding
        self.activate = activate
        self.scale = 1.0 / math.sqrt(in_channels * kernel_size ** 2)
        # torch.randn analogue, deterministic
        self.weight = jax.random.normal(
            key, (out_channels, in_channels, kernel_size, kernel_size), jnp.float32)
        if bias and (not activate):
            self.conv_bias = jnp.full((out_channels,), bias_init_val, jnp.float32)
        else:
            self.conv_bias = None
        # FusedLeakyReLU carries its own (zero-init) bias when activate & bias,
        # ScaledLeakyReLU(0.2) when activate & not bias.
        if activate and bias:
            self.flr_bias = jnp.zeros((out_channels,), jnp.float32)
        else:
            self.flr_bias = None

    def __call__(self, x, compute_dtype=jnp.float32):
        if self.conv_bias is not None:
            bias_vec = self.conv_bias
        elif self.flr_bias is not None:
            bias_vec = self.flr_bias
        else:
            bias_vec = jnp.zeros((self.out_channels,), jnp.float32)
        return conv_up_forward(x, self.weight, self.scale, bias_vec,
                               self.kernel_size, self.stride, self.padding,
                               self.activate, compute_dtype=compute_dtype)


# ----------------------------------------------------------------------------
# Pure-JAX reference (mirrors PyTorch semantics) for verification.
# ----------------------------------------------------------------------------
def reference(x, layer):
    UH = jnp.asarray(bilinear_matrix_x2(x.shape[2]))
    UW = jnp.asarray(bilinear_matrix_x2(x.shape[3]))
    up = jnp.einsum('oh,nchw->ncow', UH, x)
    up = jnp.einsum('ncow,vw->ncov', up, UW)
    w = layer.weight * layer.scale
    out = jax.lax.conv_general_dilated(
        up, w, (layer.stride, layer.stride),
        [(layer.padding, layer.padding), (layer.padding, layer.padding)],
        dimension_numbers=('NCHW', 'OIHW', 'NCHW'))
    if layer.conv_bias is not None:
        out = out + layer.conv_bias[None, :, None, None]
    if layer.activate:
        if layer.flr_bias is not None:
            out = out + layer.flr_bias[None, :, None, None]
        out = jnp.where(out >= 0.0, out, 0.2 * out) * math.sqrt(2.0)
    return out


if __name__ == "__main__":
    key = jax.random.PRNGKey(0)
    kw, kx = jax.random.split(key)

    N, Cin, H, W = 2, 4, 16, 16
    Cout, K = 8, 3
    x = jax.random.normal(kx, (N, Cin, H, W), jnp.float32)

    # defaults of the module: bias=True, activate=True -> FusedLeakyReLU
    layer = ConvUpLayerPallas(kw, Cin, Cout, K, stride=1, padding=1,
                              bias=True, bias_init_val=0.0, activate=True)

    y = jax.block_until_ready(layer(x))
    y_ref = reference(x, layer)
    assert y.shape == (N, Cout, 2 * H, 2 * W), y.shape
    np.testing.assert_allclose(np.asarray(y), np.asarray(y_ref),
                               rtol=5e-4, atol=5e-4)

    # bf16 MXU-operand path (f32 accumulation) for v6e/v7x throughput.
    y_bf16 = jax.block_until_ready(layer(x, compute_dtype=jnp.bfloat16))
    np.testing.assert_allclose(np.asarray(y_bf16), np.asarray(y_ref),
                               rtol=5e-2, atol=5e-2)

    print("KERNEL_OK")
</pallas_src>

<mosaic_0001>
module attributes {stable_mosaic.version = 11 : i64} {
  func.func @kernel(%arg0: i32, %arg1: memref<1x4x16x16xf32, #tpu.memory_space<vmem>>, %arg2: memref<16x34xf32, #tpu.memory_space<vmem>>, %arg3: memref<34x16xf32, #tpu.memory_space<vmem>>, %arg4: memref<3x3x8x4xf32, #tpu.memory_space<vmem>>, %arg5: memref<8x1xf32, #tpu.memory_space<vmem>>, %arg6: memref<1x8x32x32xf32, #tpu.memory_space<vmem>>) attributes {dimension_semantics = [#tpu.dimension_semantics<parallel>], iteration_bounds = array<i64: 2>, scalar_prefetch = 0 : i64, scratch_operands = 0 : i64, tpu.core_type = #tpu.core_type<tc>, window_params = [{transform_indices = @transform_0, window_bounds = array<i64: 1, 4, 16, 16>}, {pipeline_mode = #tpu.pipeline_mode<synchronous>, transform_indices = @transform_1, window_bounds = array<i64: 16, 34>}, {pipeline_mode = #tpu.pipeline_mode<synchronous>, transform_indices = @transform_2, window_bounds = array<i64: 34, 16>}, {pipeline_mode = #tpu.pipeline_mode<synchronous>, transform_indices = @transform_3, window_bounds = array<i64: 3, 3, 8, 4>}, {pipeline_mode = #tpu.pipeline_mode<synchronous>, transform_indices = @transform_4, window_bounds = array<i64: 8, 1>}, {transform_indices = @transform_5, window_bounds = array<i64: 1, 8, 32, 32>}]} {
    %c0 = arith.constant 0 : index
    %c0_0 = arith.constant 0 : index
    %c0_1 = arith.constant 0 : index
    %c0_2 = arith.constant 0 : index
    %0 = vector.load %arg1[%c0, %c0_0, %c0_1, %c0_2] : memref<1x4x16x16xf32, #tpu.memory_space<vmem>>, vector<1x4x16x16xf32>
    %1 = vector.shape_cast %0 : vector<1x4x16x16xf32> to vector<4x16x16xf32>
    %2 = vector.shape_cast %1 : vector<4x16x16xf32> to vector<64x16xf32>
    %c0_3 = arith.constant 0 : index
    %c0_4 = arith.constant 0 : index
    %3 = vector.load %arg2[%c0_3, %c0_4] : memref<16x34xf32, #tpu.memory_space<vmem>>, vector<16x34xf32>
    %cst = arith.constant dense<0.000000e+00> : vector<64x34xf32>
    %4 = tpu.matmul %2, %3, %cst {dimension_numbers = #tpu.dot_dimension_numbers<[1], [0], [0], [1], [0, 0, 1, 1], [], []>} : vector<64x16xf32>, vector<16x34xf32>, vector<64x34xf32> -> vector<64x34xf32>
    %5 = vector.shape_cast %4 : vector<64x34xf32> to vector<4x16x34xf32>
    %c0_5 = arith.constant 0 : index
    %c0_6 = arith.constant 0 : index
    %6 = vector.load %arg3[%c0_5, %c0_6] : memref<34x16xf32, #tpu.memory_space<vmem>>, vector<34x16xf32>
    "tpu.trace_start"() <{level = 10 : i32, message = "oh,chw->cow"}> : () -> ()
    %cst_7 = arith.constant dense<0.000000e+00> : vector<4x34x34xf32>
    %7 = tpu.matmul %5, %6, %cst_7 {dimension_numbers = #tpu.dot_dimension_numbers<[1], [1], [0, 2], [0], [0, 0, 0, 2, 1, 0], [], []>} : vector<4x16x34xf32>, vector<34x16xf32>, vector<4x34x34xf32> -> vector<4x34x34xf32>
    %8 = tpu.transpose %7, [0, 2, 1] : vector<4x34x34xf32> -> vector<4x34x34xf32>
    %cst_8 = arith.constant 0.000000e+00 : f32
    "tpu.trace_stop"() : () -> ()
    %9 = vector.broadcast %cst_8 : f32 to vector<8x32x32xf32>
    %10 = vector.extract_strided_slice %8 {offsets = [0, 0, 0], sizes = [4, 32, 32], strides = [1, 1, 1]} : vector<4x34x34xf32> to vector<4x32x32xf32>
    %c0_9 = arith.constant 0 : index
    %c0_10 = arith.constant 0 : index
    %c0_11 = arith.constant 0 : index
    %c0_12 = arith.constant 0 : index
    %11 = vector.load %arg4[%c0_9, %c0_10, %c0_11, %c0_12] : memref<3x3x8x4xf32, #tpu.memory_space<vmem>>, vector<1x1x8x4xf32>
    %12 = vector.shape_cast %11 : vector<1x1x8x4xf32> to vector<8x4xf32>
    "tpu.trace_start"() <{level = 10 : i32, message = "oc,chw->ohw"}> : () -> ()
    %cst_13 = arith.constant dense<0.000000e+00> : vector<8x32x32xf32>
    %13 = tpu.matmul %12, %10, %cst_13 {dimension_numbers = #tpu.dot_dimension_numbers<[1], [0], [0], [1, 2], [0, 0, 1, 1, 1, 2], [], []>} : vector<8x4xf32>, vector<4x32x32xf32>, vector<8x32x32xf32> -> vector<8x32x32xf32>
    "tpu.trace_stop"() : () -> ()
    %14 = arith.addf %9, %13 : vector<8x32x32xf32>
    %15 = vector.extract_strided_slice %8 {offsets = [0, 0, 1], sizes = [4, 32, 32], strides = [1, 1, 1]} : vector<4x34x34xf32> to vector<4x32x32xf32>
    %c0_14 = arith.constant 0 : index
    %c1 = arith.constant 1 : index
    %c0_15 = arith.constant 0 : index
    %c0_16 = arith.constant 0 : index
    %16 = vector.load %arg4[%c0_14, %c1, %c0_15, %c0_16] : memref<3x3x8x4xf32, #tpu.memory_space<vmem>>, vector<1x1x8x4xf32>
    %17 = vector.shape_cast %16 : vector<1x1x8x4xf32> to vector<8x4xf32>
    "tpu.trace_start"() <{level = 10 : i32, message = "oc,chw->ohw"}> : () -> ()
    %cst_17 = arith.constant dense<0.000000e+00> : vector<8x32x32xf32>
    %18 = tpu.matmul %17, %15, %cst_17 {dimension_numbers = #tpu.dot_dimension_numbers<[1], [0], [0], [1, 2], [0, 0, 1, 1, 1, 2], [], []>} : vector<8x4xf32>, vector<4x32x32xf32>, vector<8x32x32xf32> -> vector<8x32x32xf32>
    "tpu.trace_stop"() : () -> ()
    %19 = arith.addf %14, %18 : vector<8x32x32xf32>
    %20 = vector.extract_strided_slice %8 {offsets = [0, 0, 2], sizes = [4, 32, 32], strides = [1, 1, 1]} : vector<4x34x34xf32> to vector<4x32x32xf32>
    %c0_18 = arith.constant 0 : index
    %c2 = arith.constant 2 : index
    %c0_19 = arith.constant 0 : index
    %c0_20 = arith.constant 0 : index
    %21 = vector.load %arg4[%c0_18, %c2, %c0_19, %c0_20] : memref<3x3x8x4xf32, #tpu.memory_space<vmem>>, vector<1x1x8x4xf32>
    %22 = vector.shape_cast %21 : vector<1x1x8x4xf32> to vector<8x4xf32>
    "tpu.trace_start"() <{level = 10 : i32, message = "oc,chw->ohw"}> : () -> ()
    %cst_21 = arith.constant dense<0.000000e+00> : vector<8x32x32xf32>
    %23 = tpu.matmul %22, %20, %cst_21 {dimension_numbers = #tpu.dot_dimension_numbers<[1], [0], [0], [1, 2], [0, 0, 1, 1, 1, 2], [], []>} : vector<8x4xf32>, vector<4x32x32xf32>, vector<8x32x32xf32> -> vector<8x32x32xf32>
    "tpu.trace_stop"() : () -> ()
    %24 = arith.addf %19, %23 : vector<8x32x32xf32>
    %25 = vector.extract_strided_slice %8 {offsets = [0, 1, 0], sizes = [4, 32, 32], strides = [1, 1, 1]} : vector<4x34x34xf32> to vector<4x32x32xf32>
    %c1_22 = arith.constant 1 : index
    %c0_23 = arith.constant 0 : index
    %c0_24 = arith.constant 0 : index
    %c0_25 = arith.constant 0 : index
    %26 = vector.load %arg4[%c1_22, %c0_23, %c0_24, %c0_25] : memref<3x3x8x4xf32, #tpu.memory_space<vmem>>, vector<1x1x8x4xf32>
    %27 = vector.shape_cast %26 : vector<1x1x8x4xf32> to vector<8x4xf32>
    "tpu.trace_start"() <{level = 10 : i32, message = "oc,chw->ohw"}> : () -> ()
    %cst_26 = arith.constant dense<0.000000e+00> : vector<8x32x32xf32>
    %28 = tpu.matmul %27, %25, %cst_26 {dimension_numbers = #tpu.dot_dimension_numbers<[1], [0], [0], [1, 2], [0, 0, 1, 1, 1, 2], [], []>} : vector<8x4xf32>, vector<4x32x32xf32>, vector<8x32x32xf32> -> vector<8x32x32xf32>
    "tpu.trace_stop"() : () -> ()
    %29 = arith.addf %24, %28 : vector<8x32x32xf32>
    %30 = vector.extract_strided_slice %8 {offsets = [0, 1, 1], sizes = [4, 32, 32], strides = [1, 1, 1]} : vector<4x34x34xf32> to vector<4x32x32xf32>
    %c1_27 = arith.constant 1 : index
    %c1_28 = arith.constant 1 : index
    %c0_29 = arith.constant 0 : index
    %c0_30 = arith.constant 0 : index
    %31 = vector.load %arg4[%c1_27, %c1_28, %c0_29, %c0_30] : memref<3x3x8x4xf32, #tpu.memory_space<vmem>>, vector<1x1x8x4xf32>
    %32 = vector.shape_cast %31 : vector<1x1x8x4xf32> to vector<8x4xf32>
    "tpu.trace_start"() <{level = 10 : i32, message = "oc,chw->ohw"}> : () -> ()
    %cst_31 = arith.constant dense<0.000000e+00> : vector<8x32x32xf32>
    %33 = tpu.matmul %32, %30, %cst_31 {dimension_numbers = #tpu.dot_dimension_numbers<[1], [0], [0], [1, 2], [0, 0, 1, 1, 1, 2], [], []>} : vector<8x4xf32>, vector<4x32x32xf32>, vector<8x32x32xf32> -> vector<8x32x32xf32>
    "tpu.trace_stop"() : () -> ()
    %34 = arith.addf %29, %33 : vector<8x32x32xf32>
    %35 = vector.extract_strided_slice %8 {offsets = [0, 1, 2], sizes = [4, 32, 32], strides = [1, 1, 1]} : vector<4x34x34xf32> to vector<4x32x32xf32>
    %c1_32 = arith.constant 1 : index
    %c2_33 = arith.constant 2 : index
    %c0_34 = arith.constant 0 : index
    %c0_35 = arith.constant 0 : index
    %36 = vector.load %arg4[%c1_32, %c2_33, %c0_34, %c0_35] : memref<3x3x8x4xf32, #tpu.memory_space<vmem>>, vector<1x1x8x4xf32>
    %37 = vector.shape_cast %36 : vector<1x1x8x4xf32> to vector<8x4xf32>
    "tpu.trace_start"() <{level = 10 : i32, message = "oc,chw->ohw"}> : () -> ()
    %cst_36 = arith.constant dense<0.000000e+00> : vector<8x32x32xf32>
    %38 = tpu.matmul %37, %35, %cst_36 {dimension_numbers = #tpu.dot_dimension_numbers<[1], [0], [0], [1, 2], [0, 0, 1, 1, 1, 2], [], []>} : vector<8x4xf32>, vector<4x32x32xf32>, vector<8x32x32xf32> -> vector<8x32x32xf32>
    "tpu.trace_stop"() : () -> ()
    %39 = arith.addf %34, %38 : vector<8x32x32xf32>
    %40 = vector.extract_strided_slice %8 {offsets = [0, 2, 0], sizes = [4, 32, 32], strides = [1, 1, 1]} : vector<4x34x34xf32> to vector<4x32x32xf32>
    %c2_37 = arith.constant 2 : index
    %c0_38 = arith.constant 0 : index
    %c0_39 = arith.constant 0 : index
    %c0_40 = arith.constant 0 : index
    %41 = vector.load %arg4[%c2_37, %c0_38, %c0_39, %c0_40] : memref<3x3x8x4xf32, #tpu.memory_space<vmem>>, vector<1x1x8x4xf32>
    %42 = vector.shape_cast %41 : vector<1x1x8x4xf32> to vector<8x4xf32>
    "tpu.trace_start"() <{level = 10 : i32, message = "oc,chw->ohw"}> : () -> ()
    %cst_41 = arith.constant dense<0.000000e+00> : vector<8x32x32xf32>
    %43 = tpu.matmul %42, %40, %cst_41 {dimension_numbers = #tpu.dot_dimension_numbers<[1], [0], [0], [1, 2], [0, 0, 1, 1, 1, 2], [], []>} : vector<8x4xf32>, vector<4x32x32xf32>, vector<8x32x32xf32> -> vector<8x32x32xf32>
    "tpu.trace_stop"() : () -> ()
    %44 = arith.addf %39, %43 : vector<8x32x32xf32>
    %45 = vector.extract_strided_slice %8 {offsets = [0, 2, 1], sizes = [4, 32, 32], strides = [1, 1, 1]} : vector<4x34x34xf32> to vector<4x32x32xf32>
    %c2_42 = arith.constant 2 : index
    %c1_43 = arith.constant 1 : index
    %c0_44 = arith.constant 0 : index
    %c0_45 = arith.constant 0 : index
    %46 = vector.load %arg4[%c2_42, %c1_43, %c0_44, %c0_45] : memref<3x3x8x4xf32, #tpu.memory_space<vmem>>, vector<1x1x8x4xf32>
    %47 = vector.shape_cast %46 : vector<1x1x8x4xf32> to vector<8x4xf32>
    "tpu.trace_start"() <{level = 10 : i32, message = "oc,chw->ohw"}> : () -> ()
    %cst_46 = arith.constant dense<0.000000e+00> : vector<8x32x32xf32>
    %48 = tpu.matmul %47, %45, %cst_46 {dimension_numbers = #tpu.dot_dimension_numbers<[1], [0], [0], [1, 2], [0, 0, 1, 1, 1, 2], [], []>} : vector<8x4xf32>, vector<4x32x32xf32>, vector<8x32x32xf32> -> vector<8x32x32xf32>
    "tpu.trace_stop"() : () -> ()
    %49 = arith.addf %44, %48 : vector<8x32x32xf32>
    %50 = vector.extract_strided_slice %8 {offsets = [0, 2, 2], sizes = [4, 32, 32], strides = [1, 1, 1]} : vector<4x34x34xf32> to vector<4x32x32xf32>
    %c2_47 = arith.constant 2 : index
    %c2_48 = arith.constant 2 : index
    %c0_49 = arith.constant 0 : index
    %c0_50 = arith.constant 0 : index
    %51 = vector.load %arg4[%c2_47, %c2_48, %c0_49, %c0_50] : memref<3x3x8x4xf32, #tpu.memory_space<vmem>>, vector<1x1x8x4xf32>
    %52 = vector.shape_cast %51 : vector<1x1x8x4xf32> to vector<8x4xf32>
    "tpu.trace_start"() <{level = 10 : i32, message = "oc,chw->ohw"}> : () -> ()
    %cst_51 = arith.constant dense<0.000000e+00> : vector<8x32x32xf32>
    %53 = tpu.matmul %52, %50, %cst_51 {dimension_numbers = #tpu.dot_dimension_numbers<[1], [0], [0], [1, 2], [0, 0, 1, 1, 1, 2], [], []>} : vector<8x4xf32>, vector<4x32x32xf32>, vector<8x32x32xf32> -> vector<8x32x32xf32>
    "tpu.trace_stop"() : () -> ()
    %54 = arith.addf %49, %53 : vector<8x32x32xf32>
    %c0_52 = arith.constant 0 : index
    %c0_53 = arith.constant 0 : index
    %55 = vector.load %arg5[%c0_52, %c0_53] : memref<8x1xf32, #tpu.memory_space<vmem>>, vector<8x1xf32>
    %56 = vector.shape_cast %55 : vector<8x1xf32> to vector<8x1x1xf32>
    %57 = vector.broadcast %56 : vector<8x1x1xf32> to vector<8x32x32xf32>
    %58 = arith.addf %54, %57 : vector<8x32x32xf32>
    %cst_54 = arith.constant 0.000000e+00 : f32
    %59 = vector.broadcast %cst_54 : f32 to vector<8x32x32xf32>
    %60 = arith.cmpf oge, %58, %59 : vector<8x32x32xf32>
    %cst_55 = arith.constant 2.000000e-01 : f32
    %61 = vector.broadcast %cst_55 : f32 to vector<8x32x32xf32>
    %62 = arith.mulf %58, %61 : vector<8x32x32xf32>
    %63 = arith.select %60, %58, %62 : vector<8x32x32xi1>, vector<8x32x32xf32>
    %cst_56 = arith.constant 1.41421354 : f32
    %64 = vector.broadcast %cst_56 : f32 to vector<8x32x32xf32>
    %65 = arith.mulf %63, %64 : vector<8x32x32xf32>
    %c0_57 = arith.constant 0 : index
    %c0_58 = arith.constant 0 : index
    %c0_59 = arith.constant 0 : index
    %c0_60 = arith.constant 0 : index
    %66 = vector.load %arg6[%c0_57, %c0_58, %c0_59, %c0_60] : memref<1x8x32x32xf32, #tpu.memory_space<vmem>>, vector<1x8x32x32xf32>
    %67 = vector.shape_cast %66 : vector<1x8x32x32xf32> to vector<8x32x32xf32>
    %68 = vector.shape_cast %65 : vector<8x32x32xf32> to vector<1x8x32x32xf32>
    tpu.vector_store %arg6[%c0_57, %c0_58, %c0_59, %c0_60], %68 {strides = array<i32>} : memref<1x8x32x32xf32, #tpu.memory_space<vmem>>, vector<1x8x32x32xf32>,
    return
  }
  func.func @transform_0(%arg0: i32) -> (i32, i32, i32, i32) {
    %c0_i32 = arith.constant 0 : i32
    %c0_i32_0 = arith.constant 0 : i32
    %c0_i32_1 = arith.constant 0 : i32
    %c0_i32_2 = arith.constant 0 : i32
    return %arg0, %c0_i32, %c0_i32_0, %c0_i32_1 : i32, i32, i32, i32
  }
  func.func @transform_1(%arg0: i32) -> (i32, i32) {
    %c0_i32 = arith.constant 0 : i32
    %c0_i32_0 = arith.constant 0 : i32
    %c0_i32_1 = arith.constant 0 : i32
    return %c0_i32, %c0_i32_0 : i32, i32
  }
  func.func @transform_2(%arg0: i32) -> (i32, i32) {
    %c0_i32 = arith.constant 0 : i32
    %c0_i32_0 = arith.constant 0 : i32
    %c0_i32_1 = arith.constant 0 : i32
    return %c0_i32, %c0_i32_0 : i32, i32
  }
  func.func @transform_3(%arg0: i32) -> (i32, i32, i32, i32) {
    %c0_i32 = arith.constant 0 : i32
    %c0_i32_0 = arith.constant 0 : i32
    %c0_i32_1 = arith.constant 0 : i32
    %c0_i32_2 = arith.constant 0 : i32
    %c0_i32_3 = arith.constant 0 : i32
    return %c0_i32, %c0_i32_0, %c0_i32_1, %c0_i32_2 : i32, i32, i32, i32
  }
  func.func @transform_4(%arg0: i32) -> (i32, i32) {
    %c0_i32 = arith.constant 0 : i32
    %c0_i32_0 = arith.constant 0 : i32
    %c0_i32_1 = arith.constant 0 : i32
    return %c0_i32, %c0_i32_0 : i32, i32
  }
  func.func @transform_5(%arg0: i32) -> (i32, i32, i32, i32) {
    %c0_i32 = arith.constant 0 : i32
    %c0_i32_0 = arith.constant 0 : i32
    %c0_i32_1 = arith.constant 0 : i32
    %c0_i32_2 = arith.constant 0 : i32
    return %arg0, %c0_i32, %c0_i32_0, %c0_i32_1 : i32, i32, i32, i32
  }
}

</mosaic_0001>

<llo_original>
// kernel: tpu_custom_call.1
$region0: #{tpu_custom_call.1}
  #allocation0 [shape = 'u32[]', space=smem, size = 0x4, offset = 0x4, fixed_abs, tag = 'smem constant byte address 0x4 - core index']
  #allocation1 [shape = 'u32[72,128]{1,0:T(1,128)}', space=vmem, size = 0x9000, scoped, tag = 'internal scratch']
  %s0 = inlined_call_operand.vmem [shape: f32[2,4,16,16], index: 0, kind: input, shape index: {}]
  %s1 = inlined_call_operand.hbm [shape: f32[16,34], index: 1, kind: input, shape index: {}]
  %s2 = inlined_call_operand.vmem [shape: f32[34,16], index: 2, kind: input, shape index: {}]
  %s3 = inlined_call_operand.vmem [shape: f32[3,3,8,4], index: 3, kind: input, shape index: {}]
  %s4 = inlined_call_operand.vmem [shape: f32[8,1], index: 4, kind: input, shape index: {}]
  %s5 = inlined_call_operand.hbm [shape: f32[2,8,32,32], index: 5, kind: output, shape index: {}]
  %s6 = sld [smem:[#allocation0]]
  $region57: #{tpu_custom_call.1} parent=0
    _
  %s8 = ssub.s32 1, %s6
  %s9 = scalar_select 0, %s8, %s6
  $region1: #{tpu_custom_call.1} parent=0
    #allocation2 [shape = 'u8[8192]{0}', space=vmem, size = 0x2000, scoped, tag = 'input window, operand 1, single buffered']
    #allocation3 [shape = 's32[2]{0}', space=sflag, size = 0x8, scoped, tag = 'scoped memory for tpu_custom_call.1']
    #allocation4 [shape = 's32[2]{0}', space=sflag, size = 0x8, scoped, tag = 'scoped memory for tpu_custom_call.1']
    #allocation5 [shape = 'u8[262144]{0}', space=vmem, size = 0x40000, scoped, tag = 'output window, operand 0']
    %10 = vsyncpa [#allocation3], 0
    %11 = vsyncpa [#allocation4], 0
    %s12 = scalar_lea.sflag [#allocation4], 1
    %13 = vsyncpa %s12, 0
    loop: start=0, step=1, limit=4
    $region2: #{tpu_custom_call.1} parent=1 // loop_pre_header
      _
    $region3: #{tpu_custom_call.1} parent=1 // loop_header
      %s15 = sphi 0, %s19
      %p16 = scmp.ge.s32.totalorder %s15, 4
      %s25 = sphi 0, %s27
      %s28 = sphi 0, %s25
      %s29 = sphi 0, %s28
      %s45 = sphi 0, %s29
      %s49 = sphi 0, %s49
      %s51 = sphi 0, %s49
      %s52 = sphi 0, %s51
      %s66 = sphi 0, %s52
      %s70 = sphi 0, %s70
      %s72 = sphi 0, %s70
      %s73 = sphi 0, %s72
      %s87 = sphi 0, %s73
      %s91 = sphi 0, %s91
      %s93 = sphi 0, %s91
      %s94 = sphi 0, %s93
      %s108 = sphi 0, %s94
      %s112 = sphi 0, %s112
      %s114 = sphi 0, %s112
      %s115 = sphi 0, %s114
      %s129 = sphi 0, %s115
      %s135 = sphi 0, %s137
      %s138 = sphi 0, %s135
      %s139 = sphi 0, %s138
      %s155 = sphi 0, %s139
    $region4: #{tpu_custom_call.1} parent=1 // loop_header_branch
      %18 = sbr.rel (%p16) target = $region8
    $region5: #{tpu_custom_call.1} parent=1 // loop_body
      %s20 = ssub.s32 %s15, 1
      %s21 = ssub.s32 %s15, 2
      %s22 = sadd.s32 %s15, 1
      %s23 = ssub.s32 %s15, %s22
      %p24 = scmp.eq.s32.totalorder %s23, 0
      %s26 = sadd.s32 %s25, 1
      %s27 = scalar_select %p24, %s25, %s26
      %p30 = pneg %p24
      %p31 = scmp.eq.s32.totalorder %s15, 1
      %p32 = por %p30, %p31
      %p33 = scmp.ne.s32.totalorder %s25, %s28
      %p34 = scmp.eq.s32.totalorder %s15, 0
      %p35 = por %p33, %p34
      %p36 = scmp.ne.s32.totalorder %s25, %s28
      %p37 = scmp.eq.s32.totalorder %s20, 1
      %p38 = por %p36, %p37
      %p39 = scmp.ne.s32.totalorder %s28, %s29
      %p40 = scmp.eq.s32.totalorder %s20, 0
      %p41 = por %p39, %p40
      %p42 = scmp.ne.s32.totalorder %s28, %s29
      %p43 = scmp.eq.s32.totalorder %s21, 1
      %p44 = por %p42, %p43
      %p46 = scmp.ne.s32.totalorder %s29, %s45
      %p47 = scmp.eq.s32.totalorder %s21, 0
      %p48 = por %p46, %p47
      %s50 = sadd.s32 %s49, 1
      %p53 = scmp.eq.s32.totalorder %s15, 1
      %p54 = scmp.ne.s32.totalorder %s49, %s51
      %p55 = scmp.eq.s32.totalorder %s15, 0
      %p56 = por %p54, %p55
      %p57 = scmp.ne.s32.totalorder %s49, %s51
      %p58 = scmp.eq.s32.totalorder %s20, 1
      %p59 = por %p57, %p58
      %p60 = scmp.ne.s32.totalorder %s51, %s52
      %p61 = scmp.eq.s32.totalorder %s20, 0
      %p62 = por %p60, %p61
      %p63 = scmp.ne.s32.totalorder %s51, %s52
      %p64 = scmp.eq.s32.totalorder %s21, 1
      %p65 = por %p63, %p64
      %p67 = scmp.ne.s32.totalorder %s52, %s66
      %p68 = scmp.eq.s32.totalorder %s21, 0
      %p69 = por %p67, %p68
      %s71 = sadd.s32 %s70, 1
      %p74 = scmp.eq.s32.totalorder %s15, 1
      %p75 = scmp.ne.s32.totalorder %s70, %s72
      %p76 = scmp.eq.s32.totalorder %s15, 0
      %p77 = por %p75, %p76
      %p78 = scmp.ne.s32.totalorder %s70, %s72
      %p79 = scmp.eq.s32.totalorder %s20, 1
      %p80 = por %p78, %p79
      %p81 = scmp.ne.s32.totalorder %s72, %s73
      %p82 = scmp.eq.s32.totalorder %s20, 0
      %p83 = por %p81, %p82
      %p84 = scmp.ne.s32.totalorder %s72, %s73
      %p85 = scmp.eq.s32.totalorder %s21, 1
      %p86 = por %p84, %p85
      %p88 = scmp.ne.s32.totalorder %s73, %s87
      %p89 = scmp.eq.s32.totalorder %s21, 0
      %p90 = por %p88, %p89
      %s92 = sadd.s32 %s91, 1
      %p95 = scmp.eq.s32.totalorder %s15, 1
      %p96 = scmp.ne.s32.totalorder %s91, %s93
      %p97 = scmp.eq.s32.totalorder %s15, 0
      %p98 = por %p96, %p97
      %p99 = scmp.ne.s32.totalorder %s91, %s93
      %p100 = scmp.eq.s32.totalorder %s20, 1
      %p101 = por %p99, %p100
      %p102 = scmp.ne.s32.totalorder %s93, %s94
      %p103 = scmp.eq.s32.totalorder %s20, 0
      %p104 = por %p102, %p103
      %p105 = scmp.ne.s32.totalorder %s93, %s94
      %p106 = scmp.eq.s32.totalorder %s21, 1
      %p107 = por %p105, %p106
      %p109 = scmp.ne.s32.totalorder %s94, %s108
      %p110 = scmp.eq.s32.totalorder %s21, 0
      %p111 = por %p109, %p110
      %s113 = sadd.s32 %s112, 1
      %p116 = scmp.eq.s32.totalorder %s15, 1
      %p117 = scmp.ne.s32.totalorder %s112, %s114
      %p118 = scmp.eq.s32.totalorder %s15, 0
      %p119 = por %p117, %p118
      %p120 = scmp.ne.s32.totalorder %s112, %s114
      %p121 = scmp.eq.s32.totalorder %s20, 1
      %p122 = por %p120, %p121
      %p123 = scmp.ne.s32.totalorder %s114, %s115
      %p124 = scmp.eq.s32.totalorder %s20, 0
      %p125 = por %p123, %p124
      %p126 = scmp.ne.s32.totalorder %s114, %s115
      %p127 = scmp.eq.s32.totalorder %s21, 1
      %p128 = por %p126, %p127
      %p130 = scmp.ne.s32.totalorder %s115, %s129
      %p131 = scmp.eq.s32.totalorder %s21, 0
      %p132 = por %p130, %p131
      %s133 = ssub.s32 %s15, %s22
      %p134 = scmp.eq.s32.totalorder %s133, 0
      %s136 = sadd.s32 %s135, 1
      %s137 = scalar_select %p134, %s135, %s136
      %p140 = pneg %p134
      %p141 = scmp.eq.s32.totalorder %s15, 1
      %p142 = por %p140, %p141
      %p143 = scmp.ne.s32.totalorder %s135, %s138
      %p144 = scmp.eq.s32.totalorder %s15, 0
      %p145 = por %p143, %p144
      %p146 = scmp.ne.s32.totalorder %s135, %s138
      %p147 = scmp.eq.s32.totalorder %s20, 1
      %p148 = por %p146, %p147
      %p149 = scmp.ne.s32.totalorder %s138, %s139
      %p150 = scmp.eq.s32.totalorder %s20, 0
      %p151 = por %p149, %p150
      %p152 = scmp.ne.s32.totalorder %s138, %s139
      %p153 = scmp.eq.s32.totalorder %s21, 1
      %p154 = por %p152, %p153
      %p156 = scmp.ne.s32.totalorder %s139, %s155
      %p157 = scmp.eq.s32.totalorder %s21, 0
      %p158 = por %p156, %p157
      %p159 = scmp.le.s32.totalorder 1, %s15
      %p160 = scmp.lt.s32.totalorder %s15, 3
      %p161 = pnand %p159, %p160
      %p162 = pneg %p161
      // Predicated region
      $region9: #{tpu_custom_call.1} parent=5 // pred_check
        _
      $region10: #{tpu_custom_call.1} parent=5 // pred_check_branch
        %164 = sbr.rel (%p161) target = $region12
      $region11: #{tpu_custom_call.1} parent=5 // pred_region
        %s165 = ssub.s32 %s15, 1
        // Predicated region
        $region13: #{tpu_custom_call.1} parent=11 // pred_check
          %p166 = pneg %p62
        $region14: #{tpu_custom_call.1} parent=11 // pred_check_branch
          %168 = sbr.rel (%p166) target = $region16
        $region15: #{tpu_custom_call.1} parent=11 // pred_region
          %170 = vsyncadd [#allocation3], 0
          %s171 = sshll.u32 %s1, 4
          %s172 = int_to_ptr.hbm [resolvable:$true] %s171
          %s173 = sshll.u32 [#allocation2], 4
          %s174 = int_to_ptr.vmem [resolvable:$true] %s173
          %179 = dma.hbm_to_vmem [thread:$0]  %s172, 256, %s174, [#allocation3], 128, 128, 8
        $region16: #{tpu_custom_call.1} parent=11 // pred_fallthru
          _
        // Predicated region
        $region17: #{tpu_custom_call.1} parent=11 // pred_check
          %p180 = pneg %p83
        $region18: #{tpu_custom_call.1} parent=11 // pred_check_branch
          %182 = sbr.rel (%p180) target = $region20
        $region19: #{tpu_custom_call.1} parent=11 // pred_region
          _
        $region20: #{tpu_custom_call.1} parent=11 // pred_fallthru
          _
        // Predicated region
        $region21: #{tpu_custom_call.1} parent=11 // pred_check
          %p183 = pneg %p104
        $region22: #{tpu_custom_call.1} parent=11 // pred_check_branch
          %185 = sbr.rel (%p183) target = $region24
        $region23: #{tpu_custom_call.1} parent=11 // pred_region
          _
        $region24: #{tpu_custom_call.1} parent=11 // pred_fallthru
          _
        // Predicated region
        $region25: #{tpu_custom_call.1} parent=11 // pred_check
          %p186 = pneg %p125
        $region26: #{tpu_custom_call.1} parent=11 // pred_check_branch
          %188 = sbr.rel (%p186) target = $region28
        $region27: #{tpu_custom_call.1} parent=11 // pred_region
          _
        $region28: #{tpu_custom_call.1} parent=11 // pred_fallthru
          _
      $region12: #{tpu_custom_call.1} parent=5 // pred_fallthru
        _
      %p189 = scmp.lt.s32.totalorder %s15, 2
      // Predicated region
      $region29: #{tpu_custom_call.1} parent=5 // pred_check
        %p190 = pneg %p189
      $region30: #{tpu_custom_call.1} parent=5 // pred_check_branch
        %192 = sbr.rel (%p190) target = $region32
      $region31: #{tpu_custom_call.1} parent=5 // pred_region
        // Predicated region
        $region33: #{tpu_custom_call.1} parent=31 // pred_check
          %p193 = pneg %p35
        $region34: #{tpu_custom_call.1} parent=31 // pred_check_branch
          %195 = sbr.rel (%p193) target = $region36
        $region35: #{tpu_custom_call.1} parent=31 // pred_region
          %p196 = scmp.lt.s32.totalorder %s15, 1
          %s197 = scalar_select %p196, %s15, 1
          %s198 = smul.addr %s197, 8
          %s199 = smul.addr %s198, 8
          %s200 = scalar_lea.vmem %s0, %s199
        $region36: #{tpu_custom_call.1} parent=31 // pred_fallthru
          _
      $region32: #{tpu_custom_call.1} parent=5 // pred_fallthru
        _
      %p201 = scmp.le.s32.totalorder 1, %s15
      %p202 = scmp.lt.s32.totalorder %s15, 3
      %p203 = pnand %p201, %p202
      %p204 = pneg %p203
      // Predicated region
      $region37: #{tpu_custom_call.1} parent=5 // pred_check
        _
      $region38: #{tpu_custom_call.1} parent=5 // pred_check_branch
        %206 = sbr.rel (%p203) target = $region40
      $region39: #{tpu_custom_call.1} parent=5 // pred_region
        %s207 = ssub.s32 %s15, 1
        // Predicated region
        $region41: #{tpu_custom_call.1} parent=39 // pred_check
          %p208 = pneg %p62
        $region42: #{tpu_custom_call.1} parent=39 // pred_check_branch
          %210 = sbr.rel (%p208) target = $region44
        $region43: #{tpu_custom_call.1} parent=39 // pred_region
          %212 = dma.done [#allocation3], 256
        $region44: #{tpu_custom_call.1} parent=39 // pred_fallthru
          _
        %p213 = scmp.lt.s32.totalorder %s20, 1
        %s214 = scalar_select %p213, %s20, 1
        %s215 = smul.addr %s214, 8
        %s216 = smul.addr %s215, 8
        %s217 = scalar_lea.vmem %s0, %s216
        %p218 = pneg %p41
        %p219 = pneg %p38
        %p220 = pneg %p62
        %p221 = pneg %p59
        %p222 = pneg %p83
        %p223 = pneg %p80
        %p224 = pneg %p104
        %p225 = pneg %p101
        %p226 = pneg %p125
        %p227 = pneg %p122
        %p228 = pneg %p151
        %p229 = pneg %p148
        %s230 = sand.u32 %s138, 1
        %s231 = scalar_lea.sflag [#allocation4], %s230
        %s232 = sand.u32 %s138, 1
        %s233 = smul.addr %s232, 256
        %s234 = scalar_lea.vmem [#allocation5], %s233
        %p235 = scmp.lt.s32.totalorder %s20, 1
        %s236 = scalar_select %p235, %s20, 1
        %s237 = smul.addr %s236, 8
        %s238 = smul.addr %s237, 8
        %s239 = scalar_lea.vmem %s0, %s238
        %v240 = vld [vmem:[%s239] sm:$0xff]
        %v241 = vld [vmem:[%s239 + $0x8] sm:$0xff]
        %v242 = vld [vmem:[%s239 + $0x10] sm:$0xff]
        %v243 = vld [vmem:[%s239 + $0x18] sm:$0xff]
        %v244 = vld [vmem:[%s239 + $0x20] sm:$0xff]
        %v245 = vld [vmem:[%s239 + $0x28] sm:$0xff]
        %v246 = vld [vmem:[%s239 + $0x30] sm:$0xff]
        %v247 = vld [vmem:[%s239 + $0x38] sm:$0xff]
        %v248 = vld [vmem:[#allocation2] sm:$0xff]
        %v249 = vld [vmem:[#allocation2 + $0x8] sm:$0xff]
        %vm250 = vcmask 130048
        %v252 = vsel %vm250, %v240, 0
        %v255 = vsel %vm250, %v241, 0
        %v258 = vsel %vm250, %v242, 0
        %v261 = vsel %vm250, %v243, 0
        %v264 = vsel %vm250, %v244, 0
        %v267 = vsel %vm250, %v245, 0
        %v270 = vsel %vm250, %v246, 0
        %v273 = vsel %vm250, %v247, 0
        %275 = vmatpush.msra.mxu0 0.0
        %276 = vmatpush.msra.mxu0 0.0
        %277 = vmatpush.msra.mxu0 0.0
        %278 = vmatpush.msra.mxu0 0.0
        %279 = vmatpush.msra.mxu0 0.0
        %280 = vmatpush.msra.mxu0 0.0
        %281 = vmatpush.msra.mxu0 0.0
        %282 = vmatpush.msra.mxu0 0.0
        %283 = vmatpush.msra.mxu0 0.0
        %284 = vmatpush.msra.mxu0 0.0
        %285 = vmatpush.msra.mxu0 0.0
        %286 = vmatpush.msra.mxu0 0.0
        %287 = vmatpush.msra.mxu0 0.0
        %288 = vmatpush.msra.mxu0 0.0
        %289 = vmatpush.msra.mxu0 %v249
        %290 = vmatpush.msra.mxu0 %v248
        %291 = vmatmul.f32.gmra.mxu0 %v252
        %v292 = vpop.f32.mrf.mxu0
        %v293 = vadd.f32 0.0, %v292
        %294 = vmatmul.f32.gmra.mxu0 %v255
        %v295 = vpop.f32.mrf.mxu0
        %v296 = vadd.f32 0.0, %v295
        %297 = vmatmul.f32.gmra.mxu0 %v258
        %v298 = vpop.f32.mrf.mxu0
        %v299 = vadd.f32 0.0, %v298
        %300 = vmatmul.f32.gmra.mxu0 %v261
        %v301 = vpop.f32.mrf.mxu0
        %v302 = vadd.f32 0.0, %v301
        %303 = vmatmul.f32.gmra.mxu0 %v264
        %v304 = vpop.f32.mrf.mxu0
        %v305 = vadd.f32 0.0, %v304
        %306 = vmatmul.f32.gmra.mxu0 %v267
        %v307 = vpop.f32.mrf.mxu0
        %v308 = vadd.f32 0.0, %v307
        %309 = vmatmul.f32.gmra.mxu0 %v270
        %v310 = vpop.f32.mrf.mxu0
        %v311 = vadd.f32 0.0, %v310
        %312 = vmatmul.f32.gmra.mxu0 %v273
        %v313 = vpop.f32.mrf.mxu0
        %v314 = vadd.f32 0.0, %v313
        %315 = vdwg.mxu0
        %v316 = vld [vmem:[%s2] sm:$0xff]
        %v317 = vld [vmem:[%s2 + $0x8] sm:$0xff]
        %v318 = vld [vmem:[%s2 + $0x10] sm:$0xff]
        %v319 = vld [vmem:[%s2 + $0x18] sm:$0xff]
        %v320 = vld [vmem:[%s2 + $0x20] sm:$0x3]
        %321 = vxpose.xlu0.b32.start [1/16] %v293, 128
        %322 = vxpose.xlu0.b32.cont [2/16] %v296, 128
        %323 = vxpose.xlu0.b32.cont [3/16] 0.0, 128
        %324 = vxpose.xlu0.b32.cont [4/16] 0.0, 128
        %325 = vxpose.xlu0.b32.cont [5/16] 0.0, 128
        %326 = vxpose.xlu0.b32.cont [6/16] 0.0, 128
        %327 = vxpose.xlu0.b32.cont [7/16] 0.0, 128
        %328 = vxpose.xlu0.b32.cont [8/16] 0.0, 128
        %329 = vxpose.xlu0.b32.cont [9/16] 0.0, 128
        %330 = vxpose.xlu0.b32.cont [10/16] 0.0, 128
        %331 = vxpose.xlu0.b32.cont [11/16] 0.0, 128
        %332 = vxpose.xlu0.b32.cont [12/16] 0.0, 128
        %333 = vxpose.xlu0.b32.cont [13/16] 0.0, 128
        %334 = vxpose.xlu0.b32.cont [14/16] 0.0, 128
        %335 = vxpose.xlu0.b32.cont [15/16] 0.0, 128
        %336 = vxpose.xlu0.b32.end [16/16] 0.0, 128
        %v337 = vpop.trf.xlu0
        %v338 = vpop.trf.xlu0
        %v339 = vpop.trf.xlu0
        %v340 = vpop.trf.xlu0
        %v341 = vpop.trf.xlu0
        %v342 = vpop.trf.xlu0
        %v343 = vpop.trf.xlu0
        %v344 = vpop.trf.xlu0
        %v345 = vpop.trf.xlu0
        %v346 = vpop.trf.xlu0
        %v347 = vpop.trf.xlu0
        %v348 = vpop.trf.xlu0
        %v349 = vpop.trf.xlu0
        %v350 = vpop.trf.xlu0
        %v351 = vpop.trf.xlu0
        %v352 = vpop.trf.xlu0
        %353 = vxpose.xlu0.b32.start [1/16] %v299, 128
        %354 = vxpose.xlu0.b32.cont [2/16] %v302, 128
        %355 = vxpose.xlu0.b32.cont [3/16] 0.0, 128
        %356 = vxpose.xlu0.b32.cont [4/16] 0.0, 128
        %357 = vxpose.xlu0.b32.cont [5/16] 0.0, 128
        %358 = vxpose.xlu0.b32.cont [6/16] 0.0, 128
        %359 = vxpose.xlu0.b32.cont [7/16] 0.0, 128
        %360 = vxpose.xlu0.b32.cont [8/16] 0.0, 128
        %361 = vxpose.xlu0.b32.cont [9/16] 0.0, 128
        %362 = vxpose.xlu0.b32.cont [10/16] 0.0, 128
        %363 = vxpose.xlu0.b32.cont [11/16] 0.0, 128
        %364 = vxpose.xlu0.b32.cont [12/16] 0.0, 128
        %365 = vxpose.xlu0.b32.cont [13/16] 0.0, 128
        %366 = vxpose.xlu0.b32.cont [14/16] 0.0, 128
        %367 = vxpose.xlu0.b32.cont [15/16] 0.0, 128
        %368 = vxpose.xlu0.b32.end [16/16] 0.0, 128
        %v369 = vpop.trf.xlu0
        %v370 = vpop.trf.xlu0
        %v371 = vpop.trf.xlu0
        %v372 = vpop.trf.xlu0
        %v373 = vpop.trf.xlu0
        %v374 = vpop.trf.xlu0
        %v375 = vpop.trf.xlu0
        %v376 = vpop.trf.xlu0
        %v377 = vpop.trf.xlu0
        %v378 = vpop.trf.xlu0
        %v379 = vpop.trf.xlu0
        %v380 = vpop.trf.xlu0
        %v381 = vpop.trf.xlu0
        %v382 = vpop.trf.xlu0
        %v383 = vpop.trf.xlu0
        %v384 = vpop.trf.xlu0
        %385 = vxpose.xlu0.b32.start [1/16] %v305, 128
        %386 = vxpose.xlu0.b32.cont [2/16] %v308, 128
        %387 = vxpose.xlu0.b32.cont [3/16] 0.0, 128
        %388 = vxpose.xlu0.b32.cont [4/16] 0.0, 128
        %389 = vxpose.xlu0.b32.cont [5/16] 0.0, 128
        %390 = vxpose.xlu0.b32.cont [6/16] 0.0, 128
        %391 = vxpose.xlu0.b32.cont [7/16] 0.0, 128
        %392 = vxpose.xlu0.b32.cont [8/16] 0.0, 128
        %393 = vxpose.xlu0.b32.cont [9/16] 0.0, 128
        %394 = vxpose.xlu0.b32.cont [10/16] 0.0, 128
        %395 = vxpose.xlu0.b32.cont [11/16] 0.0, 128
        %396 = vxpose.xlu0.b32.cont [12/16] 0.0, 128
        %397 = vxpose.xlu0.b32.cont [13/16] 0.0, 128
        %398 = vxpose.xlu0.b32.cont [14/16] 0.0, 128
        %399 = vxpose.xlu0.b32.cont [15/16] 0.0, 128
        %400 = vxpose.xlu0.b32.end [16/16] 0.0, 128
        %v401 = vpop.trf.xlu0
        %v402 = vpop.trf.xlu0
        %v403 = vpop.trf.xlu0
        %v404 = vpop.trf.xlu0
        %v405 = vpop.trf.xlu0
        %v406 = vpop.trf.xlu0
        %v407 = vpop.trf.xlu0
        %v408 = vpop.trf.xlu0
        %v409 = vpop.trf.xlu0
        %v410 = vpop.trf.xlu0
        %v411 = vpop.trf.xlu0
        %v412 = vpop.trf.xlu0
        %v413 = vpop.trf.xlu0
        %v414 = vpop.trf.xlu0
        %v415 = vpop.trf.xlu0
        %v416 = vpop.trf.xlu0
        %417 = vxpose.xlu0.b32.start [1/16] %v311, 128
        %418 = vxpose.xlu0.b32.cont [2/16] %v314, 128
        %419 = vxpose.xlu0.b32.cont [3/16] 0.0, 128
        %420 = vxpose.xlu0.b32.cont [4/16] 0.0, 128
        %421 = vxpose.xlu0.b32.cont [5/16] 0.0, 128
        %422 = vxpose.xlu0.b32.cont [6/16] 0.0, 128
        %423 = vxpose.xlu0.b32.cont [7/16] 0.0, 128
        %424 = vxpose.xlu0.b32.cont [8/16] 0.0, 128
        %425 = vxpose.xlu0.b32.cont [9/16] 0.0, 128
        %426 = vxpose.xlu0.b32.cont [10/16] 0.0, 128
        %427 = vxpose.xlu0.b32.cont [11/16] 0.0, 128
        %428 = vxpose.xlu0.b32.cont [12/16] 0.0, 128
        %429 = vxpose.xlu0.b32.cont [13/16] 0.0, 128
        %430 = vxpose.xlu0.b32.cont [14/16] 0.0, 128
        %431 = vxpose.xlu0.b32.cont [15/16] 0.0, 128
        %432 = vxpose.xlu0.b32.end [16/16] 0.0, 128
        %v433 = vpop.trf.xlu0
        %v434 = vpop.trf.xlu0
        %v435 = vpop.trf.xlu0
        %v436 = vpop.trf.xlu0
        %v437 = vpop.trf.xlu0
        %v438 = vpop.trf.xlu0
        %v439 = vpop.trf.xlu0
        %v440 = vpop.trf.xlu0
        %v441 = vpop.trf.xlu0
        %v442 = vpop.trf.xlu0
        %v443 = vpop.trf.xlu0
        %v444 = vpop.trf.xlu0
        %v445 = vpop.trf.xlu0
        %v446 = vpop.trf.xlu0
        %v447 = vpop.trf.xlu0
        %v448 = vpop.trf.xlu0
        %v469 = vrot.slane %v337, 2
        %v470 = vrot.slane %v337, 4
        %v471 = vrot.slane %v337, 6
        %v472 = vrot.slane %v338, 2
        %v473 = vrot.slane %v338, 4
        %v474 = vrot.slane %v338, 6
        %v475 = vrot.slane %v339, 2
        %v476 = vrot.slane %v339, 4
        %v477 = vrot.slane %v339, 6
        %v478 = vrot.slane %v340, 2
        %v479 = vrot.slane %v340, 4
        %v480 = vrot.slane %v340, 6
        %v481 = vrot.slane %v369, 2
        %v482 = vrot.slane %v369, 4
        %v483 = vrot.slane %v369, 6
        %v484 = vrot.slane %v370, 2
        %v485 = vrot.slane %v370, 4
        %v486 = vrot.slane %v370, 6
        %v487 = vrot.slane %v371, 2
        %v488 = vrot.slane %v371, 4
        %v489 = vrot.slane %v371, 6
        %v490 = vrot.slane %v372, 2
        %v491 = vrot.slane %v372, 4
        %v492 = vrot.slane %v372, 6
        %v493 = vrot.slane %v401, 2
        %v494 = vrot.slane %v401, 4
        %v495 = vrot.slane %v401, 6
        %v496 = vrot.slane %v402, 2
        %v497 = vrot.slane %v402, 4
        %v498 = vrot.slane %v402, 6
        %v499 = vrot.slane %v403, 2
        %v500 = vrot.slane %v403, 4
        %v501 = vrot.slane %v403, 6
        %v502 = vrot.slane %v404, 2
        %v503 = vrot.slane %v404, 4
        %v504 = vrot.slane %v404, 6
        %v505 = vrot.slane %v433, 2
        %v506 = vrot.slane %v433, 4
        %v507 = vrot.slane %v433, 6
        %v508 = vrot.slane %v434, 2
        %v509 = vrot.slane %v434, 4
        %v510 = vrot.slane %v434, 6
        %v511 = vrot.slane %v435, 2
        %v512 = vrot.slane %v435, 4
        %v513 = vrot.slane %v435, 6
        %v514 = vrot.slane %v436, 2
        %v515 = vrot.slane %v436, 4
        %v516 = vrot.slane %v436, 6
        %517 = vst [vmem:[#allocation1] ss:$4 sm:$0xff] %v337
        %s518 = scalar_lea.vmem [#allocation1], 1
        %519 = vst [vmem:[%s518] ss:$4 sm:$0xff] %v469
        %s520 = scalar_lea.vmem [#allocation1], 2
        %521 = vst [vmem:[%s520] ss:$4 sm:$0xff] %v470
        %s522 = scalar_lea.vmem [#allocation1], 3
        %523 = vst [vmem:[%s522] ss:$4 sm:$0xff] %v471
        %s524 = scalar_lea.vmem [#allocation1], 32
        %525 = vst [vmem:[%s524] ss:$4 sm:$0xff] %v338
        %s526 = scalar_lea.vmem [#allocation1], 33
        %527 = vst [vmem:[%s526] ss:$4 sm:$0xff] %v472
        %s528 = scalar_lea.vmem [#allocation1], 34
        %529 = vst [vmem:[%s528] ss:$4 sm:$0xff] %v473
        %s530 = scalar_lea.vmem [#allocation1], 35
        %531 = vst [vmem:[%s530] ss:$4 sm:$0xff] %v474
        %v532 = vld.sshfl [vmem:[#allocation1] sm:$0xff pattern:$0x73625140]
        %v533 = vld.sshfl [vmem:[#allocation1 + $0x20] sm:$0xff pattern:$0x73625140]
        %534 = vst [vmem:[#allocation1] ss:$4 sm:$0xff] %v339
        %535 = vst [vmem:[%s518] ss:$4 sm:$0xff] %v475
        %536 = vst [vmem:[%s520] ss:$4 sm:$0xff] %v476
        %537 = vst [vmem:[%s522] ss:$4 sm:$0xff] %v477
        %538 = vst [vmem:[%s524] ss:$4 sm:$0xff] %v340
        %539 = vst [vmem:[%s526] ss:$4 sm:$0xff] %v478
        %540 = vst [vmem:[%s528] ss:$4 sm:$0xff] %v479
        %541 = vst [vmem:[%s530] ss:$4 sm:$0xff] %v480
        %v542 = vld.sshfl [vmem:[#allocation1] sm:$0xff pattern:$0x73625140]
        %v543 = vld.sshfl [vmem:[#allocation1 + $0x20] sm:$0xff pattern:$0x73625140]
        %544 = vst [vmem:[#allocation1] ss:$4 sm:$0xff] %v341
        %545 = vst [vmem:[%s518] ss:$4 sm:$0xff] %v369
        %546 = vst [vmem:[%s520] ss:$4 sm:$0xff] %v481
        %547 = vst [vmem:[%s522] ss:$4 sm:$0xff] %v482
        %548 = vst [vmem:[%s524] ss:$4 sm:$0xff] %v483
        %549 = vst [vmem:[%s526] ss:$4 sm:$0xff] %v370
        %550 = vst [vmem:[%s528] ss:$4 sm:$0xff] %v484
        %551 = vst [vmem:[%s530] ss:$4 sm:$0xff] %v485
        %v552 = vld.sshfl [vmem:[#allocation1] sm:$0xff pattern:$0x73625140]
        %v553 = vld.sshfl [vmem:[#allocation1 + $0x20] sm:$0xff pattern:$0x73625140]
        %554 = vst [vmem:[#allocation1] ss:$4 sm:$0xff] %v486
        %555 = vst [vmem:[%s518] ss:$4 sm:$0xff] %v371
        %556 = vst [vmem:[%s520] ss:$4 sm:$0xff] %v487
        %557 = vst [vmem:[%s522] ss:$4 sm:$0xff] %v488
        %558 = vst [vmem:[%s524] ss:$4 sm:$0xff] %v489
        %559 = vst [vmem:[%s526] ss:$4 sm:$0xff] %v372
        %560 = vst [vmem:[%s528] ss:$4 sm:$0xff] %v490
        %561 = vst [vmem:[%s530] ss:$4 sm:$0xff] %v491
        %v562 = vld.sshfl [vmem:[#allocation1] sm:$0xff pattern:$0x73625140]
        %v563 = vld.sshfl [vmem:[#allocation1 + $0x20] sm:$0xff pattern:$0x73625140]
        %564 = vst [vmem:[#allocation1] ss:$4 sm:$0xff] %v492
        %565 = vst [vmem:[%s518] ss:$4 sm:$0xff] %v373
        %566 = vst [vmem:[%s520] ss:$4 sm:$0xff] %v401
        %567 = vst [vmem:[%s522] ss:$4 sm:$0xff] %v493
        %568 = vst [vmem:[%s524] ss:$4 sm:$0xff] %v494
        %569 = vst [vmem:[%s526] ss:$4 sm:$0xff] %v495
        %570 = vst [vmem:[%s528] ss:$4 sm:$0xff] %v402
        %571 = vst [vmem:[%s530] ss:$4 sm:$0xff] %v496
        %v572 = vld.sshfl [vmem:[#allocation1] sm:$0xff pattern:$0x73625140]
        %v573 = vld.sshfl [vmem:[#allocation1 + $0x20] sm:$0xff pattern:$0x73625140]
        %574 = vst [vmem:[#allocation1] ss:$4 sm:$0xff] %v497
        %575 = vst [vmem:[%s518] ss:$4 sm:$0xff] %v498
        %576 = vst [vmem:[%s520] ss:$4 sm:$0xff] %v403
        %577 = vst [vmem:[%s522] ss:$4 sm:$0xff] %v499
        %578 = vst [vmem:[%s524] ss:$4 sm:$0xff] %v500
        %579 = vst [vmem:[%s526] ss:$4 sm:$0xff] %v501
        %580 = vst [vmem:[%s528] ss:$4 sm:$0xff] %v404
        %581 = vst [vmem:[%s530] ss:$4 sm:$0xff] %v502
        %v582 = vld.sshfl [vmem:[#allocation1] sm:$0xff pattern:$0x73625140]
        %v583 = vld.sshfl [vmem:[#allocation1 + $0x20] sm:$0xff pattern:$0x73625140]
        %584 = vst [vmem:[#allocation1] ss:$4 sm:$0xff] %v503
        %585 = vst [vmem:[%s518] ss:$4 sm:$0xff] %v504
        %586 = vst [vmem:[%s520] ss:$4 sm:$0xff] %v405
        %587 = vst [vmem:[%s522] ss:$4 sm:$0xff] %v433
        %588 = vst [vmem:[%s524] ss:$4 sm:$0xff] %v505
        %589 = vst [vmem:[%s526] ss:$4 sm:$0xff] %v506
        %590 = vst [vmem:[%s528] ss:$4 sm:$0xff] %v507
        %591 = vst [vmem:[%s530] ss:$4 sm:$0xff] %v434
        %v592 = vld.sshfl [vmem:[#allocation1] sm:$0xff pattern:$0x73625140]
        %v593 = vld.sshfl [vmem:[#allocation1 + $0x20] sm:$0xff pattern:$0x73625140]
        %594 = vst [vmem:[#allocation1] ss:$4 sm:$0xff] %v508
        %595 = vst [vmem:[%s518] ss:$4 sm:$0xff] %v509
        %596 = vst [vmem:[%s520] ss:$4 sm:$0xff] %v510
        %597 = vst [vmem:[%s522] ss:$4 sm:$0xff] %v435
        %598 = vst [vmem:[%s524] ss:$4 sm:$0xff] %v511
        %599 = vst [vmem:[%s526] ss:$4 sm:$0xff] %v512
        %600 = vst [vmem:[%s528] ss:$4 sm:$0xff] %v513
        %601 = vst [vmem:[%s530] ss:$4 sm:$0xff] %v436
        %v602 = vld.sshfl [vmem:[#allocation1] sm:$0xff pattern:$0x73625140]
        %v603 = vld.sshfl [vmem:[#allocation1 + $0x20] sm:$0xff pattern:$0x73625140]
        %604 = vst [vmem:[#allocation1] ss:$4 sm:$0xff] %v514
        %605 = vst [vmem:[%s518] ss:$4 sm:$0xff] %v515
        %606 = vst [vmem:[%s520] ss:$4 sm:$0xff] %v516
        %607 = vst [vmem:[%s522] ss:$4 sm:$0xff] %v437
        %v608 = vld.sshfl [vmem:[#allocation1] sm:$0xff pattern:$0x73625140]
        %v609 = vsel %vm250, %v532, 0
        %v611 = vsel %vm250, %v533, 0
        %v613 = vsel %vm250, %v542, 0
        %v615 = vsel %vm250, %v543, 0
        %v617 = vsel %vm250, %v552, 0
        %v619 = vsel %vm250, %v553, 0
        %v621 = vsel %vm250, %v562, 0
        %v623 = vsel %vm250, %v563, 0
        %v625 = vsel %vm250, %v572, 0
        %v627 = vsel %vm250, %v573, 0
        %v629 = vsel %vm250, %v582, 0
        %v631 = vsel %vm250, %v583, 0
        %v633 = vsel %vm250, %v592, 0
        %v635 = vsel %vm250, %v593, 0
        %v637 = vsel %vm250, %v602, 0
        %v639 = vsel %vm250, %v603, 0
        %v641 = vsel %vm250, %v608, 0
        %v644 = vsel %vm250, %v316, 0
        %v647 = vsel %vm250, %v317, 0
        %v650 = vsel %vm250, %v318, 0
        %v653 = vsel %vm250, %v319, 0
        %v656 = vsel %vm250, %v320, 0
        %658 = vmatpush.xpose.msra.mxu0 0.0
        %659 = vmatpush.xpose.msra.mxu0 0.0
        %660 = vmatpush.xpose.msra.mxu0 0.0
        %661 = vmatpush.xpose.msra.mxu0 0.0
        %662 = vmatpush.xpose.msra.mxu0 0.0
        %663 = vmatpush.xpose.msra.mxu0 0.0
        %664 = vmatpush.xpose.msra.mxu0 0.0
        %665 = vmatpush.xpose.msra.mxu0 0.0
        %666 = vmatpush.xpose.msra.mxu0 0.0
        %667 = vmatpush.xpose.msra.mxu0 0.0
        %668 = vmatpush.xpose.msra.mxu0 0.0
        %669 = vmatpush.xpose.msra.mxu0 %v656
        %670 = vmatpush.xpose.msra.mxu0 %v653
        %671 = vmatpush.xpose.msra.mxu0 %v650
        %672 = vmatpush.xpose.msra.mxu0 %v647
        %673 = vmatpush.xpose.msra.mxu0 %v644
        %674 = vmatmul.f32.gmra.mxu0 %v609
        %v675 = vpop.f32.mrf.mxu0
        %v676 = vadd.f32 0.0, %v675
        %677 = vmatmul.f32.gmra.mxu0 %v611
        %v678 = vpop.f32.mrf.mxu0
        %v679 = vadd.f32 0.0, %v678
        %680 = vmatmul.f32.gmra.mxu0 %v613
        %v681 = vpop.f32.mrf.mxu0
        %v682 = vadd.f32 0.0, %v681
        %683 = vmatmul.f32.gmra.mxu0 %v615
        %v684 = vpop.f32.mrf.mxu0
        %v685 = vadd.f32 0.0, %v684
        %686 = vmatmul.f32.gmra.mxu0 %v617
        %v687 = vpop.f32.mrf.mxu0
        %v688 = vadd.f32 0.0, %v687
        %689 = vmatmul.f32.gmra.mxu0 %v619
        %v690 = vpop.f32.mrf.mxu0
        %v691 = vadd.f32 0.0, %v690
        %692 = vmatmul.f32.gmra.mxu0 %v621
        %v693 = vpop.f32.mrf.mxu0
        %v694 = vadd.f32 0.0, %v693
        %695 = vmatmul.f32.gmra.mxu0 %v623
        %v696 = vpop.f32.mrf.mxu0
        %v697 = vadd.f32 0.0, %v696
        %698 = vmatmul.f32.gmra.mxu0 %v625
        %v699 = vpop.f32.mrf.mxu0
        %v700 = vadd.f32 0.0, %v699
        %701 = vmatmul.f32.gmra.mxu0 %v627
        %v702 = vpop.f32.mrf.mxu0
        %v703 = vadd.f32 0.0, %v702
        %704 = vmatmul.f32.gmra.mxu0 %v629
        %v705 = vpop.f32.mrf.mxu0
        %v706 = vadd.f32 0.0, %v705
        %707 = vmatmul.f32.gmra.mxu0 %v631
        %v708 = vpop.f32.mrf.mxu0
        %v709 = vadd.f32 0.0, %v708
        %710 = vmatmul.f32.gmra.mxu0 %v633
        %v711 = vpop.f32.mrf.mxu0
        %v712 = vadd.f32 0.0, %v711
        %713 = vmatmul.f32.gmra.mxu0 %v635
        %v714 = vpop.f32.mrf.mxu0
        %v715 = vadd.f32 0.0, %v714
        %716 = vmatmul.f32.gmra.mxu0 %v637
        %v717 = vpop.f32.mrf.mxu0
        %v718 = vadd.f32 0.0, %v717
        %719 = vmatmul.f32.gmra.mxu0 %v639
        %v720 = vpop.f32.mrf.mxu0
        %v721 = vadd.f32 0.0, %v720
        %722 = vmatmul.f32.gmra.mxu0 %v641
        %v723 = vpop.f32.mrf.mxu0
        %v724 = vadd.f32 0.0, %v723
        %725 = vdwg.mxu0
        %v743 = vrot.slane %v676, 2
        %v744 = vrot.slane %v676, 4
        %v745 = vrot.slane %v676, 6
        %v746 = vrot.slane %v679, 2
        %v747 = vrot.slane %v679, 4
        %v748 = vrot.slane %v679, 6
        %v749 = vrot.slane %v682, 2
        %v750 = vrot.slane %v682, 4
        %v751 = vrot.slane %v682, 6
        %v752 = vrot.slane %v685, 2
        %v753 = vrot.slane %v685, 4
        %v754 = vrot.slane %v685, 6
        %v755 = vrot.slane %v688, 2
        %v756 = vrot.slane %v688, 4
        %v757 = vrot.slane %v688, 6
        %v758 = vrot.slane %v691, 2
        %v759 = vrot.slane %v691, 4
        %v760 = vrot.slane %v691, 6
        %v761 = vrot.slane %v694, 2
        %v762 = vrot.slane %v694, 4
        %v763 = vrot.slane %v694, 6
        %v764 = vrot.slane %v697, 2
        %v765 = vrot.slane %v697, 4
        %v766 = vrot.slane %v697, 6
        %v767 = vrot.slane %v700, 2
        %v768 = vrot.slane %v700, 4
        %v769 = vrot.slane %v700, 6
        %v770 = vrot.slane %v703, 2
        %v771 = vrot.slane %v703, 4
        %v772 = vrot.slane %v703, 6
        %v773 = vrot.slane %v706, 2
        %v774 = vrot.slane %v706, 4
        %v775 = vrot.slane %v706, 6
        %v776 = vrot.slane %v709, 2
        %v777 = vrot.slane %v709, 4
        %v778 = vrot.slane %v709, 6
        %v779 = vrot.slane %v712, 2
        %v780 = vrot.slane %v712, 4
        %v781 = vrot.slane %v712, 6
        %v782 = vrot.slane %v715, 2
        %v783 = vrot.slane %v715, 4
        %v784 = vrot.slane %v715, 6
        %v785 = vrot.slane %v718, 2
        %v786 = vrot.slane %v718, 4
        %v787 = vrot.slane %v718, 6
        %v788 = vrot.slane %v721, 2
        %v789 = vrot.slane %v721, 4
        %v790 = vrot.slane %v721, 6
        %v791 = vrot.slane %v724, 2
        %v792 = vrot.slane %v724, 4
        %v793 = vrot.slane %v724, 6
        %794 = vst [vmem:[#allocation1] ss:$4 sm:$0xff] %v676
        %s795 = scalar_lea.vmem [#allocation1], 1
        %796 = vst [vmem:[%s795] ss:$4 sm:$0xff] %v743
        %s797 = scalar_lea.vmem [#allocation1], 2
        %798 = vst [vmem:[%s797] ss:$4 sm:$0xff] %v744
        %s799 = scalar_lea.vmem [#allocation1], 3
        %800 = vst [vmem:[%s799] ss:$4 sm:$0xff] %v745
        %s801 = scalar_lea.vmem [#allocation1], 32
        %802 = vst [vmem:[%s801] ss:$4 sm:$0xff] %v679
        %s803 = scalar_lea.vmem [#allocation1], 33
        %804 = vst [vmem:[%s803] ss:$4 sm:$0xff] %v746
        %s805 = scalar_lea.vmem [#allocation1], 34
        %806 = vst [vmem:[%s805] ss:$4 sm:$0xff] %v747
        %s807 = scalar_lea.vmem [#allocation1], 35
        %808 = vst [vmem:[%s807] ss:$4 sm:$0xff] %v748
        %v809 = vld.sshfl [vmem:[#allocation1] sm:$0xff pattern:$0x73625140]
        %v810 = vld.sshfl [vmem:[#allocation1 + $0x20] sm:$0xff pattern:$0x73625140]
        %811 = vst [vmem:[#allocation1] ss:$4 sm:$0xff] %v682
        %812 = vst [vmem:[%s795] ss:$4 sm:$0xff] %v749
        %813 = vst [vmem:[%s797] ss:$4 sm:$0xff] %v750
        %814 = vst [vmem:[%s799] ss:$4 sm:$0xff] %v751
        %815 = vst [vmem:[%s801] ss:$4 sm:$0xff] %v685
        %816 = vst [vmem:[%s803] ss:$4 sm:$0xff] %v752
        %817 = vst [vmem:[%s805] ss:$4 sm:$0xff] %v753
        %818 = vst [vmem:[%s807] ss:$4 sm:$0xff] %v754
        %v819 = vld.sshfl [vmem:[#allocation1] sm:$0xff pattern:$0x73625140]
        %v820 = vld.sshfl [vmem:[#allocation1 + $0x20] sm:$0xff pattern:$0x73625140]
        %821 = vst [vmem:[#allocation1] ss:$4 sm:$0xff] %v688
        %v822 = vld.sshfl [vmem:[#allocation1] sm:$0xff pattern:$0x73625140]
        %823 = vst [vmem:[%s801] ss:$4 sm:$0xff] %v755
        %824 = vst [vmem:[%s803] ss:$4 sm:$0xff] %v756
        %825 = vst [vmem:[%s805] ss:$4 sm:$0xff] %v757
        %826 = vst [vmem:[%s807] ss:$4 sm:$0xff] %v691
        %v827 = vld.sshfl [vmem:[#allocation1 + $0x20] sm:$0xff pattern:$0x73625140]
        %828 = vst [vmem:[#allocation1] ss:$4 sm:$0xff] %v758
        %829 = vst [vmem:[%s795] ss:$4 sm:$0xff] %v759
        %830 = vst [vmem:[%s797] ss:$4 sm:$0xff] %v760
        %831 = vst [vmem:[%s799] ss:$4 sm:$0xff] %v694
        %832 = vst [vmem:[%s801] ss:$4 sm:$0xff] %v761
        %833 = vst [vmem:[%s803] ss:$4 sm:$0xff] %v762
        %834 = vst [vmem:[%s805] ss:$4 sm:$0xff] %v763
        %835 = vst [vmem:[%s807] ss:$4 sm:$0xff] %v697
        %v836 = vld.sshfl [vmem:[#allocation1] sm:$0xff pattern:$0x73625140]
        %v837 = vld.sshfl [vmem:[#allocation1 + $0x20] sm:$0xff pattern:$0x73625140]
        %838 = vst [vmem:[#allocation1] ss:$4 sm:$0xff] %v764
        %839 = vst [vmem:[%s795] ss:$4 sm:$0xff] %v765
        %840 = vst [vmem:[%s797] ss:$4 sm:$0xff] %v766
        %841 = vst [vmem:[%s799] ss:$4 sm:$0xff] %v700
        %842 = vst [vmem:[%s801] ss:$4 sm:$0xff] %v767
        %v843 = vld.sshfl [vmem:[#allocation1] sm:$0xff pattern:$0x73625140]
        %v844 = vld.sshfl [vmem:[#allocation1 + $0x20] sm:$0xff pattern:$0x73625140]
        %845 = vst [vmem:[#allocation1] ss:$4 sm:$0xff] %v768
        %846 = vst [vmem:[%s795] ss:$4 sm:$0xff] %v769
        %847 = vst [vmem:[%s797] ss:$4 sm:$0xff] %v703
        %848 = vst [vmem:[%s799] ss:$4 sm:$0xff] %v770
        %849 = vst [vmem:[%s801] ss:$4 sm:$0xff] %v771
        %850 = vst [vmem:[%s803] ss:$4 sm:$0xff] %v772
        %851 = vst [vmem:[%s805] ss:$4 sm:$0xff] %v706
        %852 = vst [vmem:[%s807] ss:$4 sm:$0xff] %v773
        %v853 = vld.sshfl [vmem:[#allocation1] sm:$0xff pattern:$0x73625140]
        %v854 = vld.sshfl [vmem:[#allocation1 + $0x20] sm:$0xff pattern:$0x73625140]
        %855 = vst [vmem:[#allocation1] ss:$4 sm:$0xff] %v774
        %856 = vst [vmem:[%s795] ss:$4 sm:$0xff] %v775
        %857 = vst [vmem:[%s797] ss:$4 sm:$0xff] %v709
        %858 = vst [vmem:[%s799] ss:$4 sm:$0xff] %v776
        %859 = vst [vmem:[%s801] ss:$4 sm:$0xff] %v777
        %860 = vst [vmem:[%s803] ss:$4 sm:$0xff] %v778
        %861 = vst [vmem:[%s805] ss:$4 sm:$0xff] %v712
        %862 = vst [vmem:[%s807] ss:$4 sm:$0xff] %v779
        %v863 = vld.sshfl [vmem:[#allocation1] sm:$0xff pattern:$0x73625140]
        %v864 = vld.sshfl [vmem:[#allocation1 + $0x20] sm:$0xff pattern:$0x73625140]
        %865 = vst [vmem:[#allocation1] ss:$4 sm:$0xff] %v780
        %v866 = vld.sshfl [vmem:[#allocation1] sm:$0xff pattern:$0x73625140]
        %867 = vst [vmem:[%s801] ss:$4 sm:$0xff] %v781
        %868 = vst [vmem:[%s803] ss:$4 sm:$0xff] %v715
        %869 = vst [vmem:[%s805] ss:$4 sm:$0xff] %v782
        %870 = vst [vmem:[%s807] ss:$4 sm:$0xff] %v783
        %v871 = vld.sshfl [vmem:[#allocation1 + $0x20] sm:$0xff pattern:$0x73625140]
        %872 = vst [vmem:[#allocation1] ss:$4 sm:$0xff] %v784
        %873 = vst [vmem:[%s795] ss:$4 sm:$0xff] %v718
        %874 = vst [vmem:[%s797] ss:$4 sm:$0xff] %v785
        %875 = vst [vmem:[%s799] ss:$4 sm:$0xff] %v786
        %876 = vst [vmem:[%s801] ss:$4 sm:$0xff] %v787
        %877 = vst [vmem:[%s803] ss:$4 sm:$0xff] %v721
        %878 = vst [vmem:[%s805] ss:$4 sm:$0xff] %v788
        %879 = vst [vmem:[%s807] ss:$4 sm:$0xff] %v789
        %v880 = vld.sshfl [vmem:[#allocation1] sm:$0xff pattern:$0x73625140]
        %v881 = vld.sshfl [vmem:[#allocation1 + $0x20] sm:$0xff pattern:$0x73625140]
        %882 = vst [vmem:[#allocation1] ss:$4 sm:$0xff] %v790
        %883 = vst [vmem:[%s795] ss:$4 sm:$0xff] %v724
        %884 = vst [vmem:[%s797] ss:$4 sm:$0xff] %v791
        %885 = vst [vmem:[%s799] ss:$4 sm:$0xff] %v792
        %886 = vst [vmem:[%s801] ss:$4 sm:$0xff] %v793
        %v887 = vld.sshfl [vmem:[#allocation1] sm:$0xff pattern:$0x73625140]
        %v888 = vld.sshfl [vmem:[#allocation1 + $0x20] sm:$0xff pattern:$0x73625140]
        %909 = vxpose.xlu0.b32.start [1/16] %v809, 128
        %910 = vxpose.xlu0.b32.cont [2/16] %v810, 128
        %911 = vxpose.xlu0.b32.cont [3/16] %v819, 128
        %912 = vxpose.xlu0.b32.cont [4/16] %v820, 128
        %913 = vxpose.xlu0.b32.cont [5/16] %v822, 128
        %914 = vxpose.xlu0.b32.cont [6/16] 0.0, 128
        %915 = vxpose.xlu0.b32.cont [7/16] 0.0, 128
        %916 = vxpose.xlu0.b32.cont [8/16] 0.0, 128
        %917 = vxpose.xlu0.b32.cont [9/16] 0.0, 128
        %918 = vxpose.xlu0.b32.cont [10/16] 0.0, 128
        %919 = vxpose.xlu0.b32.cont [11/16] 0.0, 128
        %920 = vxpose.xlu0.b32.cont [12/16] 0.0, 128
        %921 = vxpose.xlu0.b32.cont [13/16] 0.0, 128
        %922 = vxpose.xlu0.b32.cont [14/16] 0.0, 128
        %923 = vxpose.xlu0.b32.cont [15/16] 0.0, 128
        %924 = vxpose.xlu0.b32.end [16/16] 0.0, 128
        %v925 = vpop.trf.xlu0
        %v926 = vpop.trf.xlu0
        %v927 = vpop.trf.xlu0
        %v928 = vpop.trf.xlu0
        %v929 = vpop.trf.xlu0
        %v930 = vpop.trf.xlu0
        %v931 = vpop.trf.xlu0
        %v932 = vpop.trf.xlu0
        %v933 = vpop.trf.xlu0
        %v934 = vpop.trf.xlu0
        %v935 = vpop.trf.xlu0
        %v936 = vpop.trf.xlu0
        %v937 = vpop.trf.xlu0
        %v938 = vpop.trf.xlu0
        %v939 = vpop.trf.xlu0
        %v940 = vpop.trf.xlu0
        %941 = vxpose.xlu0.b32.start [1/16] %v827, 128
        %942 = vxpose.xlu0.b32.cont [2/16] %v836, 128
        %943 = vxpose.xlu0.b32.cont [3/16] %v837, 128
        %944 = vxpose.xlu0.b32.cont [4/16] %v843, 128
        %945 = vxpose.xlu0.b32.cont [5/16] %v844, 128
        %946 = vxpose.xlu0.b32.cont [6/16] 0.0, 128
        %947 = vxpose.xlu0.b32.cont [7/16] 0.0, 128
        %948 = vxpose.xlu0.b32.cont [8/16] 0.0, 128
        %949 = vxpose.xlu0.b32.cont [9/16] 0.0, 128
        %950 = vxpose.xlu0.b32.cont [10/16] 0.0, 128
        %951 = vxpose.xlu0.b32.cont [11/16] 0.0, 128
        %952 = vxpose.xlu0.b32.cont [12/16] 0.0, 128
        %953 = vxpose.xlu0.b32.cont [13/16] 0.0, 128
        %954 = vxpose.xlu0.b32.cont [14/16] 0.0, 128
        %955 = vxpose.xlu0.b32.cont [15/16] 0.0, 128
        %956 = vxpose.xlu0.b32.end [16/16] 0.0, 128
        %v957 = vpop.trf.xlu0
        %v958 = vpop.trf.xlu0
        %v959 = vpop.trf.xlu0
        %v960 = vpop.trf.xlu0
        %v961 = vpop.trf.xlu0
        %v962 = vpop.trf.xlu0
        %v963 = vpop.trf.xlu0
        %v964 = vpop.trf.xlu0
        %v965 = vpop.trf.xlu0
        %v966 = vpop.trf.xlu0
        %v967 = vpop.trf.xlu0
        %v968 = vpop.trf.xlu0
        %v969 = vpop.trf.xlu0
        %v970 = vpop.trf.xlu0
        %v971 = vpop.trf.xlu0
        %v972 = vpop.trf.xlu0
        %973 = vxpose.xlu0.b32.start [1/16] %v853, 128
        %974 = vxpose.xlu0.b32.cont [2/16] %v854, 128
        %975 = vxpose.xlu0.b32.cont [3/16] %v863, 128
        %976 = vxpose.xlu0.b32.cont [4/16] %v864, 128
        %977 = vxpose.xlu0.b32.cont [5/16] %v866, 128
        %978 = vxpose.xlu0.b32.cont [6/16] 0.0, 128
        %979 = vxpose.xlu0.b32.cont [7/16] 0.0, 128
        %980 = vxpose.xlu0.b32.cont [8/16] 0.0, 128
        %981 = vxpose.xlu0.b32.cont [9/16] 0.0, 128
        %982 = vxpose.xlu0.b32.cont [10/16] 0.0, 128
        %983 = vxpose.xlu0.b32.cont [11/16] 0.0, 128
        %984 = vxpose.xlu0.b32.cont [12/16] 0.0, 128
        %985 = vxpose.xlu0.b32.cont [13/16] 0.0, 128
        %986 = vxpose.xlu0.b32.cont [14/16] 0.0, 128
        %987 = vxpose.xlu0.b32.cont [15/16] 0.0, 128
        %988 = vxpose.xlu0.b32.end [16/16] 0.0, 128
        %v989 = vpop.trf.xlu0
        %v990 = vpop.trf.xlu0
        %v991 = vpop.trf.xlu0
        %v992 = vpop.trf.xlu0
        %v993 = vpop.trf.xlu0
        %v994 = vpop.trf.xlu0
        %v995 = vpop.trf.xlu0
        %v996 = vpop.trf.xlu0
        %v997 = vpop.trf.xlu0
        %v998 = vpop.trf.xlu0
        %v999 = vpop.trf.xlu0
        %v1000 = vpop.trf.xlu0
        %v1001 = vpop.trf.xlu0
        %v1002 = vpop.trf.xlu0
        %v1003 = vpop.trf.xlu0
        %v1004 = vpop.trf.xlu0
        %1005 = vxpose.xlu0.b32.start [1/16] %v871, 128
        %1006 = vxpose.xlu0.b32.cont [2/16] %v880, 128
        %1007 = vxpose.xlu0.b32.cont [3/16] %v881, 128
        %1008 = vxpose.xlu0.b32.cont [4/16] %v887, 128
        %1009 = vxpose.xlu0.b32.cont [5/16] %v888, 128
        %1010 = vxpose.xlu0.b32.cont [6/16] 0.0, 128
        %1011 = vxpose.xlu0.b32.cont [7/16] 0.0, 128
        %1012 = vxpose.xlu0.b32.cont [8/16] 0.0, 128
        %1013 = vxpose.xlu0.b32.cont [9/16] 0.0, 128
        %1014 = vxpose.xlu0.b32.cont [10/16] 0.0, 128
        %1015 = vxpose.xlu0.b32.cont [11/16] 0.0, 128
        %1016 = vxpose.xlu0.b32.cont [12/16] 0.0, 128
        %1017 = vxpose.xlu0.b32.cont [13/16] 0.0, 128
        %1018 = vxpose.xlu0.b32.cont [14/16] 0.0, 128
        %1019 = vxpose.xlu0.b32.cont [15/16] 0.0, 128
        %1020 = vxpose.xlu0.b32.end [16/16] 0.0, 128
        %v1021 = vpop.trf.xlu0
        %v1022 = vpop.trf.xlu0
        %v1023 = vpop.trf.xlu0
        %v1024 = vpop.trf.xlu0
        %v1025 = vpop.trf.xlu0
        %v1026 = vpop.trf.xlu0
        %v1027 = vpop.trf.xlu0
        %v1028 = vpop.trf.xlu0
        %v1029 = vpop.trf.xlu0
        %v1030 = vpop.trf.xlu0
        %v1031 = vpop.trf.xlu0
        %v1032 = vpop.trf.xlu0
        %v1033 = vpop.trf.xlu0
        %v1034 = vpop.trf.xlu0
        %v1035 = vpop.trf.xlu0
        %v1036 = vpop.trf.xlu0
        %v1037 = vld [vmem:[%s3] sm:$0xff]
        %s1038 = scalar_lea.vmem %s3, 8
        %v1039 = vld [vmem:[%s1038] sm:$0xff]
        %1056 = vrot.lane.b32.xlu0 %v925, 127
        %v1057 = vpop.permute.xlu0 %1056
        %1058 = vrot.lane.b32.xlu0 %v926, 127
        %v1059 = vpop.permute.xlu0 %1058
        %1060 = vrot.lane.b32.xlu0 %v927, 127
        %v1061 = vpop.permute.xlu0 %1060
        %1062 = vrot.lane.b32.xlu0 %v928, 127
        %v1063 = vpop.permute.xlu0 %1062
        %1064 = vrot.lane.b32.xlu0 %v957, 127
        %v1065 = vpop.permute.xlu0 %1064
        %1066 = vrot.lane.b32.xlu0 %v958, 127
        %v1067 = vpop.permute.xlu0 %1066
        %1068 = vrot.lane.b32.xlu0 %v959, 127
        %v1069 = vpop.permute.xlu0 %1068
        %1070 = vrot.lane.b32.xlu0 %v960, 127
        %v1071 = vpop.permute.xlu0 %1070
        %1072 = vrot.lane.b32.xlu0 %v989, 127
        %v1073 = vpop.permute.xlu0 %1072
        %1074 = vrot.lane.b32.xlu0 %v990, 127
        %v1075 = vpop.permute.xlu0 %1074
        %1076 = vrot.lane.b32.xlu0 %v991, 127
        %v1077 = vpop.permute.xlu0 %1076
        %1078 = vrot.lane.b32.xlu0 %v992, 127
        %v1079 = vpop.permute.xlu0 %1078
        %1080 = vrot.lane.b32.xlu0 %v1021, 127
        %v1081 = vpop.permute.xlu0 %1080
        %1082 = vrot.lane.b32.xlu0 %v1022, 127
        %v1083 = vpop.permute.xlu0 %1082
        %1084 = vrot.lane.b32.xlu0 %v1023, 127
        %v1085 = vpop.permute.xlu0 %1084
        %1086 = vrot.lane.b32.xlu0 %v1024, 127
        %v1087 = vpop.permute.xlu0 %1086
        %v1104 = vrot.slane %v1073, 4
        %vm1105 = vcmask 1047556
        %v1106 = vsel %vm1105, %v1104, %v1057
        %v1107 = vrot.slane %v1057, 4
        %v1108 = vsel %vm1105, %v1073, %v1107
        %v1110 = vunpack.c.l.s4 1983009808
        %v1111 = vunpack.c.0.s8 %v1110
        %v1112 = vperm.slane %v1106, %v1111
        %v1114 = vunpack.c.l.s4 1983009808
        %v1115 = vunpack.c.0.s8 %v1114
        %v1116 = vperm.slane %v1108, %v1115
        %v1117 = vrot.slane %v1081, 4
        %v1118 = vsel %vm1105, %v1117, %v1065
        %v1119 = vrot.slane %v1065, 4
        %v1120 = vsel %vm1105, %v1081, %v1119
        %v1122 = vunpack.c.l.s4 1983009808
        %v1123 = vunpack.c.0.s8 %v1122
        %v1124 = vperm.slane %v1118, %v1123
        %v1126 = vunpack.c.l.s4 1983009808
        %v1127 = vunpack.c.0.s8 %v1126
        %v1128 = vperm.slane %v1120, %v1127
        %v1129 = vrot.slane %v1124, 4
        %v1130 = vsel %vm1105, %v1129, %v1112
        %v1131 = vrot.slane %v1112, 4
        %v1132 = vsel %vm1105, %v1124, %v1131
        %v1134 = vunpack.c.l.s4 1934713408
        %v1135 = vunpack.c.0.s8 %v1134
        %v1136 = vperm.slane %v1130, %v1135
        %v1138 = vunpack.c.l.s4 1934713408
        %v1139 = vunpack.c.0.s8 %v1138
        %v1140 = vperm.slane %v1132, %v1139
        %v1141 = vrot.slane %v1128, 4
        %v1142 = vsel %vm1105, %v1141, %v1116
        %v1143 = vrot.slane %v1116, 4
        %v1144 = vsel %vm1105, %v1128, %v1143
        %v1146 = vunpack.c.l.s4 1934713408
        %v1147 = vunpack.c.0.s8 %v1146
        %v1148 = vperm.slane %v1142, %v1147
        %v1150 = vunpack.c.l.s4 1934713408
        %v1151 = vunpack.c.0.s8 %v1150
        %v1152 = vperm.slane %v1144, %v1151
        %v1153 = vrot.slane %v1136, 4
        %v1154 = vsel %vm1105, 0.0, %v1153
        %v1155 = vrot.slane %v1140, 4
        %v1156 = vsel %vm1105, 0.0, %v1155
        %v1157 = vrot.slane %v1148, 4
        %v1158 = vsel %vm1105, 0.0, %v1157
        %v1159 = vrot.slane %v1152, 4
        %v1160 = vsel %vm1105, 0.0, %v1159
        %v1161 = vrot.slane %v1075, 4
        %v1162 = vsel %vm1105, %v1161, %v1059
        %v1163 = vrot.slane %v1059, 4
        %v1164 = vsel %vm1105, %v1075, %v1163
        %v1166 = vunpack.c.l.s4 1983009808
        %v1167 = vunpack.c.0.s8 %v1166
        %v1168 = vperm.slane %v1162, %v1167
        %v1170 = vunpack.c.l.s4 1983009808
        %v1171 = vunpack.c.0.s8 %v1170
        %v1172 = vperm.slane %v1164, %v1171
        %v1173 = vrot.slane %v1083, 4
        %v1174 = vsel %vm1105, %v1173, %v1067
        %v1175 = vrot.slane %v1067, 4
        %v1176 = vsel %vm1105, %v1083, %v1175
        %v1178 = vunpack.c.l.s4 1983009808
        %v1179 = vunpack.c.0.s8 %v1178
        %v1180 = vperm.slane %v1174, %v1179
        %v1182 = vunpack.c.l.s4 1983009808
        %v1183 = vunpack.c.0.s8 %v1182
        %v1184 = vperm.slane %v1176, %v1183
        %v1185 = vrot.slane %v1180, 4
        %v1186 = vsel %vm1105, %v1185, %v1168
        %v1187 = vrot.slane %v1168, 4
        %v1188 = vsel %vm1105, %v1180, %v1187
        %v1190 = vunpack.c.l.s4 1934713408
        %v1191 = vunpack.c.0.s8 %v1190
        %v1192 = vperm.slane %v1186, %v1191
        %v1194 = vunpack.c.l.s4 1934713408
        %v1195 = vunpack.c.0.s8 %v1194
        %v1196 = vperm.slane %v1188, %v1195
        %v1197 = vrot.slane %v1184, 4
        %v1198 = vsel %vm1105, %v1197, %v1172
        %v1199 = vrot.slane %v1172, 4
        %v1200 = vsel %vm1105, %v1184, %v1199
        %v1202 = vunpack.c.l.s4 1934713408
        %v1203 = vunpack.c.0.s8 %v1202
        %v1204 = vperm.slane %v1198, %v1203
        %v1206 = vunpack.c.l.s4 1934713408
        %v1207 = vunpack.c.0.s8 %v1206
        %v1208 = vperm.slane %v1200, %v1207
        %v1209 = vrot.slane %v1192, 4
        %v1210 = vsel %vm1105, 0.0, %v1209
        %v1211 = vrot.slane %v1196, 4
        %v1212 = vsel %vm1105, 0.0, %v1211
        %v1213 = vrot.slane %v1204, 4
        %v1214 = vsel %vm1105, 0.0, %v1213
        %v1215 = vrot.slane %v1208, 4
        %v1216 = vsel %vm1105, 0.0, %v1215
        %v1217 = vrot.slane %v1077, 4
        %v1218 = vsel %vm1105, %v1217, %v1061
        %v1219 = vrot.slane %v1061, 4
        %v1220 = vsel %vm1105, %v1077, %v1219
        %v1222 = vunpack.c.l.s4 1983009808
        %v1223 = vunpack.c.0.s8 %v1222
        %v1224 = vperm.slane %v1218, %v1223
        %v1226 = vunpack.c.l.s4 1983009808
        %v1227 = vunpack.c.0.s8 %v1226
        %v1228 = vperm.slane %v1220, %v1227
        %v1229 = vrot.slane %v1085, 4
        %v1230 = vsel %vm1105, %v1229, %v1069
        %v1231 = vrot.slane %v1069, 4
        %v1232 = vsel %vm1105, %v1085, %v1231
        %v1234 = vunpack.c.l.s4 1983009808
        %v1235 = vunpack.c.0.s8 %v1234
        %v1236 = vperm.slane %v1230, %v1235
        %v1238 = vunpack.c.l.s4 1983009808
        %v1239 = vunpack.c.0.s8 %v1238
        %v1240 = vperm.slane %v1232, %v1239
        %v1241 = vrot.slane %v1236, 4
        %v1242 = vsel %vm1105, %v1241, %v1224
        %v1243 = vrot.slane %v1224, 4
        %v1244 = vsel %vm1105, %v1236, %v1243
        %v1246 = vunpack.c.l.s4 1934713408
        %v1247 = vunpack.c.0.s8 %v1246
        %v1248 = vperm.slane %v1242, %v1247
        %v1250 = vunpack.c.l.s4 1934713408
        %v1251 = vunpack.c.0.s8 %v1250
        %v1252 = vperm.slane %v1244, %v1251
        %v1253 = vrot.slane %v1240, 4
        %v1254 = vsel %vm1105, %v1253, %v1228
        %v1255 = vrot.slane %v1228, 4
        %v1256 = vsel %vm1105, %v1240, %v1255
        %v1258 = vunpack.c.l.s4 1934713408
        %v1259 = vunpack.c.0.s8 %v1258
        %v1260 = vperm.slane %v1254, %v1259
        %v1262 = vunpack.c.l.s4 1934713408
        %v1263 = vunpack.c.0.s8 %v1262
        %v1264 = vperm.slane %v1256, %v1263
        %v1265 = vrot.slane %v1248, 4
        %v1266 = vsel %vm1105, 0.0, %v1265
        %v1267 = vrot.slane %v1252, 4
        %v1268 = vsel %vm1105, 0.0, %v1267
        %v1269 = vrot.slane %v1260, 4
        %v1270 = vsel %vm1105, 0.0, %v1269
        %v1271 = vrot.slane %v1264, 4
        %v1272 = vsel %vm1105, 0.0, %v1271
        %v1273 = vrot.slane %v1079, 4
        %v1274 = vsel %vm1105, %v1273, %v1063
        %v1275 = vrot.slane %v1063, 4
        %v1276 = vsel %vm1105, %v1079, %v1275
        %v1278 = vunpack.c.l.s4 1983009808
        %v1279 = vunpack.c.0.s8 %v1278
        %v1280 = vperm.slane %v1274, %v1279
        %v1282 = vunpack.c.l.s4 1983009808
        %v1283 = vunpack.c.0.s8 %v1282
        %v1284 = vperm.slane %v1276, %v1283
        %v1285 = vrot.slane %v1087, 4
        %v1286 = vsel %vm1105, %v1285, %v1071
        %v1287 = vrot.slane %v1071, 4
        %v1288 = vsel %vm1105, %v1087, %v1287
        %v1290 = vunpack.c.l.s4 1983009808
        %v1291 = vunpack.c.0.s8 %v1290
        %v1292 = vperm.slane %v1286, %v1291
        %v1294 = vunpack.c.l.s4 1983009808
        %v1295 = vunpack.c.0.s8 %v1294
        %v1296 = vperm.slane %v1288, %v1295
        %v1297 = vrot.slane %v1292, 4
        %v1298 = vsel %vm1105, %v1297, %v1280
        %v1299 = vrot.slane %v1280, 4
        %v1300 = vsel %vm1105, %v1292, %v1299
        %v1302 = vunpack.c.l.s4 1934713408
        %v1303 = vunpack.c.0.s8 %v1302
        %v1304 = vperm.slane %v1298, %v1303
        %v1306 = vunpack.c.l.s4 1934713408
        %v1307 = vunpack.c.0.s8 %v1306
        %v1308 = vperm.slane %v1300, %v1307
        %v1309 = vrot.slane %v1296, 4
        %v1310 = vsel %vm1105, %v1309, %v1284
        %v1311 = vrot.slane %v1284, 4
        %v1312 = vsel %vm1105, %v1296, %v1311
        %v1314 = vunpack.c.l.s4 1934713408
        %v1315 = vunpack.c.0.s8 %v1314
        %v1316 = vperm.slane %v1310, %v1315
        %v1318 = vunpack.c.l.s4 1934713408
        %v1319 = vunpack.c.0.s8 %v1318
        %v1320 = vperm.slane %v1312, %v1319
        %v1321 = vrot.slane %v1304, 4
        %v1322 = vsel %vm1105, 0.0, %v1321
        %v1323 = vrot.slane %v1308, 4
        %v1324 = vsel %vm1105, 0.0, %v1323
        %v1325 = vrot.slane %v1316, 4
        %v1326 = vsel %vm1105, 0.0, %v1325
        %v1327 = vrot.slane %v1320, 4
        %v1328 = vsel %vm1105, 0.0, %v1327
        %1330 = vrot.lane.b32.xlu0 %v1154, 32
        %v1331 = vpop.permute.xlu0 %1330
        %1334 = vrot.lane.b32.xlu0 %v1140, 64
        %v1335 = vpop.permute.xlu0 %1334
        %1338 = vrot.lane.b32.xlu0 %v1156, 96
        %v1339 = vpop.permute.xlu0 %1338
        %1342 = vrot.lane.b32.xlu0 %v1158, 32
        %v1343 = vpop.permute.xlu0 %1342
        %1346 = vrot.lane.b32.xlu0 %v1152, 64
        %v1347 = vpop.permute.xlu0 %1346
        %1350 = vrot.lane.b32.xlu0 %v1160, 96
        %v1351 = vpop.permute.xlu0 %1350
        %1354 = vrot.lane.b32.xlu0 %v1210, 32
        %v1355 = vpop.permute.xlu0 %1354
        %1358 = vrot.lane.b32.xlu0 %v1196, 64
        %v1359 = vpop.permute.xlu0 %1358
        %1362 = vrot.lane.b32.xlu0 %v1212, 96
        %v1363 = vpop.permute.xlu0 %1362
        %1366 = vrot.lane.b32.xlu0 %v1214, 32
        %v1367 = vpop.permute.xlu0 %1366
        %1370 = vrot.lane.b32.xlu0 %v1208, 64
        %v1371 = vpop.permute.xlu0 %1370
        %1374 = vrot.lane.b32.xlu0 %v1216, 96
        %v1375 = vpop.permute.xlu0 %1374
        %1378 = vrot.lane.b32.xlu0 %v1266, 32
        %v1379 = vpop.permute.xlu0 %1378
        %1382 = vrot.lane.b32.xlu0 %v1252, 64
        %v1383 = vpop.permute.xlu0 %1382
        %1386 = vrot.lane.b32.xlu0 %v1268, 96
        %v1387 = vpop.permute.xlu0 %1386
        %1390 = vrot.lane.b32.xlu0 %v1270, 32
        %v1391 = vpop.permute.xlu0 %1390
        %1394 = vrot.lane.b32.xlu0 %v1264, 64
        %v1395 = vpop.permute.xlu0 %1394
        %1398 = vrot.lane.b32.xlu0 %v1272, 96
        %v1399 = vpop.permute.xlu0 %1398
        %1402 = vrot.lane.b32.xlu0 %v1322, 32
        %v1403 = vpop.permute.xlu0 %1402
        %1406 = vrot.lane.b32.xlu0 %v1308, 64
        %v1407 = vpop.permute.xlu0 %1406
        %1410 = vrot.lane.b32.xlu0 %v1324, 96
        %v1411 = vpop.permute.xlu0 %1410
        %1414 = vrot.lane.b32.xlu0 %v1326, 32
        %v1415 = vpop.permute.xlu0 %1414
        %1418 = vrot.lane.b32.xlu0 %v1320, 64
        %v1419 = vpop.permute.xlu0 %1418
        %1422 = vrot.lane.b32.xlu0 %v1328, 96
        %v1423 = vpop.permute.xlu0 %1422
        %vm1425 = vcmask 261120
        %v1426 = vsel %vm1425, %v1136, %v1331
        %vm1427 = vcmask 523264
        %v1428 = vsel %vm1427, %v1426, %v1335
        %vm1429 = vcmask 785408
        %v1430 = vsel %vm1429, %v1428, %v1339
        %v1431 = vsel %vm1425, %v1148, %v1343
        %v1432 = vsel %vm1427, %v1431, %v1347
        %v1433 = vsel %vm1429, %v1432, %v1351
        %v1434 = vsel %vm1425, %v1192, %v1355
        %v1435 = vsel %vm1427, %v1434, %v1359
        %v1436 = vsel %vm1429, %v1435, %v1363
        %v1437 = vsel %vm1425, %v1204, %v1367
        %v1438 = vsel %vm1427, %v1437, %v1371
        %v1439 = vsel %vm1429, %v1438, %v1375
        %v1440 = vsel %vm1425, %v1248, %v1379
        %v1441 = vsel %vm1427, %v1440, %v1383
        %v1442 = vsel %vm1429, %v1441, %v1387
        %v1443 = vsel %vm1425, %v1260, %v1391
        %v1444 = vsel %vm1427, %v1443, %v1395
        %v1445 = vsel %vm1429, %v1444, %v1399
        %v1446 = vsel %vm1425, %v1304, %v1403
        %v1447 = vsel %vm1427, %v1446, %v1407
        %v1448 = vsel %vm1429, %v1447, %v1411
        %v1449 = vsel %vm1425, %v1316, %v1415
        %v1450 = vsel %vm1427, %v1449, %v1419
        %v1451 = vsel %vm1429, %v1450, %v1423
        %v1452 = vsel %vm1105, 0.0, 0.0
        %v1453 = vsel %vm1105, 0.0, 0.0
        %v1455 = vunpack.c.l.s4 1983009808
        %v1456 = vunpack.c.0.s8 %v1455
        %v1457 = vperm.slane %v1452, %v1456
        %v1459 = vunpack.c.l.s4 1983009808
        %v1460 = vunpack.c.0.s8 %v1459
        %v1461 = vperm.slane %v1453, %v1460
        %v1462 = vrot.slane %v1457, 4
        %v1463 = vsel %vm1105, %v1462, %v1457
        %v1464 = vsel %vm1105, %v1457, %v1462
        %v1466 = vunpack.c.l.s4 1934713408
        %v1467 = vunpack.c.0.s8 %v1466
        %v1468 = vperm.slane %v1463, %v1467
        %v1470 = vunpack.c.l.s4 1934713408
        %v1471 = vunpack.c.0.s8 %v1470
        %v1472 = vperm.slane %v1464, %v1471
        %v1473 = vrot.slane %v1461, 4
        %v1474 = vsel %vm1105, %v1473, %v1461
        %v1475 = vsel %vm1105, %v1461, %v1473
        %v1477 = vunpack.c.l.s4 1934713408
        %v1478 = vunpack.c.0.s8 %v1477
        %v1479 = vperm.slane %v1474, %v1478
        %v1481 = vunpack.c.l.s4 1934713408
        %v1482 = vunpack.c.0.s8 %v1481
        %v1483 = vperm.slane %v1475, %v1482
        %v1484 = vrot.slane %v1468, 4
        %v1485 = vsel %vm1105, %v1484, %v1468
        %v1486 = vsel %vm1105, %v1468, %v1484
        %v1487 = vrot.slane %v1472, 4
        %v1488 = vsel %vm1105, %v1487, %v1472
        %v1489 = vsel %vm1105, %v1472, %v1487
        %v1490 = vrot.slane %v1479, 4
        %v1491 = vsel %vm1105, %v1490, %v1479
        %v1492 = vsel %vm1105, %v1479, %v1490
        %v1493 = vrot.slane %v1483, 4
        %v1494 = vsel %vm1105, %v1493, %v1483
        %v1495 = vsel %vm1105, %v1483, %v1493
        %1497 = vrot.lane.b32.xlu0 %v1486, 32
        %v1498 = vpop.permute.xlu0 %1497
        %1501 = vrot.lane.b32.xlu0 %v1488, 64
        %v1502 = vpop.permute.xlu0 %1501
        %1505 = vrot.lane.b32.xlu0 %v1489, 96
        %v1506 = vpop.permute.xlu0 %1505
        %1509 = vrot.lane.b32.xlu0 %v1492, 32
        %v1510 = vpop.permute.xlu0 %1509
        %1513 = vrot.lane.b32.xlu0 %v1494, 64
        %v1514 = vpop.permute.xlu0 %1513
        %1517 = vrot.lane.b32.xlu0 %v1495, 96
        %v1518 = vpop.permute.xlu0 %1517
        %v1520 = vsel %vm1425, %v1485, %v1498
        %v1521 = vsel %vm1427, %v1520, %v1502
        %v1522 = vsel %vm1429, %v1521, %v1506
        %v1523 = vsel %vm1425, %v1491, %v1510
        %v1524 = vsel %vm1427, %v1523, %v1514
        %v1525 = vsel %vm1429, %v1524, %v1518
        %vm1526 = vcmask 31744
        %v1528 = vsel %vm1526, %v1039, 0
        %vm1530 = vcmask 1043456
        %v1532 = vsel %vm1530, %v1430, 0
        %v1535 = vsel %vm1530, %v1433, 0
        %v1538 = vsel %vm1530, %v1436, 0
        %v1541 = vsel %vm1530, %v1439, 0
        %v1544 = vsel %vm1530, %v1442, 0
        %v1547 = vsel %vm1530, %v1445, 0
        %v1550 = vsel %vm1530, %v1448, 0
        %v1553 = vsel %vm1530, %v1451, 0
        %1555 = vmatpush.msra.mxu0 0.0
        %1556 = vmatpush.msra.mxu0 0.0
        %1557 = vmatpush.msra.mxu0 0.0
        %1558 = vmatpush.msra.mxu0 0.0
        %1559 = vmatpush.msra.mxu0 0.0
        %1560 = vmatpush.msra.mxu0 0.0
        %1561 = vmatpush.msra.mxu0 0.0
        %1562 = vmatpush.msra.mxu0 0.0
        %1563 = vmatpush.msra.mxu0 0.0
        %1564 = vmatpush.msra.mxu0 0.0
        %1565 = vmatpush.msra.mxu0 0.0
        %1566 = vmatpush.msra.mxu0 0.0
        %1567 = vmatpush.msra.mxu0 0.0
        %1568 = vmatpush.msra.mxu0 0.0
        %1569 = vmatpush.msra.mxu0 0.0
        %1570 = vmatpush.msra.mxu0 %v1532
        %1571 = vmatmul.f32.gmra.mxu0 %v1528
        %v1572 = vpop.f32.mrf.mxu0
        %v1573 = vadd.f32 %v1522, %v1572
        %1574 = vdwg.mxu0
        %1575 = vmatpush.msra.mxu0 0.0
        %1576 = vmatpush.msra.mxu0 0.0
        %1577 = vmatpush.msra.mxu0 0.0
        %1578 = vmatpush.msra.mxu0 0.0
        %1579 = vmatpush.msra.mxu0 0.0
        %1580 = vmatpush.msra.mxu0 0.0
        %1581 = vmatpush.msra.mxu0 0.0
        %1582 = vmatpush.msra.mxu0 0.0
        %1583 = vmatpush.msra.mxu0 0.0
        %1584 = vmatpush.msra.mxu0 0.0
        %1585 = vmatpush.msra.mxu0 0.0
        %1586 = vmatpush.msra.mxu0 0.0
        %1587 = vmatpush.msra.mxu0 0.0
        %1588 = vmatpush.msra.mxu0 0.0
        %1589 = vmatpush.msra.mxu0 0.0
        %1590 = vmatpush.msra.mxu0 %v1535
        %1591 = vmatmul.f32.gmra.mxu0 %v1528
        %v1592 = vpop.f32.mrf.mxu0
        %v1593 = vadd.f32 %v1525, %v1592
        %1594 = vdwg.mxu0
        %1595 = vmatpush.msra.mxu0 0.0
        %1596 = vmatpush.msra.mxu0 0.0
        %1597 = vmatpush.msra.mxu0 0.0
        %1598 = vmatpush.msra.mxu0 0.0
        %1599 = vmatpush.msra.mxu0 0.0
        %1600 = vmatpush.msra.mxu0 0.0
        %1601 = vmatpush.msra.mxu0 0.0
        %1602 = vmatpush.msra.mxu0 0.0
        %1603 = vmatpush.msra.mxu0 0.0
        %1604 = vmatpush.msra.mxu0 0.0
        %1605 = vmatpush.msra.mxu0 0.0
        %1606 = vmatpush.msra.mxu0 0.0
        %1607 = vmatpush.msra.mxu0 0.0
        %1608 = vmatpush.msra.mxu0 0.0
        %1609 = vmatpush.msra.mxu0 0.0
        %1610 = vmatpush.msra.mxu0 %v1538
        %1611 = vmatmul.f32.gmra.mxu0 %v1528
        %v1612 = vpop.f32.mrf.mxu0
        %v1613 = vadd.f32 %v1522, %v1612
        %1614 = vdwg.mxu0
        %1615 = vmatpush.msra.mxu0 0.0
        %1616 = vmatpush.msra.mxu0 0.0
        %1617 = vmatpush.msra.mxu0 0.0
        %1618 = vmatpush.msra.mxu0 0.0
        %1619 = vmatpush.msra.mxu0 0.0
        %1620 = vmatpush.msra.mxu0 0.0
        %1621 = vmatpush.msra.mxu0 0.0
        %1622 = vmatpush.msra.mxu0 0.0
        %1623 = vmatpush.msra.mxu0 0.0
        %1624 = vmatpush.msra.mxu0 0.0
        %1625 = vmatpush.msra.mxu0 0.0
        %1626 = vmatpush.msra.mxu0 0.0
        %1627 = vmatpush.msra.mxu0 0.0
        %1628 = vmatpush.msra.mxu0 0.0
        %1629 = vmatpush.msra.mxu0 0.0
        %1630 = vmatpush.msra.mxu0 %v1541
        %1631 = vmatmul.f32.gmra.mxu0 %v1528
        %v1632 = vpop.f32.mrf.mxu0
        %v1633 = vadd.f32 %v1525, %v1632
        %1634 = vdwg.mxu0
        %1635 = vmatpush.msra.mxu0 0.0
        %1636 = vmatpush.msra.mxu0 0.0
        %1637 = vmatpush.msra.mxu0 0.0
        %1638 = vmatpush.msra.mxu0 0.0
        %1639 = vmatpush.msra.mxu0 0.0
        %1640 = vmatpush.msra.mxu0 0.0
        %1641 = vmatpush.msra.mxu0 0.0
        %1642 = vmatpush.msra.mxu0 0.0
        %1643 = vmatpush.msra.mxu0 0.0
        %1644 = vmatpush.msra.mxu0 0.0
        %1645 = vmatpush.msra.mxu0 0.0
        %1646 = vmatpush.msra.mxu0 0.0
        %1647 = vmatpush.msra.mxu0 0.0
        %1648 = vmatpush.msra.mxu0 0.0
        %1649 = vmatpush.msra.mxu0 0.0
        %1650 = vmatpush.msra.mxu0 %v1544
        %1651 = vmatmul.f32.gmra.mxu0 %v1528
        %v1652 = vpop.f32.mrf.mxu0
        %v1653 = vadd.f32 %v1522, %v1652
        %1654 = vdwg.mxu0
        %1655 = vmatpush.msra.mxu0 0.0
        %1656 = vmatpush.msra.mxu0 0.0
        %1657 = vmatpush.msra.mxu0 0.0
        %1658 = vmatpush.msra.mxu0 0.0
        %1659 = vmatpush.msra.mxu0 0.0
        %1660 = vmatpush.msra.mxu0 0.0
        %1661 = vmatpush.msra.mxu0 0.0
        %1662 = vmatpush.msra.mxu0 0.0
        %1663 = vmatpush.msra.mxu0 0.0
        %1664 = vmatpush.msra.mxu0 0.0
        %1665 = vmatpush.msra.mxu0 0.0
        %1666 = vmatpush.msra.mxu0 0.0
        %1667 = vmatpush.msra.mxu0 0.0
        %1668 = vmatpush.msra.mxu0 0.0
        %1669 = vmatpush.msra.mxu0 0.0
        %1670 = vmatpush.msra.mxu0 %v1547
        %1671 = vmatmul.f32.gmra.mxu0 %v1528
        %v1672 = vpop.f32.mrf.mxu0
        %v1673 = vadd.f32 %v1525, %v1672
        %1674 = vdwg.mxu0
        %1675 = vmatpush.msra.mxu0 0.0
        %1676 = vmatpush.msra.mxu0 0.0
        %1677 = vmatpush.msra.mxu0 0.0
        %1678 = vmatpush.msra.mxu0 0.0
        %1679 = vmatpush.msra.mxu0 0.0
        %1680 = vmatpush.msra.mxu0 0.0
        %1681 = vmatpush.msra.mxu0 0.0
        %1682 = vmatpush.msra.mxu0 0.0
        %1683 = vmatpush.msra.mxu0 0.0
        %1684 = vmatpush.msra.mxu0 0.0
        %1685 = vmatpush.msra.mxu0 0.0
        %1686 = vmatpush.msra.mxu0 0.0
        %1687 = vmatpush.msra.mxu0 0.0
        %1688 = vmatpush.msra.mxu0 0.0
        %1689 = vmatpush.msra.mxu0 0.0
        %1690 = vmatpush.msra.mxu0 %v1550
        %1691 = vmatmul.f32.gmra.mxu0 %v1528
        %v1692 = vpop.f32.mrf.mxu0
        %v1693 = vadd.f32 %v1522, %v1692
        %1694 = vdwg.mxu0
        %1695 = vmatpush.msra.mxu0 0.0
        %1696 = vmatpush.msra.mxu0 0.0
        %1697 = vmatpush.msra.mxu0 0.0
        %1698 = vmatpush.msra.mxu0 0.0
        %1699 = vmatpush.msra.mxu0 0.0
        %1700 = vmatpush.msra.mxu0 0.0
        %1701 = vmatpush.msra.mxu0 0.0
        %1702 = vmatpush.msra.mxu0 0.0
        %1703 = vmatpush.msra.mxu0 0.0
        %1704 = vmatpush.msra.mxu0 0.0
        %1705 = vmatpush.msra.mxu0 0.0
        %1706 = vmatpush.msra.mxu0 0.0
        %1707 = vmatpush.msra.mxu0 0.0
        %1708 = vmatpush.msra.mxu0 0.0
        %1709 = vmatpush.msra.mxu0 0.0
        %1710 = vmatpush.msra.mxu0 %v1553
        %1711 = vmatmul.f32.gmra.mxu0 %v1528
        %v1712 = vpop.f32.mrf.mxu0
        %v1713 = vadd.f32 %v1525, %v1712
        %1714 = vdwg.mxu0
        %1716 = vrot.lane.b32.xlu0 %v1573, 96
        %v1717 = vpop.permute.xlu0 %1716
        %1719 = vrot.lane.b32.xlu0 %v1573, 64
        %v1720 = vpop.permute.xlu0 %1719
        %1722 = vrot.lane.b32.xlu0 %v1573, 32
        %v1723 = vpop.permute.xlu0 %1722
        %1726 = vrot.lane.b32.xlu0 %v1593, 96
        %v1727 = vpop.permute.xlu0 %1726
        %1729 = vrot.lane.b32.xlu0 %v1593, 64
        %v1730 = vpop.permute.xlu0 %1729
        %1732 = vrot.lane.b32.xlu0 %v1593, 32
        %v1733 = vpop.permute.xlu0 %1732
        %1736 = vrot.lane.b32.xlu0 %v1613, 96
        %v1737 = vpop.permute.xlu0 %1736
        %1739 = vrot.lane.b32.xlu0 %v1613, 64
        %v1740 = vpop.permute.xlu0 %1739
        %1742 = vrot.lane.b32.xlu0 %v1613, 32
        %v1743 = vpop.permute.xlu0 %1742
        %1746 = vrot.lane.b32.xlu0 %v1633, 96
        %v1747 = vpop.permute.xlu0 %1746
        %1749 = vrot.lane.b32.xlu0 %v1633, 64
        %v1750 = vpop.permute.xlu0 %1749
        %1752 = vrot.lane.b32.xlu0 %v1633, 32
        %v1753 = vpop.permute.xlu0 %1752
        %1756 = vrot.lane.b32.xlu0 %v1653, 96
        %v1757 = vpop.permute.xlu0 %1756
        %1759 = vrot.lane.b32.xlu0 %v1653, 64
        %v1760 = vpop.permute.xlu0 %1759
        %1762 = vrot.lane.b32.xlu0 %v1653, 32
        %v1763 = vpop.permute.xlu0 %1762
        %1766 = vrot.lane.b32.xlu0 %v1673, 96
        %v1767 = vpop.permute.xlu0 %1766
        %1769 = vrot.lane.b32.xlu0 %v1673, 64
        %v1770 = vpop.permute.xlu0 %1769
        %1772 = vrot.lane.b32.xlu0 %v1673, 32
        %v1773 = vpop.permute.xlu0 %1772
        %1776 = vrot.lane.b32.xlu0 %v1693, 96
        %v1777 = vpop.permute.xlu0 %1776
        %1779 = vrot.lane.b32.xlu0 %v1693, 64
        %v1780 = vpop.permute.xlu0 %1779
        %1782 = vrot.lane.b32.xlu0 %v1693, 32
        %v1783 = vpop.permute.xlu0 %1782
        %1786 = vrot.lane.b32.xlu0 %v1713, 96
        %v1787 = vpop.permute.xlu0 %1786
        %1789 = vrot.lane.b32.xlu0 %v1713, 64
        %v1790 = vpop.permute.xlu0 %1789
        %1792 = vrot.lane.b32.xlu0 %v1713, 32
        %v1793 = vpop.permute.xlu0 %1792
        %v1795 = vrot.slane %v1720, 4
        %v1796 = vsel %vm1105, %v1795, %v1573
        %v1797 = vrot.slane %v1573, 4
        %v1798 = vsel %vm1105, %v1720, %v1797
        %v1800 = vunpack.c.l.s4 1983009808
        %v1801 = vunpack.c.0.s8 %v1800
        %v1802 = vperm.slane %v1796, %v1801
        %v1804 = vunpack.c.l.s4 1983009808
        %v1805 = vunpack.c.0.s8 %v1804
        %v1806 = vperm.slane %v1798, %v1805
        %v1807 = vrot.slane %v1723, 4
        %v1808 = vsel %vm1105, %v1807, %v1717
        %v1809 = vrot.slane %v1717, 4
        %v1810 = vsel %vm1105, %v1723, %v1809
        %v1812 = vunpack.c.l.s4 1983009808
        %v1813 = vunpack.c.0.s8 %v1812
        %v1814 = vperm.slane %v1808, %v1813
        %v1816 = vunpack.c.l.s4 1983009808
        %v1817 = vunpack.c.0.s8 %v1816
        %v1818 = vperm.slane %v1810, %v1817
        %v1819 = vrot.slane %v1730, 4
        %v1820 = vsel %vm1105, %v1819, %v1593
        %v1821 = vrot.slane %v1593, 4
        %v1822 = vsel %vm1105, %v1730, %v1821
        %v1824 = vunpack.c.l.s4 1983009808
        %v1825 = vunpack.c.0.s8 %v1824
        %v1826 = vperm.slane %v1820, %v1825
        %v1828 = vunpack.c.l.s4 1983009808
        %v1829 = vunpack.c.0.s8 %v1828
        %v1830 = vperm.slane %v1822, %v1829
        %v1831 = vrot.slane %v1733, 4
        %v1832 = vsel %vm1105, %v1831, %v1727
        %v1833 = vrot.slane %v1727, 4
        %v1834 = vsel %vm1105, %v1733, %v1833
        %v1836 = vunpack.c.l.s4 1983009808
        %v1837 = vunpack.c.0.s8 %v1836
        %v1838 = vperm.slane %v1832, %v1837
        %v1840 = vunpack.c.l.s4 1983009808
        %v1841 = vunpack.c.0.s8 %v1840
        %v1842 = vperm.slane %v1834, %v1841
        %v1843 = vrot.slane %v1814, 4
        %v1844 = vsel %vm1105, %v1843, %v1802
        %v1845 = vrot.slane %v1802, 4
        %v1846 = vsel %vm1105, %v1814, %v1845
        %v1848 = vunpack.c.l.s4 1934713408
        %v1849 = vunpack.c.0.s8 %v1848
        %v1850 = vperm.slane %v1844, %v1849
        %v1852 = vunpack.c.l.s4 1934713408
        %v1853 = vunpack.c.0.s8 %v1852
        %v1854 = vperm.slane %v1846, %v1853
        %v1855 = vrot.slane %v1818, 4
        %v1856 = vsel %vm1105, %v1855, %v1806
        %v1857 = vrot.slane %v1806, 4
        %v1858 = vsel %vm1105, %v1818, %v1857
        %v1860 = vunpack.c.l.s4 1934713408
        %v1861 = vunpack.c.0.s8 %v1860
        %v1862 = vperm.slane %v1856, %v1861
        %v1864 = vunpack.c.l.s4 1934713408
        %v1865 = vunpack.c.0.s8 %v1864
        %v1866 = vperm.slane %v1858, %v1865
        %v1867 = vrot.slane %v1838, 4
        %v1868 = vsel %vm1105, %v1867, %v1826
        %v1869 = vrot.slane %v1826, 4
        %v1870 = vsel %vm1105, %v1838, %v1869
        %v1872 = vunpack.c.l.s4 1934713408
        %v1873 = vunpack.c.0.s8 %v1872
        %v1874 = vperm.slane %v1868, %v1873
        %v1876 = vunpack.c.l.s4 1934713408
        %v1877 = vunpack.c.0.s8 %v1876
        %v1878 = vperm.slane %v1870, %v1877
        %v1879 = vrot.slane %v1842, 4
        %v1880 = vsel %vm1105, %v1879, %v1830
        %v1881 = vrot.slane %v1830, 4
        %v1882 = vsel %vm1105, %v1842, %v1881
        %v1884 = vunpack.c.l.s4 1934713408
        %v1885 = vunpack.c.0.s8 %v1884
        %v1886 = vperm.slane %v1880, %v1885
        %v1888 = vunpack.c.l.s4 1934713408
        %v1889 = vunpack.c.0.s8 %v1888
        %v1890 = vperm.slane %v1882, %v1889
        %v1891 = vrot.slane %v1874, 4
        %v1892 = vsel %vm1105, %v1891, %v1850
        %v1893 = vrot.slane %v1850, 4
        %v1894 = vsel %vm1105, %v1874, %v1893
        %v1895 = vrot.slane %v1878, 4
        %v1896 = vsel %vm1105, %v1895, %v1854
        %v1897 = vrot.slane %v1854, 4
        %v1898 = vsel %vm1105, %v1878, %v1897
        %v1899 = vrot.slane %v1886, 4
        %v1900 = vsel %vm1105, %v1899, %v1862
        %v1901 = vrot.slane %v1862, 4
        %v1902 = vsel %vm1105, %v1886, %v1901
        %v1903 = vrot.slane %v1890, 4
        %v1904 = vsel %vm1105, %v1903, %v1866
        %v1905 = vrot.slane %v1866, 4
        %v1906 = vsel %vm1105, %v1890, %v1905
        %v1907 = vrot.slane %v1740, 4
        %v1908 = vsel %vm1105, %v1907, %v1613
        %v1909 = vrot.slane %v1613, 4
        %v1910 = vsel %vm1105, %v1740, %v1909
        %v1912 = vunpack.c.l.s4 1983009808
        %v1913 = vunpack.c.0.s8 %v1912
        %v1914 = vperm.slane %v1908, %v1913
        %v1916 = vunpack.c.l.s4 1983009808
        %v1917 = vunpack.c.0.s8 %v1916
        %v1918 = vperm.slane %v1910, %v1917
        %v1919 = vrot.slane %v1743, 4
        %v1920 = vsel %vm1105, %v1919, %v1737
        %v1921 = vrot.slane %v1737, 4
        %v1922 = vsel %vm1105, %v1743, %v1921
        %v1924 = vunpack.c.l.s4 1983009808
        %v1925 = vunpack.c.0.s8 %v1924
        %v1926 = vperm.slane %v1920, %v1925
        %v1928 = vunpack.c.l.s4 1983009808
        %v1929 = vunpack.c.0.s8 %v1928
        %v1930 = vperm.slane %v1922, %v1929
        %v1931 = vrot.slane %v1750, 4
        %v1932 = vsel %vm1105, %v1931, %v1633
        %v1933 = vrot.slane %v1633, 4
        %v1934 = vsel %vm1105, %v1750, %v1933
        %v1936 = vunpack.c.l.s4 1983009808
        %v1937 = vunpack.c.0.s8 %v1936
        %v1938 = vperm.slane %v1932, %v1937
        %v1940 = vunpack.c.l.s4 1983009808
        %v1941 = vunpack.c.0.s8 %v1940
        %v1942 = vperm.slane %v1934, %v1941
        %v1943 = vrot.slane %v1753, 4
        %v1944 = vsel %vm1105, %v1943, %v1747
        %v1945 = vrot.slane %v1747, 4
        %v1946 = vsel %vm1105, %v1753, %v1945
        %v1948 = vunpack.c.l.s4 1983009808
        %v1949 = vunpack.c.0.s8 %v1948
        %v1950 = vperm.slane %v1944, %v1949
        %v1952 = vunpack.c.l.s4 1983009808
        %v1953 = vunpack.c.0.s8 %v1952
        %v1954 = vperm.slane %v1946, %v1953
        %v1955 = vrot.slane %v1926, 4
        %v1956 = vsel %vm1105, %v1955, %v1914
        %v1957 = vrot.slane %v1914, 4
        %v1958 = vsel %vm1105, %v1926, %v1957
        %v1960 = vunpack.c.l.s4 1934713408
        %v1961 = vunpack.c.0.s8 %v1960
        %v1962 = vperm.slane %v1956, %v1961
        %v1964 = vunpack.c.l.s4 1934713408
        %v1965 = vunpack.c.0.s8 %v1964
        %v1966 = vperm.slane %v1958, %v1965
        %v1967 = vrot.slane %v1930, 4
        %v1968 = vsel %vm1105, %v1967, %v1918
        %v1969 = vrot.slane %v1918, 4
        %v1970 = vsel %vm1105, %v1930, %v1969
        %v1972 = vunpack.c.l.s4 1934713408
        %v1973 = vunpack.c.0.s8 %v1972
        %v1974 = vperm.slane %v1968, %v1973
        %v1976 = vunpack.c.l.s4 1934713408
        %v1977 = vunpack.c.0.s8 %v1976
        %v1978 = vperm.slane %v1970, %v1977
        %v1979 = vrot.slane %v1950, 4
        %v1980 = vsel %vm1105, %v1979, %v1938
        %v1981 = vrot.slane %v1938, 4
        %v1982 = vsel %vm1105, %v1950, %v1981
        %v1984 = vunpack.c.l.s4 1934713408
        %v1985 = vunpack.c.0.s8 %v1984
        %v1986 = vperm.slane %v1980, %v1985
        %v1988 = vunpack.c.l.s4 1934713408
        %v1989 = vunpack.c.0.s8 %v1988
        %v1990 = vperm.slane %v1982, %v1989
        %v1991 = vrot.slane %v1954, 4
        %v1992 = vsel %vm1105, %v1991, %v1942
        %v1993 = vrot.slane %v1942, 4
        %v1994 = vsel %vm1105, %v1954, %v1993
        %v1996 = vunpack.c.l.s4 1934713408
        %v1997 = vunpack.c.0.s8 %v1996
        %v1998 = vperm.slane %v1992, %v1997
        %v2000 = vunpack.c.l.s4 1934713408
        %v2001 = vunpack.c.0.s8 %v2000
        %v2002 = vperm.slane %v1994, %v2001
        %v2003 = vrot.slane %v1986, 4
        %v2004 = vsel %vm1105, %v2003, %v1962
        %v2005 = vrot.slane %v1962, 4
        %v2006 = vsel %vm1105, %v1986, %v2005
        %v2007 = vrot.slane %v1990, 4
        %v2008 = vsel %vm1105, %v2007, %v1966
        %v2009 = vrot.slane %v1966, 4
        %v2010 = vsel %vm1105, %v1990, %v2009
        %v2011 = vrot.slane %v1998, 4
        %v2012 = vsel %vm1105, %v2011, %v1974
        %v2013 = vrot.slane %v1974, 4
        %v2014 = vsel %vm1105, %v1998, %v2013
        %v2015 = vrot.slane %v2002, 4
        %v2016 = vsel %vm1105, %v2015, %v1978
        %v2017 = vrot.slane %v1978, 4
        %v2018 = vsel %vm1105, %v2002, %v2017
        %v2019 = vrot.slane %v1760, 4
        %v2020 = vsel %vm1105, %v2019, %v1653
        %v2021 = vrot.slane %v1653, 4
        %v2022 = vsel %vm1105, %v1760, %v2021
        %v2024 = vunpack.c.l.s4 1983009808
        %v2025 = vunpack.c.0.s8 %v2024
        %v2026 = vperm.slane %v2020, %v2025
        %v2028 = vunpack.c.l.s4 1983009808
        %v2029 = vunpack.c.0.s8 %v2028
        %v2030 = vperm.slane %v2022, %v2029
        %v2031 = vrot.slane %v1763, 4
        %v2032 = vsel %vm1105, %v2031, %v1757
        %v2033 = vrot.slane %v1757, 4
        %v2034 = vsel %vm1105, %v1763, %v2033
        %v2036 = vunpack.c.l.s4 1983009808
        %v2037 = vunpack.c.0.s8 %v2036
        %v2038 = vperm.slane %v2032, %v2037
        %v2040 = vunpack.c.l.s4 1983009808
        %v2041 = vunpack.c.0.s8 %v2040
        %v2042 = vperm.slane %v2034, %v2041
        %v2043 = vrot.slane %v1770, 4
        %v2044 = vsel %vm1105, %v2043, %v1673
        %v2045 = vrot.slane %v1673, 4
        %v2046 = vsel %vm1105, %v1770, %v2045
        %v2048 = vunpack.c.l.s4 1983009808
        %v2049 = vunpack.c.0.s8 %v2048
        %v2050 = vperm.slane %v2044, %v2049
        %v2052 = vunpack.c.l.s4 1983009808
        %v2053 = vunpack.c.0.s8 %v2052
        %v2054 = vperm.slane %v2046, %v2053
        %v2055 = vrot.slane %v1773, 4
        %v2056 = vsel %vm1105, %v2055, %v1767
        %v2057 = vrot.slane %v1767, 4
        %v2058 = vsel %vm1105, %v1773, %v2057
        %v2060 = vunpack.c.l.s4 1983009808
        %v2061 = vunpack.c.0.s8 %v2060
        %v2062 = vperm.slane %v2056, %v2061
        %v2064 = vunpack.c.l.s4 1983009808
        %v2065 = vunpack.c.0.s8 %v2064
        %v2066 = vperm.slane %v2058, %v2065
        %v2067 = vrot.slane %v2038, 4
        %v2068 = vsel %vm1105, %v2067, %v2026
        %v2069 = vrot.slane %v2026, 4
        %v2070 = vsel %vm1105, %v2038, %v2069
        %v2072 = vunpack.c.l.s4 1934713408
        %v2073 = vunpack.c.0.s8 %v2072
        %v2074 = vperm.slane %v2068, %v2073
        %v2076 = vunpack.c.l.s4 1934713408
        %v2077 = vunpack.c.0.s8 %v2076
        %v2078 = vperm.slane %v2070, %v2077
        %v2079 = vrot.slane %v2042, 4
        %v2080 = vsel %vm1105, %v2079, %v2030
        %v2081 = vrot.slane %v2030, 4
        %v2082 = vsel %vm1105, %v2042, %v2081
        %v2084 = vunpack.c.l.s4 1934713408
        %v2085 = vunpack.c.0.s8 %v2084
        %v2086 = vperm.slane %v2080, %v2085
        %v2088 = vunpack.c.l.s4 1934713408
        %v2089 = vunpack.c.0.s8 %v2088
        %v2090 = vperm.slane %v2082, %v2089
        %v2091 = vrot.slane %v2062, 4
        %v2092 = vsel %vm1105, %v2091, %v2050
        %v2093 = vrot.slane %v2050, 4
        %v2094 = vsel %vm1105, %v2062, %v2093
        %v2096 = vunpack.c.l.s4 1934713408
        %v2097 = vunpack.c.0.s8 %v2096
        %v2098 = vperm.slane %v2092, %v2097
        %v2100 = vunpack.c.l.s4 1934713408
        %v2101 = vunpack.c.0.s8 %v2100
        %v2102 = vperm.slane %v2094, %v2101
        %v2103 = vrot.slane %v2066, 4
        %v2104 = vsel %vm1105, %v2103, %v2054
        %v2105 = vrot.slane %v2054, 4
        %v2106 = vsel %vm1105, %v2066, %v2105
        %v2108 = vunpack.c.l.s4 1934713408
        %v2109 = vunpack.c.0.s8 %v2108
        %v2110 = vperm.slane %v2104, %v2109
        %v2112 = vunpack.c.l.s4 1934713408
        %v2113 = vunpack.c.0.s8 %v2112
        %v2114 = vperm.slane %v2106, %v2113
        %v2115 = vrot.slane %v2098, 4
        %v2116 = vsel %vm1105, %v2115, %v2074
        %v2117 = vrot.slane %v2074, 4
        %v2118 = vsel %vm1105, %v2098, %v2117
        %v2119 = vrot.slane %v2102, 4
        %v2120 = vsel %vm1105, %v2119, %v2078
        %v2121 = vrot.slane %v2078, 4
        %v2122 = vsel %vm1105, %v2102, %v2121
        %v2123 = vrot.slane %v2110, 4
        %v2124 = vsel %vm1105, %v2123, %v2086
        %v2125 = vrot.slane %v2086, 4
        %v2126 = vsel %vm1105, %v2110, %v2125
        %v2127 = vrot.slane %v2114, 4
        %v2128 = vsel %vm1105, %v2127, %v2090
        %v2129 = vrot.slane %v2090, 4
        %v2130 = vsel %vm1105, %v2114, %v2129
        %v2131 = vrot.slane %v1780, 4
        %v2132 = vsel %vm1105, %v2131, %v1693
        %v2133 = vrot.slane %v1693, 4
        %v2134 = vsel %vm1105, %v1780, %v2133
        %v2136 = vunpack.c.l.s4 1983009808
        %v2137 = vunpack.c.0.s8 %v2136
        %v2138 = vperm.slane %v2132, %v2137
        %v2140 = vunpack.c.l.s4 1983009808
        %v2141 = vunpack.c.0.s8 %v2140
        %v2142 = vperm.slane %v2134, %v2141
        %v2143 = vrot.slane %v1783, 4
        %v2144 = vsel %vm1105, %v2143, %v1777
        %v2145 = vrot.slane %v1777, 4
        %v2146 = vsel %vm1105, %v1783, %v2145
        %v2148 = vunpack.c.l.s4 1983009808
        %v2149 = vunpack.c.0.s8 %v2148
        %v2150 = vperm.slane %v2144, %v2149
        %v2152 = vunpack.c.l.s4 1983009808
        %v2153 = vunpack.c.0.s8 %v2152
        %v2154 = vperm.slane %v2146, %v2153
        %v2155 = vrot.slane %v1790, 4
        %v2156 = vsel %vm1105, %v2155, %v1713
        %v2157 = vrot.slane %v1713, 4
        %v2158 = vsel %vm1105, %v1790, %v2157
        %v2160 = vunpack.c.l.s4 1983009808
        %v2161 = vunpack.c.0.s8 %v2160
        %v2162 = vperm.slane %v2156, %v2161
        %v2164 = vunpack.c.l.s4 1983009808
        %v2165 = vunpack.c.0.s8 %v2164
        %v2166 = vperm.slane %v2158, %v2165
        %v2167 = vrot.slane %v1793, 4
        %v2168 = vsel %vm1105, %v2167, %v1787
        %v2169 = vrot.slane %v1787, 4
        %v2170 = vsel %vm1105, %v1793, %v2169
        %v2172 = vunpack.c.l.s4 1983009808
        %v2173 = vunpack.c.0.s8 %v2172
        %v2174 = vperm.slane %v2168, %v2173
        %v2176 = vunpack.c.l.s4 1983009808
        %v2177 = vunpack.c.0.s8 %v2176
        %v2178 = vperm.slane %v2170, %v2177
        %v2179 = vrot.slane %v2150, 4
        %v2180 = vsel %vm1105, %v2179, %v2138
        %v2181 = vrot.slane %v2138, 4
        %v2182 = vsel %vm1105, %v2150, %v2181
        %v2184 = vunpack.c.l.s4 1934713408
        %v2185 = vunpack.c.0.s8 %v2184
        %v2186 = vperm.slane %v2180, %v2185
        %v2188 = vunpack.c.l.s4 1934713408
        %v2189 = vunpack.c.0.s8 %v2188
        %v2190 = vperm.slane %v2182, %v2189
        %v2191 = vrot.slane %v2154, 4
        %v2192 = vsel %vm1105, %v2191, %v2142
        %v2193 = vrot.slane %v2142, 4
        %v2194 = vsel %vm1105, %v2154, %v2193
        %v2196 = vunpack.c.l.s4 1934713408
        %v2197 = vunpack.c.0.s8 %v2196
        %v2198 = vperm.slane %v2192, %v2197
        %v2200 = vunpack.c.l.s4 1934713408
        %v2201 = vunpack.c.0.s8 %v2200
        %v2202 = vperm.slane %v2194, %v2201
        %v2203 = vrot.slane %v2174, 4
        %v2204 = vsel %vm1105, %v2203, %v2162
        %v2205 = vrot.slane %v2162, 4
        %v2206 = vsel %vm1105, %v2174, %v2205
        %v2208 = vunpack.c.l.s4 1934713408
        %v2209 = vunpack.c.0.s8 %v2208
        %v2210 = vperm.slane %v2204, %v2209
        %v2212 = vunpack.c.l.s4 1934713408
        %v2213 = vunpack.c.0.s8 %v2212
        %v2214 = vperm.slane %v2206, %v2213
        %v2215 = vrot.slane %v2178, 4
        %v2216 = vsel %vm1105, %v2215, %v2166
        %v2217 = vrot.slane %v2166, 4
        %v2218 = vsel %vm1105, %v2178, %v2217
        %v2220 = vunpack.c.l.s4 1934713408
        %v2221 = vunpack.c.0.s8 %v2220
        %v2222 = vperm.slane %v2216, %v2221
        %v2224 = vunpack.c.l.s4 1934713408
        %v2225 = vunpack.c.0.s8 %v2224
        %v2226 = vperm.slane %v2218, %v2225
        %v2227 = vrot.slane %v2210, 4
        %v2228 = vsel %vm1105, %v2227, %v2186
        %v2229 = vrot.slane %v2186, 4
        %v2230 = vsel %vm1105, %v2210, %v2229
        %v2231 = vrot.slane %v2214, 4
        %v2232 = vsel %vm1105, %v2231, %v2190
        %v2233 = vrot.slane %v2190, 4
        %v2234 = vsel %vm1105, %v2214, %v2233
        %v2235 = vrot.slane %v2222, 4
        %v2236 = vsel %vm1105, %v2235, %v2198
        %v2237 = vrot.slane %v2198, 4
        %v2238 = vsel %vm1105, %v2222, %v2237
        %v2239 = vrot.slane %v2226, 4
        %v2240 = vsel %vm1105, %v2239, %v2202
        %v2241 = vrot.slane %v2202, 4
        %v2242 = vsel %vm1105, %v2226, %v2241
        %v2243 = vrot.slane %v989, 4
        %v2244 = vsel %vm1105, %v2243, %v925
        %v2245 = vrot.slane %v925, 4
        %v2246 = vsel %vm1105, %v989, %v2245
        %v2248 = vunpack.c.l.s4 1983009808
        %v2249 = vunpack.c.0.s8 %v2248
        %v2250 = vperm.slane %v2244, %v2249
        %v2252 = vunpack.c.l.s4 1983009808
        %v2253 = vunpack.c.0.s8 %v2252
        %v2254 = vperm.slane %v2246, %v2253
        %v2255 = vrot.slane %v1021, 4
        %v2256 = vsel %vm1105, %v2255, %v957
        %v2257 = vrot.slane %v957, 4
        %v2258 = vsel %vm1105, %v1021, %v2257
        %v2260 = vunpack.c.l.s4 1983009808
        %v2261 = vunpack.c.0.s8 %v2260
        %v2262 = vperm.slane %v2256, %v2261
        %v2264 = vunpack.c.l.s4 1983009808
        %v2265 = vunpack.c.0.s8 %v2264
        %v2266 = vperm.slane %v2258, %v2265
        %v2267 = vrot.slane %v2262, 4
        %v2268 = vsel %vm1105, %v2267, %v2250
        %v2269 = vrot.slane %v2250, 4
        %v2270 = vsel %vm1105, %v2262, %v2269
        %v2272 = vunpack.c.l.s4 1934713408
        %v2273 = vunpack.c.0.s8 %v2272
        %v2274 = vperm.slane %v2268, %v2273
        %v2276 = vunpack.c.l.s4 1934713408
        %v2277 = vunpack.c.0.s8 %v2276
        %v2278 = vperm.slane %v2270, %v2277
        %v2279 = vrot.slane %v2266, 4
        %v2280 = vsel %vm1105, %v2279, %v2254
        %v2281 = vrot.slane %v2254, 4
        %v2282 = vsel %vm1105, %v2266, %v2281
        %v2284 = vunpack.c.l.s4 1934713408
        %v2285 = vunpack.c.0.s8 %v2284
        %v2286 = vperm.slane %v2280, %v2285
        %v2288 = vunpack.c.l.s4 1934713408
        %v2289 = vunpack.c.0.s8 %v2288
        %v2290 = vperm.slane %v2282, %v2289
        %v2291 = vrot.slane %v2274, 4
        %v2292 = vsel %vm1105, 0.0, %v2291
        %v2293 = vrot.slane %v2278, 4
        %v2294 = vsel %vm1105, 0.0, %v2293
        %v2295 = vrot.slane %v2286, 4
        %v2296 = vsel %vm1105, 0.0, %v2295
        %v2297 = vrot.slane %v2290, 4
        %v2298 = vsel %vm1105, 0.0, %v2297
        %v2299 = vrot.slane %v990, 4
        %v2300 = vsel %vm1105, %v2299, %v926
        %v2301 = vrot.slane %v926, 4
        %v2302 = vsel %vm1105, %v990, %v2301
        %v2304 = vunpack.c.l.s4 1983009808
        %v2305 = vunpack.c.0.s8 %v2304
        %v2306 = vperm.slane %v2300, %v2305
        %v2308 = vunpack.c.l.s4 1983009808
        %v2309 = vunpack.c.0.s8 %v2308
        %v2310 = vperm.slane %v2302, %v2309
        %v2311 = vrot.slane %v1022, 4
        %v2312 = vsel %vm1105, %v2311, %v958
        %v2313 = vrot.slane %v958, 4
        %v2314 = vsel %vm1105, %v1022, %v2313
        %v2316 = vunpack.c.l.s4 1983009808
        %v2317 = vunpack.c.0.s8 %v2316
        %v2318 = vperm.slane %v2312, %v2317
        %v2320 = vunpack.c.l.s4 1983009808
        %v2321 = vunpack.c.0.s8 %v2320
        %v2322 = vperm.slane %v2314, %v2321
        %v2323 = vrot.slane %v2318, 4
        %v2324 = vsel %vm1105, %v2323, %v2306
        %v2325 = vrot.slane %v2306, 4
        %v2326 = vsel %vm1105, %v2318, %v2325
        %v2328 = vunpack.c.l.s4 1934713408
        %v2329 = vunpack.c.0.s8 %v2328
        %v2330 = vperm.slane %v2324, %v2329
        %v2332 = vunpack.c.l.s4 1934713408
        %v2333 = vunpack.c.0.s8 %v2332
        %v2334 = vperm.slane %v2326, %v2333
        %v2335 = vrot.slane %v2322, 4
        %v2336 = vsel %vm1105, %v2335, %v2310
        %v2337 = vrot.slane %v2310, 4
        %v2338 = vsel %vm1105, %v2322, %v2337
        %v2340 = vunpack.c.l.s4 1934713408
        %v2341 = vunpack.c.0.s8 %v2340
        %v2342 = vperm.slane %v2336, %v2341
        %v2344 = vunpack.c.l.s4 1934713408
        %v2345 = vunpack.c.0.s8 %v2344
        %v2346 = vperm.slane %v2338, %v2345
        %v2347 = vrot.slane %v2330, 4
        %v2348 = vsel %vm1105, 0.0, %v2347
        %v2349 = vrot.slane %v2334, 4
        %v2350 = vsel %vm1105, 0.0, %v2349
        %v2351 = vrot.slane %v2342, 4
        %v2352 = vsel %vm1105, 0.0, %v2351
        %v2353 = vrot.slane %v2346, 4
        %v2354 = vsel %vm1105, 0.0, %v2353
        %v2355 = vrot.slane %v991, 4
        %v2356 = vsel %vm1105, %v2355, %v927
        %v2357 = vrot.slane %v927, 4
        %v2358 = vsel %vm1105, %v991, %v2357
        %v2360 = vunpack.c.l.s4 1983009808
        %v2361 = vunpack.c.0.s8 %v2360
        %v2362 = vperm.slane %v2356, %v2361
        %v2364 = vunpack.c.l.s4 1983009808
        %v2365 = vunpack.c.0.s8 %v2364
        %v2366 = vperm.slane %v2358, %v2365
        %v2367 = vrot.slane %v1023, 4
        %v2368 = vsel %vm1105, %v2367, %v959
        %v2369 = vrot.slane %v959, 4
        %v2370 = vsel %vm1105, %v1023, %v2369
        %v2372 = vunpack.c.l.s4 1983009808
        %v2373 = vunpack.c.0.s8 %v2372
        %v2374 = vperm.slane %v2368, %v2373
        %v2376 = vunpack.c.l.s4 1983009808
        %v2377 = vunpack.c.0.s8 %v2376
        %v2378 = vperm.slane %v2370, %v2377
        %v2379 = vrot.slane %v2374, 4
        %v2380 = vsel %vm1105, %v2379, %v2362
        %v2381 = vrot.slane %v2362, 4
        %v2382 = vsel %vm1105, %v2374, %v2381
        %v2384 = vunpack.c.l.s4 1934713408
        %v2385 = vunpack.c.0.s8 %v2384
        %v2386 = vperm.slane %v2380, %v2385
        %v2388 = vunpack.c.l.s4 1934713408
        %v2389 = vunpack.c.0.s8 %v2388
        %v2390 = vperm.slane %v2382, %v2389
        %v2391 = vrot.slane %v2378, 4
        %v2392 = vsel %vm1105, %v2391, %v2366
        %v2393 = vrot.slane %v2366, 4
        %v2394 = vsel %vm1105, %v2378, %v2393
        %v2396 = vunpack.c.l.s4 1934713408
        %v2397 = vunpack.c.0.s8 %v2396
        %v2398 = vperm.slane %v2392, %v2397
        %v2400 = vunpack.c.l.s4 1934713408
        %v2401 = vunpack.c.0.s8 %v2400
        %v2402 = vperm.slane %v2394, %v2401
        %v2403 = vrot.slane %v2386, 4
        %v2404 = vsel %vm1105, 0.0, %v2403
        %v2405 = vrot.slane %v2390, 4
        %v2406 = vsel %vm1105, 0.0, %v2405
        %v2407 = vrot.slane %v2398, 4
        %v2408 = vsel %vm1105, 0.0, %v2407
        %v2409 = vrot.slane %v2402, 4
        %v2410 = vsel %vm1105, 0.0, %v2409
        %v2411 = vrot.slane %v992, 4
        %v2412 = vsel %vm1105, %v2411, %v928
        %v2413 = vrot.slane %v928, 4
        %v2414 = vsel %vm1105, %v992, %v2413
        %v2416 = vunpack.c.l.s4 1983009808
        %v2417 = vunpack.c.0.s8 %v2416
        %v2418 = vperm.slane %v2412, %v2417
        %v2420 = vunpack.c.l.s4 1983009808
        %v2421 = vunpack.c.0.s8 %v2420
        %v2422 = vperm.slane %v2414, %v2421
        %v2423 = vrot.slane %v1024, 4
        %v2424 = vsel %vm1105, %v2423, %v960
        %v2425 = vrot.slane %v960, 4
        %v2426 = vsel %vm1105, %v1024, %v2425
        %v2428 = vunpack.c.l.s4 1983009808
        %v2429 = vunpack.c.0.s8 %v2428
        %v2430 = vperm.slane %v2424, %v2429
        %v2432 = vunpack.c.l.s4 1983009808
        %v2433 = vunpack.c.0.s8 %v2432
        %v2434 = vperm.slane %v2426, %v2433
        %v2435 = vrot.slane %v2430, 4
        %v2436 = vsel %vm1105, %v2435, %v2418
        %v2437 = vrot.slane %v2418, 4
        %v2438 = vsel %vm1105, %v2430, %v2437
        %v2440 = vunpack.c.l.s4 1934713408
        %v2441 = vunpack.c.0.s8 %v2440
        %v2442 = vperm.slane %v2436, %v2441
        %v2444 = vunpack.c.l.s4 1934713408
        %v2445 = vunpack.c.0.s8 %v2444
        %v2446 = vperm.slane %v2438, %v2445
        %v2447 = vrot.slane %v2434, 4
        %v2448 = vsel %vm1105, %v2447, %v2422
        %v2449 = vrot.slane %v2422, 4
        %v2450 = vsel %vm1105, %v2434, %v2449
        %v2452 = vunpack.c.l.s4 1934713408
        %v2453 = vunpack.c.0.s8 %v2452
        %v2454 = vperm.slane %v2448, %v2453
        %v2456 = vunpack.c.l.s4 1934713408
        %v2457 = vunpack.c.0.s8 %v2456
        %v2458 = vperm.slane %v2450, %v2457
        %v2459 = vrot.slane %v2442, 4
        %v2460 = vsel %vm1105, 0.0, %v2459
        %v2461 = vrot.slane %v2446, 4
        %v2462 = vsel %vm1105, 0.0, %v2461
        %v2463 = vrot.slane %v2454, 4
        %v2464 = vsel %vm1105, 0.0, %v2463
        %v2465 = vrot.slane %v2458, 4
        %v2466 = vsel %vm1105, 0.0, %v2465
        %2468 = vrot.lane.b32.xlu0 %v2292, 32
        %v2469 = vpop.permute.xlu0 %2468
        %2472 = vrot.lane.b32.xlu0 %v2278, 64
        %v2473 = vpop.permute.xlu0 %2472
        %2476 = vrot.lane.b32.xlu0 %v2294, 96
        %v2477 = vpop.permute.xlu0 %2476
        %2480 = vrot.lane.b32.xlu0 %v2296, 32
        %v2481 = vpop.permute.xlu0 %2480
        %2484 = vrot.lane.b32.xlu0 %v2290, 64
        %v2485 = vpop.permute.xlu0 %2484
        %2488 = vrot.lane.b32.xlu0 %v2298, 96
        %v2489 = vpop.permute.xlu0 %2488
        %2492 = vrot.lane.b32.xlu0 %v2348, 32
        %v2493 = vpop.permute.xlu0 %2492
        %2496 = vrot.lane.b32.xlu0 %v2334, 64
        %v2497 = vpop.permute.xlu0 %2496
        %2500 = vrot.lane.b32.xlu0 %v2350, 96
        %v2501 = vpop.permute.xlu0 %2500
        %2504 = vrot.lane.b32.xlu0 %v2352, 32
        %v2505 = vpop.permute.xlu0 %2504
        %2508 = vrot.lane.b32.xlu0 %v2346, 64
        %v2509 = vpop.permute.xlu0 %2508
        %2512 = vrot.lane.b32.xlu0 %v2354, 96
        %v2513 = vpop.permute.xlu0 %2512
        %2516 = vrot.lane.b32.xlu0 %v2404, 32
        %v2517 = vpop.permute.xlu0 %2516
        %2520 = vrot.lane.b32.xlu0 %v2390, 64
        %v2521 = vpop.permute.xlu0 %2520
        %2524 = vrot.lane.b32.xlu0 %v2406, 96
        %v2525 = vpop.permute.xlu0 %2524
        %2528 = vrot.lane.b32.xlu0 %v2408, 32
        %v2529 = vpop.permute.xlu0 %2528
        %2532 = vrot.lane.b32.xlu0 %v2402, 64
        %v2533 = vpop.permute.xlu0 %2532
        %2536 = vrot.lane.b32.xlu0 %v2410, 96
        %v2537 = vpop.permute.xlu0 %2536
        %2540 = vrot.lane.b32.xlu0 %v2460, 32
        %v2541 = vpop.permute.xlu0 %2540
        %2544 = vrot.lane.b32.xlu0 %v2446, 64
        %v2545 = vpop.permute.xlu0 %2544
        %2548 = vrot.lane.b32.xlu0 %v2462, 96
        %v2549 = vpop.permute.xlu0 %2548
        %2552 = vrot.lane.b32.xlu0 %v2464, 32
        %v2553 = vpop.permute.xlu0 %2552
        %2556 = vrot.lane.b32.xlu0 %v2458, 64
        %v2557 = vpop.permute.xlu0 %2556
        %2560 = vrot.lane.b32.xlu0 %v2466, 96
        %v2561 = vpop.permute.xlu0 %2560
        %v2563 = vsel %vm1425, %v2274, %v2469
        %v2564 = vsel %vm1427, %v2563, %v2473
        %v2565 = vsel %vm1429, %v2564, %v2477
        %v2566 = vsel %vm1425, %v2286, %v2481
        %v2567 = vsel %vm1427, %v2566, %v2485
        %v2568 = vsel %vm1429, %v2567, %v2489
        %v2569 = vsel %vm1425, %v2330, %v2493
        %v2570 = vsel %vm1427, %v2569, %v2497
        %v2571 = vsel %vm1429, %v2570, %v2501
        %v2572 = vsel %vm1425, %v2342, %v2505
        %v2573 = vsel %vm1427, %v2572, %v2509
        %v2574 = vsel %vm1429, %v2573, %v2513
        %v2575 = vsel %vm1425, %v2386, %v2517
        %v2576 = vsel %vm1427, %v2575, %v2521
        %v2577 = vsel %vm1429, %v2576, %v2525
        %v2578 = vsel %vm1425, %v2398, %v2529
        %v2579 = vsel %vm1427, %v2578, %v2533
        %v2580 = vsel %vm1429, %v2579, %v2537
        %v2581 = vsel %vm1425, %v2442, %v2541
        %v2582 = vsel %vm1427, %v2581, %v2545
        %v2583 = vsel %vm1429, %v2582, %v2549
        %v2584 = vsel %vm1425, %v2454, %v2553
        %v2585 = vsel %vm1427, %v2584, %v2557
        %v2586 = vsel %vm1429, %v2585, %v2561
        %v2587 = vrot.slane %v1896, 4
        %v2588 = vsel %vm1105, %v2587, %v1892
        %v2589 = vrot.slane %v1892, 4
        %v2590 = vsel %vm1105, %v1896, %v2589
        %v2592 = vunpack.c.l.s4 1983009808
        %v2593 = vunpack.c.0.s8 %v2592
        %v2594 = vperm.slane %v2588, %v2593
        %v2596 = vunpack.c.l.s4 1983009808
        %v2597 = vunpack.c.0.s8 %v2596
        %v2598 = vperm.slane %v2590, %v2597
        %v2599 = vrot.slane %v1898, 4
        %v2600 = vsel %vm1105, %v2599, %v1894
        %v2601 = vrot.slane %v1894, 4
        %v2602 = vsel %vm1105, %v1898, %v2601
        %v2604 = vunpack.c.l.s4 1983009808
        %v2605 = vunpack.c.0.s8 %v2604
        %v2606 = vperm.slane %v2600, %v2605
        %v2608 = vunpack.c.l.s4 1983009808
        %v2609 = vunpack.c.0.s8 %v2608
        %v2610 = vperm.slane %v2602, %v2609
        %v2611 = vrot.slane %v1904, 4
        %v2612 = vsel %vm1105, %v2611, %v1900
        %v2613 = vrot.slane %v1900, 4
        %v2614 = vsel %vm1105, %v1904, %v2613
        %v2616 = vunpack.c.l.s4 1983009808
        %v2617 = vunpack.c.0.s8 %v2616
        %v2618 = vperm.slane %v2612, %v2617
        %v2620 = vunpack.c.l.s4 1983009808
        %v2621 = vunpack.c.0.s8 %v2620
        %v2622 = vperm.slane %v2614, %v2621
        %v2623 = vrot.slane %v1906, 4
        %v2624 = vsel %vm1105, %v2623, %v1902
        %v2625 = vrot.slane %v1902, 4
        %v2626 = vsel %vm1105, %v1906, %v2625
        %v2628 = vunpack.c.l.s4 1983009808
        %v2629 = vunpack.c.0.s8 %v2628
        %v2630 = vperm.slane %v2624, %v2629
        %v2632 = vunpack.c.l.s4 1983009808
        %v2633 = vunpack.c.0.s8 %v2632
        %v2634 = vperm.slane %v2626, %v2633
        %v2635 = vrot.slane %v2606, 4
        %v2636 = vsel %vm1105, %v2635, %v2594
        %v2637 = vrot.slane %v2594, 4
        %v2638 = vsel %vm1105, %v2606, %v2637
        %v2640 = vunpack.c.l.s4 1934713408
        %v2641 = vunpack.c.0.s8 %v2640
        %v2642 = vperm.slane %v2636, %v2641
        %v2644 = vunpack.c.l.s4 1934713408
        %v2645 = vunpack.c.0.s8 %v2644
        %v2646 = vperm.slane %v2638, %v2645
        %v2647 = vrot.slane %v2610, 4
        %v2648 = vsel %vm1105, %v2647, %v2598
        %v2649 = vrot.slane %v2598, 4
        %v2650 = vsel %vm1105, %v2610, %v2649
        %v2652 = vunpack.c.l.s4 1934713408
        %v2653 = vunpack.c.0.s8 %v2652
        %v2654 = vperm.slane %v2648, %v2653
        %v2656 = vunpack.c.l.s4 1934713408
        %v2657 = vunpack.c.0.s8 %v2656
        %v2658 = vperm.slane %v2650, %v2657
        %v2659 = vrot.slane %v2630, 4
        %v2660 = vsel %vm1105, %v2659, %v2618
        %v2661 = vrot.slane %v2618, 4
        %v2662 = vsel %vm1105, %v2630, %v2661
        %v2664 = vunpack.c.l.s4 1934713408
        %v2665 = vunpack.c.0.s8 %v2664
        %v2666 = vperm.slane %v2660, %v2665
        %v2668 = vunpack.c.l.s4 1934713408
        %v2669 = vunpack.c.0.s8 %v2668
        %v2670 = vperm.slane %v2662, %v2669
        %v2671 = vrot.slane %v2634, 4
        %v2672 = vsel %vm1105, %v2671, %v2622
        %v2673 = vrot.slane %v2622, 4
        %v2674 = vsel %vm1105, %v2634, %v2673
        %v2676 = vunpack.c.l.s4 1934713408
        %v2677 = vunpack.c.0.s8 %v2676
        %v2678 = vperm.slane %v2672, %v2677
        %v2680 = vunpack.c.l.s4 1934713408
        %v2681 = vunpack.c.0.s8 %v2680
        %v2682 = vperm.slane %v2674, %v2681
        %v2683 = vrot.slane %v2666, 4
        %v2684 = vsel %vm1105, %v2683, %v2642
        %v2685 = vrot.slane %v2642, 4
        %v2686 = vsel %vm1105, %v2666, %v2685
        %v2687 = vrot.slane %v2670, 4
        %v2688 = vsel %vm1105, %v2687, %v2646
        %v2689 = vrot.slane %v2646, 4
        %v2690 = vsel %vm1105, %v2670, %v2689
        %v2691 = vrot.slane %v2678, 4
        %v2692 = vsel %vm1105, %v2691, %v2654
        %v2693 = vrot.slane %v2654, 4
        %v2694 = vsel %vm1105, %v2678, %v2693
        %v2695 = vrot.slane %v2682, 4
        %v2696 = vsel %vm1105, %v2695, %v2658
        %v2697 = vrot.slane %v2658, 4
        %v2698 = vsel %vm1105, %v2682, %v2697
        %v2699 = vrot.slane %v2008, 4
        %v2700 = vsel %vm1105, %v2699, %v2004
        %v2701 = vrot.slane %v2004, 4
        %v2702 = vsel %vm1105, %v2008, %v2701
        %v2704 = vunpack.c.l.s4 1983009808
        %v2705 = vunpack.c.0.s8 %v2704
        %v2706 = vperm.slane %v2700, %v2705
        %v2708 = vunpack.c.l.s4 1983009808
        %v2709 = vunpack.c.0.s8 %v2708
        %v2710 = vperm.slane %v2702, %v2709
        %v2711 = vrot.slane %v2010, 4
        %v2712 = vsel %vm1105, %v2711, %v2006
        %v2713 = vrot.slane %v2006, 4
        %v2714 = vsel %vm1105, %v2010, %v2713
        %v2716 = vunpack.c.l.s4 1983009808
        %v2717 = vunpack.c.0.s8 %v2716
        %v2718 = vperm.slane %v2712, %v2717
        %v2720 = vunpack.c.l.s4 1983009808
        %v2721 = vunpack.c.0.s8 %v2720
        %v2722 = vperm.slane %v2714, %v2721
        %v2723 = vrot.slane %v2016, 4
        %v2724 = vsel %vm1105, %v2723, %v2012
        %v2725 = vrot.slane %v2012, 4
        %v2726 = vsel %vm1105, %v2016, %v2725
        %v2728 = vunpack.c.l.s4 1983009808
        %v2729 = vunpack.c.0.s8 %v2728
        %v2730 = vperm.slane %v2724, %v2729
        %v2732 = vunpack.c.l.s4 1983009808
        %v2733 = vunpack.c.0.s8 %v2732
        %v2734 = vperm.slane %v2726, %v2733
        %v2735 = vrot.slane %v2018, 4
        %v2736 = vsel %vm1105, %v2735, %v2014
        %v2737 = vrot.slane %v2014, 4
        %v2738 = vsel %vm1105, %v2018, %v2737
        %v2740 = vunpack.c.l.s4 1983009808
        %v2741 = vunpack.c.0.s8 %v2740
        %v2742 = vperm.slane %v2736, %v2741
        %v2744 = vunpack.c.l.s4 1983009808
        %v2745 = vunpack.c.0.s8 %v2744
        %v2746 = vperm.slane %v2738, %v2745
        %v2747 = vrot.slane %v2718, 4
        %v2748 = vsel %vm1105, %v2747, %v2706
        %v2749 = vrot.slane %v2706, 4
        %v2750 = vsel %vm1105, %v2718, %v2749
        %v2752 = vunpack.c.l.s4 1934713408
        %v2753 = vunpack.c.0.s8 %v2752
        %v2754 = vperm.slane %v2748, %v2753
        %v2756 = vunpack.c.l.s4 1934713408
        %v2757 = vunpack.c.0.s8 %v2756
        %v2758 = vperm.slane %v2750, %v2757
        %v2759 = vrot.slane %v2722, 4
        %v2760 = vsel %vm1105, %v2759, %v2710
        %v2761 = vrot.slane %v2710, 4
        %v2762 = vsel %vm1105, %v2722, %v2761
        %v2764 = vunpack.c.l.s4 1934713408
        %v2765 = vunpack.c.0.s8 %v2764
        %v2766 = vperm.slane %v2760, %v2765
        %v2768 = vunpack.c.l.s4 1934713408
        %v2769 = vunpack.c.0.s8 %v2768
        %v2770 = vperm.slane %v2762, %v2769
        %v2771 = vrot.slane %v2742, 4
        %v2772 = vsel %vm1105, %v2771, %v2730
        %v2773 = vrot.slane %v2730, 4
        %v2774 = vsel %vm1105, %v2742, %v2773
        %v2776 = vunpack.c.l.s4 1934713408
        %v2777 = vunpack.c.0.s8 %v2776
        %v2778 = vperm.slane %v2772, %v2777
        %v2780 = vunpack.c.l.s4 1934713408
        %v2781 = vunpack.c.0.s8 %v2780
        %v2782 = vperm.slane %v2774, %v2781
        %v2783 = vrot.slane %v2746, 4
        %v2784 = vsel %vm1105, %v2783, %v2734
        %v2785 = vrot.slane %v2734, 4
        %v2786 = vsel %vm1105, %v2746, %v2785
        %v2788 = vunpack.c.l.s4 1934713408
        %v2789 = vunpack.c.0.s8 %v2788
        %v2790 = vperm.slane %v2784, %v2789
        %v2792 = vunpack.c.l.s4 1934713408
        %v2793 = vunpack.c.0.s8 %v2792
        %v2794 = vperm.slane %v2786, %v2793
        %v2795 = vrot.slane %v2778, 4
        %v2796 = vsel %vm1105, %v2795, %v2754
        %v2797 = vrot.slane %v2754, 4
        %v2798 = vsel %vm1105, %v2778, %v2797
        %v2799 = vrot.slane %v2782, 4
        %v2800 = vsel %vm1105, %v2799, %v2758
        %v2801 = vrot.slane %v2758, 4
        %v2802 = vsel %vm1105, %v2782, %v2801
        %v2803 = vrot.slane %v2790, 4
        %v2804 = vsel %vm1105, %v2803, %v2766
        %v2805 = vrot.slane %v2766, 4
        %v2806 = vsel %vm1105, %v2790, %v2805
        %v2807 = vrot.slane %v2794, 4
        %v2808 = vsel %vm1105, %v2807, %v2770
        %v2809 = vrot.slane %v2770, 4
        %v2810 = vsel %vm1105, %v2794, %v2809
        %v2811 = vrot.slane %v2120, 4
        %v2812 = vsel %vm1105, %v2811, %v2116
        %v2813 = vrot.slane %v2116, 4
        %v2814 = vsel %vm1105, %v2120, %v2813
        %v2816 = vunpack.c.l.s4 1983009808
        %v2817 = vunpack.c.0.s8 %v2816
        %v2818 = vperm.slane %v2812, %v2817
        %v2820 = vunpack.c.l.s4 1983009808
        %v2821 = vunpack.c.0.s8 %v2820
        %v2822 = vperm.slane %v2814, %v2821
        %v2823 = vrot.slane %v2122, 4
        %v2824 = vsel %vm1105, %v2823, %v2118
        %v2825 = vrot.slane %v2118, 4
        %v2826 = vsel %vm1105, %v2122, %v2825
        %v2828 = vunpack.c.l.s4 1983009808
        %v2829 = vunpack.c.0.s8 %v2828
        %v2830 = vperm.slane %v2824, %v2829
        %v2832 = vunpack.c.l.s4 1983009808
        %v2833 = vunpack.c.0.s8 %v2832
        %v2834 = vperm.slane %v2826, %v2833
        %v2835 = vrot.slane %v2128, 4
        %v2836 = vsel %vm1105, %v2835, %v2124
        %v2837 = vrot.slane %v2124, 4
        %v2838 = vsel %vm1105, %v2128, %v2837
        %v2840 = vunpack.c.l.s4 1983009808
        %v2841 = vunpack.c.0.s8 %v2840
        %v2842 = vperm.slane %v2836, %v2841
        %v2844 = vunpack.c.l.s4 1983009808
        %v2845 = vunpack.c.0.s8 %v2844
        %v2846 = vperm.slane %v2838, %v2845
        %v2847 = vrot.slane %v2130, 4
        %v2848 = vsel %vm1105, %v2847, %v2126
        %v2849 = vrot.slane %v2126, 4
        %v2850 = vsel %vm1105, %v2130, %v2849
        %v2852 = vunpack.c.l.s4 1983009808
        %v2853 = vunpack.c.0.s8 %v2852
        %v2854 = vperm.slane %v2848, %v2853
        %v2856 = vunpack.c.l.s4 1983009808
        %v2857 = vunpack.c.0.s8 %v2856
        %v2858 = vperm.slane %v2850, %v2857
        %v2859 = vrot.slane %v2830, 4
        %v2860 = vsel %vm1105, %v2859, %v2818
        %v2861 = vrot.slane %v2818, 4
        %v2862 = vsel %vm1105, %v2830, %v2861
        %v2864 = vunpack.c.l.s4 1934713408
        %v2865 = vunpack.c.0.s8 %v2864
        %v2866 = vperm.slane %v2860, %v2865
        %v2868 = vunpack.c.l.s4 1934713408
        %v2869 = vunpack.c.0.s8 %v2868
        %v2870 = vperm.slane %v2862, %v2869
        %v2871 = vrot.slane %v2834, 4
        %v2872 = vsel %vm1105, %v2871, %v2822
        %v2873 = vrot.slane %v2822, 4
        %v2874 = vsel %vm1105, %v2834, %v2873
        %v2876 = vunpack.c.l.s4 1934713408
        %v2877 = vunpack.c.0.s8 %v2876
        %v2878 = vperm.slane %v2872, %v2877
        %v2880 = vunpack.c.l.s4 1934713408
        %v2881 = vunpack.c.0.s8 %v2880
        %v2882 = vperm.slane %v2874, %v2881
        %v2883 = vrot.slane %v2854, 4
        %v2884 = vsel %vm1105, %v2883, %v2842
        %v2885 = vrot.slane %v2842, 4
        %v2886 = vsel %vm1105, %v2854, %v2885
        %v2888 = vunpack.c.l.s4 1934713408
        %v2889 = vunpack.c.0.s8 %v2888
        %v2890 = vperm.slane %v2884, %v2889
        %v2892 = vunpack.c.l.s4 1934713408
        %v2893 = vunpack.c.0.s8 %v2892
        %v2894 = vperm.slane %v2886, %v2893
        %v2895 = vrot.slane %v2858, 4
        %v2896 = vsel %vm1105, %v2895, %v2846
        %v2897 = vrot.slane %v2846, 4
        %v2898 = vsel %vm1105, %v2858, %v2897
        %v2900 = vunpack.c.l.s4 1934713408
        %v2901 = vunpack.c.0.s8 %v2900
        %v2902 = vperm.slane %v2896, %v2901
        %v2904 = vunpack.c.l.s4 1934713408
        %v2905 = vunpack.c.0.s8 %v2904
        %v2906 = vperm.slane %v2898, %v2905
        %v2907 = vrot.slane %v2890, 4
        %v2908 = vsel %vm1105, %v2907, %v2866
        %v2909 = vrot.slane %v2866, 4
        %v2910 = vsel %vm1105, %v2890, %v2909
        %v2911 = vrot.slane %v2894, 4
        %v2912 = vsel %vm1105, %v2911, %v2870
        %v2913 = vrot.slane %v2870, 4
        %v2914 = vsel %vm1105, %v2894, %v2913
        %v2915 = vrot.slane %v2902, 4
        %v2916 = vsel %vm1105, %v2915, %v2878
        %v2917 = vrot.slane %v2878, 4
        %v2918 = vsel %vm1105, %v2902, %v2917
        %v2919 = vrot.slane %v2906, 4
        %v2920 = vsel %vm1105, %v2919, %v2882
        %v2921 = vrot.slane %v2882, 4
        %v2922 = vsel %vm1105, %v2906, %v2921
        %v2923 = vrot.slane %v2232, 4
        %v2924 = vsel %vm1105, %v2923, %v2228
        %v2925 = vrot.slane %v2228, 4
        %v2926 = vsel %vm1105, %v2232, %v2925
        %v2928 = vunpack.c.l.s4 1983009808
        %v2929 = vunpack.c.0.s8 %v2928
        %v2930 = vperm.slane %v2924, %v2929
        %v2932 = vunpack.c.l.s4 1983009808
        %v2933 = vunpack.c.0.s8 %v2932
        %v2934 = vperm.slane %v2926, %v2933
        %v2935 = vrot.slane %v2234, 4
        %v2936 = vsel %vm1105, %v2935, %v2230
        %v2937 = vrot.slane %v2230, 4
        %v2938 = vsel %vm1105, %v2234, %v2937
        %v2940 = vunpack.c.l.s4 1983009808
        %v2941 = vunpack.c.0.s8 %v2940
        %v2942 = vperm.slane %v2936, %v2941
        %v2944 = vunpack.c.l.s4 1983009808
        %v2945 = vunpack.c.0.s8 %v2944
        %v2946 = vperm.slane %v2938, %v2945
        %v2947 = vrot.slane %v2240, 4
        %v2948 = vsel %vm1105, %v2947, %v2236
        %v2949 = vrot.slane %v2236, 4
        %v2950 = vsel %vm1105, %v2240, %v2949
        %v2952 = vunpack.c.l.s4 1983009808
        %v2953 = vunpack.c.0.s8 %v2952
        %v2954 = vperm.slane %v2948, %v2953
        %v2956 = vunpack.c.l.s4 1983009808
        %v2957 = vunpack.c.0.s8 %v2956
        %v2958 = vperm.slane %v2950, %v2957
        %v2959 = vrot.slane %v2242, 4
        %v2960 = vsel %vm1105, %v2959, %v2238
        %v2961 = vrot.slane %v2238, 4
        %v2962 = vsel %vm1105, %v2242, %v2961
        %v2964 = vunpack.c.l.s4 1983009808
        %v2965 = vunpack.c.0.s8 %v2964
        %v2966 = vperm.slane %v2960, %v2965
        %v2968 = vunpack.c.l.s4 1983009808
        %v2969 = vunpack.c.0.s8 %v2968
        %v2970 = vperm.slane %v2962, %v2969
        %v2971 = vrot.slane %v2942, 4
        %v2972 = vsel %vm1105, %v2971, %v2930
        %v2973 = vrot.slane %v2930, 4
        %v2974 = vsel %vm1105, %v2942, %v2973
        %v2976 = vunpack.c.l.s4 1934713408
        %v2977 = vunpack.c.0.s8 %v2976
        %v2978 = vperm.slane %v2972, %v2977
        %v2980 = vunpack.c.l.s4 1934713408
        %v2981 = vunpack.c.0.s8 %v2980
        %v2982 = vperm.slane %v2974, %v2981
        %v2983 = vrot.slane %v2946, 4
        %v2984 = vsel %vm1105, %v2983, %v2934
        %v2985 = vrot.slane %v2934, 4
        %v2986 = vsel %vm1105, %v2946, %v2985
        %v2988 = vunpack.c.l.s4 1934713408
        %v2989 = vunpack.c.0.s8 %v2988
        %v2990 = vperm.slane %v2984, %v2989
        %v2992 = vunpack.c.l.s4 1934713408
        %v2993 = vunpack.c.0.s8 %v2992
        %v2994 = vperm.slane %v2986, %v2993
        %v2995 = vrot.slane %v2966, 4
        %v2996 = vsel %vm1105, %v2995, %v2954
        %v2997 = vrot.slane %v2954, 4
        %v2998 = vsel %vm1105, %v2966, %v2997
        %v3000 = vunpack.c.l.s4 1934713408
        %v3001 = vunpack.c.0.s8 %v3000
        %v3002 = vperm.slane %v2996, %v3001
        %v3004 = vunpack.c.l.s4 1934713408
        %v3005 = vunpack.c.0.s8 %v3004
        %v3006 = vperm.slane %v2998, %v3005
        %v3007 = vrot.slane %v2970, 4
        %v3008 = vsel %vm1105, %v3007, %v2958
        %v3009 = vrot.slane %v2958, 4
        %v3010 = vsel %vm1105, %v2970, %v3009
        %v3012 = vunpack.c.l.s4 1934713408
        %v3013 = vunpack.c.0.s8 %v3012
        %v3014 = vperm.slane %v3008, %v3013
        %v3016 = vunpack.c.l.s4 1934713408
        %v3017 = vunpack.c.0.s8 %v3016
        %v3018 = vperm.slane %v3010, %v3017
        %v3019 = vrot.slane %v3002, 4
        %v3020 = vsel %vm1105, %v3019, %v2978
        %v3021 = vrot.slane %v2978, 4
        %v3022 = vsel %vm1105, %v3002, %v3021
        %v3023 = vrot.slane %v3006, 4
        %v3024 = vsel %vm1105, %v3023, %v2982
        %v3025 = vrot.slane %v2982, 4
        %v3026 = vsel %vm1105, %v3006, %v3025
        %v3027 = vrot.slane %v3014, 4
        %v3028 = vsel %vm1105, %v3027, %v2990
        %v3029 = vrot.slane %v2990, 4
        %v3030 = vsel %vm1105, %v3014, %v3029
        %v3031 = vrot.slane %v3018, 4
        %v3032 = vsel %vm1105, %v3031, %v2994
        %v3033 = vrot.slane %v2994, 4
        %v3034 = vsel %vm1105, %v3018, %v3033
        %3036 = vrot.lane.b32.xlu0 %v2686, 32
        %v3037 = vpop.permute.xlu0 %3036
        %3040 = vrot.lane.b32.xlu0 %v2688, 64
        %v3041 = vpop.permute.xlu0 %3040
        %3044 = vrot.lane.b32.xlu0 %v2690, 96
        %v3045 = vpop.permute.xlu0 %3044
        %3048 = vrot.lane.b32.xlu0 %v2694, 32
        %v3049 = vpop.permute.xlu0 %3048
        %3052 = vrot.lane.b32.xlu0 %v2696, 64
        %v3053 = vpop.permute.xlu0 %3052
        %3056 = vrot.lane.b32.xlu0 %v2698, 96
        %v3057 = vpop.permute.xlu0 %3056
        %3060 = vrot.lane.b32.xlu0 %v2798, 32
        %v3061 = vpop.permute.xlu0 %3060
        %3064 = vrot.lane.b32.xlu0 %v2800, 64
        %v3065 = vpop.permute.xlu0 %3064
        %3068 = vrot.lane.b32.xlu0 %v2802, 96
        %v3069 = vpop.permute.xlu0 %3068
        %3072 = vrot.lane.b32.xlu0 %v2806, 32
        %v3073 = vpop.permute.xlu0 %3072
        %3076 = vrot.lane.b32.xlu0 %v2808, 64
        %v3077 = vpop.permute.xlu0 %3076
        %3080 = vrot.lane.b32.xlu0 %v2810, 96
        %v3081 = vpop.permute.xlu0 %3080
        %3084 = vrot.lane.b32.xlu0 %v2910, 32
        %v3085 = vpop.permute.xlu0 %3084
        %3088 = vrot.lane.b32.xlu0 %v2912, 64
        %v3089 = vpop.permute.xlu0 %3088
        %3092 = vrot.lane.b32.xlu0 %v2914, 96
        %v3093 = vpop.permute.xlu0 %3092
        %3096 = vrot.lane.b32.xlu0 %v2918, 32
        %v3097 = vpop.permute.xlu0 %3096
        %3100 = vrot.lane.b32.xlu0 %v2920, 64
        %v3101 = vpop.permute.xlu0 %3100
        %3104 = vrot.lane.b32.xlu0 %v2922, 96
        %v3105 = vpop.permute.xlu0 %3104
        %3108 = vrot.lane.b32.xlu0 %v3022, 32
        %v3109 = vpop.permute.xlu0 %3108
        %3112 = vrot.lane.b32.xlu0 %v3024, 64
        %v3113 = vpop.permute.xlu0 %3112
        %3116 = vrot.lane.b32.xlu0 %v3026, 96
        %v3117 = vpop.permute.xlu0 %3116
        %3120 = vrot.lane.b32.xlu0 %v3030, 32
        %v3121 = vpop.permute.xlu0 %3120
        %3124 = vrot.lane.b32.xlu0 %v3032, 64
        %v3125 = vpop.permute.xlu0 %3124
        %3128 = vrot.lane.b32.xlu0 %v3034, 96
        %v3129 = vpop.permute.xlu0 %3128
        %v3131 = vsel %vm1425, %v2684, %v3037
        %v3132 = vsel %vm1427, %v3131, %v3041
        %v3133 = vsel %vm1429, %v3132, %v3045
        %v3134 = vsel %vm1425, %v2692, %v3049
        %v3135 = vsel %vm1427, %v3134, %v3053
        %v3136 = vsel %vm1429, %v3135, %v3057
        %v3137 = vsel %vm1425, %v2796, %v3061
        %v3138 = vsel %vm1427, %v3137, %v3065
        %v3139 = vsel %vm1429, %v3138, %v3069
        %v3140 = vsel %vm1425, %v2804, %v3073
        %v3141 = vsel %vm1427, %v3140, %v3077
        %v3142 = vsel %vm1429, %v3141, %v3081
        %v3143 = vsel %vm1425, %v2908, %v3085
        %v3144 = vsel %vm1427, %v3143, %v3089
        %v3145 = vsel %vm1429, %v3144, %v3093
        %v3146 = vsel %vm1425, %v2916, %v3097
        %v3147 = vsel %vm1427, %v3146, %v3101
        %v3148 = vsel %vm1429, %v3147, %v3105
        %v3149 = vsel %vm1425, %v3020, %v3109
        %v3150 = vsel %vm1427, %v3149, %v3113
        %v3151 = vsel %vm1429, %v3150, %v3117
        %v3152 = vsel %vm1425, %v3028, %v3121
        %v3153 = vsel %vm1427, %v3152, %v3125
        %v3154 = vsel %vm1429, %v3153, %v3129
        %v3156 = vsel %vm1526, %v1037, 0
        %v3159 = vsel %vm1530, %v2565, 0
        %v3162 = vsel %vm1530, %v2568, 0
        %v3165 = vsel %vm1530, %v2571, 0
        %v3168 = vsel %vm1530, %v2574, 0
        %v3171 = vsel %vm1530, %v2577, 0
        %v3174 = vsel %vm1530, %v2580, 0
        %v3177 = vsel %vm1530, %v2583, 0
        %v3180 = vsel %vm1530, %v2586, 0
        %3182 = vmatpush.msra.mxu0 0.0
        %3183 = vmatpush.msra.mxu0 0.0
        %3184 = vmatpush.msra.mxu0 0.0
        %3185 = vmatpush.msra.mxu0 0.0
        %3186 = vmatpush.msra.mxu0 0.0
        %3187 = vmatpush.msra.mxu0 0.0
        %3188 = vmatpush.msra.mxu0 0.0
        %3189 = vmatpush.msra.mxu0 0.0
        %3190 = vmatpush.msra.mxu0 0.0
        %3191 = vmatpush.msra.mxu0 0.0
        %3192 = vmatpush.msra.mxu0 0.0
        %3193 = vmatpush.msra.mxu0 0.0
        %3194 = vmatpush.msra.mxu0 0.0
        %3195 = vmatpush.msra.mxu0 0.0
        %3196 = vmatpush.msra.mxu0 0.0
        %3197 = vmatpush.msra.mxu0 %v3159
        %3198 = vmatmul.f32.gmra.mxu0 %v3156
        %v3199 = vpop.f32.mrf.mxu0
        %v3200 = vadd.f32 %v3133, %v3199
        %3201 = vdwg.mxu0
        %3202 = vmatpush.msra.mxu0 0.0
        %3203 = vmatpush.msra.mxu0 0.0
        %3204 = vmatpush.msra.mxu0 0.0
        %3205 = vmatpush.msra.mxu0 0.0
        %3206 = vmatpush.msra.mxu0 0.0
        %3207 = vmatpush.msra.mxu0 0.0
        %3208 = vmatpush.msra.mxu0 0.0
        %3209 = vmatpush.msra.mxu0 0.0
        %3210 = vmatpush.msra.mxu0 0.0
        %3211 = vmatpush.msra.mxu0 0.0
        %3212 = vmatpush.msra.mxu0 0.0
        %3213 = vmatpush.msra.mxu0 0.0
        %3214 = vmatpush.msra.mxu0 0.0
        %3215 = vmatpush.msra.mxu0 0.0
        %3216 = vmatpush.msra.mxu0 0.0
        %3217 = vmatpush.msra.mxu0 %v3162
        %3218 = vmatmul.f32.gmra.mxu0 %v3156
        %v3219 = vpop.f32.mrf.mxu0
        %v3220 = vadd.f32 %v3136, %v3219
        %3221 = vdwg.mxu0
        %3222 = vmatpush.msra.mxu0 0.0
        %3223 = vmatpush.msra.mxu0 0.0
        %3224 = vmatpush.msra.mxu0 0.0
        %3225 = vmatpush.msra.mxu0 0.0
        %3226 = vmatpush.msra.mxu0 0.0
        %3227 = vmatpush.msra.mxu0 0.0
        %3228 = vmatpush.msra.mxu0 0.0
        %3229 = vmatpush.msra.mxu0 0.0
        %3230 = vmatpush.msra.mxu0 0.0
        %3231 = vmatpush.msra.mxu0 0.0
        %3232 = vmatpush.msra.mxu0 0.0
        %3233 = vmatpush.msra.mxu0 0.0
        %3234 = vmatpush.msra.mxu0 0.0
        %3235 = vmatpush.msra.mxu0 0.0
        %3236 = vmatpush.msra.mxu0 0.0
        %3237 = vmatpush.msra.mxu0 %v3165
        %3238 = vmatmul.f32.gmra.mxu0 %v3156
        %v3239 = vpop.f32.mrf.mxu0
        %v3240 = vadd.f32 %v3139, %v3239
        %3241 = vdwg.mxu0
        %3242 = vmatpush.msra.mxu0 0.0
        %3243 = vmatpush.msra.mxu0 0.0
        %3244 = vmatpush.msra.mxu0 0.0
        %3245 = vmatpush.msra.mxu0 0.0
        %3246 = vmatpush.msra.mxu0 0.0
        %3247 = vmatpush.msra.mxu0 0.0
        %3248 = vmatpush.msra.mxu0 0.0
        %3249 = vmatpush.msra.mxu0 0.0
        %3250 = vmatpush.msra.mxu0 0.0
        %3251 = vmatpush.msra.mxu0 0.0
        %3252 = vmatpush.msra.mxu0 0.0
        %3253 = vmatpush.msra.mxu0 0.0
        %3254 = vmatpush.msra.mxu0 0.0
        %3255 = vmatpush.msra.mxu0 0.0
        %3256 = vmatpush.msra.mxu0 0.0
        %3257 = vmatpush.msra.mxu0 %v3168
        %3258 = vmatmul.f32.gmra.mxu0 %v3156
        %v3259 = vpop.f32.mrf.mxu0
        %v3260 = vadd.f32 %v3142, %v3259
        %3261 = vdwg.mxu0
        %3262 = vmatpush.msra.mxu0 0.0
        %3263 = vmatpush.msra.mxu0 0.0
        %3264 = vmatpush.msra.mxu0 0.0
        %3265 = vmatpush.msra.mxu0 0.0
        %3266 = vmatpush.msra.mxu0 0.0
        %3267 = vmatpush.msra.mxu0 0.0
        %3268 = vmatpush.msra.mxu0 0.0
        %3269 = vmatpush.msra.mxu0 0.0
        %3270 = vmatpush.msra.mxu0 0.0
        %3271 = vmatpush.msra.mxu0 0.0
        %3272 = vmatpush.msra.mxu0 0.0
        %3273 = vmatpush.msra.mxu0 0.0
        %3274 = vmatpush.msra.mxu0 0.0
        %3275 = vmatpush.msra.mxu0 0.0
        %3276 = vmatpush.msra.mxu0 0.0
        %3277 = vmatpush.msra.mxu0 %v3171
        %3278 = vmatmul.f32.gmra.mxu0 %v3156
        %v3279 = vpop.f32.mrf.mxu0
        %v3280 = vadd.f32 %v3145, %v3279
        %3281 = vdwg.mxu0
        %3282 = vmatpush.msra.mxu0 0.0
        %3283 = vmatpush.msra.mxu0 0.0
        %3284 = vmatpush.msra.mxu0 0.0
        %3285 = vmatpush.msra.mxu0 0.0
        %3286 = vmatpush.msra.mxu0 0.0
        %3287 = vmatpush.msra.mxu0 0.0
        %3288 = vmatpush.msra.mxu0 0.0
        %3289 = vmatpush.msra.mxu0 0.0
        %3290 = vmatpush.msra.mxu0 0.0
        %3291 = vmatpush.msra.mxu0 0.0
        %3292 = vmatpush.msra.mxu0 0.0
        %3293 = vmatpush.msra.mxu0 0.0
        %3294 = vmatpush.msra.mxu0 0.0
        %3295 = vmatpush.msra.mxu0 0.0
        %3296 = vmatpush.msra.mxu0 0.0
        %3297 = vmatpush.msra.mxu0 %v3174
        %3298 = vmatmul.f32.gmra.mxu0 %v3156
        %v3299 = vpop.f32.mrf.mxu0
        %v3300 = vadd.f32 %v3148, %v3299
        %3301 = vdwg.mxu0
        %3302 = vmatpush.msra.mxu0 0.0
        %3303 = vmatpush.msra.mxu0 0.0
        %3304 = vmatpush.msra.mxu0 0.0
        %3305 = vmatpush.msra.mxu0 0.0
        %3306 = vmatpush.msra.mxu0 0.0
        %3307 = vmatpush.msra.mxu0 0.0
        %3308 = vmatpush.msra.mxu0 0.0
        %3309 = vmatpush.msra.mxu0 0.0
        %3310 = vmatpush.msra.mxu0 0.0
        %3311 = vmatpush.msra.mxu0 0.0
        %3312 = vmatpush.msra.mxu0 0.0
        %3313 = vmatpush.msra.mxu0 0.0
        %3314 = vmatpush.msra.mxu0 0.0
        %3315 = vmatpush.msra.mxu0 0.0
        %3316 = vmatpush.msra.mxu0 0.0
        %3317 = vmatpush.msra.mxu0 %v3177
        %3318 = vmatmul.f32.gmra.mxu0 %v3156
        %v3319 = vpop.f32.mrf.mxu0
        %v3320 = vadd.f32 %v3151, %v3319
        %3321 = vdwg.mxu0
        %3322 = vmatpush.msra.mxu0 0.0
        %3323 = vmatpush.msra.mxu0 0.0
        %3324 = vmatpush.msra.mxu0 0.0
        %3325 = vmatpush.msra.mxu0 0.0
        %3326 = vmatpush.msra.mxu0 0.0
        %3327 = vmatpush.msra.mxu0 0.0
        %3328 = vmatpush.msra.mxu0 0.0
        %3329 = vmatpush.msra.mxu0 0.0
        %3330 = vmatpush.msra.mxu0 0.0
        %3331 = vmatpush.msra.mxu0 0.0
        %3332 = vmatpush.msra.mxu0 0.0
        %3333 = vmatpush.msra.mxu0 0.0
        %3334 = vmatpush.msra.mxu0 0.0
        %3335 = vmatpush.msra.mxu0 0.0
        %3336 = vmatpush.msra.mxu0 0.0
        %3337 = vmatpush.msra.mxu0 %v3180
        %3338 = vmatmul.f32.gmra.mxu0 %v3156
        %v3339 = vpop.f32.mrf.mxu0
        %v3340 = vadd.f32 %v3154, %v3339
        %3341 = vdwg.mxu0
        %3343 = vrot.lane.b32.xlu0 %v3200, 96
        %v3344 = vpop.permute.xlu0 %3343
        %3346 = vrot.lane.b32.xlu0 %v3200, 64
        %v3347 = vpop.permute.xlu0 %3346
        %3349 = vrot.lane.b32.xlu0 %v3200, 32
        %v3350 = vpop.permute.xlu0 %3349
        %3353 = vrot.lane.b32.xlu0 %v3220, 96
        %v3354 = vpop.permute.xlu0 %3353
        %3356 = vrot.lane.b32.xlu0 %v3220, 64
        %v3357 = vpop.permute.xlu0 %3356
        %3359 = vrot.lane.b32.xlu0 %v3220, 32
        %v3360 = vpop.permute.xlu0 %3359
        %3363 = vrot.lane.b32.xlu0 %v3240, 96
        %v3364 = vpop.permute.xlu0 %3363
        %3366 = vrot.lane.b32.xlu0 %v3240, 64
        %v3367 = vpop.permute.xlu0 %3366
        %3369 = vrot.lane.b32.xlu0 %v3240, 32
        %v3370 = vpop.permute.xlu0 %3369
        %3373 = vrot.lane.b32.xlu0 %v3260, 96
        %v3374 = vpop.permute.xlu0 %3373
        %3376 = vrot.lane.b32.xlu0 %v3260, 64
        %v3377 = vpop.permute.xlu0 %3376
        %3379 = vrot.lane.b32.xlu0 %v3260, 32
        %v3380 = vpop.permute.xlu0 %3379
        %3383 = vrot.lane.b32.xlu0 %v3280, 96
        %v3384 = vpop.permute.xlu0 %3383
        %3386 = vrot.lane.b32.xlu0 %v3280, 64
        %v3387 = vpop.permute.xlu0 %3386
        %3389 = vrot.lane.b32.xlu0 %v3280, 32
        %v3390 = vpop.permute.xlu0 %3389
        %3393 = vrot.lane.b32.xlu0 %v3300, 96
        %v3394 = vpop.permute.xlu0 %3393
        %3396 = vrot.lane.b32.xlu0 %v3300, 64
        %v3397 = vpop.permute.xlu0 %3396
        %3399 = vrot.lane.b32.xlu0 %v3300, 32
        %v3400 = vpop.permute.xlu0 %3399
        %3403 = vrot.lane.b32.xlu0 %v3320, 96
        %v3404 = vpop.permute.xlu0 %3403
        %3406 = vrot.lane.b32.xlu0 %v3320, 64
        %v3407 = vpop.permute.xlu0 %3406
        %3409 = vrot.lane.b32.xlu0 %v3320, 32
        %v3410 = vpop.permute.xlu0 %3409
        %3413 = vrot.lane.b32.xlu0 %v3340, 96
        %v3414 = vpop.permute.xlu0 %3413
        %3416 = vrot.lane.b32.xlu0 %v3340, 64
        %v3417 = vpop.permute.xlu0 %3416
        %3419 = vrot.lane.b32.xlu0 %v3340, 32
        %v3420 = vpop.permute.xlu0 %3419
        %v3422 = vrot.slane %v3347, 4
        %v3423 = vsel %vm1105, %v3422, %v3200
        %v3424 = vrot.slane %v3200, 4
        %v3425 = vsel %vm1105, %v3347, %v3424
        %v3427 = vunpack.c.l.s4 1983009808
        %v3428 = vunpack.c.0.s8 %v3427
        %v3429 = vperm.slane %v3423, %v3428
        %v3431 = vunpack.c.l.s4 1983009808
        %v3432 = vunpack.c.0.s8 %v3431
        %v3433 = vperm.slane %v3425, %v3432
        %v3434 = vrot.slane %v3350, 4
        %v3435 = vsel %vm1105, %v3434, %v3344
        %v3436 = vrot.slane %v3344, 4
        %v3437 = vsel %vm1105, %v3350, %v3436
        %v3439 = vunpack.c.l.s4 1983009808
        %v3440 = vunpack.c.0.s8 %v3439
        %v3441 = vperm.slane %v3435, %v3440
        %v3443 = vunpack.c.l.s4 1983009808
        %v3444 = vunpack.c.0.s8 %v3443
        %v3445 = vperm.slane %v3437, %v3444
        %v3446 = vrot.slane %v3357, 4
        %v3447 = vsel %vm1105, %v3446, %v3220
        %v3448 = vrot.slane %v3220, 4
        %v3449 = vsel %vm1105, %v3357, %v3448
        %v3451 = vunpack.c.l.s4 1983009808
        %v3452 = vunpack.c.0.s8 %v3451
        %v3453 = vperm.slane %v3447, %v3452
        %v3455 = vunpack.c.l.s4 1983009808
        %v3456 = vunpack.c.0.s8 %v3455
        %v3457 = vperm.slane %v3449, %v3456
        %v3458 = vrot.slane %v3360, 4
        %v3459 = vsel %vm1105, %v3458, %v3354
        %v3460 = vrot.slane %v3354, 4
        %v3461 = vsel %vm1105, %v3360, %v3460
        %v3463 = vunpack.c.l.s4 1983009808
        %v3464 = vunpack.c.0.s8 %v3463
        %v3465 = vperm.slane %v3459, %v3464
        %v3467 = vunpack.c.l.s4 1983009808
        %v3468 = vunpack.c.0.s8 %v3467
        %v3469 = vperm.slane %v3461, %v3468
        %v3470 = vrot.slane %v3441, 4
        %v3471 = vsel %vm1105, %v3470, %v3429
        %v3472 = vrot.slane %v3429, 4
        %v3473 = vsel %vm1105, %v3441, %v3472
        %v3475 = vunpack.c.l.s4 1934713408
        %v3476 = vunpack.c.0.s8 %v3475
        %v3477 = vperm.slane %v3471, %v3476
        %v3479 = vunpack.c.l.s4 1934713408
        %v3480 = vunpack.c.0.s8 %v3479
        %v3481 = vperm.slane %v3473, %v3480
        %v3482 = vrot.slane %v3445, 4
        %v3483 = vsel %vm1105, %v3482, %v3433
        %v3484 = vrot.slane %v3433, 4
        %v3485 = vsel %vm1105, %v3445, %v3484
        %v3487 = vunpack.c.l.s4 1934713408
        %v3488 = vunpack.c.0.s8 %v3487
        %v3489 = vperm.slane %v3483, %v3488
        %v3491 = vunpack.c.l.s4 1934713408
        %v3492 = vunpack.c.0.s8 %v3491
        %v3493 = vperm.slane %v3485, %v3492
        %v3494 = vrot.slane %v3465, 4
        %v3495 = vsel %vm1105, %v3494, %v3453
        %v3496 = vrot.slane %v3453, 4
        %v3497 = vsel %vm1105, %v3465, %v3496
        %v3499 = vunpack.c.l.s4 1934713408
        %v3500 = vunpack.c.0.s8 %v3499
        %v3501 = vperm.slane %v3495, %v3500
        %v3503 = vunpack.c.l.s4 1934713408
        %v3504 = vunpack.c.0.s8 %v3503
        %v3505 = vperm.slane %v3497, %v3504
        %v3506 = vrot.slane %v3469, 4
        %v3507 = vsel %vm1105, %v3506, %v3457
        %v3508 = vrot.slane %v3457, 4
        %v3509 = vsel %vm1105, %v3469, %v3508
        %v3511 = vunpack.c.l.s4 1934713408
        %v3512 = vunpack.c.0.s8 %v3511
        %v3513 = vperm.slane %v3507, %v3512
        %v3515 = vunpack.c.l.s4 1934713408
        %v3516 = vunpack.c.0.s8 %v3515
        %v3517 = vperm.slane %v3509, %v3516
        %v3518 = vrot.slane %v3501, 4
        %v3519 = vsel %vm1105, %v3518, %v3477
        %v3520 = vrot.slane %v3477, 4
        %v3521 = vsel %vm1105, %v3501, %v3520
        %v3522 = vrot.slane %v3505, 4
        %v3523 = vsel %vm1105, %v3522, %v3481
        %v3524 = vrot.slane %v3481, 4
        %v3525 = vsel %vm1105, %v3505, %v3524
        %v3526 = vrot.slane %v3513, 4
        %v3527 = vsel %vm1105, %v3526, %v3489
        %v3528 = vrot.slane %v3489, 4
        %v3529 = vsel %vm1105, %v3513, %v3528
        %v3530 = vrot.slane %v3517, 4
        %v3531 = vsel %vm1105, %v3530, %v3493
        %v3532 = vrot.slane %v3493, 4
        %v3533 = vsel %vm1105, %v3517, %v3532
        %v3534 = vrot.slane %v3367, 4
        %v3535 = vsel %vm1105, %v3534, %v3240
        %v3536 = vrot.slane %v3240, 4
        %v3537 = vsel %vm1105, %v3367, %v3536
        %v3539 = vunpack.c.l.s4 1983009808
        %v3540 = vunpack.c.0.s8 %v3539
        %v3541 = vperm.slane %v3535, %v3540
        %v3543 = vunpack.c.l.s4 1983009808
        %v3544 = vunpack.c.0.s8 %v3543
        %v3545 = vperm.slane %v3537, %v3544
        %v3546 = vrot.slane %v3370, 4
        %v3547 = vsel %vm1105, %v3546, %v3364
        %v3548 = vrot.slane %v3364, 4
        %v3549 = vsel %vm1105, %v3370, %v3548
        %v3551 = vunpack.c.l.s4 1983009808
        %v3552 = vunpack.c.0.s8 %v3551
        %v3553 = vperm.slane %v3547, %v3552
        %v3555 = vunpack.c.l.s4 1983009808
        %v3556 = vunpack.c.0.s8 %v3555
        %v3557 = vperm.slane %v3549, %v3556
        %v3558 = vrot.slane %v3377, 4
        %v3559 = vsel %vm1105, %v3558, %v3260
        %v3560 = vrot.slane %v3260, 4
        %v3561 = vsel %vm1105, %v3377, %v3560
        %v3563 = vunpack.c.l.s4 1983009808
        %v3564 = vunpack.c.0.s8 %v3563
        %v3565 = vperm.slane %v3559, %v3564
        %v3567 = vunpack.c.l.s4 1983009808
        %v3568 = vunpack.c.0.s8 %v3567
        %v3569 = vperm.slane %v3561, %v3568
        %v3570 = vrot.slane %v3380, 4
        %v3571 = vsel %vm1105, %v3570, %v3374
        %v3572 = vrot.slane %v3374, 4
        %v3573 = vsel %vm1105, %v3380, %v3572
        %v3575 = vunpack.c.l.s4 1983009808
        %v3576 = vunpack.c.0.s8 %v3575
        %v3577 = vperm.slane %v3571, %v3576
        %v3579 = vunpack.c.l.s4 1983009808
        %v3580 = vunpack.c.0.s8 %v3579
        %v3581 = vperm.slane %v3573, %v3580
        %v3582 = vrot.slane %v3553, 4
        %v3583 = vsel %vm1105, %v3582, %v3541
        %v3584 = vrot.slane %v3541, 4
        %v3585 = vsel %vm1105, %v3553, %v3584
        %v3587 = vunpack.c.l.s4 1934713408
        %v3588 = vunpack.c.0.s8 %v3587
        %v3589 = vperm.slane %v3583, %v3588
        %v3591 = vunpack.c.l.s4 1934713408
        %v3592 = vunpack.c.0.s8 %v3591
        %v3593 = vperm.slane %v3585, %v3592
        %v3594 = vrot.slane %v3557, 4
        %v3595 = vsel %vm1105, %v3594, %v3545
        %v3596 = vrot.slane %v3545, 4
        %v3597 = vsel %vm1105, %v3557, %v3596
        %v3599 = vunpack.c.l.s4 1934713408
        %v3600 = vunpack.c.0.s8 %v3599
        %v3601 = vperm.slane %v3595, %v3600
        %v3603 = vunpack.c.l.s4 1934713408
        %v3604 = vunpack.c.0.s8 %v3603
        %v3605 = vperm.slane %v3597, %v3604
        %v3606 = vrot.slane %v3577, 4
        %v3607 = vsel %vm1105, %v3606, %v3565
        %v3608 = vrot.slane %v3565, 4
        %v3609 = vsel %vm1105, %v3577, %v3608
        %v3611 = vunpack.c.l.s4 1934713408
        %v3612 = vunpack.c.0.s8 %v3611
        %v3613 = vperm.slane %v3607, %v3612
        %v3615 = vunpack.c.l.s4 1934713408
        %v3616 = vunpack.c.0.s8 %v3615
        %v3617 = vperm.slane %v3609, %v3616
        %v3618 = vrot.slane %v3581, 4
        %v3619 = vsel %vm1105, %v3618, %v3569
        %v3620 = vrot.slane %v3569, 4
        %v3621 = vsel %vm1105, %v3581, %v3620
        %v3623 = vunpack.c.l.s4 1934713408
        %v3624 = vunpack.c.0.s8 %v3623
        %v3625 = vperm.slane %v3619, %v3624
        %v3627 = vunpack.c.l.s4 1934713408
        %v3628 = vunpack.c.0.s8 %v3627
        %v3629 = vperm.slane %v3621, %v3628
        %v3630 = vrot.slane %v3613, 4
        %v3631 = vsel %vm1105, %v3630, %v3589
        %v3632 = vrot.slane %v3589, 4
        %v3633 = vsel %vm1105, %v3613, %v3632
        %v3634 = vrot.slane %v3617, 4
        %v3635 = vsel %vm1105, %v3634, %v3593
        %v3636 = vrot.slane %v3593, 4
        %v3637 = vsel %vm1105, %v3617, %v3636
        %v3638 = vrot.slane %v3625, 4
        %v3639 = vsel %vm1105, %v3638, %v3601
        %v3640 = vrot.slane %v3601, 4
        %v3641 = vsel %vm1105, %v3625, %v3640
        %v3642 = vrot.slane %v3629, 4
        %v3643 = vsel %vm1105, %v3642, %v3605
        %v3644 = vrot.slane %v3605, 4
        %v3645 = vsel %vm1105, %v3629, %v3644
        %v3646 = vrot.slane %v3387, 4
        %v3647 = vsel %vm1105, %v3646, %v3280
        %v3648 = vrot.slane %v3280, 4
        %v3649 = vsel %vm1105, %v3387, %v3648
        %v3651 = vunpack.c.l.s4 1983009808
        %v3652 = vunpack.c.0.s8 %v3651
        %v3653 = vperm.slane %v3647, %v3652
        %v3655 = vunpack.c.l.s4 1983009808
        %v3656 = vunpack.c.0.s8 %v3655
        %v3657 = vperm.slane %v3649, %v3656
        %v3658 = vrot.slane %v3390, 4
        %v3659 = vsel %vm1105, %v3658, %v3384
        %v3660 = vrot.slane %v3384, 4
        %v3661 = vsel %vm1105, %v3390, %v3660
        %v3663 = vunpack.c.l.s4 1983009808
        %v3664 = vunpack.c.0.s8 %v3663
        %v3665 = vperm.slane %v3659, %v3664
        %v3667 = vunpack.c.l.s4 1983009808
        %v3668 = vunpack.c.0.s8 %v3667
        %v3669 = vperm.slane %v3661, %v3668
        %v3670 = vrot.slane %v3397, 4
        %v3671 = vsel %vm1105, %v3670, %v3300
        %v3672 = vrot.slane %v3300, 4
        %v3673 = vsel %vm1105, %v3397, %v3672
        %v3675 = vunpack.c.l.s4 1983009808
        %v3676 = vunpack.c.0.s8 %v3675
        %v3677 = vperm.slane %v3671, %v3676
        %v3679 = vunpack.c.l.s4 1983009808
        %v3680 = vunpack.c.0.s8 %v3679
        %v3681 = vperm.slane %v3673, %v3680
        %v3682 = vrot.slane %v3400, 4
        %v3683 = vsel %vm1105, %v3682, %v3394
        %v3684 = vrot.slane %v3394, 4
        %v3685 = vsel %vm1105, %v3400, %v3684
        %v3687 = vunpack.c.l.s4 1983009808
        %v3688 = vunpack.c.0.s8 %v3687
        %v3689 = vperm.slane %v3683, %v3688
        %v3691 = vunpack.c.l.s4 1983009808
        %v3692 = vunpack.c.0.s8 %v3691
        %v3693 = vperm.slane %v3685, %v3692
        %v3694 = vrot.slane %v3665, 4
        %v3695 = vsel %vm1105, %v3694, %v3653
        %v3696 = vrot.slane %v3653, 4
        %v3697 = vsel %vm1105, %v3665, %v3696
        %v3699 = vunpack.c.l.s4 1934713408
        %v3700 = vunpack.c.0.s8 %v3699
        %v3701 = vperm.slane %v3695, %v3700
        %v3703 = vunpack.c.l.s4 1934713408
        %v3704 = vunpack.c.0.s8 %v3703
        %v3705 = vperm.slane %v3697, %v3704
        %v3706 = vrot.slane %v3669, 4
        %v3707 = vsel %vm1105, %v3706, %v3657
        %v3708 = vrot.slane %v3657, 4
        %v3709 = vsel %vm1105, %v3669, %v3708
        %v3711 = vunpack.c.l.s4 1934713408
        %v3712 = vunpack.c.0.s8 %v3711
        %v3713 = vperm.slane %v3707, %v3712
        %v3715 = vunpack.c.l.s4 1934713408
        %v3716 = vunpack.c.0.s8 %v3715
        %v3717 = vperm.slane %v3709, %v3716
        %v3718 = vrot.slane %v3689, 4
        %v3719 = vsel %vm1105, %v3718, %v3677
        %v3720 = vrot.slane %v3677, 4
        %v3721 = vsel %vm1105, %v3689, %v3720
        %v3723 = vunpack.c.l.s4 1934713408
        %v3724 = vunpack.c.0.s8 %v3723
        %v3725 = vperm.slane %v3719, %v3724
        %v3727 = vunpack.c.l.s4 1934713408
        %v3728 = vunpack.c.0.s8 %v3727
        %v3729 = vperm.slane %v3721, %v3728
        %v3730 = vrot.slane %v3693, 4
        %v3731 = vsel %vm1105, %v3730, %v3681
        %v3732 = vrot.slane %v3681, 4
        %v3733 = vsel %vm1105, %v3693, %v3732
        %v3735 = vunpack.c.l.s4 1934713408
        %v3736 = vunpack.c.0.s8 %v3735
        %v3737 = vperm.slane %v3731, %v3736
        %v3739 = vunpack.c.l.s4 1934713408
        %v3740 = vunpack.c.0.s8 %v3739
        %v3741 = vperm.slane %v3733, %v3740
        %v3742 = vrot.slane %v3725, 4
        %v3743 = vsel %vm1105, %v3742, %v3701
        %v3744 = vrot.slane %v3701, 4
        %v3745 = vsel %vm1105, %v3725, %v3744
        %v3746 = vrot.slane %v3729, 4
        %v3747 = vsel %vm1105, %v3746, %v3705
        %v3748 = vrot.slane %v3705, 4
        %v3749 = vsel %vm1105, %v3729, %v3748
        %v3750 = vrot.slane %v3737, 4
        %v3751 = vsel %vm1105, %v3750, %v3713
        %v3752 = vrot.slane %v3713, 4
        %v3753 = vsel %vm1105, %v3737, %v3752
        %v3754 = vrot.slane %v3741, 4
        %v3755 = vsel %vm1105, %v3754, %v3717
        %v3756 = vrot.slane %v3717, 4
        %v3757 = vsel %vm1105, %v3741, %v3756
        %v3758 = vrot.slane %v3407, 4
        %v3759 = vsel %vm1105, %v3758, %v3320
        %v3760 = vrot.slane %v3320, 4
        %v3761 = vsel %vm1105, %v3407, %v3760
        %v3763 = vunpack.c.l.s4 1983009808
        %v3764 = vunpack.c.0.s8 %v3763
        %v3765 = vperm.slane %v3759, %v3764
        %v3767 = vunpack.c.l.s4 1983009808
        %v3768 = vunpack.c.0.s8 %v3767
        %v3769 = vperm.slane %v3761, %v3768
        %v3770 = vrot.slane %v3410, 4
        %v3771 = vsel %vm1105, %v3770, %v3404
        %v3772 = vrot.slane %v3404, 4
        %v3773 = vsel %vm1105, %v3410, %v3772
        %v3775 = vunpack.c.l.s4 1983009808
        %v3776 = vunpack.c.0.s8 %v3775
        %v3777 = vperm.slane %v3771, %v3776
        %v3779 = vunpack.c.l.s4 1983009808
        %v3780 = vunpack.c.0.s8 %v3779
        %v3781 = vperm.slane %v3773, %v3780
        %v3782 = vrot.slane %v3417, 4
        %v3783 = vsel %vm1105, %v3782, %v3340
        %v3784 = vrot.slane %v3340, 4
        %v3785 = vsel %vm1105, %v3417, %v3784
        %v3787 = vunpack.c.l.s4 1983009808
        %v3788 = vunpack.c.0.s8 %v3787
        %v3789 = vperm.slane %v3783, %v3788
        %v3791 = vunpack.c.l.s4 1983009808
        %v3792 = vunpack.c.0.s8 %v3791
        %v3793 = vperm.slane %v3785, %v3792
        %v3794 = vrot.slane %v3420, 4
        %v3795 = vsel %vm1105, %v3794, %v3414
        %v3796 = vrot.slane %v3414, 4
        %v3797 = vsel %vm1105, %v3420, %v3796
        %v3799 = vunpack.c.l.s4 1983009808
        %v3800 = vunpack.c.0.s8 %v3799
        %v3801 = vperm.slane %v3795, %v3800
        %v3803 = vunpack.c.l.s4 1983009808
        %v3804 = vunpack.c.0.s8 %v3803
        %v3805 = vperm.slane %v3797, %v3804
        %v3806 = vrot.slane %v3777, 4
        %v3807 = vsel %vm1105, %v3806, %v3765
        %v3808 = vrot.slane %v3765, 4
        %v3809 = vsel %vm1105, %v3777, %v3808
        %v3811 = vunpack.c.l.s4 1934713408
        %v3812 = vunpack.c.0.s8 %v3811
        %v3813 = vperm.slane %v3807, %v3812
        %v3815 = vunpack.c.l.s4 1934713408
        %v3816 = vunpack.c.0.s8 %v3815
        %v3817 = vperm.slane %v3809, %v3816
        %v3818 = vrot.slane %v3781, 4
        %v3819 = vsel %vm1105, %v3818, %v3769
        %v3820 = vrot.slane %v3769, 4
        %v3821 = vsel %vm1105, %v3781, %v3820
        %v3823 = vunpack.c.l.s4 1934713408
        %v3824 = vunpack.c.0.s8 %v3823
        %v3825 = vperm.slane %v3819, %v3824
        %v3827 = vunpack.c.l.s4 1934713408
        %v3828 = vunpack.c.0.s8 %v3827
        %v3829 = vperm.slane %v3821, %v3828
        %v3830 = vrot.slane %v3801, 4
        %v3831 = vsel %vm1105, %v3830, %v3789
        %v3832 = vrot.slane %v3789, 4
        %v3833 = vsel %vm1105, %v3801, %v3832
        %v3835 = vunpack.c.l.s4 1934713408
        %v3836 = vunpack.c.0.s8 %v3835
        %v3837 = vperm.slane %v3831, %v3836
        %v3839 = vunpack.c.l.s4 1934713408
        %v3840 = vunpack.c.0.s8 %v3839
        %v3841 = vperm.slane %v3833, %v3840
        %v3842 = vrot.slane %v3805, 4
        %v3843 = vsel %vm1105, %v3842, %v3793
        %v3844 = vrot.slane %v3793, 4
        %v3845 = vsel %vm1105, %v3805, %v3844
        %v3847 = vunpack.c.l.s4 1934713408
        %v3848 = vunpack.c.0.s8 %v3847
        %v3849 = vperm.slane %v3843, %v3848
        %v3851 = vunpack.c.l.s4 1934713408
        %v3852 = vunpack.c.0.s8 %v3851
        %v3853 = vperm.slane %v3845, %v3852
        %v3854 = vrot.slane %v3837, 4
        %v3855 = vsel %vm1105, %v3854, %v3813
        %v3856 = vrot.slane %v3813, 4
        %v3857 = vsel %vm1105, %v3837, %v3856
        %v3858 = vrot.slane %v3841, 4
        %v3859 = vsel %vm1105, %v3858, %v3817
        %v3860 = vrot.slane %v3817, 4
        %v3861 = vsel %vm1105, %v3841, %v3860
        %v3862 = vrot.slane %v3849, 4
        %v3863 = vsel %vm1105, %v3862, %v3825
        %v3864 = vrot.slane %v3825, 4
        %v3865 = vsel %vm1105, %v3849, %v3864
        %v3866 = vrot.slane %v3853, 4
        %v3867 = vsel %vm1105, %v3866, %v3829
        %v3868 = vrot.slane %v3829, 4
        %v3869 = vsel %vm1105, %v3853, %v3868
        %s3870 = scalar_lea.vmem %s3, 16
        %v3871 = vld [vmem:[%s3870] sm:$0xff]
        %3872 = vrot.lane.b32.xlu0 %v925, 126
        %v3873 = vpop.permute.xlu0 %3872
        %3874 = vrot.lane.b32.xlu0 %v926, 126
        %v3875 = vpop.permute.xlu0 %3874
        %3876 = vrot.lane.b32.xlu0 %v927, 126
        %v3877 = vpop.permute.xlu0 %3876
        %3878 = vrot.lane.b32.xlu0 %v928, 126
        %v3879 = vpop.permute.xlu0 %3878
        %3880 = vrot.lane.b32.xlu0 %v957, 126
        %v3881 = vpop.permute.xlu0 %3880
        %3882 = vrot.lane.b32.xlu0 %v958, 126
        %v3883 = vpop.permute.xlu0 %3882
        %3884 = vrot.lane.b32.xlu0 %v959, 126
        %v3885 = vpop.permute.xlu0 %3884
        %3886 = vrot.lane.b32.xlu0 %v960, 126
        %v3887 = vpop.permute.xlu0 %3886
        %3888 = vrot.lane.b32.xlu0 %v989, 126
        %v3889 = vpop.permute.xlu0 %3888
        %3890 = vrot.lane.b32.xlu0 %v990, 126
        %v3891 = vpop.permute.xlu0 %3890
        %3892 = vrot.lane.b32.xlu0 %v991, 126
        %v3893 = vpop.permute.xlu0 %3892
        %3894 = vrot.lane.b32.xlu0 %v992, 126
        %v3895 = vpop.permute.xlu0 %3894
        %3896 = vrot.lane.b32.xlu0 %v1021, 126
        %v3897 = vpop.permute.xlu0 %3896
        %3898 = vrot.lane.b32.xlu0 %v1022, 126
        %v3899 = vpop.permute.xlu0 %3898
        %3900 = vrot.lane.b32.xlu0 %v1023, 126
        %v3901 = vpop.permute.xlu0 %3900
        %3902 = vrot.lane.b32.xlu0 %v1024, 126
        %v3903 = vpop.permute.xlu0 %3902
        %v3920 = vrot.slane %v3889, 4
        %v3921 = vsel %vm1105, %v3920, %v3873
        %v3922 = vrot.slane %v3873, 4
        %v3923 = vsel %vm1105, %v3889, %v3922
        %v3925 = vunpack.c.l.s4 1983009808
        %v3926 = vunpack.c.0.s8 %v3925
        %v3927 = vperm.slane %v3921, %v3926
        %v3929 = vunpack.c.l.s4 1983009808
        %v3930 = vunpack.c.0.s8 %v3929
        %v3931 = vperm.slane %v3923, %v3930
        %v3932 = vrot.slane %v3897, 4
        %v3933 = vsel %vm1105, %v3932, %v3881
        %v3934 = vrot.slane %v3881, 4
        %v3935 = vsel %vm1105, %v3897, %v3934
        %v3937 = vunpack.c.l.s4 1983009808
        %v3938 = vunpack.c.0.s8 %v3937
        %v3939 = vperm.slane %v3933, %v3938
        %v3941 = vunpack.c.l.s4 1983009808
        %v3942 = vunpack.c.0.s8 %v3941
        %v3943 = vperm.slane %v3935, %v3942
        %v3944 = vrot.slane %v3939, 4
        %v3945 = vsel %vm1105, %v3944, %v3927
        %v3946 = vrot.slane %v3927, 4
        %v3947 = vsel %vm1105, %v3939, %v3946
        %v3949 = vunpack.c.l.s4 1934713408
        %v3950 = vunpack.c.0.s8 %v3949
        %v3951 = vperm.slane %v3945, %v3950
        %v3953 = vunpack.c.l.s4 1934713408
        %v3954 = vunpack.c.0.s8 %v3953
        %v3955 = vperm.slane %v3947, %v3954
        %v3956 = vrot.slane %v3943, 4
        %v3957 = vsel %vm1105, %v3956, %v3931
        %v3958 = vrot.slane %v3931, 4
        %v3959 = vsel %vm1105, %v3943, %v3958
        %v3961 = vunpack.c.l.s4 1934713408
        %v3962 = vunpack.c.0.s8 %v3961
        %v3963 = vperm.slane %v3957, %v3962
        %v3965 = vunpack.c.l.s4 1934713408
        %v3966 = vunpack.c.0.s8 %v3965
        %v3967 = vperm.slane %v3959, %v3966
        %v3968 = vrot.slane %v3951, 4
        %v3969 = vsel %vm1105, 0.0, %v3968
        %v3970 = vrot.slane %v3955, 4
        %v3971 = vsel %vm1105, 0.0, %v3970
        %v3972 = vrot.slane %v3963, 4
        %v3973 = vsel %vm1105, 0.0, %v3972
        %v3974 = vrot.slane %v3967, 4
        %v3975 = vsel %vm1105, 0.0, %v3974
        %v3976 = vrot.slane %v3891, 4
        %v3977 = vsel %vm1105, %v3976, %v3875
        %v3978 = vrot.slane %v3875, 4
        %v3979 = vsel %vm1105, %v3891, %v3978
        %v3981 = vunpack.c.l.s4 1983009808
        %v3982 = vunpack.c.0.s8 %v3981
        %v3983 = vperm.slane %v3977, %v3982
        %v3985 = vunpack.c.l.s4 1983009808
        %v3986 = vunpack.c.0.s8 %v3985
        %v3987 = vperm.slane %v3979, %v3986
        %v3988 = vrot.slane %v3899, 4
        %v3989 = vsel %vm1105, %v3988, %v3883
        %v3990 = vrot.slane %v3883, 4
        %v3991 = vsel %vm1105, %v3899, %v3990
        %v3993 = vunpack.c.l.s4 1983009808
        %v3994 = vunpack.c.0.s8 %v3993
        %v3995 = vperm.slane %v3989, %v3994
        %v3997 = vunpack.c.l.s4 1983009808
        %v3998 = vunpack.c.0.s8 %v3997
        %v3999 = vperm.slane %v3991, %v3998
        %v4000 = vrot.slane %v3995, 4
        %v4001 = vsel %vm1105, %v4000, %v3983
        %v4002 = vrot.slane %v3983, 4
        %v4003 = vsel %vm1105, %v3995, %v4002
        %v4005 = vunpack.c.l.s4 1934713408
        %v4006 = vunpack.c.0.s8 %v4005
        %v4007 = vperm.slane %v4001, %v4006
        %v4009 = vunpack.c.l.s4 1934713408
        %v4010 = vunpack.c.0.s8 %v4009
        %v4011 = vperm.slane %v4003, %v4010
        %v4012 = vrot.slane %v3999, 4
        %v4013 = vsel %vm1105, %v4012, %v3987
        %v4014 = vrot.slane %v3987, 4
        %v4015 = vsel %vm1105, %v3999, %v4014
        %v4017 = vunpack.c.l.s4 1934713408
        %v4018 = vunpack.c.0.s8 %v4017
        %v4019 = vperm.slane %v4013, %v4018
        %v4021 = vunpack.c.l.s4 1934713408
        %v4022 = vunpack.c.0.s8 %v4021
        %v4023 = vperm.slane %v4015, %v4022
        %v4024 = vrot.slane %v4007, 4
        %v4025 = vsel %vm1105, 0.0, %v4024
        %v4026 = vrot.slane %v4011, 4
        %v4027 = vsel %vm1105, 0.0, %v4026
        %v4028 = vrot.slane %v4019, 4
        %v4029 = vsel %vm1105, 0.0, %v4028
        %v4030 = vrot.slane %v4023, 4
        %v4031 = vsel %vm1105, 0.0, %v4030
        %v4032 = vrot.slane %v3893, 4
        %v4033 = vsel %vm1105, %v4032, %v3877
        %v4034 = vrot.slane %v3877, 4
        %v4035 = vsel %vm1105, %v3893, %v4034
        %v4037 = vunpack.c.l.s4 1983009808
        %v4038 = vunpack.c.0.s8 %v4037
        %v4039 = vperm.slane %v4033, %v4038
        %v4041 = vunpack.c.l.s4 1983009808
        %v4042 = vunpack.c.0.s8 %v4041
        %v4043 = vperm.slane %v4035, %v4042
        %v4044 = vrot.slane %v3901, 4
        %v4045 = vsel %vm1105, %v4044, %v3885
        %v4046 = vrot.slane %v3885, 4
        %v4047 = vsel %vm1105, %v3901, %v4046
        %v4049 = vunpack.c.l.s4 1983009808
        %v4050 = vunpack.c.0.s8 %v4049
        %v4051 = vperm.slane %v4045, %v4050
        %v4053 = vunpack.c.l.s4 1983009808
        %v4054 = vunpack.c.0.s8 %v4053
        %v4055 = vperm.slane %v4047, %v4054
        %v4056 = vrot.slane %v4051, 4
        %v4057 = vsel %vm1105, %v4056, %v4039
        %v4058 = vrot.slane %v4039, 4
        %v4059 = vsel %vm1105, %v4051, %v4058
        %v4061 = vunpack.c.l.s4 1934713408
        %v4062 = vunpack.c.0.s8 %v4061
        %v4063 = vperm.slane %v4057, %v4062
        %v4065 = vunpack.c.l.s4 1934713408
        %v4066 = vunpack.c.0.s8 %v4065
        %v4067 = vperm.slane %v4059, %v4066
        %v4068 = vrot.slane %v4055, 4
        %v4069 = vsel %vm1105, %v4068, %v4043
        %v4070 = vrot.slane %v4043, 4
        %v4071 = vsel %vm1105, %v4055, %v4070
        %v4073 = vunpack.c.l.s4 1934713408
        %v4074 = vunpack.c.0.s8 %v4073
        %v4075 = vperm.slane %v4069, %v4074
        %v4077 = vunpack.c.l.s4 1934713408
        %v4078 = vunpack.c.0.s8 %v4077
        %v4079 = vperm.slane %v4071, %v4078
        %v4080 = vrot.slane %v4063, 4
        %v4081 = vsel %vm1105, 0.0, %v4080
        %v4082 = vrot.slane %v4067, 4
        %v4083 = vsel %vm1105, 0.0, %v4082
        %v4084 = vrot.slane %v4075, 4
        %v4085 = vsel %vm1105, 0.0, %v4084
        %v4086 = vrot.slane %v4079, 4
        %v4087 = vsel %vm1105, 0.0, %v4086
        %v4088 = vrot.slane %v3895, 4
        %v4089 = vsel %vm1105, %v4088, %v3879
        %v4090 = vrot.slane %v3879, 4
        %v4091 = vsel %vm1105, %v3895, %v4090
        %v4093 = vunpack.c.l.s4 1983009808
        %v4094 = vunpack.c.0.s8 %v4093
        %v4095 = vperm.slane %v4089, %v4094
        %v4097 = vunpack.c.l.s4 1983009808
        %v4098 = vunpack.c.0.s8 %v4097
        %v4099 = vperm.slane %v4091, %v4098
        %v4100 = vrot.slane %v3903, 4
        %v4101 = vsel %vm1105, %v4100, %v3887
        %v4102 = vrot.slane %v3887, 4
        %v4103 = vsel %vm1105, %v3903, %v4102
        %v4105 = vunpack.c.l.s4 1983009808
        %v4106 = vunpack.c.0.s8 %v4105
        %v4107 = vperm.slane %v4101, %v4106
        %v4109 = vunpack.c.l.s4 1983009808
        %v4110 = vunpack.c.0.s8 %v4109
        %v4111 = vperm.slane %v4103, %v4110
        %v4112 = vrot.slane %v4107, 4
        %v4113 = vsel %vm1105, %v4112, %v4095
        %v4114 = vrot.slane %v4095, 4
        %v4115 = vsel %vm1105, %v4107, %v4114
        %v4117 = vunpack.c.l.s4 1934713408
        %v4118 = vunpack.c.0.s8 %v4117
        %v4119 = vperm.slane %v4113, %v4118
        %v4121 = vunpack.c.l.s4 1934713408
        %v4122 = vunpack.c.0.s8 %v4121
        %v4123 = vperm.slane %v4115, %v4122
        %v4124 = vrot.slane %v4111, 4
        %v4125 = vsel %vm1105, %v4124, %v4099
        %v4126 = vrot.slane %v4099, 4
        %v4127 = vsel %vm1105, %v4111, %v4126
        %v4129 = vunpack.c.l.s4 1934713408
        %v4130 = vunpack.c.0.s8 %v4129
        %v4131 = vperm.slane %v4125, %v4130
        %v4133 = vunpack.c.l.s4 1934713408
        %v4134 = vunpack.c.0.s8 %v4133
        %v4135 = vperm.slane %v4127, %v4134
        %v4136 = vrot.slane %v4119, 4
        %v4137 = vsel %vm1105, 0.0, %v4136
        %v4138 = vrot.slane %v4123, 4
        %v4139 = vsel %vm1105, 0.0, %v4138
        %v4140 = vrot.slane %v4131, 4
        %v4141 = vsel %vm1105, 0.0, %v4140
        %v4142 = vrot.slane %v4135, 4
        %v4143 = vsel %vm1105, 0.0, %v4142
        %4145 = vrot.lane.b32.xlu0 %v3969, 32
        %v4146 = vpop.permute.xlu0 %4145
        %4149 = vrot.lane.b32.xlu0 %v3955, 64
        %v4150 = vpop.permute.xlu0 %4149
        %4153 = vrot.lane.b32.xlu0 %v3971, 96
        %v4154 = vpop.permute.xlu0 %4153
        %4157 = vrot.lane.b32.xlu0 %v3973, 32
        %v4158 = vpop.permute.xlu0 %4157
        %4161 = vrot.lane.b32.xlu0 %v3967, 64
        %v4162 = vpop.permute.xlu0 %4161
        %4165 = vrot.lane.b32.xlu0 %v3975, 96
        %v4166 = vpop.permute.xlu0 %4165
        %4169 = vrot.lane.b32.xlu0 %v4025, 32
        %v4170 = vpop.permute.xlu0 %4169
        %4173 = vrot.lane.b32.xlu0 %v4011, 64
        %v4174 = vpop.permute.xlu0 %4173
        %4177 = vrot.lane.b32.xlu0 %v4027, 96
        %v4178 = vpop.permute.xlu0 %4177
        %4181 = vrot.lane.b32.xlu0 %v4029, 32
        %v4182 = vpop.permute.xlu0 %4181
        %4185 = vrot.lane.b32.xlu0 %v4023, 64
        %v4186 = vpop.permute.xlu0 %4185
        %4189 = vrot.lane.b32.xlu0 %v4031, 96
        %v4190 = vpop.permute.xlu0 %4189
        %4193 = vrot.lane.b32.xlu0 %v4081, 32
        %v4194 = vpop.permute.xlu0 %4193
        %4197 = vrot.lane.b32.xlu0 %v4067, 64
        %v4198 = vpop.permute.xlu0 %4197
        %4201 = vrot.lane.b32.xlu0 %v4083, 96
        %v4202 = vpop.permute.xlu0 %4201
        %4205 = vrot.lane.b32.xlu0 %v4085, 32
        %v4206 = vpop.permute.xlu0 %4205
        %4209 = vrot.lane.b32.xlu0 %v4079, 64
        %v4210 = vpop.permute.xlu0 %4209
        %4213 = vrot.lane.b32.xlu0 %v4087, 96
        %v4214 = vpop.permute.xlu0 %4213
        %4217 = vrot.lane.b32.xlu0 %v4137, 32
        %v4218 = vpop.permute.xlu0 %4217
        %4221 = vrot.lane.b32.xlu0 %v4123, 64
        %v4222 = vpop.permute.xlu0 %4221
        %4225 = vrot.lane.b32.xlu0 %v4139, 96
        %v4226 = vpop.permute.xlu0 %4225
        %4229 = vrot.lane.b32.xlu0 %v4141, 32
        %v4230 = vpop.permute.xlu0 %4229
        %4233 = vrot.lane.b32.xlu0 %v4135, 64
        %v4234 = vpop.permute.xlu0 %4233
        %4237 = vrot.lane.b32.xlu0 %v4143, 96
        %v4238 = vpop.permute.xlu0 %4237
        %v4240 = vsel %vm1425, %v3951, %v4146
        %v4241 = vsel %vm1427, %v4240, %v4150
        %v4242 = vsel %vm1429, %v4241, %v4154
        %v4243 = vsel %vm1425, %v3963, %v4158
        %v4244 = vsel %vm1427, %v4243, %v4162
        %v4245 = vsel %vm1429, %v4244, %v4166
        %v4246 = vsel %vm1425, %v4007, %v4170
        %v4247 = vsel %vm1427, %v4246, %v4174
        %v4248 = vsel %vm1429, %v4247, %v4178
        %v4249 = vsel %vm1425, %v4019, %v4182
        %v4250 = vsel %vm1427, %v4249, %v4186
        %v4251 = vsel %vm1429, %v4250, %v4190
        %v4252 = vsel %vm1425, %v4063, %v4194
        %v4253 = vsel %vm1427, %v4252, %v4198
        %v4254 = vsel %vm1429, %v4253, %v4202
        %v4255 = vsel %vm1425, %v4075, %v4206
        %v4256 = vsel %vm1427, %v4255, %v4210
        %v4257 = vsel %vm1429, %v4256, %v4214
        %v4258 = vsel %vm1425, %v4119, %v4218
        %v4259 = vsel %vm1427, %v4258, %v4222
        %v4260 = vsel %vm1429, %v4259, %v4226
        %v4261 = vsel %vm1425, %v4131, %v4230
        %v4262 = vsel %vm1427, %v4261, %v4234
        %v4263 = vsel %vm1429, %v4262, %v4238
        %v4265 = vsel %vm1526, %v3871, 0
        %v4268 = vsel %vm1530, %v4242, 0
        %v4271 = vsel %vm1530, %v4245, 0
        %v4274 = vsel %vm1530, %v4248, 0
        %v4277 = vsel %vm1530, %v4251, 0
        %v4280 = vsel %vm1530, %v4254, 0
        %v4283 = vsel %vm1530, %v4257, 0
        %v4286 = vsel %vm1530, %v4260, 0
        %v4289 = vsel %vm1530, %v4263, 0
        %4291 = vmatpush.msra.mxu0 0.0
        %4292 = vmatpush.msra.mxu0 0.0
        %4293 = vmatpush.msra.mxu0 0.0
        %4294 = vmatpush.msra.mxu0 0.0
        %4295 = vmatpush.msra.mxu0 0.0
        %4296 = vmatpush.msra.mxu0 0.0
        %4297 = vmatpush.msra.mxu0 0.0
        %4298 = vmatpush.msra.mxu0 0.0
        %4299 = vmatpush.msra.mxu0 0.0
        %4300 = vmatpush.msra.mxu0 0.0
        %4301 = vmatpush.msra.mxu0 0.0
        %4302 = vmatpush.msra.mxu0 0.0
        %4303 = vmatpush.msra.mxu0 0.0
        %4304 = vmatpush.msra.mxu0 0.0
        %4305 = vmatpush.msra.mxu0 0.0
        %4306 = vmatpush.msra.mxu0 %v4268
        %4307 = vmatmul.f32.gmra.mxu0 %v4265
        %v4308 = vpop.f32.mrf.mxu0
        %v4309 = vadd.f32 %v1522, %v4308
        %4310 = vdwg.mxu0
        %4311 = vmatpush.msra.mxu0 0.0
        %4312 = vmatpush.msra.mxu0 0.0
        %4313 = vmatpush.msra.mxu0 0.0
        %4314 = vmatpush.msra.mxu0 0.0
        %4315 = vmatpush.msra.mxu0 0.0
        %4316 = vmatpush.msra.mxu0 0.0
        %4317 = vmatpush.msra.mxu0 0.0
        %4318 = vmatpush.msra.mxu0 0.0
        %4319 = vmatpush.msra.mxu0 0.0
        %4320 = vmatpush.msra.mxu0 0.0
        %4321 = vmatpush.msra.mxu0 0.0
        %4322 = vmatpush.msra.mxu0 0.0
        %4323 = vmatpush.msra.mxu0 0.0
        %4324 = vmatpush.msra.mxu0 0.0
        %4325 = vmatpush.msra.mxu0 0.0
        %4326 = vmatpush.msra.mxu0 %v4271
        %4327 = vmatmul.f32.gmra.mxu0 %v4265
        %v4328 = vpop.f32.mrf.mxu0
        %v4329 = vadd.f32 %v1525, %v4328
        %4330 = vdwg.mxu0
        %4331 = vmatpush.msra.mxu0 0.0
        %4332 = vmatpush.msra.mxu0 0.0
        %4333 = vmatpush.msra.mxu0 0.0
        %4334 = vmatpush.msra.mxu0 0.0
        %4335 = vmatpush.msra.mxu0 0.0
        %4336 = vmatpush.msra.mxu0 0.0
        %4337 = vmatpush.msra.mxu0 0.0
        %4338 = vmatpush.msra.mxu0 0.0
        %4339 = vmatpush.msra.mxu0 0.0
        %4340 = vmatpush.msra.mxu0 0.0
        %4341 = vmatpush.msra.mxu0 0.0
        %4342 = vmatpush.msra.mxu0 0.0
        %4343 = vmatpush.msra.mxu0 0.0
        %4344 = vmatpush.msra.mxu0 0.0
        %4345 = vmatpush.msra.mxu0 0.0
        %4346 = vmatpush.msra.mxu0 %v4274
        %4347 = vmatmul.f32.gmra.mxu0 %v4265
        %v4348 = vpop.f32.mrf.mxu0
        %v4349 = vadd.f32 %v1522, %v4348
        %4350 = vdwg.mxu0
        %4351 = vmatpush.msra.mxu0 0.0
        %4352 = vmatpush.msra.mxu0 0.0
        %4353 = vmatpush.msra.mxu0 0.0
        %4354 = vmatpush.msra.mxu0 0.0
        %4355 = vmatpush.msra.mxu0 0.0
        %4356 = vmatpush.msra.mxu0 0.0
        %4357 = vmatpush.msra.mxu0 0.0
        %4358 = vmatpush.msra.mxu0 0.0
        %4359 = vmatpush.msra.mxu0 0.0
        %4360 = vmatpush.msra.mxu0 0.0
        %4361 = vmatpush.msra.mxu0 0.0
        %4362 = vmatpush.msra.mxu0 0.0
        %4363 = vmatpush.msra.mxu0 0.0
        %4364 = vmatpush.msra.mxu0 0.0
        %4365 = vmatpush.msra.mxu0 0.0
        %4366 = vmatpush.msra.mxu0 %v4277
        %4367 = vmatmul.f32.gmra.mxu0 %v4265
        %v4368 = vpop.f32.mrf.mxu0
        %v4369 = vadd.f32 %v1525, %v4368
        %4370 = vdwg.mxu0
        %4371 = vmatpush.msra.mxu0 0.0
        %4372 = vmatpush.msra.mxu0 0.0
        %4373 = vmatpush.msra.mxu0 0.0
        %4374 = vmatpush.msra.mxu0 0.0
        %4375 = vmatpush.msra.mxu0 0.0
        %4376 = vmatpush.msra.mxu0 0.0
        %4377 = vmatpush.msra.mxu0 0.0
        %4378 = vmatpush.msra.mxu0 0.0
        %4379 = vmatpush.msra.mxu0 0.0
        %4380 = vmatpush.msra.mxu0 0.0
        %4381 = vmatpush.msra.mxu0 0.0
        %4382 = vmatpush.msra.mxu0 0.0
        %4383 = vmatpush.msra.mxu0 0.0
        %4384 = vmatpush.msra.mxu0 0.0
        %4385 = vmatpush.msra.mxu0 0.0
        %4386 = vmatpush.msra.mxu0 %v4280
        %4387 = vmatmul.f32.gmra.mxu0 %v4265
        %v4388 = vpop.f32.mrf.mxu0
        %v4389 = vadd.f32 %v1522, %v4388
        %4390 = vdwg.mxu0
        %4391 = vmatpush.msra.mxu0 0.0
        %4392 = vmatpush.msra.mxu0 0.0
        %4393 = vmatpush.msra.mxu0 0.0
        %4394 = vmatpush.msra.mxu0 0.0
        %4395 = vmatpush.msra.mxu0 0.0
        %4396 = vmatpush.msra.mxu0 0.0
        %4397 = vmatpush.msra.mxu0 0.0
        %4398 = vmatpush.msra.mxu0 0.0
        %4399 = vmatpush.msra.mxu0 0.0
        %4400 = vmatpush.msra.mxu0 0.0
        %4401 = vmatpush.msra.mxu0 0.0
        %4402 = vmatpush.msra.mxu0 0.0
        %4403 = vmatpush.msra.mxu0 0.0
        %4404 = vmatpush.msra.mxu0 0.0
        %4405 = vmatpush.msra.mxu0 0.0
        %4406 = vmatpush.msra.mxu0 %v4283
        %4407 = vmatmul.f32.gmra.mxu0 %v4265
        %v4408 = vpop.f32.mrf.mxu0
        %v4409 = vadd.f32 %v1525, %v4408
        %4410 = vdwg.mxu0
        %4411 = vmatpush.msra.mxu0 0.0
        %4412 = vmatpush.msra.mxu0 0.0
        %4413 = vmatpush.msra.mxu0 0.0
        %4414 = vmatpush.msra.mxu0 0.0
        %4415 = vmatpush.msra.mxu0 0.0
        %4416 = vmatpush.msra.mxu0 0.0
        %4417 = vmatpush.msra.mxu0 0.0
        %4418 = vmatpush.msra.mxu0 0.0
        %4419 = vmatpush.msra.mxu0 0.0
        %4420 = vmatpush.msra.mxu0 0.0
        %4421 = vmatpush.msra.mxu0 0.0
        %4422 = vmatpush.msra.mxu0 0.0
        %4423 = vmatpush.msra.mxu0 0.0
        %4424 = vmatpush.msra.mxu0 0.0
        %4425 = vmatpush.msra.mxu0 0.0
        %4426 = vmatpush.msra.mxu0 %v4286
        %4427 = vmatmul.f32.gmra.mxu0 %v4265
        %v4428 = vpop.f32.mrf.mxu0
        %v4429 = vadd.f32 %v1522, %v4428
        %4430 = vdwg.mxu0
        %4431 = vmatpush.msra.mxu0 0.0
        %4432 = vmatpush.msra.mxu0 0.0
        %4433 = vmatpush.msra.mxu0 0.0
        %4434 = vmatpush.msra.mxu0 0.0
        %4435 = vmatpush.msra.mxu0 0.0
        %4436 = vmatpush.msra.mxu0 0.0
        %4437 = vmatpush.msra.mxu0 0.0
        %4438 = vmatpush.msra.mxu0 0.0
        %4439 = vmatpush.msra.mxu0 0.0
        %4440 = vmatpush.msra.mxu0 0.0
        %4441 = vmatpush.msra.mxu0 0.0
        %4442 = vmatpush.msra.mxu0 0.0
        %4443 = vmatpush.msra.mxu0 0.0
        %4444 = vmatpush.msra.mxu0 0.0
        %4445 = vmatpush.msra.mxu0 0.0
        %4446 = vmatpush.msra.mxu0 %v4289
        %4447 = vmatmul.f32.gmra.mxu0 %v4265
        %v4448 = vpop.f32.mrf.mxu0
        %v4449 = vadd.f32 %v1525, %v4448
        %4450 = vdwg.mxu0
        %4452 = vrot.lane.b32.xlu0 %v4309, 96
        %v4453 = vpop.permute.xlu0 %4452
        %4455 = vrot.lane.b32.xlu0 %v4309, 64
        %v4456 = vpop.permute.xlu0 %4455
        %4458 = vrot.lane.b32.xlu0 %v4309, 32
        %v4459 = vpop.permute.xlu0 %4458
        %4462 = vrot.lane.b32.xlu0 %v4329, 96
        %v4463 = vpop.permute.xlu0 %4462
        %4465 = vrot.lane.b32.xlu0 %v4329, 64
        %v4466 = vpop.permute.xlu0 %4465
        %4468 = vrot.lane.b32.xlu0 %v4329, 32
        %v4469 = vpop.permute.xlu0 %4468
        %4472 = vrot.lane.b32.xlu0 %v4349, 96
        %v4473 = vpop.permute.xlu0 %4472
        %4475 = vrot.lane.b32.xlu0 %v4349, 64
        %v4476 = vpop.permute.xlu0 %4475
        %4478 = vrot.lane.b32.xlu0 %v4349, 32
        %v4479 = vpop.permute.xlu0 %4478
        %4482 = vrot.lane.b32.xlu0 %v4369, 96
        %v4483 = vpop.permute.xlu0 %4482
        %4485 = vrot.lane.b32.xlu0 %v4369, 64
        %v4486 = vpop.permute.xlu0 %4485
        %4488 = vrot.lane.b32.xlu0 %v4369, 32
        %v4489 = vpop.permute.xlu0 %4488
        %4492 = vrot.lane.b32.xlu0 %v4389, 96
        %v4493 = vpop.permute.xlu0 %4492
        %4495 = vrot.lane.b32.xlu0 %v4389, 64
        %v4496 = vpop.permute.xlu0 %4495
        %4498 = vrot.lane.b32.xlu0 %v4389, 32
        %v4499 = vpop.permute.xlu0 %4498
        %4502 = vrot.lane.b32.xlu0 %v4409, 96
        %v4503 = vpop.permute.xlu0 %4502
        %4505 = vrot.lane.b32.xlu0 %v4409, 64
        %v4506 = vpop.permute.xlu0 %4505
        %4508 = vrot.lane.b32.xlu0 %v4409, 32
        %v4509 = vpop.permute.xlu0 %4508
        %4512 = vrot.lane.b32.xlu0 %v4429, 96
        %v4513 = vpop.permute.xlu0 %4512
        %4515 = vrot.lane.b32.xlu0 %v4429, 64
        %v4516 = vpop.permute.xlu0 %4515
        %4518 = vrot.lane.b32.xlu0 %v4429, 32
        %v4519 = vpop.permute.xlu0 %4518
        %4522 = vrot.lane.b32.xlu0 %v4449, 96
        %v4523 = vpop.permute.xlu0 %4522
        %4525 = vrot.lane.b32.xlu0 %v4449, 64
        %v4526 = vpop.permute.xlu0 %4525
        %4528 = vrot.lane.b32.xlu0 %v4449, 32
        %v4529 = vpop.permute.xlu0 %4528
        %v4531 = vrot.slane %v4456, 4
        %v4532 = vsel %vm1105, %v4531, %v4309
        %v4533 = vrot.slane %v4309, 4
        %v4534 = vsel %vm1105, %v4456, %v4533
        %v4536 = vunpack.c.l.s4 1983009808
        %v4537 = vunpack.c.0.s8 %v4536
        %v4538 = vperm.slane %v4532, %v4537
        %v4540 = vunpack.c.l.s4 1983009808
        %v4541 = vunpack.c.0.s8 %v4540
        %v4542 = vperm.slane %v4534, %v4541
        %v4543 = vrot.slane %v4459, 4
        %v4544 = vsel %vm1105, %v4543, %v4453
        %v4545 = vrot.slane %v4453, 4
        %v4546 = vsel %vm1105, %v4459, %v4545
        %v4548 = vunpack.c.l.s4 1983009808
        %v4549 = vunpack.c.0.s8 %v4548
        %v4550 = vperm.slane %v4544, %v4549
        %v4552 = vunpack.c.l.s4 1983009808
        %v4553 = vunpack.c.0.s8 %v4552
        %v4554 = vperm.slane %v4546, %v4553
        %v4555 = vrot.slane %v4466, 4
        %v4556 = vsel %vm1105, %v4555, %v4329
        %v4557 = vrot.slane %v4329, 4
        %v4558 = vsel %vm1105, %v4466, %v4557
        %v4560 = vunpack.c.l.s4 1983009808
        %v4561 = vunpack.c.0.s8 %v4560
        %v4562 = vperm.slane %v4556, %v4561
        %v4564 = vunpack.c.l.s4 1983009808
        %v4565 = vunpack.c.0.s8 %v4564
        %v4566 = vperm.slane %v4558, %v4565
        %v4567 = vrot.slane %v4469, 4
        %v4568 = vsel %vm1105, %v4567, %v4463
        %v4569 = vrot.slane %v4463, 4
        %v4570 = vsel %vm1105, %v4469, %v4569
        %v4572 = vunpack.c.l.s4 1983009808
        %v4573 = vunpack.c.0.s8 %v4572
        %v4574 = vperm.slane %v4568, %v4573
        %v4576 = vunpack.c.l.s4 1983009808
        %v4577 = vunpack.c.0.s8 %v4576
        %v4578 = vperm.slane %v4570, %v4577
        %v4579 = vrot.slane %v4550, 4
        %v4580 = vsel %vm1105, %v4579, %v4538
        %v4581 = vrot.slane %v4538, 4
        %v4582 = vsel %vm1105, %v4550, %v4581
        %v4584 = vunpack.c.l.s4 1934713408
        %v4585 = vunpack.c.0.s8 %v4584
        %v4586 = vperm.slane %v4580, %v4585
        %v4588 = vunpack.c.l.s4 1934713408
        %v4589 = vunpack.c.0.s8 %v4588
        %v4590 = vperm.slane %v4582, %v4589
        %v4591 = vrot.slane %v4554, 4
        %v4592 = vsel %vm1105, %v4591, %v4542
        %v4593 = vrot.slane %v4542, 4
        %v4594 = vsel %vm1105, %v4554, %v4593
        %v4596 = vunpack.c.l.s4 1934713408
        %v4597 = vunpack.c.0.s8 %v4596
        %v4598 = vperm.slane %v4592, %v4597
        %v4600 = vunpack.c.l.s4 1934713408
        %v4601 = vunpack.c.0.s8 %v4600
        %v4602 = vperm.slane %v4594, %v4601
        %v4603 = vrot.slane %v4574, 4
        %v4604 = vsel %vm1105, %v4603, %v4562
        %v4605 = vrot.slane %v4562, 4
        %v4606 = vsel %vm1105, %v4574, %v4605
        %v4608 = vunpack.c.l.s4 1934713408
        %v4609 = vunpack.c.0.s8 %v4608
        %v4610 = vperm.slane %v4604, %v4609
        %v4612 = vunpack.c.l.s4 1934713408
        %v4613 = vunpack.c.0.s8 %v4612
        %v4614 = vperm.slane %v4606, %v4613
        %v4615 = vrot.slane %v4578, 4
        %v4616 = vsel %vm1105, %v4615, %v4566
        %v4617 = vrot.slane %v4566, 4
        %v4618 = vsel %vm1105, %v4578, %v4617
        %v4620 = vunpack.c.l.s4 1934713408
        %v4621 = vunpack.c.0.s8 %v4620
        %v4622 = vperm.slane %v4616, %v4621
        %v4624 = vunpack.c.l.s4 1934713408
        %v4625 = vunpack.c.0.s8 %v4624
        %v4626 = vperm.slane %v4618, %v4625
        %v4627 = vrot.slane %v4610, 4
        %v4628 = vsel %vm1105, %v4627, %v4586
        %v4629 = vrot.slane %v4586, 4
        %v4630 = vsel %vm1105, %v4610, %v4629
        %v4631 = vrot.slane %v4614, 4
        %v4632 = vsel %vm1105, %v4631, %v4590
        %v4633 = vrot.slane %v4590, 4
        %v4634 = vsel %vm1105, %v4614, %v4633
        %v4635 = vrot.slane %v4622, 4
        %v4636 = vsel %vm1105, %v4635, %v4598
        %v4637 = vrot.slane %v4598, 4
        %v4638 = vsel %vm1105, %v4622, %v4637
        %v4639 = vrot.slane %v4626, 4
        %v4640 = vsel %vm1105, %v4639, %v4602
        %v4641 = vrot.slane %v4602, 4
        %v4642 = vsel %vm1105, %v4626, %v4641
        %v4643 = vrot.slane %v4476, 4
        %v4644 = vsel %vm1105, %v4643, %v4349
        %v4645 = vrot.slane %v4349, 4
        %v4646 = vsel %vm1105, %v4476, %v4645
        %v4648 = vunpack.c.l.s4 1983009808
        %v4649 = vunpack.c.0.s8 %v4648
        %v4650 = vperm.slane %v4644, %v4649
        %v4652 = vunpack.c.l.s4 1983009808
        %v4653 = vunpack.c.0.s8 %v4652
        %v4654 = vperm.slane %v4646, %v4653
        %v4655 = vrot.slane %v4479, 4
        %v4656 = vsel %vm1105, %v4655, %v4473
        %v4657 = vrot.slane %v4473, 4
        %v4658 = vsel %vm1105, %v4479, %v4657
        %v4660 = vunpack.c.l.s4 1983009808
        %v4661 = vunpack.c.0.s8 %v4660
        %v4662 = vperm.slane %v4656, %v4661
        %v4664 = vunpack.c.l.s4 1983009808
        %v4665 = vunpack.c.0.s8 %v4664
        %v4666 = vperm.slane %v4658, %v4665
        %v4667 = vrot.slane %v4486, 4
        %v4668 = vsel %vm1105, %v4667, %v4369
        %v4669 = vrot.slane %v4369, 4
        %v4670 = vsel %vm1105, %v4486, %v4669
        %v4672 = vunpack.c.l.s4 1983009808
        %v4673 = vunpack.c.0.s8 %v4672
        %v4674 = vperm.slane %v4668, %v4673
        %v4676 = vunpack.c.l.s4 1983009808
        %v4677 = vunpack.c.0.s8 %v4676
        %v4678 = vperm.slane %v4670, %v4677
        %v4679 = vrot.slane %v4489, 4
        %v4680 = vsel %vm1105, %v4679, %v4483
        %v4681 = vrot.slane %v4483, 4
        %v4682 = vsel %vm1105, %v4489, %v4681
        %v4684 = vunpack.c.l.s4 1983009808
        %v4685 = vunpack.c.0.s8 %v4684
        %v4686 = vperm.slane %v4680, %v4685
        %v4688 = vunpack.c.l.s4 1983009808
        %v4689 = vunpack.c.0.s8 %v4688
        %v4690 = vperm.slane %v4682, %v4689
        %v4691 = vrot.slane %v4662, 4
        %v4692 = vsel %vm1105, %v4691, %v4650
        %v4693 = vrot.slane %v4650, 4
        %v4694 = vsel %vm1105, %v4662, %v4693
        %v4696 = vunpack.c.l.s4 1934713408
        %v4697 = vunpack.c.0.s8 %v4696
        %v4698 = vperm.slane %v4692, %v4697
        %v4700 = vunpack.c.l.s4 1934713408
        %v4701 = vunpack.c.0.s8 %v4700
        %v4702 = vperm.slane %v4694, %v4701
        %v4703 = vrot.slane %v4666, 4
        %v4704 = vsel %vm1105, %v4703, %v4654
        %v4705 = vrot.slane %v4654, 4
        %v4706 = vsel %vm1105, %v4666, %v4705
        %v4708 = vunpack.c.l.s4 1934713408
        %v4709 = vunpack.c.0.s8 %v4708
        %v4710 = vperm.slane %v4704, %v4709
        %v4712 = vunpack.c.l.s4 1934713408
        %v4713 = vunpack.c.0.s8 %v4712
        %v4714 = vperm.slane %v4706, %v4713
        %v4715 = vrot.slane %v4686, 4
        %v4716 = vsel %vm1105, %v4715, %v4674
        %v4717 = vrot.slane %v4674, 4
        %v4718 = vsel %vm1105, %v4686, %v4717
        %v4720 = vunpack.c.l.s4 1934713408
        %v4721 = vunpack.c.0.s8 %v4720
        %v4722 = vperm.slane %v4716, %v4721
        %v4724 = vunpack.c.l.s4 1934713408
        %v4725 = vunpack.c.0.s8 %v4724
        %v4726 = vperm.slane %v4718, %v4725
        %v4727 = vrot.slane %v4690, 4
        %v4728 = vsel %vm1105, %v4727, %v4678
        %v4729 = vrot.slane %v4678, 4
        %v4730 = vsel %vm1105, %v4690, %v4729
        %v4732 = vunpack.c.l.s4 1934713408
        %v4733 = vunpack.c.0.s8 %v4732
        %v4734 = vperm.slane %v4728, %v4733
        %v4736 = vunpack.c.l.s4 1934713408
        %v4737 = vunpack.c.0.s8 %v4736
        %v4738 = vperm.slane %v4730, %v4737
        %v4739 = vrot.slane %v4722, 4
        %v4740 = vsel %vm1105, %v4739, %v4698
        %v4741 = vrot.slane %v4698, 4
        %v4742 = vsel %vm1105, %v4722, %v4741
        %v4743 = vrot.slane %v4726, 4
        %v4744 = vsel %vm1105, %v4743, %v4702
        %v4745 = vrot.slane %v4702, 4
        %v4746 = vsel %vm1105, %v4726, %v4745
        %v4747 = vrot.slane %v4734, 4
        %v4748 = vsel %vm1105, %v4747, %v4710
        %v4749 = vrot.slane %v4710, 4
        %v4750 = vsel %vm1105, %v4734, %v4749
        %v4751 = vrot.slane %v4738, 4
        %v4752 = vsel %vm1105, %v4751, %v4714
        %v4753 = vrot.slane %v4714, 4
        %v4754 = vsel %vm1105, %v4738, %v4753
        %v4755 = vrot.slane %v4496, 4
        %v4756 = vsel %vm1105, %v4755, %v4389
        %v4757 = vrot.slane %v4389, 4
        %v4758 = vsel %vm1105, %v4496, %v4757
        %v4760 = vunpack.c.l.s4 1983009808
        %v4761 = vunpack.c.0.s8 %v4760
        %v4762 = vperm.slane %v4756, %v4761
        %v4764 = vunpack.c.l.s4 1983009808
        %v4765 = vunpack.c.0.s8 %v4764
        %v4766 = vperm.slane %v4758, %v4765
        %v4767 = vrot.slane %v4499, 4
        %v4768 = vsel %vm1105, %v4767, %v4493
        %v4769 = vrot.slane %v4493, 4
        %v4770 = vsel %vm1105, %v4499, %v4769
        %v4772 = vunpack.c.l.s4 1983009808
        %v4773 = vunpack.c.0.s8 %v4772
        %v4774 = vperm.slane %v4768, %v4773
        %v4776 = vunpack.c.l.s4 1983009808
        %v4777 = vunpack.c.0.s8 %v4776
        %v4778 = vperm.slane %v4770, %v4777
        %v4779 = vrot.slane %v4506, 4
        %v4780 = vsel %vm1105, %v4779, %v4409
        %v4781 = vrot.slane %v4409, 4
        %v4782 = vsel %vm1105, %v4506, %v4781
        %v4784 = vunpack.c.l.s4 1983009808
        %v4785 = vunpack.c.0.s8 %v4784
        %v4786 = vperm.slane %v4780, %v4785
        %v4788 = vunpack.c.l.s4 1983009808
        %v4789 = vunpack.c.0.s8 %v4788
        %v4790 = vperm.slane %v4782, %v4789
        %v4791 = vrot.slane %v4509, 4
        %v4792 = vsel %vm1105, %v4791, %v4503
        %v4793 = vrot.slane %v4503, 4
        %v4794 = vsel %vm1105, %v4509, %v4793
        %v4796 = vunpack.c.l.s4 1983009808
        %v4797 = vunpack.c.0.s8 %v4796
        %v4798 = vperm.slane %v4792, %v4797
        %v4800 = vunpack.c.l.s4 1983009808
        %v4801 = vunpack.c.0.s8 %v4800
        %v4802 = vperm.slane %v4794, %v4801
        %v4803 = vrot.slane %v4774, 4
        %v4804 = vsel %vm1105, %v4803, %v4762
        %v4805 = vrot.slane %v4762, 4
        %v4806 = vsel %vm1105, %v4774, %v4805
        %v4808 = vunpack.c.l.s4 1934713408
        %v4809 = vunpack.c.0.s8 %v4808
        %v4810 = vperm.slane %v4804, %v4809
        %v4812 = vunpack.c.l.s4 1934713408
        %v4813 = vunpack.c.0.s8 %v4812
        %v4814 = vperm.slane %v4806, %v4813
        %v4815 = vrot.slane %v4778, 4
        %v4816 = vsel %vm1105, %v4815, %v4766
        %v4817 = vrot.slane %v4766, 4
        %v4818 = vsel %vm1105, %v4778, %v4817
        %v4820 = vunpack.c.l.s4 1934713408
        %v4821 = vunpack.c.0.s8 %v4820
        %v4822 = vperm.slane %v4816, %v4821
        %v4824 = vunpack.c.l.s4 1934713408
        %v4825 = vunpack.c.0.s8 %v4824
        %v4826 = vperm.slane %v4818, %v4825
        %v4827 = vrot.slane %v4798, 4
        %v4828 = vsel %vm1105, %v4827, %v4786
        %v4829 = vrot.slane %v4786, 4
        %v4830 = vsel %vm1105, %v4798, %v4829
        %v4832 = vunpack.c.l.s4 1934713408
        %v4833 = vunpack.c.0.s8 %v4832
        %v4834 = vperm.slane %v4828, %v4833
        %v4836 = vunpack.c.l.s4 1934713408
        %v4837 = vunpack.c.0.s8 %v4836
        %v4838 = vperm.slane %v4830, %v4837
        %v4839 = vrot.slane %v4802, 4
        %v4840 = vsel %vm1105, %v4839, %v4790
        %v4841 = vrot.slane %v4790, 4
        %v4842 = vsel %vm1105, %v4802, %v4841
        %v4844 = vunpack.c.l.s4 1934713408
        %v4845 = vunpack.c.0.s8 %v4844
        %v4846 = vperm.slane %v4840, %v4845
        %v4848 = vunpack.c.l.s4 1934713408
        %v4849 = vunpack.c.0.s8 %v4848
        %v4850 = vperm.slane %v4842, %v4849
        %v4851 = vrot.slane %v4834, 4
        %v4852 = vsel %vm1105, %v4851, %v4810
        %v4853 = vrot.slane %v4810, 4
        %v4854 = vsel %vm1105, %v4834, %v4853
        %v4855 = vrot.slane %v4838, 4
        %v4856 = vsel %vm1105, %v4855, %v4814
        %v4857 = vrot.slane %v4814, 4
        %v4858 = vsel %vm1105, %v4838, %v4857
        %v4859 = vrot.slane %v4846, 4
        %v4860 = vsel %vm1105, %v4859, %v4822
        %v4861 = vrot.slane %v4822, 4
        %v4862 = vsel %vm1105, %v4846, %v4861
        %v4863 = vrot.slane %v4850, 4
        %v4864 = vsel %vm1105, %v4863, %v4826
        %v4865 = vrot.slane %v4826, 4
        %v4866 = vsel %vm1105, %v4850, %v4865
        %v4867 = vrot.slane %v4516, 4
        %v4868 = vsel %vm1105, %v4867, %v4429
        %v4869 = vrot.slane %v4429, 4
        %v4870 = vsel %vm1105, %v4516, %v4869
        %v4872 = vunpack.c.l.s4 1983009808
        %v4873 = vunpack.c.0.s8 %v4872
        %v4874 = vperm.slane %v4868, %v4873
        %v4876 = vunpack.c.l.s4 1983009808
        %v4877 = vunpack.c.0.s8 %v4876
        %v4878 = vperm.slane %v4870, %v4877
        %v4879 = vrot.slane %v4519, 4
        %v4880 = vsel %vm1105, %v4879, %v4513
        %v4881 = vrot.slane %v4513, 4
        %v4882 = vsel %vm1105, %v4519, %v4881
        %v4884 = vunpack.c.l.s4 1983009808
        %v4885 = vunpack.c.0.s8 %v4884
        %v4886 = vperm.slane %v4880, %v4885
        %v4888 = vunpack.c.l.s4 1983009808
        %v4889 = vunpack.c.0.s8 %v4888
        %v4890 = vperm.slane %v4882, %v4889
        %v4891 = vrot.slane %v4526, 4
        %v4892 = vsel %vm1105, %v4891, %v4449
        %v4893 = vrot.slane %v4449, 4
        %v4894 = vsel %vm1105, %v4526, %v4893
        %v4896 = vunpack.c.l.s4 1983009808
        %v4897 = vunpack.c.0.s8 %v4896
        %v4898 = vperm.slane %v4892, %v4897
        %v4900 = vunpack.c.l.s4 1983009808
        %v4901 = vunpack.c.0.s8 %v4900
        %v4902 = vperm.slane %v4894, %v4901
        %v4903 = vrot.slane %v4529, 4
        %v4904 = vsel %vm1105, %v4903, %v4523
        %v4905 = vrot.slane %v4523, 4
        %v4906 = vsel %vm1105, %v4529, %v4905
        %v4908 = vunpack.c.l.s4 1983009808
        %v4909 = vunpack.c.0.s8 %v4908
        %v4910 = vperm.slane %v4904, %v4909
        %v4912 = vunpack.c.l.s4 1983009808
        %v4913 = vunpack.c.0.s8 %v4912
        %v4914 = vperm.slane %v4906, %v4913
        %v4915 = vrot.slane %v4886, 4
        %v4916 = vsel %vm1105, %v4915, %v4874
        %v4917 = vrot.slane %v4874, 4
        %v4918 = vsel %vm1105, %v4886, %v4917
        %v4920 = vunpack.c.l.s4 1934713408
        %v4921 = vunpack.c.0.s8 %v4920
        %v4922 = vperm.slane %v4916, %v4921
        %v4924 = vunpack.c.l.s4 1934713408
        %v4925 = vunpack.c.0.s8 %v4924
        %v4926 = vperm.slane %v4918, %v4925
        %v4927 = vrot.slane %v4890, 4
        %v4928 = vsel %vm1105, %v4927, %v4878
        %v4929 = vrot.slane %v4878, 4
        %v4930 = vsel %vm1105, %v4890, %v4929
        %v4932 = vunpack.c.l.s4 1934713408
        %v4933 = vunpack.c.0.s8 %v4932
        %v4934 = vperm.slane %v4928, %v4933
        %v4936 = vunpack.c.l.s4 1934713408
        %v4937 = vunpack.c.0.s8 %v4936
        %v4938 = vperm.slane %v4930, %v4937
        %v4939 = vrot.slane %v4910, 4
        %v4940 = vsel %vm1105, %v4939, %v4898
        %v4941 = vrot.slane %v4898, 4
        %v4942 = vsel %vm1105, %v4910, %v4941
        %v4944 = vunpack.c.l.s4 1934713408
        %v4945 = vunpack.c.0.s8 %v4944
        %v4946 = vperm.slane %v4940, %v4945
        %v4948 = vunpack.c.l.s4 1934713408
        %v4949 = vunpack.c.0.s8 %v4948
        %v4950 = vperm.slane %v4942, %v4949
        %v4951 = vrot.slane %v4914, 4
        %v4952 = vsel %vm1105, %v4951, %v4902
        %v4953 = vrot.slane %v4902, 4
        %v4954 = vsel %vm1105, %v4914, %v4953
        %v4956 = vunpack.c.l.s4 1934713408
        %v4957 = vunpack.c.0.s8 %v4956
        %v4958 = vperm.slane %v4952, %v4957
        %v4960 = vunpack.c.l.s4 1934713408
        %v4961 = vunpack.c.0.s8 %v4960
        %v4962 = vperm.slane %v4954, %v4961
        %v4963 = vrot.slane %v4946, 4
        %v4964 = vsel %vm1105, %v4963, %v4922
        %v4965 = vrot.slane %v4922, 4
        %v4966 = vsel %vm1105, %v4946, %v4965
        %v4967 = vrot.slane %v4950, 4
        %v4968 = vsel %vm1105, %v4967, %v4926
        %v4969 = vrot.slane %v4926, 4
        %v4970 = vsel %vm1105, %v4950, %v4969
        %v4971 = vrot.slane %v4958, 4
        %v4972 = vsel %vm1105, %v4971, %v4934
        %v4973 = vrot.slane %v4934, 4
        %v4974 = vsel %vm1105, %v4958, %v4973
        %v4975 = vrot.slane %v4962, 4
        %v4976 = vsel %vm1105, %v4975, %v4938
        %v4977 = vrot.slane %v4938, 4
        %v4978 = vsel %vm1105, %v4962, %v4977
        %v4979 = vadd.f32 %v3519, %v4628
        %v4980 = vadd.f32 %v3631, %v4740
        %v4981 = vadd.f32 %v3743, %v4852
        %v4982 = vadd.f32 %v3855, %v4964
        %v4983 = vadd.f32 %v3521, %v4630
        %v4984 = vadd.f32 %v3633, %v4742
        %v4985 = vadd.f32 %v3745, %v4854
        %v4986 = vadd.f32 %v3857, %v4966
        %v4987 = vadd.f32 %v3523, %v4632
        %v4988 = vadd.f32 %v3635, %v4744
        %v4989 = vadd.f32 %v3747, %v4856
        %v4990 = vadd.f32 %v3859, %v4968
        %v4991 = vadd.f32 %v3525, %v4634
        %v4992 = vadd.f32 %v3637, %v4746
        %v4993 = vadd.f32 %v3749, %v4858
        %v4994 = vadd.f32 %v3861, %v4970
        %v4995 = vadd.f32 %v3527, %v4636
        %v4996 = vadd.f32 %v3639, %v4748
        %v4997 = vadd.f32 %v3751, %v4860
        %v4998 = vadd.f32 %v3863, %v4972
        %v4999 = vadd.f32 %v3529, %v4638
        %v5000 = vadd.f32 %v3641, %v4750
        %v5001 = vadd.f32 %v3753, %v4862
        %v5002 = vadd.f32 %v3865, %v4974
        %v5003 = vadd.f32 %v3531, %v4640
        %v5004 = vadd.f32 %v3643, %v4752
        %v5005 = vadd.f32 %v3755, %v4864
        %v5006 = vadd.f32 %v3867, %v4976
        %v5007 = vadd.f32 %v3533, %v4642
        %v5008 = vadd.f32 %v3645, %v4754
        %v5009 = vadd.f32 %v3757, %v4866
        %v5010 = vadd.f32 %v3869, %v4978
        %s5011 = scalar_lea.vmem %s3, 24
        %v5012 = vld [vmem:[%s5011] sm:$0xff]
        %vm5017 = vcmask 1046528
        %v5018 = vrot.slane %v925, 1
        %v5019 = vrot.slane %v926, 1
        %v5020 = vsel %vm5017, %v5018, %v5019
        %v5021 = vrot.slane %v927, 1
        %v5022 = vsel %vm5017, %v5019, %v5021
        %v5023 = vrot.slane %v928, 1
        %v5024 = vsel %vm5017, %v5021, %v5023
        %v5025 = vrot.slane %v929, 1
        %v5026 = vsel %vm5017, %v5023, %v5025
        %v5027 = vrot.slane %v957, 1
        %v5028 = vrot.slane %v958, 1
        %v5029 = vsel %vm5017, %v5027, %v5028
        %v5030 = vrot.slane %v959, 1
        %v5031 = vsel %vm5017, %v5028, %v5030
        %v5032 = vrot.slane %v960, 1
        %v5033 = vsel %vm5017, %v5030, %v5032
        %v5034 = vrot.slane %v961, 1
        %v5035 = vsel %vm5017, %v5032, %v5034
        %v5036 = vrot.slane %v989, 1
        %v5037 = vrot.slane %v990, 1
        %v5038 = vsel %vm5017, %v5036, %v5037
        %v5039 = vrot.slane %v991, 1
        %v5040 = vsel %vm5017, %v5037, %v5039
        %v5041 = vrot.slane %v992, 1
        %v5042 = vsel %vm5017, %v5039, %v5041
        %v5043 = vrot.slane %v993, 1
        %v5044 = vsel %vm5017, %v5041, %v5043
        %v5045 = vrot.slane %v1021, 1
        %v5046 = vrot.slane %v1022, 1
        %v5047 = vsel %vm5017, %v5045, %v5046
        %v5048 = vrot.slane %v1023, 1
        %v5049 = vsel %vm5017, %v5046, %v5048
        %v5050 = vrot.slane %v1024, 1
        %v5051 = vsel %vm5017, %v5048, %v5050
        %v5052 = vrot.slane %v1025, 1
        %v5053 = vsel %vm5017, %v5050, %v5052
        %v5070 = vrot.slane %v5038, 4
        %v5071 = vsel %vm1105, %v5070, %v5020
        %v5072 = vrot.slane %v5020, 4
        %v5073 = vsel %vm1105, %v5038, %v5072
        %v5075 = vunpack.c.l.s4 1983009808
        %v5076 = vunpack.c.0.s8 %v5075
        %v5077 = vperm.slane %v5071, %v5076
        %v5079 = vunpack.c.l.s4 1983009808
        %v5080 = vunpack.c.0.s8 %v5079
        %v5081 = vperm.slane %v5073, %v5080
        %v5082 = vrot.slane %v5047, 4
        %v5083 = vsel %vm1105, %v5082, %v5029
        %v5084 = vrot.slane %v5029, 4
        %v5085 = vsel %vm1105, %v5047, %v5084
        %v5087 = vunpack.c.l.s4 1983009808
        %v5088 = vunpack.c.0.s8 %v5087
        %v5089 = vperm.slane %v5083, %v5088
        %v5091 = vunpack.c.l.s4 1983009808
        %v5092 = vunpack.c.0.s8 %v5091
        %v5093 = vperm.slane %v5085, %v5092
        %v5094 = vrot.slane %v5089, 4
        %v5095 = vsel %vm1105, %v5094, %v5077
        %v5096 = vrot.slane %v5077, 4
        %v5097 = vsel %vm1105, %v5089, %v5096
        %v5099 = vunpack.c.l.s4 1934713408
        %v5100 = vunpack.c.0.s8 %v5099
        %v5101 = vperm.slane %v5095, %v5100
        %v5103 = vunpack.c.l.s4 1934713408
        %v5104 = vunpack.c.0.s8 %v5103
        %v5105 = vperm.slane %v5097, %v5104
        %v5106 = vrot.slane %v5093, 4
        %v5107 = vsel %vm1105, %v5106, %v5081
        %v5108 = vrot.slane %v5081, 4
        %v5109 = vsel %vm1105, %v5093, %v5108
        %v5111 = vunpack.c.l.s4 1934713408
        %v5112 = vunpack.c.0.s8 %v5111
        %v5113 = vperm.slane %v5107, %v5112
        %v5115 = vunpack.c.l.s4 1934713408
        %v5116 = vunpack.c.0.s8 %v5115
        %v5117 = vperm.slane %v5109, %v5116
        %v5118 = vrot.slane %v5101, 4
        %v5119 = vsel %vm1105, 0.0, %v5118
        %v5120 = vrot.slane %v5105, 4
        %v5121 = vsel %vm1105, 0.0, %v5120
        %v5122 = vrot.slane %v5113, 4
        %v5123 = vsel %vm1105, 0.0, %v5122
        %v5124 = vrot.slane %v5117, 4
        %v5125 = vsel %vm1105, 0.0, %v5124
        %v5126 = vrot.slane %v5040, 4
        %v5127 = vsel %vm1105, %v5126, %v5022
        %v5128 = vrot.slane %v5022, 4
        %v5129 = vsel %vm1105, %v5040, %v5128
        %v5131 = vunpack.c.l.s4 1983009808
        %v5132 = vunpack.c.0.s8 %v5131
        %v5133 = vperm.slane %v5127, %v5132
        %v5135 = vunpack.c.l.s4 1983009808
        %v5136 = vunpack.c.0.s8 %v5135
        %v5137 = vperm.slane %v5129, %v5136
        %v5138 = vrot.slane %v5049, 4
        %v5139 = vsel %vm1105, %v5138, %v5031
        %v5140 = vrot.slane %v5031, 4
        %v5141 = vsel %vm1105, %v5049, %v5140
        %v5143 = vunpack.c.l.s4 1983009808
        %v5144 = vunpack.c.0.s8 %v5143
        %v5145 = vperm.slane %v5139, %v5144
        %v5147 = vunpack.c.l.s4 1983009808
        %v5148 = vunpack.c.0.s8 %v5147
        %v5149 = vperm.slane %v5141, %v5148
        %v5150 = vrot.slane %v5145, 4
        %v5151 = vsel %vm1105, %v5150, %v5133
        %v5152 = vrot.slane %v5133, 4
        %v5153 = vsel %vm1105, %v5145, %v5152
        %v5155 = vunpack.c.l.s4 1934713408
        %v5156 = vunpack.c.0.s8 %v5155
        %v5157 = vperm.slane %v5151, %v5156
        %v5159 = vunpack.c.l.s4 1934713408
        %v5160 = vunpack.c.0.s8 %v5159
        %v5161 = vperm.slane %v5153, %v5160
        %v5162 = vrot.slane %v5149, 4
        %v5163 = vsel %vm1105, %v5162, %v5137
        %v5164 = vrot.slane %v5137, 4
        %v5165 = vsel %vm1105, %v5149, %v5164
        %v5167 = vunpack.c.l.s4 1934713408
        %v5168 = vunpack.c.0.s8 %v5167
        %v5169 = vperm.slane %v5163, %v5168
        %v5171 = vunpack.c.l.s4 1934713408
        %v5172 = vunpack.c.0.s8 %v5171
        %v5173 = vperm.slane %v5165, %v5172
        %v5174 = vrot.slane %v5157, 4
        %v5175 = vsel %vm1105, 0.0, %v5174
        %v5176 = vrot.slane %v5161, 4
        %v5177 = vsel %vm1105, 0.0, %v5176
        %v5178 = vrot.slane %v5169, 4
        %v5179 = vsel %vm1105, 0.0, %v5178
        %v5180 = vrot.slane %v5173, 4
        %v5181 = vsel %vm1105, 0.0, %v5180
        %v5182 = vrot.slane %v5042, 4
        %v5183 = vsel %vm1105, %v5182, %v5024
        %v5184 = vrot.slane %v5024, 4
        %v5185 = vsel %vm1105, %v5042, %v5184
        %v5187 = vunpack.c.l.s4 1983009808
        %v5188 = vunpack.c.0.s8 %v5187
        %v5189 = vperm.slane %v5183, %v5188
        %v5191 = vunpack.c.l.s4 1983009808
        %v5192 = vunpack.c.0.s8 %v5191
        %v5193 = vperm.slane %v5185, %v5192
        %v5194 = vrot.slane %v5051, 4
        %v5195 = vsel %vm1105, %v5194, %v5033
        %v5196 = vrot.slane %v5033, 4
        %v5197 = vsel %vm1105, %v5051, %v5196
        %v5199 = vunpack.c.l.s4 1983009808
        %v5200 = vunpack.c.0.s8 %v5199
        %v5201 = vperm.slane %v5195, %v5200
        %v5203 = vunpack.c.l.s4 1983009808
        %v5204 = vunpack.c.0.s8 %v5203
        %v5205 = vperm.slane %v5197, %v5204
        %v5206 = vrot.slane %v5201, 4
        %v5207 = vsel %vm1105, %v5206, %v5189
        %v5208 = vrot.slane %v5189, 4
        %v5209 = vsel %vm1105, %v5201, %v5208
        %v5211 = vunpack.c.l.s4 1934713408
        %v5212 = vunpack.c.0.s8 %v5211
        %v5213 = vperm.slane %v5207, %v5212
        %v5215 = vunpack.c.l.s4 1934713408
        %v5216 = vunpack.c.0.s8 %v5215
        %v5217 = vperm.slane %v5209, %v5216
        %v5218 = vrot.slane %v5205, 4
        %v5219 = vsel %vm1105, %v5218, %v5193
        %v5220 = vrot.slane %v5193, 4
        %v5221 = vsel %vm1105, %v5205, %v5220
        %v5223 = vunpack.c.l.s4 1934713408
        %v5224 = vunpack.c.0.s8 %v5223
        %v5225 = vperm.slane %v5219, %v5224
        %v5227 = vunpack.c.l.s4 1934713408
        %v5228 = vunpack.c.0.s8 %v5227
        %v5229 = vperm.slane %v5221, %v5228
        %v5230 = vrot.slane %v5213, 4
        %v5231 = vsel %vm1105, 0.0, %v5230
        %v5232 = vrot.slane %v5217, 4
        %v5233 = vsel %vm1105, 0.0, %v5232
        %v5234 = vrot.slane %v5225, 4
        %v5235 = vsel %vm1105, 0.0, %v5234
        %v5236 = vrot.slane %v5229, 4
        %v5237 = vsel %vm1105, 0.0, %v5236
        %v5238 = vrot.slane %v5044, 4
        %v5239 = vsel %vm1105, %v5238, %v5026
        %v5240 = vrot.slane %v5026, 4
        %v5241 = vsel %vm1105, %v5044, %v5240
        %v5243 = vunpack.c.l.s4 1983009808
        %v5244 = vunpack.c.0.s8 %v5243
        %v5245 = vperm.slane %v5239, %v5244
        %v5247 = vunpack.c.l.s4 1983009808
        %v5248 = vunpack.c.0.s8 %v5247
        %v5249 = vperm.slane %v5241, %v5248
        %v5250 = vrot.slane %v5053, 4
        %v5251 = vsel %vm1105, %v5250, %v5035
        %v5252 = vrot.slane %v5035, 4
        %v5253 = vsel %vm1105, %v5053, %v5252
        %v5255 = vunpack.c.l.s4 1983009808
        %v5256 = vunpack.c.0.s8 %v5255
        %v5257 = vperm.slane %v5251, %v5256
        %v5259 = vunpack.c.l.s4 1983009808
        %v5260 = vunpack.c.0.s8 %v5259
        %v5261 = vperm.slane %v5253, %v5260
        %v5262 = vrot.slane %v5257, 4
        %v5263 = vsel %vm1105, %v5262, %v5245
        %v5264 = vrot.slane %v5245, 4
        %v5265 = vsel %vm1105, %v5257, %v5264
        %v5267 = vunpack.c.l.s4 1934713408
        %v5268 = vunpack.c.0.s8 %v5267
        %v5269 = vperm.slane %v5263, %v5268
        %v5271 = vunpack.c.l.s4 1934713408
        %v5272 = vunpack.c.0.s8 %v5271
        %v5273 = vperm.slane %v5265, %v5272
        %v5274 = vrot.slane %v5261, 4
        %v5275 = vsel %vm1105, %v5274, %v5249
        %v5276 = vrot.slane %v5249, 4
        %v5277 = vsel %vm1105, %v5261, %v5276
        %v5279 = vunpack.c.l.s4 1934713408
        %v5280 = vunpack.c.0.s8 %v5279
        %v5281 = vperm.slane %v5275, %v5280
        %v5283 = vunpack.c.l.s4 1934713408
        %v5284 = vunpack.c.0.s8 %v5283
        %v5285 = vperm.slane %v5277, %v5284
        %v5286 = vrot.slane %v5269, 4
        %v5287 = vsel %vm1105, 0.0, %v5286
        %v5288 = vrot.slane %v5273, 4
        %v5289 = vsel %vm1105, 0.0, %v5288
        %v5290 = vrot.slane %v5281, 4
        %v5291 = vsel %vm1105, 0.0, %v5290
        %v5292 = vrot.slane %v5285, 4
        %v5293 = vsel %vm1105, 0.0, %v5292
        %5295 = vrot.lane.b32.xlu0 %v5119, 32
        %v5296 = vpop.permute.xlu0 %5295
        %5299 = vrot.lane.b32.xlu0 %v5105, 64
        %v5300 = vpop.permute.xlu0 %5299
        %5303 = vrot.lane.b32.xlu0 %v5121, 96
        %v5304 = vpop.permute.xlu0 %5303
        %5307 = vrot.lane.b32.xlu0 %v5123, 32
        %v5308 = vpop.permute.xlu0 %5307
        %5311 = vrot.lane.b32.xlu0 %v5117, 64
        %v5312 = vpop.permute.xlu0 %5311
        %5315 = vrot.lane.b32.xlu0 %v5125, 96
        %v5316 = vpop.permute.xlu0 %5315
        %5319 = vrot.lane.b32.xlu0 %v5175, 32
        %v5320 = vpop.permute.xlu0 %5319
        %5323 = vrot.lane.b32.xlu0 %v5161, 64
        %v5324 = vpop.permute.xlu0 %5323
        %5327 = vrot.lane.b32.xlu0 %v5177, 96
        %v5328 = vpop.permute.xlu0 %5327
        %5331 = vrot.lane.b32.xlu0 %v5179, 32
        %v5332 = vpop.permute.xlu0 %5331
        %5335 = vrot.lane.b32.xlu0 %v5173, 64
        %v5336 = vpop.permute.xlu0 %5335
        %5339 = vrot.lane.b32.xlu0 %v5181, 96
        %v5340 = vpop.permute.xlu0 %5339
        %5343 = vrot.lane.b32.xlu0 %v5231, 32
        %v5344 = vpop.permute.xlu0 %5343
        %5347 = vrot.lane.b32.xlu0 %v5217, 64
        %v5348 = vpop.permute.xlu0 %5347
        %5351 = vrot.lane.b32.xlu0 %v5233, 96
        %v5352 = vpop.permute.xlu0 %5351
        %5355 = vrot.lane.b32.xlu0 %v5235, 32
        %v5356 = vpop.permute.xlu0 %5355
        %5359 = vrot.lane.b32.xlu0 %v5229, 64
        %v5360 = vpop.permute.xlu0 %5359
        %5363 = vrot.lane.b32.xlu0 %v5237, 96
        %v5364 = vpop.permute.xlu0 %5363
        %5367 = vrot.lane.b32.xlu0 %v5287, 32
        %v5368 = vpop.permute.xlu0 %5367
        %5371 = vrot.lane.b32.xlu0 %v5273, 64
        %v5372 = vpop.permute.xlu0 %5371
        %5375 = vrot.lane.b32.xlu0 %v5289, 96
        %v5376 = vpop.permute.xlu0 %5375
        %5379 = vrot.lane.b32.xlu0 %v5291, 32
        %v5380 = vpop.permute.xlu0 %5379
        %5383 = vrot.lane.b32.xlu0 %v5285, 64
        %v5384 = vpop.permute.xlu0 %5383
        %5387 = vrot.lane.b32.xlu0 %v5293, 96
        %v5388 = vpop.permute.xlu0 %5387
        %v5390 = vsel %vm1425, %v5101, %v5296
        %v5391 = vsel %vm1427, %v5390, %v5300
        %v5392 = vsel %vm1429, %v5391, %v5304
        %v5393 = vsel %vm1425, %v5113, %v5308
        %v5394 = vsel %vm1427, %v5393, %v5312
        %v5395 = vsel %vm1429, %v5394, %v5316
        %v5396 = vsel %vm1425, %v5157, %v5320
        %v5397 = vsel %vm1427, %v5396, %v5324
        %v5398 = vsel %vm1429, %v5397, %v5328
        %v5399 = vsel %vm1425, %v5169, %v5332
        %v5400 = vsel %vm1427, %v5399, %v5336
        %v5401 = vsel %vm1429, %v5400, %v5340
        %v5402 = vsel %vm1425, %v5213, %v5344
        %v5403 = vsel %vm1427, %v5402, %v5348
        %v5404 = vsel %vm1429, %v5403, %v5352
        %v5405 = vsel %vm1425, %v5225, %v5356
        %v5406 = vsel %vm1427, %v5405, %v5360
        %v5407 = vsel %vm1429, %v5406, %v5364
        %v5408 = vsel %vm1425, %v5269, %v5368
        %v5409 = vsel %vm1427, %v5408, %v5372
        %v5410 = vsel %vm1429, %v5409, %v5376
        %v5411 = vsel %vm1425, %v5281, %v5380
        %v5412 = vsel %vm1427, %v5411, %v5384
        %v5413 = vsel %vm1429, %v5412, %v5388
        %v5415 = vsel %vm1526, %v5012, 0
        %v5418 = vsel %vm1530, %v5392, 0
        %v5421 = vsel %vm1530, %v5395, 0
        %v5424 = vsel %vm1530, %v5398, 0
        %v5427 = vsel %vm1530, %v5401, 0
        %v5430 = vsel %vm1530, %v5404, 0
        %v5433 = vsel %vm1530, %v5407, 0
        %v5436 = vsel %vm1530, %v5410, 0
        %v5439 = vsel %vm1530, %v5413, 0
        %5441 = vmatpush.msra.mxu0 0.0
        %5442 = vmatpush.msra.mxu0 0.0
        %5443 = vmatpush.msra.mxu0 0.0
        %5444 = vmatpush.msra.mxu0 0.0
        %5445 = vmatpush.msra.mxu0 0.0
        %5446 = vmatpush.msra.mxu0 0.0
        %5447 = vmatpush.msra.mxu0 0.0
        %5448 = vmatpush.msra.mxu0 0.0
        %5449 = vmatpush.msra.mxu0 0.0
        %5450 = vmatpush.msra.mxu0 0.0
        %5451 = vmatpush.msra.mxu0 0.0
        %5452 = vmatpush.msra.mxu0 0.0
        %5453 = vmatpush.msra.mxu0 0.0
        %5454 = vmatpush.msra.mxu0 0.0
        %5455 = vmatpush.msra.mxu0 0.0
        %5456 = vmatpush.msra.mxu0 %v5418
        %5457 = vmatmul.f32.gmra.mxu0 %v5415
        %v5458 = vpop.f32.mrf.mxu0
        %v5459 = vadd.f32 %v1522, %v5458
        %5460 = vdwg.mxu0
        %5461 = vmatpush.msra.mxu0 0.0
        %5462 = vmatpush.msra.mxu0 0.0
        %5463 = vmatpush.msra.mxu0 0.0
        %5464 = vmatpush.msra.mxu0 0.0
        %5465 = vmatpush.msra.mxu0 0.0
        %5466 = vmatpush.msra.mxu0 0.0
        %5467 = vmatpush.msra.mxu0 0.0
        %5468 = vmatpush.msra.mxu0 0.0
        %5469 = vmatpush.msra.mxu0 0.0
        %5470 = vmatpush.msra.mxu0 0.0
        %5471 = vmatpush.msra.mxu0 0.0
        %5472 = vmatpush.msra.mxu0 0.0
        %5473 = vmatpush.msra.mxu0 0.0
        %5474 = vmatpush.msra.mxu0 0.0
        %5475 = vmatpush.msra.mxu0 0.0
        %5476 = vmatpush.msra.mxu0 %v5421
        %5477 = vmatmul.f32.gmra.mxu0 %v5415
        %v5478 = vpop.f32.mrf.mxu0
        %v5479 = vadd.f32 %v1525, %v5478
        %5480 = vdwg.mxu0
        %5481 = vmatpush.msra.mxu0 0.0
        %5482 = vmatpush.msra.mxu0 0.0
        %5483 = vmatpush.msra.mxu0 0.0
        %5484 = vmatpush.msra.mxu0 0.0
        %5485 = vmatpush.msra.mxu0 0.0
        %5486 = vmatpush.msra.mxu0 0.0
        %5487 = vmatpush.msra.mxu0 0.0
        %5488 = vmatpush.msra.mxu0 0.0
        %5489 = vmatpush.msra.mxu0 0.0
        %5490 = vmatpush.msra.mxu0 0.0
        %5491 = vmatpush.msra.mxu0 0.0
        %5492 = vmatpush.msra.mxu0 0.0
        %5493 = vmatpush.msra.mxu0 0.0
        %5494 = vmatpush.msra.mxu0 0.0
        %5495 = vmatpush.msra.mxu0 0.0
        %5496 = vmatpush.msra.mxu0 %v5424
        %5497 = vmatmul.f32.gmra.mxu0 %v5415
        %v5498 = vpop.f32.mrf.mxu0
        %v5499 = vadd.f32 %v1522, %v5498
        %5500 = vdwg.mxu0
        %5501 = vmatpush.msra.mxu0 0.0
        %5502 = vmatpush.msra.mxu0 0.0
        %5503 = vmatpush.msra.mxu0 0.0
        %5504 = vmatpush.msra.mxu0 0.0
        %5505 = vmatpush.msra.mxu0 0.0
        %5506 = vmatpush.msra.mxu0 0.0
        %5507 = vmatpush.msra.mxu0 0.0
        %5508 = vmatpush.msra.mxu0 0.0
        %5509 = vmatpush.msra.mxu0 0.0
        %5510 = vmatpush.msra.mxu0 0.0
        %5511 = vmatpush.msra.mxu0 0.0
        %5512 = vmatpush.msra.mxu0 0.0
        %5513 = vmatpush.msra.mxu0 0.0
        %5514 = vmatpush.msra.mxu0 0.0
        %5515 = vmatpush.msra.mxu0 0.0
        %5516 = vmatpush.msra.mxu0 %v5427
        %5517 = vmatmul.f32.gmra.mxu0 %v5415
        %v5518 = vpop.f32.mrf.mxu0
        %v5519 = vadd.f32 %v1525, %v5518
        %5520 = vdwg.mxu0
        %5521 = vmatpush.msra.mxu0 0.0
        %5522 = vmatpush.msra.mxu0 0.0
        %5523 = vmatpush.msra.mxu0 0.0
        %5524 = vmatpush.msra.mxu0 0.0
        %5525 = vmatpush.msra.mxu0 0.0
        %5526 = vmatpush.msra.mxu0 0.0
        %5527 = vmatpush.msra.mxu0 0.0
        %5528 = vmatpush.msra.mxu0 0.0
        %5529 = vmatpush.msra.mxu0 0.0
        %5530 = vmatpush.msra.mxu0 0.0
        %5531 = vmatpush.msra.mxu0 0.0
        %5532 = vmatpush.msra.mxu0 0.0
        %5533 = vmatpush.msra.mxu0 0.0
        %5534 = vmatpush.msra.mxu0 0.0
        %5535 = vmatpush.msra.mxu0 0.0
        %5536 = vmatpush.msra.mxu0 %v5430
        %5537 = vmatmul.f32.gmra.mxu0 %v5415
        %v5538 = vpop.f32.mrf.mxu0
        %v5539 = vadd.f32 %v1522, %v5538
        %5540 = vdwg.mxu0
        %5541 = vmatpush.msra.mxu0 0.0
        %5542 = vmatpush.msra.mxu0 0.0
        %5543 = vmatpush.msra.mxu0 0.0
        %5544 = vmatpush.msra.mxu0 0.0
        %5545 = vmatpush.msra.mxu0 0.0
        %5546 = vmatpush.msra.mxu0 0.0
        %5547 = vmatpush.msra.mxu0 0.0
        %5548 = vmatpush.msra.mxu0 0.0
        %5549 = vmatpush.msra.mxu0 0.0
        %5550 = vmatpush.msra.mxu0 0.0
        %5551 = vmatpush.msra.mxu0 0.0
        %5552 = vmatpush.msra.mxu0 0.0
        %5553 = vmatpush.msra.mxu0 0.0
        %5554 = vmatpush.msra.mxu0 0.0
        %5555 = vmatpush.msra.mxu0 0.0
        %5556 = vmatpush.msra.mxu0 %v5433
        %5557 = vmatmul.f32.gmra.mxu0 %v5415
        %v5558 = vpop.f32.mrf.mxu0
        %v5559 = vadd.f32 %v1525, %v5558
        %5560 = vdwg.mxu0
        %5561 = vmatpush.msra.mxu0 0.0
        %5562 = vmatpush.msra.mxu0 0.0
        %5563 = vmatpush.msra.mxu0 0.0
        %5564 = vmatpush.msra.mxu0 0.0
        %5565 = vmatpush.msra.mxu0 0.0
        %5566 = vmatpush.msra.mxu0 0.0
        %5567 = vmatpush.msra.mxu0 0.0
        %5568 = vmatpush.msra.mxu0 0.0
        %5569 = vmatpush.msra.mxu0 0.0
        %5570 = vmatpush.msra.mxu0 0.0
        %5571 = vmatpush.msra.mxu0 0.0
        %5572 = vmatpush.msra.mxu0 0.0
        %5573 = vmatpush.msra.mxu0 0.0
        %5574 = vmatpush.msra.mxu0 0.0
        %5575 = vmatpush.msra.mxu0 0.0
        %5576 = vmatpush.msra.mxu0 %v5436
        %5577 = vmatmul.f32.gmra.mxu0 %v5415
        %v5578 = vpop.f32.mrf.mxu0
        %v5579 = vadd.f32 %v1522, %v5578
        %5580 = vdwg.mxu0
        %5581 = vmatpush.msra.mxu0 0.0
        %5582 = vmatpush.msra.mxu0 0.0
        %5583 = vmatpush.msra.mxu0 0.0
        %5584 = vmatpush.msra.mxu0 0.0
        %5585 = vmatpush.msra.mxu0 0.0
        %5586 = vmatpush.msra.mxu0 0.0
        %5587 = vmatpush.msra.mxu0 0.0
        %5588 = vmatpush.msra.mxu0 0.0
        %5589 = vmatpush.msra.mxu0 0.0
        %5590 = vmatpush.msra.mxu0 0.0
        %5591 = vmatpush.msra.mxu0 0.0
        %5592 = vmatpush.msra.mxu0 0.0
        %5593 = vmatpush.msra.mxu0 0.0
        %5594 = vmatpush.msra.mxu0 0.0
        %5595 = vmatpush.msra.mxu0 0.0
        %5596 = vmatpush.msra.mxu0 %v5439
        %5597 = vmatmul.f32.gmra.mxu0 %v5415
        %v5598 = vpop.f32.mrf.mxu0
        %v5599 = vadd.f32 %v1525, %v5598
        %5600 = vdwg.mxu0
        %5602 = vrot.lane.b32.xlu0 %v5459, 96
        %v5603 = vpop.permute.xlu0 %5602
        %5605 = vrot.lane.b32.xlu0 %v5459, 64
        %v5606 = vpop.permute.xlu0 %5605
        %5608 = vrot.lane.b32.xlu0 %v5459, 32
        %v5609 = vpop.permute.xlu0 %5608
        %5612 = vrot.lane.b32.xlu0 %v5479, 96
        %v5613 = vpop.permute.xlu0 %5612
        %5615 = vrot.lane.b32.xlu0 %v5479, 64
        %v5616 = vpop.permute.xlu0 %5615
        %5618 = vrot.lane.b32.xlu0 %v5479, 32
        %v5619 = vpop.permute.xlu0 %5618
        %5622 = vrot.lane.b32.xlu0 %v5499, 96
        %v5623 = vpop.permute.xlu0 %5622
        %5625 = vrot.lane.b32.xlu0 %v5499, 64
        %v5626 = vpop.permute.xlu0 %5625
        %5628 = vrot.lane.b32.xlu0 %v5499, 32
        %v5629 = vpop.permute.xlu0 %5628
        %5632 = vrot.lane.b32.xlu0 %v5519, 96
        %v5633 = vpop.permute.xlu0 %5632
        %5635 = vrot.lane.b32.xlu0 %v5519, 64
        %v5636 = vpop.permute.xlu0 %5635
        %5638 = vrot.lane.b32.xlu0 %v5519, 32
        %v5639 = vpop.permute.xlu0 %5638
        %5642 = vrot.lane.b32.xlu0 %v5539, 96
        %v5643 = vpop.permute.xlu0 %5642
        %5645 = vrot.lane.b32.xlu0 %v5539, 64
        %v5646 = vpop.permute.xlu0 %5645
        %5648 = vrot.lane.b32.xlu0 %v5539, 32
        %v5649 = vpop.permute.xlu0 %5648
        %5652 = vrot.lane.b32.xlu0 %v5559, 96
        %v5653 = vpop.permute.xlu0 %5652
        %5655 = vrot.lane.b32.xlu0 %v5559, 64
        %v5656 = vpop.permute.xlu0 %5655
        %5658 = vrot.lane.b32.xlu0 %v5559, 32
        %v5659 = vpop.permute.xlu0 %5658
        %5662 = vrot.lane.b32.xlu0 %v5579, 96
        %v5663 = vpop.permute.xlu0 %5662
        %5665 = vrot.lane.b32.xlu0 %v5579, 64
        %v5666 = vpop.permute.xlu0 %5665
        %5668 = vrot.lane.b32.xlu0 %v5579, 32
        %v5669 = vpop.permute.xlu0 %5668
        %5672 = vrot.lane.b32.xlu0 %v5599, 96
        %v5673 = vpop.permute.xlu0 %5672
        %5675 = vrot.lane.b32.xlu0 %v5599, 64
        %v5676 = vpop.permute.xlu0 %5675
        %5678 = vrot.lane.b32.xlu0 %v5599, 32
        %v5679 = vpop.permute.xlu0 %5678
        %v5681 = vrot.slane %v5606, 4
        %v5682 = vsel %vm1105, %v5681, %v5459
        %v5683 = vrot.slane %v5459, 4
        %v5684 = vsel %vm1105, %v5606, %v5683
        %v5686 = vunpack.c.l.s4 1983009808
        %v5687 = vunpack.c.0.s8 %v5686
        %v5688 = vperm.slane %v5682, %v5687
        %v5690 = vunpack.c.l.s4 1983009808
        %v5691 = vunpack.c.0.s8 %v5690
        %v5692 = vperm.slane %v5684, %v5691
        %v5693 = vrot.slane %v5609, 4
        %v5694 = vsel %vm1105, %v5693, %v5603
        %v5695 = vrot.slane %v5603, 4
        %v5696 = vsel %vm1105, %v5609, %v5695
        %v5698 = vunpack.c.l.s4 1983009808
        %v5699 = vunpack.c.0.s8 %v5698
        %v5700 = vperm.slane %v5694, %v5699
        %v5702 = vunpack.c.l.s4 1983009808
        %v5703 = vunpack.c.0.s8 %v5702
        %v5704 = vperm.slane %v5696, %v5703
        %v5705 = vrot.slane %v5616, 4
        %v5706 = vsel %vm1105, %v5705, %v5479
        %v5707 = vrot.slane %v5479, 4
        %v5708 = vsel %vm1105, %v5616, %v5707
        %v5710 = vunpack.c.l.s4 1983009808
        %v5711 = vunpack.c.0.s8 %v5710
        %v5712 = vperm.slane %v5706, %v5711
        %v5714 = vunpack.c.l.s4 1983009808
        %v5715 = vunpack.c.0.s8 %v5714
        %v5716 = vperm.slane %v5708, %v5715
        %v5717 = vrot.slane %v5619, 4
        %v5718 = vsel %vm1105, %v5717, %v5613
        %v5719 = vrot.slane %v5613, 4
        %v5720 = vsel %vm1105, %v5619, %v5719
        %v5722 = vunpack.c.l.s4 1983009808
        %v5723 = vunpack.c.0.s8 %v5722
        %v5724 = vperm.slane %v5718, %v5723
        %v5726 = vunpack.c.l.s4 1983009808
        %v5727 = vunpack.c.0.s8 %v5726
        %v5728 = vperm.slane %v5720, %v5727
        %v5729 = vrot.slane %v5700, 4
        %v5730 = vsel %vm1105, %v5729, %v5688
        %v5731 = vrot.slane %v5688, 4
        %v5732 = vsel %vm1105, %v5700, %v5731
        %v5734 = vunpack.c.l.s4 1934713408
        %v5735 = vunpack.c.0.s8 %v5734
        %v5736 = vperm.slane %v5730, %v5735
        %v5738 = vunpack.c.l.s4 1934713408
        %v5739 = vunpack.c.0.s8 %v5738
        %v5740 = vperm.slane %v5732, %v5739
        %v5741 = vrot.slane %v5704, 4
        %v5742 = vsel %vm1105, %v5741, %v5692
        %v5743 = vrot.slane %v5692, 4
        %v5744 = vsel %vm1105, %v5704, %v5743
        %v5746 = vunpack.c.l.s4 1934713408
        %v5747 = vunpack.c.0.s8 %v5746
        %v5748 = vperm.slane %v5742, %v5747
        %v5750 = vunpack.c.l.s4 1934713408
        %v5751 = vunpack.c.0.s8 %v5750
        %v5752 = vperm.slane %v5744, %v5751
        %v5753 = vrot.slane %v5724, 4
        %v5754 = vsel %vm1105, %v5753, %v5712
        %v5755 = vrot.slane %v5712, 4
        %v5756 = vsel %vm1105, %v5724, %v5755
        %v5758 = vunpack.c.l.s4 1934713408
        %v5759 = vunpack.c.0.s8 %v5758
        %v5760 = vperm.slane %v5754, %v5759
        %v5762 = vunpack.c.l.s4 1934713408
        %v5763 = vunpack.c.0.s8 %v5762
        %v5764 = vperm.slane %v5756, %v5763
        %v5765 = vrot.slane %v5728, 4
        %v5766 = vsel %vm1105, %v5765, %v5716
        %v5767 = vrot.slane %v5716, 4
        %v5768 = vsel %vm1105, %v5728, %v5767
        %v5770 = vunpack.c.l.s4 1934713408
        %v5771 = vunpack.c.0.s8 %v5770
        %v5772 = vperm.slane %v5766, %v5771
        %v5774 = vunpack.c.l.s4 1934713408
        %v5775 = vunpack.c.0.s8 %v5774
        %v5776 = vperm.slane %v5768, %v5775
        %v5777 = vrot.slane %v5760, 4
        %v5778 = vsel %vm1105, %v5777, %v5736
        %v5779 = vrot.slane %v5736, 4
        %v5780 = vsel %vm1105, %v5760, %v5779
        %v5781 = vrot.slane %v5764, 4
        %v5782 = vsel %vm1105, %v5781, %v5740
        %v5783 = vrot.slane %v5740, 4
        %v5784 = vsel %vm1105, %v5764, %v5783
        %v5785 = vrot.slane %v5772, 4
        %v5786 = vsel %vm1105, %v5785, %v5748
        %v5787 = vrot.slane %v5748, 4
        %v5788 = vsel %vm1105, %v5772, %v5787
        %v5789 = vrot.slane %v5776, 4
        %v5790 = vsel %vm1105, %v5789, %v5752
        %v5791 = vrot.slane %v5752, 4
        %v5792 = vsel %vm1105, %v5776, %v5791
        %v5793 = vrot.slane %v5626, 4
        %v5794 = vsel %vm1105, %v5793, %v5499
        %v5795 = vrot.slane %v5499, 4
        %v5796 = vsel %vm1105, %v5626, %v5795
        %v5798 = vunpack.c.l.s4 1983009808
        %v5799 = vunpack.c.0.s8 %v5798
        %v5800 = vperm.slane %v5794, %v5799
        %v5802 = vunpack.c.l.s4 1983009808
        %v5803 = vunpack.c.0.s8 %v5802
        %v5804 = vperm.slane %v5796, %v5803
        %v5805 = vrot.slane %v5629, 4
        %v5806 = vsel %vm1105, %v5805, %v5623
        %v5807 = vrot.slane %v5623, 4
        %v5808 = vsel %vm1105, %v5629, %v5807
        %v5810 = vunpack.c.l.s4 1983009808
        %v5811 = vunpack.c.0.s8 %v5810
        %v5812 = vperm.slane %v5806, %v5811
        %v5814 = vunpack.c.l.s4 1983009808
        %v5815 = vunpack.c.0.s8 %v5814
        %v5816 = vperm.slane %v5808, %v5815
        %v5817 = vrot.slane %v5636, 4
        %v5818 = vsel %vm1105, %v5817, %v5519
        %v5819 = vrot.slane %v5519, 4
        %v5820 = vsel %vm1105, %v5636, %v5819
        %v5822 = vunpack.c.l.s4 1983009808
        %v5823 = vunpack.c.0.s8 %v5822
        %v5824 = vperm.slane %v5818, %v5823
        %v5826 = vunpack.c.l.s4 1983009808
        %v5827 = vunpack.c.0.s8 %v5826
        %v5828 = vperm.slane %v5820, %v5827
        %v5829 = vrot.slane %v5639, 4
        %v5830 = vsel %vm1105, %v5829, %v5633
        %v5831 = vrot.slane %v5633, 4
        %v5832 = vsel %vm1105, %v5639, %v5831
        %v5834 = vunpack.c.l.s4 1983009808
        %v5835 = vunpack.c.0.s8 %v5834
        %v5836 = vperm.slane %v5830, %v5835
        %v5838 = vunpack.c.l.s4 1983009808
        %v5839 = vunpack.c.0.s8 %v5838
        %v5840 = vperm.slane %v5832, %v5839
        %v5841 = vrot.slane %v5812, 4
        %v5842 = vsel %vm1105, %v5841, %v5800
        %v5843 = vrot.slane %v5800, 4
        %v5844 = vsel %vm1105, %v5812, %v5843
        %v5846 = vunpack.c.l.s4 1934713408
        %v5847 = vunpack.c.0.s8 %v5846
        %v5848 = vperm.slane %v5842, %v5847
        %v5850 = vunpack.c.l.s4 1934713408
        %v5851 = vunpack.c.0.s8 %v5850
        %v5852 = vperm.slane %v5844, %v5851
        %v5853 = vrot.slane %v5816, 4
        %v5854 = vsel %vm1105, %v5853, %v5804
        %v5855 = vrot.slane %v5804, 4
        %v5856 = vsel %vm1105, %v5816, %v5855
        %v5858 = vunpack.c.l.s4 1934713408
        %v5859 = vunpack.c.0.s8 %v5858
        %v5860 = vperm.slane %v5854, %v5859
        %v5862 = vunpack.c.l.s4 1934713408
        %v5863 = vunpack.c.0.s8 %v5862
        %v5864 = vperm.slane %v5856, %v5863
        %v5865 = vrot.slane %v5836, 4
        %v5866 = vsel %vm1105, %v5865, %v5824
        %v5867 = vrot.slane %v5824, 4
        %v5868 = vsel %vm1105, %v5836, %v5867
        %v5870 = vunpack.c.l.s4 1934713408
        %v5871 = vunpack.c.0.s8 %v5870
        %v5872 = vperm.slane %v5866, %v5871
        %v5874 = vunpack.c.l.s4 1934713408
        %v5875 = vunpack.c.0.s8 %v5874
        %v5876 = vperm.slane %v5868, %v5875
        %v5877 = vrot.slane %v5840, 4
        %v5878 = vsel %vm1105, %v5877, %v5828
        %v5879 = vrot.slane %v5828, 4
        %v5880 = vsel %vm1105, %v5840, %v5879
        %v5882 = vunpack.c.l.s4 1934713408
        %v5883 = vunpack.c.0.s8 %v5882
        %v5884 = vperm.slane %v5878, %v5883
        %v5886 = vunpack.c.l.s4 1934713408
        %v5887 = vunpack.c.0.s8 %v5886
        %v5888 = vperm.slane %v5880, %v5887
        %v5889 = vrot.slane %v5872, 4
        %v5890 = vsel %vm1105, %v5889, %v5848
        %v5891 = vrot.slane %v5848, 4
        %v5892 = vsel %vm1105, %v5872, %v5891
        %v5893 = vrot.slane %v5876, 4
        %v5894 = vsel %vm1105, %v5893, %v5852
        %v5895 = vrot.slane %v5852, 4
        %v5896 = vsel %vm1105, %v5876, %v5895
        %v5897 = vrot.slane %v5884, 4
        %v5898 = vsel %vm1105, %v5897, %v5860
        %v5899 = vrot.slane %v5860, 4
        %v5900 = vsel %vm1105, %v5884, %v5899
        %v5901 = vrot.slane %v5888, 4
        %v5902 = vsel %vm1105, %v5901, %v5864
        %v5903 = vrot.slane %v5864, 4
        %v5904 = vsel %vm1105, %v5888, %v5903
        %v5905 = vrot.slane %v5646, 4
        %v5906 = vsel %vm1105, %v5905, %v5539
        %v5907 = vrot.slane %v5539, 4
        %v5908 = vsel %vm1105, %v5646, %v5907
        %v5910 = vunpack.c.l.s4 1983009808
        %v5911 = vunpack.c.0.s8 %v5910
        %v5912 = vperm.slane %v5906, %v5911
        %v5914 = vunpack.c.l.s4 1983009808
        %v5915 = vunpack.c.0.s8 %v5914
        %v5916 = vperm.slane %v5908, %v5915
        %v5917 = vrot.slane %v5649, 4
        %v5918 = vsel %vm1105, %v5917, %v5643
        %v5919 = vrot.slane %v5643, 4
        %v5920 = vsel %vm1105, %v5649, %v5919
        %v5922 = vunpack.c.l.s4 1983009808
        %v5923 = vunpack.c.0.s8 %v5922
        %v5924 = vperm.slane %v5918, %v5923
        %v5926 = vunpack.c.l.s4 1983009808
        %v5927 = vunpack.c.0.s8 %v5926
        %v5928 = vperm.slane %v5920, %v5927
        %v5929 = vrot.slane %v5656, 4
        %v5930 = vsel %vm1105, %v5929, %v5559
        %v5931 = vrot.slane %v5559, 4
        %v5932 = vsel %vm1105, %v5656, %v5931
        %v5934 = vunpack.c.l.s4 1983009808
        %v5935 = vunpack.c.0.s8 %v5934
        %v5936 = vperm.slane %v5930, %v5935
        %v5938 = vunpack.c.l.s4 1983009808
        %v5939 = vunpack.c.0.s8 %v5938
        %v5940 = vperm.slane %v5932, %v5939
        %v5941 = vrot.slane %v5659, 4
        %v5942 = vsel %vm1105, %v5941, %v5653
        %v5943 = vrot.slane %v5653, 4
        %v5944 = vsel %vm1105, %v5659, %v5943
        %v5946 = vunpack.c.l.s4 1983009808
        %v5947 = vunpack.c.0.s8 %v5946
        %v5948 = vperm.slane %v5942, %v5947
        %v5950 = vunpack.c.l.s4 1983009808
        %v5951 = vunpack.c.0.s8 %v5950
        %v5952 = vperm.slane %v5944, %v5951
        %v5953 = vrot.slane %v5924, 4
        %v5954 = vsel %vm1105, %v5953, %v5912
        %v5955 = vrot.slane %v5912, 4
        %v5956 = vsel %vm1105, %v5924, %v5955
        %v5958 = vunpack.c.l.s4 1934713408
        %v5959 = vunpack.c.0.s8 %v5958
        %v5960 = vperm.slane %v5954, %v5959
        %v5962 = vunpack.c.l.s4 1934713408
        %v5963 = vunpack.c.0.s8 %v5962
        %v5964 = vperm.slane %v5956, %v5963
        %v5965 = vrot.slane %v5928, 4
        %v5966 = vsel %vm1105, %v5965, %v5916
        %v5967 = vrot.slane %v5916, 4
        %v5968 = vsel %vm1105, %v5928, %v5967
        %v5970 = vunpack.c.l.s4 1934713408
        %v5971 = vunpack.c.0.s8 %v5970
        %v5972 = vperm.slane %v5966, %v5971
        %v5974 = vunpack.c.l.s4 1934713408
        %v5975 = vunpack.c.0.s8 %v5974
        %v5976 = vperm.slane %v5968, %v5975
        %v5977 = vrot.slane %v5948, 4
        %v5978 = vsel %vm1105, %v5977, %v5936
        %v5979 = vrot.slane %v5936, 4
        %v5980 = vsel %vm1105, %v5948, %v5979
        %v5982 = vunpack.c.l.s4 1934713408
        %v5983 = vunpack.c.0.s8 %v5982
        %v5984 = vperm.slane %v5978, %v5983
        %v5986 = vunpack.c.l.s4 1934713408
        %v5987 = vunpack.c.0.s8 %v5986
        %v5988 = vperm.slane %v5980, %v5987
        %v5989 = vrot.slane %v5952, 4
        %v5990 = vsel %vm1105, %v5989, %v5940
        %v5991 = vrot.slane %v5940, 4
        %v5992 = vsel %vm1105, %v5952, %v5991
        %v5994 = vunpack.c.l.s4 1934713408
        %v5995 = vunpack.c.0.s8 %v5994
        %v5996 = vperm.slane %v5990, %v5995
        %v5998 = vunpack.c.l.s4 1934713408
        %v5999 = vunpack.c.0.s8 %v5998
        %v6000 = vperm.slane %v5992, %v5999
        %v6001 = vrot.slane %v5984, 4
        %v6002 = vsel %vm1105, %v6001, %v5960
        %v6003 = vrot.slane %v5960, 4
        %v6004 = vsel %vm1105, %v5984, %v6003
        %v6005 = vrot.slane %v5988, 4
        %v6006 = vsel %vm1105, %v6005, %v5964
        %v6007 = vrot.slane %v5964, 4
        %v6008 = vsel %vm1105, %v5988, %v6007
        %v6009 = vrot.slane %v5996, 4
        %v6010 = vsel %vm1105, %v6009, %v5972
        %v6011 = vrot.slane %v5972, 4
        %v6012 = vsel %vm1105, %v5996, %v6011
        %v6013 = vrot.slane %v6000, 4
        %v6014 = vsel %vm1105, %v6013, %v5976
        %v6015 = vrot.slane %v5976, 4
        %v6016 = vsel %vm1105, %v6000, %v6015
        %v6017 = vrot.slane %v5666, 4
        %v6018 = vsel %vm1105, %v6017, %v5579
        %v6019 = vrot.slane %v5579, 4
        %v6020 = vsel %vm1105, %v5666, %v6019
        %v6022 = vunpack.c.l.s4 1983009808
        %v6023 = vunpack.c.0.s8 %v6022
        %v6024 = vperm.slane %v6018, %v6023
        %v6026 = vunpack.c.l.s4 1983009808
        %v6027 = vunpack.c.0.s8 %v6026
        %v6028 = vperm.slane %v6020, %v6027
        %v6029 = vrot.slane %v5669, 4
        %v6030 = vsel %vm1105, %v6029, %v5663
        %v6031 = vrot.slane %v5663, 4
        %v6032 = vsel %vm1105, %v5669, %v6031
        %v6034 = vunpack.c.l.s4 1983009808
        %v6035 = vunpack.c.0.s8 %v6034
        %v6036 = vperm.slane %v6030, %v6035
        %v6038 = vunpack.c.l.s4 1983009808
        %v6039 = vunpack.c.0.s8 %v6038
        %v6040 = vperm.slane %v6032, %v6039
        %v6041 = vrot.slane %v5676, 4
        %v6042 = vsel %vm1105, %v6041, %v5599
        %v6043 = vrot.slane %v5599, 4
        %v6044 = vsel %vm1105, %v5676, %v6043
        %v6046 = vunpack.c.l.s4 1983009808
        %v6047 = vunpack.c.0.s8 %v6046
        %v6048 = vperm.slane %v6042, %v6047
        %v6050 = vunpack.c.l.s4 1983009808
        %v6051 = vunpack.c.0.s8 %v6050
        %v6052 = vperm.slane %v6044, %v6051
        %v6053 = vrot.slane %v5679, 4
        %v6054 = vsel %vm1105, %v6053, %v5673
        %v6055 = vrot.slane %v5673, 4
        %v6056 = vsel %vm1105, %v5679, %v6055
        %v6058 = vunpack.c.l.s4 1983009808
        %v6059 = vunpack.c.0.s8 %v6058
        %v6060 = vperm.slane %v6054, %v6059
        %v6062 = vunpack.c.l.s4 1983009808
        %v6063 = vunpack.c.0.s8 %v6062
        %v6064 = vperm.slane %v6056, %v6063
        %v6065 = vrot.slane %v6036, 4
        %v6066 = vsel %vm1105, %v6065, %v6024
        %v6067 = vrot.slane %v6024, 4
        %v6068 = vsel %vm1105, %v6036, %v6067
        %v6070 = vunpack.c.l.s4 1934713408
        %v6071 = vunpack.c.0.s8 %v6070
        %v6072 = vperm.slane %v6066, %v6071
        %v6074 = vunpack.c.l.s4 1934713408
        %v6075 = vunpack.c.0.s8 %v6074
        %v6076 = vperm.slane %v6068, %v6075
        %v6077 = vrot.slane %v6040, 4
        %v6078 = vsel %vm1105, %v6077, %v6028
        %v6079 = vrot.slane %v6028, 4
        %v6080 = vsel %vm1105, %v6040, %v6079
        %v6082 = vunpack.c.l.s4 1934713408
        %v6083 = vunpack.c.0.s8 %v6082
        %v6084 = vperm.slane %v6078, %v6083
        %v6086 = vunpack.c.l.s4 1934713408
        %v6087 = vunpack.c.0.s8 %v6086
        %v6088 = vperm.slane %v6080, %v6087
        %v6089 = vrot.slane %v6060, 4
        %v6090 = vsel %vm1105, %v6089, %v6048
        %v6091 = vrot.slane %v6048, 4
        %v6092 = vsel %vm1105, %v6060, %v6091
        %v6094 = vunpack.c.l.s4 1934713408
        %v6095 = vunpack.c.0.s8 %v6094
        %v6096 = vperm.slane %v6090, %v6095
        %v6098 = vunpack.c.l.s4 1934713408
        %v6099 = vunpack.c.0.s8 %v6098
        %v6100 = vperm.slane %v6092, %v6099
        %v6101 = vrot.slane %v6064, 4
        %v6102 = vsel %vm1105, %v6101, %v6052
        %v6103 = vrot.slane %v6052, 4
        %v6104 = vsel %vm1105, %v6064, %v6103
        %v6106 = vunpack.c.l.s4 1934713408
        %v6107 = vunpack.c.0.s8 %v6106
        %v6108 = vperm.slane %v6102, %v6107
        %v6110 = vunpack.c.l.s4 1934713408
        %v6111 = vunpack.c.0.s8 %v6110
        %v6112 = vperm.slane %v6104, %v6111
        %v6113 = vrot.slane %v6096, 4
        %v6114 = vsel %vm1105, %v6113, %v6072
        %v6115 = vrot.slane %v6072, 4
        %v6116 = vsel %vm1105, %v6096, %v6115
        %v6117 = vrot.slane %v6100, 4
        %v6118 = vsel %vm1105, %v6117, %v6076
        %v6119 = vrot.slane %v6076, 4
        %v6120 = vsel %vm1105, %v6100, %v6119
        %v6121 = vrot.slane %v6108, 4
        %v6122 = vsel %vm1105, %v6121, %v6084
        %v6123 = vrot.slane %v6084, 4
        %v6124 = vsel %vm1105, %v6108, %v6123
        %v6125 = vrot.slane %v6112, 4
        %v6126 = vsel %vm1105, %v6125, %v6088
        %v6127 = vrot.slane %v6088, 4
        %v6128 = vsel %vm1105, %v6112, %v6127
        %v6129 = vadd.f32 %v4979, %v5778
        %v6130 = vadd.f32 %v4980, %v5890
        %v6131 = vadd.f32 %v4981, %v6002
        %v6132 = vadd.f32 %v4982, %v6114
        %v6133 = vadd.f32 %v4983, %v5780
        %v6134 = vadd.f32 %v4984, %v5892
        %v6135 = vadd.f32 %v4985, %v6004
        %v6136 = vadd.f32 %v4986, %v6116
        %v6137 = vadd.f32 %v4987, %v5782
        %v6138 = vadd.f32 %v4988, %v5894
        %v6139 = vadd.f32 %v4989, %v6006
        %v6140 = vadd.f32 %v4990, %v6118
        %v6141 = vadd.f32 %v4991, %v5784
        %v6142 = vadd.f32 %v4992, %v5896
        %v6143 = vadd.f32 %v4993, %v6008
        %v6144 = vadd.f32 %v4994, %v6120
        %v6145 = vadd.f32 %v4995, %v5786
        %v6146 = vadd.f32 %v4996, %v5898
        %v6147 = vadd.f32 %v4997, %v6010
        %v6148 = vadd.f32 %v4998, %v6122
        %v6149 = vadd.f32 %v4999, %v5788
        %v6150 = vadd.f32 %v5000, %v5900
        %v6151 = vadd.f32 %v5001, %v6012
        %v6152 = vadd.f32 %v5002, %v6124
        %v6153 = vadd.f32 %v5003, %v5790
        %v6154 = vadd.f32 %v5004, %v5902
        %v6155 = vadd.f32 %v5005, %v6014
        %v6156 = vadd.f32 %v5006, %v6126
        %v6157 = vadd.f32 %v5007, %v5792
        %v6158 = vadd.f32 %v5008, %v5904
        %v6159 = vadd.f32 %v5009, %v6016
        %v6160 = vadd.f32 %v5010, %v6128
        %s6161 = scalar_lea.vmem %s3, 32
        %v6162 = vld [vmem:[%s6161] sm:$0xff]
        %6163 = vrot.lane.b32.xlu0 %v5020, 127
        %v6164 = vpop.permute.xlu0 %6163
        %6165 = vrot.lane.b32.xlu0 %v5022, 127
        %v6166 = vpop.permute.xlu0 %6165
        %6167 = vrot.lane.b32.xlu0 %v5024, 127
        %v6168 = vpop.permute.xlu0 %6167
        %6169 = vrot.lane.b32.xlu0 %v5026, 127
        %v6170 = vpop.permute.xlu0 %6169
        %6171 = vrot.lane.b32.xlu0 %v5029, 127
        %v6172 = vpop.permute.xlu0 %6171
        %6173 = vrot.lane.b32.xlu0 %v5031, 127
        %v6174 = vpop.permute.xlu0 %6173
        %6175 = vrot.lane.b32.xlu0 %v5033, 127
        %v6176 = vpop.permute.xlu0 %6175
        %6177 = vrot.lane.b32.xlu0 %v5035, 127
        %v6178 = vpop.permute.xlu0 %6177
        %6179 = vrot.lane.b32.xlu0 %v5038, 127
        %v6180 = vpop.permute.xlu0 %6179
        %6181 = vrot.lane.b32.xlu0 %v5040, 127
        %v6182 = vpop.permute.xlu0 %6181
        %6183 = vrot.lane.b32.xlu0 %v5042, 127
        %v6184 = vpop.permute.xlu0 %6183
        %6185 = vrot.lane.b32.xlu0 %v5044, 127
        %v6186 = vpop.permute.xlu0 %6185
        %6187 = vrot.lane.b32.xlu0 %v5047, 127
        %v6188 = vpop.permute.xlu0 %6187
        %6189 = vrot.lane.b32.xlu0 %v5049, 127
        %v6190 = vpop.permute.xlu0 %6189
        %6191 = vrot.lane.b32.xlu0 %v5051, 127
        %v6192 = vpop.permute.xlu0 %6191
        %6193 = vrot.lane.b32.xlu0 %v5053, 127
        %v6194 = vpop.permute.xlu0 %6193
        %v6211 = vrot.slane %v6180, 4
        %v6212 = vsel %vm1105, %v6211, %v6164
        %v6213 = vrot.slane %v6164, 4
        %v6214 = vsel %vm1105, %v6180, %v6213
        %v6216 = vunpack.c.l.s4 1983009808
        %v6217 = vunpack.c.0.s8 %v6216
        %v6218 = vperm.slane %v6212, %v6217
        %v6220 = vunpack.c.l.s4 1983009808
        %v6221 = vunpack.c.0.s8 %v6220
        %v6222 = vperm.slane %v6214, %v6221
        %v6223 = vrot.slane %v6188, 4
        %v6224 = vsel %vm1105, %v6223, %v6172
        %v6225 = vrot.slane %v6172, 4
        %v6226 = vsel %vm1105, %v6188, %v6225
        %v6228 = vunpack.c.l.s4 1983009808
        %v6229 = vunpack.c.0.s8 %v6228
        %v6230 = vperm.slane %v6224, %v6229
        %v6232 = vunpack.c.l.s4 1983009808
        %v6233 = vunpack.c.0.s8 %v6232
        %v6234 = vperm.slane %v6226, %v6233
        %v6235 = vrot.slane %v6230, 4
        %v6236 = vsel %vm1105, %v6235, %v6218
        %v6237 = vrot.slane %v6218, 4
        %v6238 = vsel %vm1105, %v6230, %v6237
        %v6240 = vunpack.c.l.s4 1934713408
        %v6241 = vunpack.c.0.s8 %v6240
        %v6242 = vperm.slane %v6236, %v6241
        %v6244 = vunpack.c.l.s4 1934713408
        %v6245 = vunpack.c.0.s8 %v6244
        %v6246 = vperm.slane %v6238, %v6245
        %v6247 = vrot.slane %v6234, 4
        %v6248 = vsel %vm1105, %v6247, %v6222
        %v6249 = vrot.slane %v6222, 4
        %v6250 = vsel %vm1105, %v6234, %v6249
        %v6252 = vunpack.c.l.s4 1934713408
        %v6253 = vunpack.c.0.s8 %v6252
        %v6254 = vperm.slane %v6248, %v6253
        %v6256 = vunpack.c.l.s4 1934713408
        %v6257 = vunpack.c.0.s8 %v6256
        %v6258 = vperm.slane %v6250, %v6257
        %v6259 = vrot.slane %v6242, 4
        %v6260 = vsel %vm1105, 0.0, %v6259
        %v6261 = vrot.slane %v6246, 4
        %v6262 = vsel %vm1105, 0.0, %v6261
        %v6263 = vrot.slane %v6254, 4
        %v6264 = vsel %vm1105, 0.0, %v6263
        %v6265 = vrot.slane %v6258, 4
        %v6266 = vsel %vm1105, 0.0, %v6265
        %v6267 = vrot.slane %v6182, 4
        %v6268 = vsel %vm1105, %v6267, %v6166
        %v6269 = vrot.slane %v6166, 4
        %v6270 = vsel %vm1105, %v6182, %v6269
        %v6272 = vunpack.c.l.s4 1983009808
        %v6273 = vunpack.c.0.s8 %v6272
        %v6274 = vperm.slane %v6268, %v6273
        %v6276 = vunpack.c.l.s4 1983009808
        %v6277 = vunpack.c.0.s8 %v6276
        %v6278 = vperm.slane %v6270, %v6277
        %v6279 = vrot.slane %v6190, 4
        %v6280 = vsel %vm1105, %v6279, %v6174
        %v6281 = vrot.slane %v6174, 4
        %v6282 = vsel %vm1105, %v6190, %v6281
        %v6284 = vunpack.c.l.s4 1983009808
        %v6285 = vunpack.c.0.s8 %v6284
        %v6286 = vperm.slane %v6280, %v6285
        %v6288 = vunpack.c.l.s4 1983009808
        %v6289 = vunpack.c.0.s8 %v6288
        %v6290 = vperm.slane %v6282, %v6289
        %v6291 = vrot.slane %v6286, 4
        %v6292 = vsel %vm1105, %v6291, %v6274
        %v6293 = vrot.slane %v6274, 4
        %v6294 = vsel %vm1105, %v6286, %v6293
        %v6296 = vunpack.c.l.s4 1934713408
        %v6297 = vunpack.c.0.s8 %v6296
        %v6298 = vperm.slane %v6292, %v6297
        %v6300 = vunpack.c.l.s4 1934713408
        %v6301 = vunpack.c.0.s8 %v6300
        %v6302 = vperm.slane %v6294, %v6301
        %v6303 = vrot.slane %v6290, 4
        %v6304 = vsel %vm1105, %v6303, %v6278
        %v6305 = vrot.slane %v6278, 4
        %v6306 = vsel %vm1105, %v6290, %v6305
        %v6308 = vunpack.c.l.s4 1934713408
        %v6309 = vunpack.c.0.s8 %v6308
        %v6310 = vperm.slane %v6304, %v6309
        %v6312 = vunpack.c.l.s4 1934713408
        %v6313 = vunpack.c.0.s8 %v6312
        %v6314 = vperm.slane %v6306, %v6313
        %v6315 = vrot.slane %v6298, 4
        %v6316 = vsel %vm1105, 0.0, %v6315
        %v6317 = vrot.slane %v6302, 4
        %v6318 = vsel %vm1105, 0.0, %v6317
        %v6319 = vrot.slane %v6310, 4
        %v6320 = vsel %vm1105, 0.0, %v6319
        %v6321 = vrot.slane %v6314, 4
        %v6322 = vsel %vm1105, 0.0, %v6321
        %v6323 = vrot.slane %v6184, 4
        %v6324 = vsel %vm1105, %v6323, %v6168
        %v6325 = vrot.slane %v6168, 4
        %v6326 = vsel %vm1105, %v6184, %v6325
        %v6328 = vunpack.c.l.s4 1983009808
        %v6329 = vunpack.c.0.s8 %v6328
        %v6330 = vperm.slane %v6324, %v6329
        %v6332 = vunpack.c.l.s4 1983009808
        %v6333 = vunpack.c.0.s8 %v6332
        %v6334 = vperm.slane %v6326, %v6333
        %v6335 = vrot.slane %v6192, 4
        %v6336 = vsel %vm1105, %v6335, %v6176
        %v6337 = vrot.slane %v6176, 4
        %v6338 = vsel %vm1105, %v6192, %v6337
        %v6340 = vunpack.c.l.s4 1983009808
        %v6341 = vunpack.c.0.s8 %v6340
        %v6342 = vperm.slane %v6336, %v6341
        %v6344 = vunpack.c.l.s4 1983009808
        %v6345 = vunpack.c.0.s8 %v6344
        %v6346 = vperm.slane %v6338, %v6345
        %v6347 = vrot.slane %v6342, 4
        %v6348 = vsel %vm1105, %v6347, %v6330
        %v6349 = vrot.slane %v6330, 4
        %v6350 = vsel %vm1105, %v6342, %v6349
        %v6352 = vunpack.c.l.s4 1934713408
        %v6353 = vunpack.c.0.s8 %v6352
        %v6354 = vperm.slane %v6348, %v6353
        %v6356 = vunpack.c.l.s4 1934713408
        %v6357 = vunpack.c.0.s8 %v6356
        %v6358 = vperm.slane %v6350, %v6357
        %v6359 = vrot.slane %v6346, 4
        %v6360 = vsel %vm1105, %v6359, %v6334
        %v6361 = vrot.slane %v6334, 4
        %v6362 = vsel %vm1105, %v6346, %v6361
        %v6364 = vunpack.c.l.s4 1934713408
        %v6365 = vunpack.c.0.s8 %v6364
        %v6366 = vperm.slane %v6360, %v6365
        %v6368 = vunpack.c.l.s4 1934713408
        %v6369 = vunpack.c.0.s8 %v6368
        %v6370 = vperm.slane %v6362, %v6369
        %v6371 = vrot.slane %v6354, 4
        %v6372 = vsel %vm1105, 0.0, %v6371
        %v6373 = vrot.slane %v6358, 4
        %v6374 = vsel %vm1105, 0.0, %v6373
        %v6375 = vrot.slane %v6366, 4
        %v6376 = vsel %vm1105, 0.0, %v6375
        %v6377 = vrot.slane %v6370, 4
        %v6378 = vsel %vm1105, 0.0, %v6377
        %v6379 = vrot.slane %v6186, 4
        %v6380 = vsel %vm1105, %v6379, %v6170
        %v6381 = vrot.slane %v6170, 4
        %v6382 = vsel %vm1105, %v6186, %v6381
        %v6384 = vunpack.c.l.s4 1983009808
        %v6385 = vunpack.c.0.s8 %v6384
        %v6386 = vperm.slane %v6380, %v6385
        %v6388 = vunpack.c.l.s4 1983009808
        %v6389 = vunpack.c.0.s8 %v6388
        %v6390 = vperm.slane %v6382, %v6389
        %v6391 = vrot.slane %v6194, 4
        %v6392 = vsel %vm1105, %v6391, %v6178
        %v6393 = vrot.slane %v6178, 4
        %v6394 = vsel %vm1105, %v6194, %v6393
        %v6396 = vunpack.c.l.s4 1983009808
        %v6397 = vunpack.c.0.s8 %v6396
        %v6398 = vperm.slane %v6392, %v6397
        %v6400 = vunpack.c.l.s4 1983009808
        %v6401 = vunpack.c.0.s8 %v6400
        %v6402 = vperm.slane %v6394, %v6401
        %v6403 = vrot.slane %v6398, 4
        %v6404 = vsel %vm1105, %v6403, %v6386
        %v6405 = vrot.slane %v6386, 4
        %v6406 = vsel %vm1105, %v6398, %v6405
        %v6408 = vunpack.c.l.s4 1934713408
        %v6409 = vunpack.c.0.s8 %v6408
        %v6410 = vperm.slane %v6404, %v6409
        %v6412 = vunpack.c.l.s4 1934713408
        %v6413 = vunpack.c.0.s8 %v6412
        %v6414 = vperm.slane %v6406, %v6413
        %v6415 = vrot.slane %v6402, 4
        %v6416 = vsel %vm1105, %v6415, %v6390
        %v6417 = vrot.slane %v6390, 4
        %v6418 = vsel %vm1105, %v6402, %v6417
        %v6420 = vunpack.c.l.s4 1934713408
        %v6421 = vunpack.c.0.s8 %v6420
        %v6422 = vperm.slane %v6416, %v6421
        %v6424 = vunpack.c.l.s4 1934713408
        %v6425 = vunpack.c.0.s8 %v6424
        %v6426 = vperm.slane %v6418, %v6425
        %v6427 = vrot.slane %v6410, 4
        %v6428 = vsel %vm1105, 0.0, %v6427
        %v6429 = vrot.slane %v6414, 4
        %v6430 = vsel %vm1105, 0.0, %v6429
        %v6431 = vrot.slane %v6422, 4
        %v6432 = vsel %vm1105, 0.0, %v6431
        %v6433 = vrot.slane %v6426, 4
        %v6434 = vsel %vm1105, 0.0, %v6433
        %6436 = vrot.lane.b32.xlu0 %v6260, 32
        %v6437 = vpop.permute.xlu0 %6436
        %6440 = vrot.lane.b32.xlu0 %v6246, 64
        %v6441 = vpop.permute.xlu0 %6440
        %6444 = vrot.lane.b32.xlu0 %v6262, 96
        %v6445 = vpop.permute.xlu0 %6444
        %6448 = vrot.lane.b32.xlu0 %v6264, 32
        %v6449 = vpop.permute.xlu0 %6448
        %6452 = vrot.lane.b32.xlu0 %v6258, 64
        %v6453 = vpop.permute.xlu0 %6452
        %6456 = vrot.lane.b32.xlu0 %v6266, 96
        %v6457 = vpop.permute.xlu0 %6456
        %6460 = vrot.lane.b32.xlu0 %v6316, 32
        %v6461 = vpop.permute.xlu0 %6460
        %6464 = vrot.lane.b32.xlu0 %v6302, 64
        %v6465 = vpop.permute.xlu0 %6464
        %6468 = vrot.lane.b32.xlu0 %v6318, 96
        %v6469 = vpop.permute.xlu0 %6468
        %6472 = vrot.lane.b32.xlu0 %v6320, 32
        %v6473 = vpop.permute.xlu0 %6472
        %6476 = vrot.lane.b32.xlu0 %v6314, 64
        %v6477 = vpop.permute.xlu0 %6476
        %6480 = vrot.lane.b32.xlu0 %v6322, 96
        %v6481 = vpop.permute.xlu0 %6480
        %6484 = vrot.lane.b32.xlu0 %v6372, 32
        %v6485 = vpop.permute.xlu0 %6484
        %6488 = vrot.lane.b32.xlu0 %v6358, 64
        %v6489 = vpop.permute.xlu0 %6488
        %6492 = vrot.lane.b32.xlu0 %v6374, 96
        %v6493 = vpop.permute.xlu0 %6492
        %6496 = vrot.lane.b32.xlu0 %v6376, 32
        %v6497 = vpop.permute.xlu0 %6496
        %6500 = vrot.lane.b32.xlu0 %v6370, 64
        %v6501 = vpop.permute.xlu0 %6500
        %6504 = vrot.lane.b32.xlu0 %v6378, 96
        %v6505 = vpop.permute.xlu0 %6504
        %6508 = vrot.lane.b32.xlu0 %v6428, 32
        %v6509 = vpop.permute.xlu0 %6508
        %6512 = vrot.lane.b32.xlu0 %v6414, 64
        %v6513 = vpop.permute.xlu0 %6512
        %6516 = vrot.lane.b32.xlu0 %v6430, 96
        %v6517 = vpop.permute.xlu0 %6516
        %6520 = vrot.lane.b32.xlu0 %v6432, 32
        %v6521 = vpop.permute.xlu0 %6520
        %6524 = vrot.lane.b32.xlu0 %v6426, 64
        %v6525 = vpop.permute.xlu0 %6524
        %6528 = vrot.lane.b32.xlu0 %v6434, 96
        %v6529 = vpop.permute.xlu0 %6528
        %v6531 = vsel %vm1425, %v6242, %v6437
        %v6532 = vsel %vm1427, %v6531, %v6441
        %v6533 = vsel %vm1429, %v6532, %v6445
        %v6534 = vsel %vm1425, %v6254, %v6449
        %v6535 = vsel %vm1427, %v6534, %v6453
        %v6536 = vsel %vm1429, %v6535, %v6457
        %v6537 = vsel %vm1425, %v6298, %v6461
        %v6538 = vsel %vm1427, %v6537, %v6465
        %v6539 = vsel %vm1429, %v6538, %v6469
        %v6540 = vsel %vm1425, %v6310, %v6473
        %v6541 = vsel %vm1427, %v6540, %v6477
        %v6542 = vsel %vm1429, %v6541, %v6481
        %v6543 = vsel %vm1425, %v6354, %v6485
        %v6544 = vsel %vm1427, %v6543, %v6489
        %v6545 = vsel %vm1429, %v6544, %v6493
        %v6546 = vsel %vm1425, %v6366, %v6497
        %v6547 = vsel %vm1427, %v6546, %v6501
        %v6548 = vsel %vm1429, %v6547, %v6505
        %v6549 = vsel %vm1425, %v6410, %v6509
        %v6550 = vsel %vm1427, %v6549, %v6513
        %v6551 = vsel %vm1429, %v6550, %v6517
        %v6552 = vsel %vm1425, %v6422, %v6521
        %v6553 = vsel %vm1427, %v6552, %v6525
        %v6554 = vsel %vm1429, %v6553, %v6529
        %v6556 = vsel %vm1526, %v6162, 0
        %v6559 = vsel %vm1530, %v6533, 0
        %v6562 = vsel %vm1530, %v6536, 0
        %v6565 = vsel %vm1530, %v6539, 0
        %v6568 = vsel %vm1530, %v6542, 0
        %v6571 = vsel %vm1530, %v6545, 0
        %v6574 = vsel %vm1530, %v6548, 0
        %v6577 = vsel %vm1530, %v6551, 0
        %v6580 = vsel %vm1530, %v6554, 0
        %6582 = vmatpush.msra.mxu0 0.0
        %6583 = vmatpush.msra.mxu0 0.0
        %6584 = vmatpush.msra.mxu0 0.0
        %6585 = vmatpush.msra.mxu0 0.0
        %6586 = vmatpush.msra.mxu0 0.0
        %6587 = vmatpush.msra.mxu0 0.0
        %6588 = vmatpush.msra.mxu0 0.0
        %6589 = vmatpush.msra.mxu0 0.0
        %6590 = vmatpush.msra.mxu0 0.0
        %6591 = vmatpush.msra.mxu0 0.0
        %6592 = vmatpush.msra.mxu0 0.0
        %6593 = vmatpush.msra.mxu0 0.0
        %6594 = vmatpush.msra.mxu0 0.0
        %6595 = vmatpush.msra.mxu0 0.0
        %6596 = vmatpush.msra.mxu0 0.0
        %6597 = vmatpush.msra.mxu0 %v6559
        %6598 = vmatmul.f32.gmra.mxu0 %v6556
        %v6599 = vpop.f32.mrf.mxu0
        %v6600 = vadd.f32 %v1522, %v6599
        %6601 = vdwg.mxu0
        %6602 = vmatpush.msra.mxu0 0.0
        %6603 = vmatpush.msra.mxu0 0.0
        %6604 = vmatpush.msra.mxu0 0.0
        %6605 = vmatpush.msra.mxu0 0.0
        %6606 = vmatpush.msra.mxu0 0.0
        %6607 = vmatpush.msra.mxu0 0.0
        %6608 = vmatpush.msra.mxu0 0.0
        %6609 = vmatpush.msra.mxu0 0.0
        %6610 = vmatpush.msra.mxu0 0.0
        %6611 = vmatpush.msra.mxu0 0.0
        %6612 = vmatpush.msra.mxu0 0.0
        %6613 = vmatpush.msra.mxu0 0.0
        %6614 = vmatpush.msra.mxu0 0.0
        %6615 = vmatpush.msra.mxu0 0.0
        %6616 = vmatpush.msra.mxu0 0.0
        %6617 = vmatpush.msra.mxu0 %v6562
        %6618 = vmatmul.f32.gmra.mxu0 %v6556
        %v6619 = vpop.f32.mrf.mxu0
        %v6620 = vadd.f32 %v1525, %v6619
        %6621 = vdwg.mxu0
        %6622 = vmatpush.msra.mxu0 0.0
        %6623 = vmatpush.msra.mxu0 0.0
        %6624 = vmatpush.msra.mxu0 0.0
        %6625 = vmatpush.msra.mxu0 0.0
        %6626 = vmatpush.msra.mxu0 0.0
        %6627 = vmatpush.msra.mxu0 0.0
        %6628 = vmatpush.msra.mxu0 0.0
        %6629 = vmatpush.msra.mxu0 0.0
        %6630 = vmatpush.msra.mxu0 0.0
        %6631 = vmatpush.msra.mxu0 0.0
        %6632 = vmatpush.msra.mxu0 0.0
        %6633 = vmatpush.msra.mxu0 0.0
        %6634 = vmatpush.msra.mxu0 0.0
        %6635 = vmatpush.msra.mxu0 0.0
        %6636 = vmatpush.msra.mxu0 0.0
        %6637 = vmatpush.msra.mxu0 %v6565
        %6638 = vmatmul.f32.gmra.mxu0 %v6556
        %v6639 = vpop.f32.mrf.mxu0
        %v6640 = vadd.f32 %v1522, %v6639
        %6641 = vdwg.mxu0
        %6642 = vmatpush.msra.mxu0 0.0
        %6643 = vmatpush.msra.mxu0 0.0
        %6644 = vmatpush.msra.mxu0 0.0
        %6645 = vmatpush.msra.mxu0 0.0
        %6646 = vmatpush.msra.mxu0 0.0
        %6647 = vmatpush.msra.mxu0 0.0
        %6648 = vmatpush.msra.mxu0 0.0
        %6649 = vmatpush.msra.mxu0 0.0
        %6650 = vmatpush.msra.mxu0 0.0
        %6651 = vmatpush.msra.mxu0 0.0
        %6652 = vmatpush.msra.mxu0 0.0
        %6653 = vmatpush.msra.mxu0 0.0
        %6654 = vmatpush.msra.mxu0 0.0
        %6655 = vmatpush.msra.mxu0 0.0
        %6656 = vmatpush.msra.mxu0 0.0
        %6657 = vmatpush.msra.mxu0 %v6568
        %6658 = vmatmul.f32.gmra.mxu0 %v6556
        %v6659 = vpop.f32.mrf.mxu0
        %v6660 = vadd.f32 %v1525, %v6659
        %6661 = vdwg.mxu0
        %6662 = vmatpush.msra.mxu0 0.0
        %6663 = vmatpush.msra.mxu0 0.0
        %6664 = vmatpush.msra.mxu0 0.0
        %6665 = vmatpush.msra.mxu0 0.0
        %6666 = vmatpush.msra.mxu0 0.0
        %6667 = vmatpush.msra.mxu0 0.0
        %6668 = vmatpush.msra.mxu0 0.0
        %6669 = vmatpush.msra.mxu0 0.0
        %6670 = vmatpush.msra.mxu0 0.0
        %6671 = vmatpush.msra.mxu0 0.0
        %6672 = vmatpush.msra.mxu0 0.0
        %6673 = vmatpush.msra.mxu0 0.0
        %6674 = vmatpush.msra.mxu0 0.0
        %6675 = vmatpush.msra.mxu0 0.0
        %6676 = vmatpush.msra.mxu0 0.0
        %6677 = vmatpush.msra.mxu0 %v6571
        %6678 = vmatmul.f32.gmra.mxu0 %v6556
        %v6679 = vpop.f32.mrf.mxu0
        %v6680 = vadd.f32 %v1522, %v6679
        %6681 = vdwg.mxu0
        %6682 = vmatpush.msra.mxu0 0.0
        %6683 = vmatpush.msra.mxu0 0.0
        %6684 = vmatpush.msra.mxu0 0.0
        %6685 = vmatpush.msra.mxu0 0.0
        %6686 = vmatpush.msra.mxu0 0.0
        %6687 = vmatpush.msra.mxu0 0.0
        %6688 = vmatpush.msra.mxu0 0.0
        %6689 = vmatpush.msra.mxu0 0.0
        %6690 = vmatpush.msra.mxu0 0.0
        %6691 = vmatpush.msra.mxu0 0.0
        %6692 = vmatpush.msra.mxu0 0.0
        %6693 = vmatpush.msra.mxu0 0.0
        %6694 = vmatpush.msra.mxu0 0.0
        %6695 = vmatpush.msra.mxu0 0.0
        %6696 = vmatpush.msra.mxu0 0.0
        %6697 = vmatpush.msra.mxu0 %v6574
        %6698 = vmatmul.f32.gmra.mxu0 %v6556
        %v6699 = vpop.f32.mrf.mxu0
        %v6700 = vadd.f32 %v1525, %v6699
        %6701 = vdwg.mxu0
        %6702 = vmatpush.msra.mxu0 0.0
        %6703 = vmatpush.msra.mxu0 0.0
        %6704 = vmatpush.msra.mxu0 0.0
        %6705 = vmatpush.msra.mxu0 0.0
        %6706 = vmatpush.msra.mxu0 0.0
        %6707 = vmatpush.msra.mxu0 0.0
        %6708 = vmatpush.msra.mxu0 0.0
        %6709 = vmatpush.msra.mxu0 0.0
        %6710 = vmatpush.msra.mxu0 0.0
        %6711 = vmatpush.msra.mxu0 0.0
        %6712 = vmatpush.msra.mxu0 0.0
        %6713 = vmatpush.msra.mxu0 0.0
        %6714 = vmatpush.msra.mxu0 0.0
        %6715 = vmatpush.msra.mxu0 0.0
        %6716 = vmatpush.msra.mxu0 0.0
        %6717 = vmatpush.msra.mxu0 %v6577
        %6718 = vmatmul.f32.gmra.mxu0 %v6556
        %v6719 = vpop.f32.mrf.mxu0
        %v6720 = vadd.f32 %v1522, %v6719
        %6721 = vdwg.mxu0
        %6722 = vmatpush.msra.mxu0 0.0
        %6723 = vmatpush.msra.mxu0 0.0
        %6724 = vmatpush.msra.mxu0 0.0
        %6725 = vmatpush.msra.mxu0 0.0
        %6726 = vmatpush.msra.mxu0 0.0
        %6727 = vmatpush.msra.mxu0 0.0
        %6728 = vmatpush.msra.mxu0 0.0
        %6729 = vmatpush.msra.mxu0 0.0
        %6730 = vmatpush.msra.mxu0 0.0
        %6731 = vmatpush.msra.mxu0 0.0
        %6732 = vmatpush.msra.mxu0 0.0
        %6733 = vmatpush.msra.mxu0 0.0
        %6734 = vmatpush.msra.mxu0 0.0
        %6735 = vmatpush.msra.mxu0 0.0
        %6736 = vmatpush.msra.mxu0 0.0
        %6737 = vmatpush.msra.mxu0 %v6580
        %6738 = vmatmul.f32.gmra.mxu0 %v6556
        %v6739 = vpop.f32.mrf.mxu0
        %v6740 = vadd.f32 %v1525, %v6739
        %6741 = vdwg.mxu0
        %6743 = vrot.lane.b32.xlu0 %v6600, 96
        %v6744 = vpop.permute.xlu0 %6743
        %6746 = vrot.lane.b32.xlu0 %v6600, 64
        %v6747 = vpop.permute.xlu0 %6746
        %6749 = vrot.lane.b32.xlu0 %v6600, 32
        %v6750 = vpop.permute.xlu0 %6749
        %6753 = vrot.lane.b32.xlu0 %v6620, 96
        %v6754 = vpop.permute.xlu0 %6753
        %6756 = vrot.lane.b32.xlu0 %v6620, 64
        %v6757 = vpop.permute.xlu0 %6756
        %6759 = vrot.lane.b32.xlu0 %v6620, 32
        %v6760 = vpop.permute.xlu0 %6759
        %6763 = vrot.lane.b32.xlu0 %v6640, 96
        %v6764 = vpop.permute.xlu0 %6763
        %6766 = vrot.lane.b32.xlu0 %v6640, 64
        %v6767 = vpop.permute.xlu0 %6766
        %6769 = vrot.lane.b32.xlu0 %v6640, 32
        %v6770 = vpop.permute.xlu0 %6769
        %6773 = vrot.lane.b32.xlu0 %v6660, 96
        %v6774 = vpop.permute.xlu0 %6773
        %6776 = vrot.lane.b32.xlu0 %v6660, 64
        %v6777 = vpop.permute.xlu0 %6776
        %6779 = vrot.lane.b32.xlu0 %v6660, 32
        %v6780 = vpop.permute.xlu0 %6779
        %6783 = vrot.lane.b32.xlu0 %v6680, 96
        %v6784 = vpop.permute.xlu0 %6783
        %6786 = vrot.lane.b32.xlu0 %v6680, 64
        %v6787 = vpop.permute.xlu0 %6786
        %6789 = vrot.lane.b32.xlu0 %v6680, 32
        %v6790 = vpop.permute.xlu0 %6789
        %6793 = vrot.lane.b32.xlu0 %v6700, 96
        %v6794 = vpop.permute.xlu0 %6793
        %6796 = vrot.lane.b32.xlu0 %v6700, 64
        %v6797 = vpop.permute.xlu0 %6796
        %6799 = vrot.lane.b32.xlu0 %v6700, 32
        %v6800 = vpop.permute.xlu0 %6799
        %6803 = vrot.lane.b32.xlu0 %v6720, 96
        %v6804 = vpop.permute.xlu0 %6803
        %6806 = vrot.lane.b32.xlu0 %v6720, 64
        %v6807 = vpop.permute.xlu0 %6806
        %6809 = vrot.lane.b32.xlu0 %v6720, 32
        %v6810 = vpop.permute.xlu0 %6809
        %6813 = vrot.lane.b32.xlu0 %v6740, 96
        %v6814 = vpop.permute.xlu0 %6813
        %6816 = vrot.lane.b32.xlu0 %v6740, 64
        %v6817 = vpop.permute.xlu0 %6816
        %6819 = vrot.lane.b32.xlu0 %v6740, 32
        %v6820 = vpop.permute.xlu0 %6819
        %v6822 = vrot.slane %v6747, 4
        %v6823 = vsel %vm1105, %v6822, %v6600
        %v6824 = vrot.slane %v6600, 4
        %v6825 = vsel %vm1105, %v6747, %v6824
        %v6827 = vunpack.c.l.s4 1983009808
        %v6828 = vunpack.c.0.s8 %v6827
        %v6829 = vperm.slane %v6823, %v6828
        %v6831 = vunpack.c.l.s4 1983009808
        %v6832 = vunpack.c.0.s8 %v6831
        %v6833 = vperm.slane %v6825, %v6832
        %v6834 = vrot.slane %v6750, 4
        %v6835 = vsel %vm1105, %v6834, %v6744
        %v6836 = vrot.slane %v6744, 4
        %v6837 = vsel %vm1105, %v6750, %v6836
        %v6839 = vunpack.c.l.s4 1983009808
        %v6840 = vunpack.c.0.s8 %v6839
        %v6841 = vperm.slane %v6835, %v6840
        %v6843 = vunpack.c.l.s4 1983009808
        %v6844 = vunpack.c.0.s8 %v6843
        %v6845 = vperm.slane %v6837, %v6844
        %v6846 = vrot.slane %v6757, 4
        %v6847 = vsel %vm1105, %v6846, %v6620
        %v6848 = vrot.slane %v6620, 4
        %v6849 = vsel %vm1105, %v6757, %v6848
        %v6851 = vunpack.c.l.s4 1983009808
        %v6852 = vunpack.c.0.s8 %v6851
        %v6853 = vperm.slane %v6847, %v6852
        %v6855 = vunpack.c.l.s4 1983009808
        %v6856 = vunpack.c.0.s8 %v6855
        %v6857 = vperm.slane %v6849, %v6856
        %v6858 = vrot.slane %v6760, 4
        %v6859 = vsel %vm1105, %v6858, %v6754
        %v6860 = vrot.slane %v6754, 4
        %v6861 = vsel %vm1105, %v6760, %v6860
        %v6863 = vunpack.c.l.s4 1983009808
        %v6864 = vunpack.c.0.s8 %v6863
        %v6865 = vperm.slane %v6859, %v6864
        %v6867 = vunpack.c.l.s4 1983009808
        %v6868 = vunpack.c.0.s8 %v6867
        %v6869 = vperm.slane %v6861, %v6868
        %v6870 = vrot.slane %v6841, 4
        %v6871 = vsel %vm1105, %v6870, %v6829
        %v6872 = vrot.slane %v6829, 4
        %v6873 = vsel %vm1105, %v6841, %v6872
        %v6875 = vunpack.c.l.s4 1934713408
        %v6876 = vunpack.c.0.s8 %v6875
        %v6877 = vperm.slane %v6871, %v6876
        %v6879 = vunpack.c.l.s4 1934713408
        %v6880 = vunpack.c.0.s8 %v6879
        %v6881 = vperm.slane %v6873, %v6880
        %v6882 = vrot.slane %v6845, 4
        %v6883 = vsel %vm1105, %v6882, %v6833
        %v6884 = vrot.slane %v6833, 4
        %v6885 = vsel %vm1105, %v6845, %v6884
        %v6887 = vunpack.c.l.s4 1934713408
        %v6888 = vunpack.c.0.s8 %v6887
        %v6889 = vperm.slane %v6883, %v6888
        %v6891 = vunpack.c.l.s4 1934713408
        %v6892 = vunpack.c.0.s8 %v6891
        %v6893 = vperm.slane %v6885, %v6892
        %v6894 = vrot.slane %v6865, 4
        %v6895 = vsel %vm1105, %v6894, %v6853
        %v6896 = vrot.slane %v6853, 4
        %v6897 = vsel %vm1105, %v6865, %v6896
        %v6899 = vunpack.c.l.s4 1934713408
        %v6900 = vunpack.c.0.s8 %v6899
        %v6901 = vperm.slane %v6895, %v6900
        %v6903 = vunpack.c.l.s4 1934713408
        %v6904 = vunpack.c.0.s8 %v6903
        %v6905 = vperm.slane %v6897, %v6904
        %v6906 = vrot.slane %v6869, 4
        %v6907 = vsel %vm1105, %v6906, %v6857
        %v6908 = vrot.slane %v6857, 4
        %v6909 = vsel %vm1105, %v6869, %v6908
        %v6911 = vunpack.c.l.s4 1934713408
        %v6912 = vunpack.c.0.s8 %v6911
        %v6913 = vperm.slane %v6907, %v6912
        %v6915 = vunpack.c.l.s4 1934713408
        %v6916 = vunpack.c.0.s8 %v6915
        %v6917 = vperm.slane %v6909, %v6916
        %v6918 = vrot.slane %v6901, 4
        %v6919 = vsel %vm1105, %v6918, %v6877
        %v6920 = vrot.slane %v6877, 4
        %v6921 = vsel %vm1105, %v6901, %v6920
        %v6922 = vrot.slane %v6905, 4
        %v6923 = vsel %vm1105, %v6922, %v6881
        %v6924 = vrot.slane %v6881, 4
        %v6925 = vsel %vm1105, %v6905, %v6924
        %v6926 = vrot.slane %v6913, 4
        %v6927 = vsel %vm1105, %v6926, %v6889
        %v6928 = vrot.slane %v6889, 4
        %v6929 = vsel %vm1105, %v6913, %v6928
        %v6930 = vrot.slane %v6917, 4
        %v6931 = vsel %vm1105, %v6930, %v6893
        %v6932 = vrot.slane %v6893, 4
        %v6933 = vsel %vm1105, %v6917, %v6932
        %v6934 = vrot.slane %v6767, 4
        %v6935 = vsel %vm1105, %v6934, %v6640
        %v6936 = vrot.slane %v6640, 4
        %v6937 = vsel %vm1105, %v6767, %v6936
        %v6939 = vunpack.c.l.s4 1983009808
        %v6940 = vunpack.c.0.s8 %v6939
        %v6941 = vperm.slane %v6935, %v6940
        %v6943 = vunpack.c.l.s4 1983009808
        %v6944 = vunpack.c.0.s8 %v6943
        %v6945 = vperm.slane %v6937, %v6944
        %v6946 = vrot.slane %v6770, 4
        %v6947 = vsel %vm1105, %v6946, %v6764
        %v6948 = vrot.slane %v6764, 4
        %v6949 = vsel %vm1105, %v6770, %v6948
        %v6951 = vunpack.c.l.s4 1983009808
        %v6952 = vunpack.c.0.s8 %v6951
        %v6953 = vperm.slane %v6947, %v6952
        %v6955 = vunpack.c.l.s4 1983009808
        %v6956 = vunpack.c.0.s8 %v6955
        %v6957 = vperm.slane %v6949, %v6956
        %v6958 = vrot.slane %v6777, 4
        %v6959 = vsel %vm1105, %v6958, %v6660
        %v6960 = vrot.slane %v6660, 4
        %v6961 = vsel %vm1105, %v6777, %v6960
        %v6963 = vunpack.c.l.s4 1983009808
        %v6964 = vunpack.c.0.s8 %v6963
        %v6965 = vperm.slane %v6959, %v6964
        %v6967 = vunpack.c.l.s4 1983009808
        %v6968 = vunpack.c.0.s8 %v6967
        %v6969 = vperm.slane %v6961, %v6968
        %v6970 = vrot.slane %v6780, 4
        %v6971 = vsel %vm1105, %v6970, %v6774
        %v6972 = vrot.slane %v6774, 4
        %v6973 = vsel %vm1105, %v6780, %v6972
        %v6975 = vunpack.c.l.s4 1983009808
        %v6976 = vunpack.c.0.s8 %v6975
        %v6977 = vperm.slane %v6971, %v6976
        %v6979 = vunpack.c.l.s4 1983009808
        %v6980 = vunpack.c.0.s8 %v6979
        %v6981 = vperm.slane %v6973, %v6980
        %v6982 = vrot.slane %v6953, 4
        %v6983 = vsel %vm1105, %v6982, %v6941
        %v6984 = vrot.slane %v6941, 4
        %v6985 = vsel %vm1105, %v6953, %v6984
        %v6987 = vunpack.c.l.s4 1934713408
        %v6988 = vunpack.c.0.s8 %v6987
        %v6989 = vperm.slane %v6983, %v6988
        %v6991 = vunpack.c.l.s4 1934713408
        %v6992 = vunpack.c.0.s8 %v6991
        %v6993 = vperm.slane %v6985, %v6992
        %v6994 = vrot.slane %v6957, 4
        %v6995 = vsel %vm1105, %v6994, %v6945
        %v6996 = vrot.slane %v6945, 4
        %v6997 = vsel %vm1105, %v6957, %v6996
        %v6999 = vunpack.c.l.s4 1934713408
        %v7000 = vunpack.c.0.s8 %v6999
        %v7001 = vperm.slane %v6995, %v7000
        %v7003 = vunpack.c.l.s4 1934713408
        %v7004 = vunpack.c.0.s8 %v7003
        %v7005 = vperm.slane %v6997, %v7004
        %v7006 = vrot.slane %v6977, 4
        %v7007 = vsel %vm1105, %v7006, %v6965
        %v7008 = vrot.slane %v6965, 4
        %v7009 = vsel %vm1105, %v6977, %v7008
        %v7011 = vunpack.c.l.s4 1934713408
        %v7012 = vunpack.c.0.s8 %v7011
        %v7013 = vperm.slane %v7007, %v7012
        %v7015 = vunpack.c.l.s4 1934713408
        %v7016 = vunpack.c.0.s8 %v7015
        %v7017 = vperm.slane %v7009, %v7016
        %v7018 = vrot.slane %v6981, 4
        %v7019 = vsel %vm1105, %v7018, %v6969
        %v7020 = vrot.slane %v6969, 4
        %v7021 = vsel %vm1105, %v6981, %v7020
        %v7023 = vunpack.c.l.s4 1934713408
        %v7024 = vunpack.c.0.s8 %v7023
        %v7025 = vperm.slane %v7019, %v7024
        %v7027 = vunpack.c.l.s4 1934713408
        %v7028 = vunpack.c.0.s8 %v7027
        %v7029 = vperm.slane %v7021, %v7028
        %v7030 = vrot.slane %v7013, 4
        %v7031 = vsel %vm1105, %v7030, %v6989
        %v7032 = vrot.slane %v6989, 4
        %v7033 = vsel %vm1105, %v7013, %v7032
        %v7034 = vrot.slane %v7017, 4
        %v7035 = vsel %vm1105, %v7034, %v6993
        %v7036 = vrot.slane %v6993, 4
        %v7037 = vsel %vm1105, %v7017, %v7036
        %v7038 = vrot.slane %v7025, 4
        %v7039 = vsel %vm1105, %v7038, %v7001
        %v7040 = vrot.slane %v7001, 4
        %v7041 = vsel %vm1105, %v7025, %v7040
        %v7042 = vrot.slane %v7029, 4
        %v7043 = vsel %vm1105, %v7042, %v7005
        %v7044 = vrot.slane %v7005, 4
        %v7045 = vsel %vm1105, %v7029, %v7044
        %v7046 = vrot.slane %v6787, 4
        %v7047 = vsel %vm1105, %v7046, %v6680
        %v7048 = vrot.slane %v6680, 4
        %v7049 = vsel %vm1105, %v6787, %v7048
        %v7051 = vunpack.c.l.s4 1983009808
        %v7052 = vunpack.c.0.s8 %v7051
        %v7053 = vperm.slane %v7047, %v7052
        %v7055 = vunpack.c.l.s4 1983009808
        %v7056 = vunpack.c.0.s8 %v7055
        %v7057 = vperm.slane %v7049, %v7056
        %v7058 = vrot.slane %v6790, 4
        %v7059 = vsel %vm1105, %v7058, %v6784
        %v7060 = vrot.slane %v6784, 4
        %v7061 = vsel %vm1105, %v6790, %v7060
        %v7063 = vunpack.c.l.s4 1983009808
        %v7064 = vunpack.c.0.s8 %v7063
        %v7065 = vperm.slane %v7059, %v7064
        %v7067 = vunpack.c.l.s4 1983009808
        %v7068 = vunpack.c.0.s8 %v7067
        %v7069 = vperm.slane %v7061, %v7068
        %v7070 = vrot.slane %v6797, 4
        %v7071 = vsel %vm1105, %v7070, %v6700
        %v7072 = vrot.slane %v6700, 4
        %v7073 = vsel %vm1105, %v6797, %v7072
        %v7075 = vunpack.c.l.s4 1983009808
        %v7076 = vunpack.c.0.s8 %v7075
        %v7077 = vperm.slane %v7071, %v7076
        %v7079 = vunpack.c.l.s4 1983009808
        %v7080 = vunpack.c.0.s8 %v7079
        %v7081 = vperm.slane %v7073, %v7080
        %v7082 = vrot.slane %v6800, 4
        %v7083 = vsel %vm1105, %v7082, %v6794
        %v7084 = vrot.slane %v6794, 4
        %v7085 = vsel %vm1105, %v6800, %v7084
        %v7087 = vunpack.c.l.s4 1983009808
        %v7088 = vunpack.c.0.s8 %v7087
        %v7089 = vperm.slane %v7083, %v7088
        %v7091 = vunpack.c.l.s4 1983009808
        %v7092 = vunpack.c.0.s8 %v7091
        %v7093 = vperm.slane %v7085, %v7092
        %v7094 = vrot.slane %v7065, 4
        %v7095 = vsel %vm1105, %v7094, %v7053
        %v7096 = vrot.slane %v7053, 4
        %v7097 = vsel %vm1105, %v7065, %v7096
        %v7099 = vunpack.c.l.s4 1934713408
        %v7100 = vunpack.c.0.s8 %v7099
        %v7101 = vperm.slane %v7095, %v7100
        %v7103 = vunpack.c.l.s4 1934713408
        %v7104 = vunpack.c.0.s8 %v7103
        %v7105 = vperm.slane %v7097, %v7104
        %v7106 = vrot.slane %v7069, 4
        %v7107 = vsel %vm1105, %v7106, %v7057
        %v7108 = vrot.slane %v7057, 4
        %v7109 = vsel %vm1105, %v7069, %v7108
        %v7111 = vunpack.c.l.s4 1934713408
        %v7112 = vunpack.c.0.s8 %v7111
        %v7113 = vperm.slane %v7107, %v7112
        %v7115 = vunpack.c.l.s4 1934713408
        %v7116 = vunpack.c.0.s8 %v7115
        %v7117 = vperm.slane %v7109, %v7116
        %v7118 = vrot.slane %v7089, 4
        %v7119 = vsel %vm1105, %v7118, %v7077
        %v7120 = vrot.slane %v7077, 4
        %v7121 = vsel %vm1105, %v7089, %v7120
        %v7123 = vunpack.c.l.s4 1934713408
        %v7124 = vunpack.c.0.s8 %v7123
        %v7125 = vperm.slane %v7119, %v7124
        %v7127 = vunpack.c.l.s4 1934713408
        %v7128 = vunpack.c.0.s8 %v7127
        %v7129 = vperm.slane %v7121, %v7128
        %v7130 = vrot.slane %v7093, 4
        %v7131 = vsel %vm1105, %v7130, %v7081
        %v7132 = vrot.slane %v7081, 4
        %v7133 = vsel %vm1105, %v7093, %v7132
        %v7135 = vunpack.c.l.s4 1934713408
        %v7136 = vunpack.c.0.s8 %v7135
        %v7137 = vperm.slane %v7131, %v7136
        %v7139 = vunpack.c.l.s4 1934713408
        %v7140 = vunpack.c.0.s8 %v7139
        %v7141 = vperm.slane %v7133, %v7140
        %v7142 = vrot.slane %v7125, 4
        %v7143 = vsel %vm1105, %v7142, %v7101
        %v7144 = vrot.slane %v7101, 4
        %v7145 = vsel %vm1105, %v7125, %v7144
        %v7146 = vrot.slane %v7129, 4
        %v7147 = vsel %vm1105, %v7146, %v7105
        %v7148 = vrot.slane %v7105, 4
        %v7149 = vsel %vm1105, %v7129, %v7148
        %v7150 = vrot.slane %v7137, 4
        %v7151 = vsel %vm1105, %v7150, %v7113
        %v7152 = vrot.slane %v7113, 4
        %v7153 = vsel %vm1105, %v7137, %v7152
        %v7154 = vrot.slane %v7141, 4
        %v7155 = vsel %vm1105, %v7154, %v7117
        %v7156 = vrot.slane %v7117, 4
        %v7157 = vsel %vm1105, %v7141, %v7156
        %v7158 = vrot.slane %v6807, 4
        %v7159 = vsel %vm1105, %v7158, %v6720
        %v7160 = vrot.slane %v6720, 4
        %v7161 = vsel %vm1105, %v6807, %v7160
        %v7163 = vunpack.c.l.s4 1983009808
        %v7164 = vunpack.c.0.s8 %v7163
        %v7165 = vperm.slane %v7159, %v7164
        %v7167 = vunpack.c.l.s4 1983009808
        %v7168 = vunpack.c.0.s8 %v7167
        %v7169 = vperm.slane %v7161, %v7168
        %v7170 = vrot.slane %v6810, 4
        %v7171 = vsel %vm1105, %v7170, %v6804
        %v7172 = vrot.slane %v6804, 4
        %v7173 = vsel %vm1105, %v6810, %v7172
        %v7175 = vunpack.c.l.s4 1983009808
        %v7176 = vunpack.c.0.s8 %v7175
        %v7177 = vperm.slane %v7171, %v7176
        %v7179 = vunpack.c.l.s4 1983009808
        %v7180 = vunpack.c.0.s8 %v7179
        %v7181 = vperm.slane %v7173, %v7180
        %v7182 = vrot.slane %v6817, 4
        %v7183 = vsel %vm1105, %v7182, %v6740
        %v7184 = vrot.slane %v6740, 4
        %v7185 = vsel %vm1105, %v6817, %v7184
        %v7187 = vunpack.c.l.s4 1983009808
        %v7188 = vunpack.c.0.s8 %v7187
        %v7189 = vperm.slane %v7183, %v7188
        %v7191 = vunpack.c.l.s4 1983009808
        %v7192 = vunpack.c.0.s8 %v7191
        %v7193 = vperm.slane %v7185, %v7192
        %v7194 = vrot.slane %v6820, 4
        %v7195 = vsel %vm1105, %v7194, %v6814
        %v7196 = vrot.slane %v6814, 4
        %v7197 = vsel %vm1105, %v6820, %v7196
        %v7199 = vunpack.c.l.s4 1983009808
        %v7200 = vunpack.c.0.s8 %v7199
        %v7201 = vperm.slane %v7195, %v7200
        %v7203 = vunpack.c.l.s4 1983009808
        %v7204 = vunpack.c.0.s8 %v7203
        %v7205 = vperm.slane %v7197, %v7204
        %v7206 = vrot.slane %v7177, 4
        %v7207 = vsel %vm1105, %v7206, %v7165
        %v7208 = vrot.slane %v7165, 4
        %v7209 = vsel %vm1105, %v7177, %v7208
        %v7211 = vunpack.c.l.s4 1934713408
        %v7212 = vunpack.c.0.s8 %v7211
        %v7213 = vperm.slane %v7207, %v7212
        %v7215 = vunpack.c.l.s4 1934713408
        %v7216 = vunpack.c.0.s8 %v7215
        %v7217 = vperm.slane %v7209, %v7216
        %v7218 = vrot.slane %v7181, 4
        %v7219 = vsel %vm1105, %v7218, %v7169
        %v7220 = vrot.slane %v7169, 4
        %v7221 = vsel %vm1105, %v7181, %v7220
        %v7223 = vunpack.c.l.s4 1934713408
        %v7224 = vunpack.c.0.s8 %v7223
        %v7225 = vperm.slane %v7219, %v7224
        %v7227 = vunpack.c.l.s4 1934713408
        %v7228 = vunpack.c.0.s8 %v7227
        %v7229 = vperm.slane %v7221, %v7228
        %v7230 = vrot.slane %v7201, 4
        %v7231 = vsel %vm1105, %v7230, %v7189
        %v7232 = vrot.slane %v7189, 4
        %v7233 = vsel %vm1105, %v7201, %v7232
        %v7235 = vunpack.c.l.s4 1934713408
        %v7236 = vunpack.c.0.s8 %v7235
        %v7237 = vperm.slane %v7231, %v7236
        %v7239 = vunpack.c.l.s4 1934713408
        %v7240 = vunpack.c.0.s8 %v7239
        %v7241 = vperm.slane %v7233, %v7240
        %v7242 = vrot.slane %v7205, 4
        %v7243 = vsel %vm1105, %v7242, %v7193
        %v7244 = vrot.slane %v7193, 4
        %v7245 = vsel %vm1105, %v7205, %v7244
        %v7247 = vunpack.c.l.s4 1934713408
        %v7248 = vunpack.c.0.s8 %v7247
        %v7249 = vperm.slane %v7243, %v7248
        %v7251 = vunpack.c.l.s4 1934713408
        %v7252 = vunpack.c.0.s8 %v7251
        %v7253 = vperm.slane %v7245, %v7252
        %v7254 = vrot.slane %v7237, 4
        %v7255 = vsel %vm1105, %v7254, %v7213
        %v7256 = vrot.slane %v7213, 4
        %v7257 = vsel %vm1105, %v7237, %v7256
        %v7258 = vrot.slane %v7241, 4
        %v7259 = vsel %vm1105, %v7258, %v7217
        %v7260 = vrot.slane %v7217, 4
        %v7261 = vsel %vm1105, %v7241, %v7260
        %v7262 = vrot.slane %v7249, 4
        %v7263 = vsel %vm1105, %v7262, %v7225
        %v7264 = vrot.slane %v7225, 4
        %v7265 = vsel %vm1105, %v7249, %v7264
        %v7266 = vrot.slane %v7253, 4
        %v7267 = vsel %vm1105, %v7266, %v7229
        %v7268 = vrot.slane %v7229, 4
        %v7269 = vsel %vm1105, %v7253, %v7268
        %v7270 = vadd.f32 %v6129, %v6919
        %v7271 = vadd.f32 %v6130, %v7031
        %v7272 = vadd.f32 %v6131, %v7143
        %v7273 = vadd.f32 %v6132, %v7255
        %v7274 = vadd.f32 %v6133, %v6921
        %v7275 = vadd.f32 %v6134, %v7033
        %v7276 = vadd.f32 %v6135, %v7145
        %v7277 = vadd.f32 %v6136, %v7257
        %v7278 = vadd.f32 %v6137, %v6923
        %v7279 = vadd.f32 %v6138, %v7035
        %v7280 = vadd.f32 %v6139, %v7147
        %v7281 = vadd.f32 %v6140, %v7259
        %v7282 = vadd.f32 %v6141, %v6925
        %v7283 = vadd.f32 %v6142, %v7037
        %v7284 = vadd.f32 %v6143, %v7149
        %v7285 = vadd.f32 %v6144, %v7261
        %v7286 = vadd.f32 %v6145, %v6927
        %v7287 = vadd.f32 %v6146, %v7039
        %v7288 = vadd.f32 %v6147, %v7151
        %v7289 = vadd.f32 %v6148, %v7263
        %v7290 = vadd.f32 %v6149, %v6929
        %v7291 = vadd.f32 %v6150, %v7041
        %v7292 = vadd.f32 %v6151, %v7153
        %v7293 = vadd.f32 %v6152, %v7265
        %v7294 = vadd.f32 %v6153, %v6931
        %v7295 = vadd.f32 %v6154, %v7043
        %v7296 = vadd.f32 %v6155, %v7155
        %v7297 = vadd.f32 %v6156, %v7267
        %v7298 = vadd.f32 %v6157, %v6933
        %v7299 = vadd.f32 %v6158, %v7045
        %v7300 = vadd.f32 %v6159, %v7157
        %v7301 = vadd.f32 %v6160, %v7269
        %s7302 = scalar_lea.vmem %s3, 40
        %v7303 = vld [vmem:[%s7302] sm:$0xff]
        %7304 = vrot.lane.b32.xlu0 %v5020, 126
        %v7305 = vpop.permute.xlu0 %7304
        %7306 = vrot.lane.b32.xlu0 %v5022, 126
        %v7307 = vpop.permute.xlu0 %7306
        %7308 = vrot.lane.b32.xlu0 %v5024, 126
        %v7309 = vpop.permute.xlu0 %7308
        %7310 = vrot.lane.b32.xlu0 %v5026, 126
        %v7311 = vpop.permute.xlu0 %7310
        %7312 = vrot.lane.b32.xlu0 %v5029, 126
        %v7313 = vpop.permute.xlu0 %7312
        %7314 = vrot.lane.b32.xlu0 %v5031, 126
        %v7315 = vpop.permute.xlu0 %7314
        %7316 = vrot.lane.b32.xlu0 %v5033, 126
        %v7317 = vpop.permute.xlu0 %7316
        %7318 = vrot.lane.b32.xlu0 %v5035, 126
        %v7319 = vpop.permute.xlu0 %7318
        %7320 = vrot.lane.b32.xlu0 %v5038, 126
        %v7321 = vpop.permute.xlu0 %7320
        %7322 = vrot.lane.b32.xlu0 %v5040, 126
        %v7323 = vpop.permute.xlu0 %7322
        %7324 = vrot.lane.b32.xlu0 %v5042, 126
        %v7325 = vpop.permute.xlu0 %7324
        %7326 = vrot.lane.b32.xlu0 %v5044, 126
        %v7327 = vpop.permute.xlu0 %7326
        %7328 = vrot.lane.b32.xlu0 %v5047, 126
        %v7329 = vpop.permute.xlu0 %7328
        %7330 = vrot.lane.b32.xlu0 %v5049, 126
        %v7331 = vpop.permute.xlu0 %7330
        %7332 = vrot.lane.b32.xlu0 %v5051, 126
        %v7333 = vpop.permute.xlu0 %7332
        %7334 = vrot.lane.b32.xlu0 %v5053, 126
        %v7335 = vpop.permute.xlu0 %7334
        %v7352 = vrot.slane %v7321, 4
        %v7353 = vsel %vm1105, %v7352, %v7305
        %v7354 = vrot.slane %v7305, 4
        %v7355 = vsel %vm1105, %v7321, %v7354
        %v7357 = vunpack.c.l.s4 1983009808
        %v7358 = vunpack.c.0.s8 %v7357
        %v7359 = vperm.slane %v7353, %v7358
        %v7361 = vunpack.c.l.s4 1983009808
        %v7362 = vunpack.c.0.s8 %v7361
        %v7363 = vperm.slane %v7355, %v7362
        %v7364 = vrot.slane %v7329, 4
        %v7365 = vsel %vm1105, %v7364, %v7313
        %v7366 = vrot.slane %v7313, 4
        %v7367 = vsel %vm1105, %v7329, %v7366
        %v7369 = vunpack.c.l.s4 1983009808
        %v7370 = vunpack.c.0.s8 %v7369
        %v7371 = vperm.slane %v7365, %v7370
        %v7373 = vunpack.c.l.s4 1983009808
        %v7374 = vunpack.c.0.s8 %v7373
        %v7375 = vperm.slane %v7367, %v7374
        %v7376 = vrot.slane %v7371, 4
        %v7377 = vsel %vm1105, %v7376, %v7359
        %v7378 = vrot.slane %v7359, 4
        %v7379 = vsel %vm1105, %v7371, %v7378
        %v7381 = vunpack.c.l.s4 1934713408
        %v7382 = vunpack.c.0.s8 %v7381
        %v7383 = vperm.slane %v7377, %v7382
        %v7385 = vunpack.c.l.s4 1934713408
        %v7386 = vunpack.c.0.s8 %v7385
        %v7387 = vperm.slane %v7379, %v7386
        %v7388 = vrot.slane %v7375, 4
        %v7389 = vsel %vm1105, %v7388, %v7363
        %v7390 = vrot.slane %v7363, 4
        %v7391 = vsel %vm1105, %v7375, %v7390
        %v7393 = vunpack.c.l.s4 1934713408
        %v7394 = vunpack.c.0.s8 %v7393
        %v7395 = vperm.slane %v7389, %v7394
        %v7397 = vunpack.c.l.s4 1934713408
        %v7398 = vunpack.c.0.s8 %v7397
        %v7399 = vperm.slane %v7391, %v7398
        %v7400 = vrot.slane %v7383, 4
        %v7401 = vsel %vm1105, 0.0, %v7400
        %v7402 = vrot.slane %v7387, 4
        %v7403 = vsel %vm1105, 0.0, %v7402
        %v7404 = vrot.slane %v7395, 4
        %v7405 = vsel %vm1105, 0.0, %v7404
        %v7406 = vrot.slane %v7399, 4
        %v7407 = vsel %vm1105, 0.0, %v7406
        %v7408 = vrot.slane %v7323, 4
        %v7409 = vsel %vm1105, %v7408, %v7307
        %v7410 = vrot.slane %v7307, 4
        %v7411 = vsel %vm1105, %v7323, %v7410
        %v7413 = vunpack.c.l.s4 1983009808
        %v7414 = vunpack.c.0.s8 %v7413
        %v7415 = vperm.slane %v7409, %v7414
        %v7417 = vunpack.c.l.s4 1983009808
        %v7418 = vunpack.c.0.s8 %v7417
        %v7419 = vperm.slane %v7411, %v7418
        %v7420 = vrot.slane %v7331, 4
        %v7421 = vsel %vm1105, %v7420, %v7315
        %v7422 = vrot.slane %v7315, 4
        %v7423 = vsel %vm1105, %v7331, %v7422
        %v7425 = vunpack.c.l.s4 1983009808
        %v7426 = vunpack.c.0.s8 %v7425
        %v7427 = vperm.slane %v7421, %v7426
        %v7429 = vunpack.c.l.s4 1983009808
        %v7430 = vunpack.c.0.s8 %v7429
        %v7431 = vperm.slane %v7423, %v7430
        %v7432 = vrot.slane %v7427, 4
        %v7433 = vsel %vm1105, %v7432, %v7415
        %v7434 = vrot.slane %v7415, 4
        %v7435 = vsel %vm1105, %v7427, %v7434
        %v7437 = vunpack.c.l.s4 1934713408
        %v7438 = vunpack.c.0.s8 %v7437
        %v7439 = vperm.slane %v7433, %v7438
        %v7441 = vunpack.c.l.s4 1934713408
        %v7442 = vunpack.c.0.s8 %v7441
        %v7443 = vperm.slane %v7435, %v7442
        %v7444 = vrot.slane %v7431, 4
        %v7445 = vsel %vm1105, %v7444, %v7419
        %v7446 = vrot.slane %v7419, 4
        %v7447 = vsel %vm1105, %v7431, %v7446
        %v7449 = vunpack.c.l.s4 1934713408
        %v7450 = vunpack.c.0.s8 %v7449
        %v7451 = vperm.slane %v7445, %v7450
        %v7453 = vunpack.c.l.s4 1934713408
        %v7454 = vunpack.c.0.s8 %v7453
        %v7455 = vperm.slane %v7447, %v7454
        %v7456 = vrot.slane %v7439, 4
        %v7457 = vsel %vm1105, 0.0, %v7456
        %v7458 = vrot.slane %v7443, 4
        %v7459 = vsel %vm1105, 0.0, %v7458
        %v7460 = vrot.slane %v7451, 4
        %v7461 = vsel %vm1105, 0.0, %v7460
        %v7462 = vrot.slane %v7455, 4
        %v7463 = vsel %vm1105, 0.0, %v7462
        %v7464 = vrot.slane %v7325, 4
        %v7465 = vsel %vm1105, %v7464, %v7309
        %v7466 = vrot.slane %v7309, 4
        %v7467 = vsel %vm1105, %v7325, %v7466
        %v7469 = vunpack.c.l.s4 1983009808
        %v7470 = vunpack.c.0.s8 %v7469
        %v7471 = vperm.slane %v7465, %v7470
        %v7473 = vunpack.c.l.s4 1983009808
        %v7474 = vunpack.c.0.s8 %v7473
        %v7475 = vperm.slane %v7467, %v7474
        %v7476 = vrot.slane %v7333, 4
        %v7477 = vsel %vm1105, %v7476, %v7317
        %v7478 = vrot.slane %v7317, 4
        %v7479 = vsel %vm1105, %v7333, %v7478
        %v7481 = vunpack.c.l.s4 1983009808
        %v7482 = vunpack.c.0.s8 %v7481
        %v7483 = vperm.slane %v7477, %v7482
        %v7485 = vunpack.c.l.s4 1983009808
        %v7486 = vunpack.c.0.s8 %v7485
        %v7487 = vperm.slane %v7479, %v7486
        %v7488 = vrot.slane %v7483, 4
        %v7489 = vsel %vm1105, %v7488, %v7471
        %v7490 = vrot.slane %v7471, 4
        %v7491 = vsel %vm1105, %v7483, %v7490
        %v7493 = vunpack.c.l.s4 1934713408
        %v7494 = vunpack.c.0.s8 %v7493
        %v7495 = vperm.slane %v7489, %v7494
        %v7497 = vunpack.c.l.s4 1934713408
        %v7498 = vunpack.c.0.s8 %v7497
        %v7499 = vperm.slane %v7491, %v7498
        %v7500 = vrot.slane %v7487, 4
        %v7501 = vsel %vm1105, %v7500, %v7475
        %v7502 = vrot.slane %v7475, 4
        %v7503 = vsel %vm1105, %v7487, %v7502
        %v7505 = vunpack.c.l.s4 1934713408
        %v7506 = vunpack.c.0.s8 %v7505
        %v7507 = vperm.slane %v7501, %v7506
        %v7509 = vunpack.c.l.s4 1934713408
        %v7510 = vunpack.c.0.s8 %v7509
        %v7511 = vperm.slane %v7503, %v7510
        %v7512 = vrot.slane %v7495, 4
        %v7513 = vsel %vm1105, 0.0, %v7512
        %v7514 = vrot.slane %v7499, 4
        %v7515 = vsel %vm1105, 0.0, %v7514
        %v7516 = vrot.slane %v7507, 4
        %v7517 = vsel %vm1105, 0.0, %v7516
        %v7518 = vrot.slane %v7511, 4
        %v7519 = vsel %vm1105, 0.0, %v7518
        %v7520 = vrot.slane %v7327, 4
        %v7521 = vsel %vm1105, %v7520, %v7311
        %v7522 = vrot.slane %v7311, 4
        %v7523 = vsel %vm1105, %v7327, %v7522
        %v7525 = vunpack.c.l.s4 1983009808
        %v7526 = vunpack.c.0.s8 %v7525
        %v7527 = vperm.slane %v7521, %v7526
        %v7529 = vunpack.c.l.s4 1983009808
        %v7530 = vunpack.c.0.s8 %v7529
        %v7531 = vperm.slane %v7523, %v7530
        %v7532 = vrot.slane %v7335, 4
        %v7533 = vsel %vm1105, %v7532, %v7319
        %v7534 = vrot.slane %v7319, 4
        %v7535 = vsel %vm1105, %v7335, %v7534
        %v7537 = vunpack.c.l.s4 1983009808
        %v7538 = vunpack.c.0.s8 %v7537
        %v7539 = vperm.slane %v7533, %v7538
        %v7541 = vunpack.c.l.s4 1983009808
        %v7542 = vunpack.c.0.s8 %v7541
        %v7543 = vperm.slane %v7535, %v7542
        %v7544 = vrot.slane %v7539, 4
        %v7545 = vsel %vm1105, %v7544, %v7527
        %v7546 = vrot.slane %v7527, 4
        %v7547 = vsel %vm1105, %v7539, %v7546
        %v7549 = vunpack.c.l.s4 1934713408
        %v7550 = vunpack.c.0.s8 %v7549
        %v7551 = vperm.slane %v7545, %v7550
        %v7553 = vunpack.c.l.s4 1934713408
        %v7554 = vunpack.c.0.s8 %v7553
        %v7555 = vperm.slane %v7547, %v7554
        %v7556 = vrot.slane %v7543, 4
        %v7557 = vsel %vm1105, %v7556, %v7531
        %v7558 = vrot.slane %v7531, 4
        %v7559 = vsel %vm1105, %v7543, %v7558
        %v7561 = vunpack.c.l.s4 1934713408
        %v7562 = vunpack.c.0.s8 %v7561
        %v7563 = vperm.slane %v7557, %v7562
        %v7565 = vunpack.c.l.s4 1934713408
        %v7566 = vunpack.c.0.s8 %v7565
        %v7567 = vperm.slane %v7559, %v7566
        %v7568 = vrot.slane %v7551, 4
        %v7569 = vsel %vm1105, 0.0, %v7568
        %v7570 = vrot.slane %v7555, 4
        %v7571 = vsel %vm1105, 0.0, %v7570
        %v7572 = vrot.slane %v7563, 4
        %v7573 = vsel %vm1105, 0.0, %v7572
        %v7574 = vrot.slane %v7567, 4
        %v7575 = vsel %vm1105, 0.0, %v7574
        %7577 = vrot.lane.b32.xlu0 %v7401, 32
        %v7578 = vpop.permute.xlu0 %7577
        %7581 = vrot.lane.b32.xlu0 %v7387, 64
        %v7582 = vpop.permute.xlu0 %7581
        %7585 = vrot.lane.b32.xlu0 %v7403, 96
        %v7586 = vpop.permute.xlu0 %7585
        %7589 = vrot.lane.b32.xlu0 %v7405, 32
        %v7590 = vpop.permute.xlu0 %7589
        %7593 = vrot.lane.b32.xlu0 %v7399, 64
        %v7594 = vpop.permute.xlu0 %7593
        %7597 = vrot.lane.b32.xlu0 %v7407, 96
        %v7598 = vpop.permute.xlu0 %7597
        %7601 = vrot.lane.b32.xlu0 %v7457, 32
        %v7602 = vpop.permute.xlu0 %7601
        %7605 = vrot.lane.b32.xlu0 %v7443, 64
        %v7606 = vpop.permute.xlu0 %7605
        %7609 = vrot.lane.b32.xlu0 %v7459, 96
        %v7610 = vpop.permute.xlu0 %7609
        %7613 = vrot.lane.b32.xlu0 %v7461, 32
        %v7614 = vpop.permute.xlu0 %7613
        %7617 = vrot.lane.b32.xlu0 %v7455, 64
        %v7618 = vpop.permute.xlu0 %7617
        %7621 = vrot.lane.b32.xlu0 %v7463, 96
        %v7622 = vpop.permute.xlu0 %7621
        %7625 = vrot.lane.b32.xlu0 %v7513, 32
        %v7626 = vpop.permute.xlu0 %7625
        %7629 = vrot.lane.b32.xlu0 %v7499, 64
        %v7630 = vpop.permute.xlu0 %7629
        %7633 = vrot.lane.b32.xlu0 %v7515, 96
        %v7634 = vpop.permute.xlu0 %7633
        %7637 = vrot.lane.b32.xlu0 %v7517, 32
        %v7638 = vpop.permute.xlu0 %7637
        %7641 = vrot.lane.b32.xlu0 %v7511, 64
        %v7642 = vpop.permute.xlu0 %7641
        %7645 = vrot.lane.b32.xlu0 %v7519, 96
        %v7646 = vpop.permute.xlu0 %7645
        %7649 = vrot.lane.b32.xlu0 %v7569, 32
        %v7650 = vpop.permute.xlu0 %7649
        %7653 = vrot.lane.b32.xlu0 %v7555, 64
        %v7654 = vpop.permute.xlu0 %7653
        %7657 = vrot.lane.b32.xlu0 %v7571, 96
        %v7658 = vpop.permute.xlu0 %7657
        %7661 = vrot.lane.b32.xlu0 %v7573, 32
        %v7662 = vpop.permute.xlu0 %7661
        %7665 = vrot.lane.b32.xlu0 %v7567, 64
        %v7666 = vpop.permute.xlu0 %7665
        %7669 = vrot.lane.b32.xlu0 %v7575, 96
        %v7670 = vpop.permute.xlu0 %7669
        %v7672 = vsel %vm1425, %v7383, %v7578
        %v7673 = vsel %vm1427, %v7672, %v7582
        %v7674 = vsel %vm1429, %v7673, %v7586
        %v7675 = vsel %vm1425, %v7395, %v7590
        %v7676 = vsel %vm1427, %v7675, %v7594
        %v7677 = vsel %vm1429, %v7676, %v7598
        %v7678 = vsel %vm1425, %v7439, %v7602
        %v7679 = vsel %vm1427, %v7678, %v7606
        %v7680 = vsel %vm1429, %v7679, %v7610
        %v7681 = vsel %vm1425, %v7451, %v7614
        %v7682 = vsel %vm1427, %v7681, %v7618
        %v7683 = vsel %vm1429, %v7682, %v7622
        %v7684 = vsel %vm1425, %v7495, %v7626
        %v7685 = vsel %vm1427, %v7684, %v7630
        %v7686 = vsel %vm1429, %v7685, %v7634
        %v7687 = vsel %vm1425, %v7507, %v7638
        %v7688 = vsel %vm1427, %v7687, %v7642
        %v7689 = vsel %vm1429, %v7688, %v7646
        %v7690 = vsel %vm1425, %v7551, %v7650
        %v7691 = vsel %vm1427, %v7690, %v7654
        %v7692 = vsel %vm1429, %v7691, %v7658
        %v7693 = vsel %vm1425, %v7563, %v7662
        %v7694 = vsel %vm1427, %v7693, %v7666
        %v7695 = vsel %vm1429, %v7694, %v7670
        %v7697 = vsel %vm1526, %v7303, 0
        %v7700 = vsel %vm1530, %v7674, 0
        %v7703 = vsel %vm1530, %v7677, 0
        %v7706 = vsel %vm1530, %v7680, 0
        %v7709 = vsel %vm1530, %v7683, 0
        %v7712 = vsel %vm1530, %v7686, 0
        %v7715 = vsel %vm1530, %v7689, 0
        %v7718 = vsel %vm1530, %v7692, 0
        %v7721 = vsel %vm1530, %v7695, 0
        %7723 = vmatpush.msra.mxu0 0.0
        %7724 = vmatpush.msra.mxu0 0.0
        %7725 = vmatpush.msra.mxu0 0.0
        %7726 = vmatpush.msra.mxu0 0.0
        %7727 = vmatpush.msra.mxu0 0.0
        %7728 = vmatpush.msra.mxu0 0.0
        %7729 = vmatpush.msra.mxu0 0.0
        %7730 = vmatpush.msra.mxu0 0.0
        %7731 = vmatpush.msra.mxu0 0.0
        %7732 = vmatpush.msra.mxu0 0.0
        %7733 = vmatpush.msra.mxu0 0.0
        %7734 = vmatpush.msra.mxu0 0.0
        %7735 = vmatpush.msra.mxu0 0.0
        %7736 = vmatpush.msra.mxu0 0.0
        %7737 = vmatpush.msra.mxu0 0.0
        %7738 = vmatpush.msra.mxu0 %v7700
        %7739 = vmatmul.f32.gmra.mxu0 %v7697
        %v7740 = vpop.f32.mrf.mxu0
        %v7741 = vadd.f32 %v1522, %v7740
        %7742 = vdwg.mxu0
        %7743 = vmatpush.msra.mxu0 0.0
        %7744 = vmatpush.msra.mxu0 0.0
        %7745 = vmatpush.msra.mxu0 0.0
        %7746 = vmatpush.msra.mxu0 0.0
        %7747 = vmatpush.msra.mxu0 0.0
        %7748 = vmatpush.msra.mxu0 0.0
        %7749 = vmatpush.msra.mxu0 0.0
        %7750 = vmatpush.msra.mxu0 0.0
        %7751 = vmatpush.msra.mxu0 0.0
        %7752 = vmatpush.msra.mxu0 0.0
        %7753 = vmatpush.msra.mxu0 0.0
        %7754 = vmatpush.msra.mxu0 0.0
        %7755 = vmatpush.msra.mxu0 0.0
        %7756 = vmatpush.msra.mxu0 0.0
        %7757 = vmatpush.msra.mxu0 0.0
        %7758 = vmatpush.msra.mxu0 %v7703
        %7759 = vmatmul.f32.gmra.mxu0 %v7697
        %v7760 = vpop.f32.mrf.mxu0
        %v7761 = vadd.f32 %v1525, %v7760
        %7762 = vdwg.mxu0
        %7763 = vmatpush.msra.mxu0 0.0
        %7764 = vmatpush.msra.mxu0 0.0
        %7765 = vmatpush.msra.mxu0 0.0
        %7766 = vmatpush.msra.mxu0 0.0
        %7767 = vmatpush.msra.mxu0 0.0
        %7768 = vmatpush.msra.mxu0 0.0
        %7769 = vmatpush.msra.mxu0 0.0
        %7770 = vmatpush.msra.mxu0 0.0
        %7771 = vmatpush.msra.mxu0 0.0
        %7772 = vmatpush.msra.mxu0 0.0
        %7773 = vmatpush.msra.mxu0 0.0
        %7774 = vmatpush.msra.mxu0 0.0
        %7775 = vmatpush.msra.mxu0 0.0
        %7776 = vmatpush.msra.mxu0 0.0
        %7777 = vmatpush.msra.mxu0 0.0
        %7778 = vmatpush.msra.mxu0 %v7706
        %7779 = vmatmul.f32.gmra.mxu0 %v7697
        %v7780 = vpop.f32.mrf.mxu0
        %v7781 = vadd.f32 %v1522, %v7780
        %7782 = vdwg.mxu0
        %7783 = vmatpush.msra.mxu0 0.0
        %7784 = vmatpush.msra.mxu0 0.0
        %7785 = vmatpush.msra.mxu0 0.0
        %7786 = vmatpush.msra.mxu0 0.0
        %7787 = vmatpush.msra.mxu0 0.0
        %7788 = vmatpush.msra.mxu0 0.0
        %7789 = vmatpush.msra.mxu0 0.0
        %7790 = vmatpush.msra.mxu0 0.0
        %7791 = vmatpush.msra.mxu0 0.0
        %7792 = vmatpush.msra.mxu0 0.0
        %7793 = vmatpush.msra.mxu0 0.0
        %7794 = vmatpush.msra.mxu0 0.0
        %7795 = vmatpush.msra.mxu0 0.0
        %7796 = vmatpush.msra.mxu0 0.0
        %7797 = vmatpush.msra.mxu0 0.0
        %7798 = vmatpush.msra.mxu0 %v7709
        %7799 = vmatmul.f32.gmra.mxu0 %v7697
        %v7800 = vpop.f32.mrf.mxu0
        %v7801 = vadd.f32 %v1525, %v7800
        %7802 = vdwg.mxu0
        %7803 = vmatpush.msra.mxu0 0.0
        %7804 = vmatpush.msra.mxu0 0.0
        %7805 = vmatpush.msra.mxu0 0.0
        %7806 = vmatpush.msra.mxu0 0.0
        %7807 = vmatpush.msra.mxu0 0.0
        %7808 = vmatpush.msra.mxu0 0.0
        %7809 = vmatpush.msra.mxu0 0.0
        %7810 = vmatpush.msra.mxu0 0.0
        %7811 = vmatpush.msra.mxu0 0.0
        %7812 = vmatpush.msra.mxu0 0.0
        %7813 = vmatpush.msra.mxu0 0.0
        %7814 = vmatpush.msra.mxu0 0.0
        %7815 = vmatpush.msra.mxu0 0.0
        %7816 = vmatpush.msra.mxu0 0.0
        %7817 = vmatpush.msra.mxu0 0.0
        %7818 = vmatpush.msra.mxu0 %v7712
        %7819 = vmatmul.f32.gmra.mxu0 %v7697
        %v7820 = vpop.f32.mrf.mxu0
        %v7821 = vadd.f32 %v1522, %v7820
        %7822 = vdwg.mxu0
        %7823 = vmatpush.msra.mxu0 0.0
        %7824 = vmatpush.msra.mxu0 0.0
        %7825 = vmatpush.msra.mxu0 0.0
        %7826 = vmatpush.msra.mxu0 0.0
        %7827 = vmatpush.msra.mxu0 0.0
        %7828 = vmatpush.msra.mxu0 0.0
        %7829 = vmatpush.msra.mxu0 0.0
        %7830 = vmatpush.msra.mxu0 0.0
        %7831 = vmatpush.msra.mxu0 0.0
        %7832 = vmatpush.msra.mxu0 0.0
        %7833 = vmatpush.msra.mxu0 0.0
        %7834 = vmatpush.msra.mxu0 0.0
        %7835 = vmatpush.msra.mxu0 0.0
        %7836 = vmatpush.msra.mxu0 0.0
        %7837 = vmatpush.msra.mxu0 0.0
        %7838 = vmatpush.msra.mxu0 %v7715
        %7839 = vmatmul.f32.gmra.mxu0 %v7697
        %v7840 = vpop.f32.mrf.mxu0
        %v7841 = vadd.f32 %v1525, %v7840
        %7842 = vdwg.mxu0
        %7843 = vmatpush.msra.mxu0 0.0
        %7844 = vmatpush.msra.mxu0 0.0
        %7845 = vmatpush.msra.mxu0 0.0
        %7846 = vmatpush.msra.mxu0 0.0
        %7847 = vmatpush.msra.mxu0 0.0
        %7848 = vmatpush.msra.mxu0 0.0
        %7849 = vmatpush.msra.mxu0 0.0
        %7850 = vmatpush.msra.mxu0 0.0
        %7851 = vmatpush.msra.mxu0 0.0
        %7852 = vmatpush.msra.mxu0 0.0
        %7853 = vmatpush.msra.mxu0 0.0
        %7854 = vmatpush.msra.mxu0 0.0
        %7855 = vmatpush.msra.mxu0 0.0
        %7856 = vmatpush.msra.mxu0 0.0
        %7857 = vmatpush.msra.mxu0 0.0
        %7858 = vmatpush.msra.mxu0 %v7718
        %7859 = vmatmul.f32.gmra.mxu0 %v7697
        %v7860 = vpop.f32.mrf.mxu0
        %v7861 = vadd.f32 %v1522, %v7860
        %7862 = vdwg.mxu0
        %7863 = vmatpush.msra.mxu0 0.0
        %7864 = vmatpush.msra.mxu0 0.0
        %7865 = vmatpush.msra.mxu0 0.0
        %7866 = vmatpush.msra.mxu0 0.0
        %7867 = vmatpush.msra.mxu0 0.0
        %7868 = vmatpush.msra.mxu0 0.0
        %7869 = vmatpush.msra.mxu0 0.0
        %7870 = vmatpush.msra.mxu0 0.0
        %7871 = vmatpush.msra.mxu0 0.0
        %7872 = vmatpush.msra.mxu0 0.0
        %7873 = vmatpush.msra.mxu0 0.0
        %7874 = vmatpush.msra.mxu0 0.0
        %7875 = vmatpush.msra.mxu0 0.0
        %7876 = vmatpush.msra.mxu0 0.0
        %7877 = vmatpush.msra.mxu0 0.0
        %7878 = vmatpush.msra.mxu0 %v7721
        %7879 = vmatmul.f32.gmra.mxu0 %v7697
        %v7880 = vpop.f32.mrf.mxu0
        %v7881 = vadd.f32 %v1525, %v7880
        %7882 = vdwg.mxu0
        %7884 = vrot.lane.b32.xlu0 %v7741, 96
        %v7885 = vpop.permute.xlu0 %7884
        %7887 = vrot.lane.b32.xlu0 %v7741, 64
        %v7888 = vpop.permute.xlu0 %7887
        %7890 = vrot.lane.b32.xlu0 %v7741, 32
        %v7891 = vpop.permute.xlu0 %7890
        %7894 = vrot.lane.b32.xlu0 %v7761, 96
        %v7895 = vpop.permute.xlu0 %7894
        %7897 = vrot.lane.b32.xlu0 %v7761, 64
        %v7898 = vpop.permute.xlu0 %7897
        %7900 = vrot.lane.b32.xlu0 %v7761, 32
        %v7901 = vpop.permute.xlu0 %7900
        %7904 = vrot.lane.b32.xlu0 %v7781, 96
        %v7905 = vpop.permute.xlu0 %7904
        %7907 = vrot.lane.b32.xlu0 %v7781, 64
        %v7908 = vpop.permute.xlu0 %7907
        %7910 = vrot.lane.b32.xlu0 %v7781, 32
        %v7911 = vpop.permute.xlu0 %7910
        %7914 = vrot.lane.b32.xlu0 %v7801, 96
        %v7915 = vpop.permute.xlu0 %7914
        %7917 = vrot.lane.b32.xlu0 %v7801, 64
        %v7918 = vpop.permute.xlu0 %7917
        %7920 = vrot.lane.b32.xlu0 %v7801, 32
        %v7921 = vpop.permute.xlu0 %7920
        %7924 = vrot.lane.b32.xlu0 %v7821, 96
        %v7925 = vpop.permute.xlu0 %7924
        %7927 = vrot.lane.b32.xlu0 %v7821, 64
        %v7928 = vpop.permute.xlu0 %7927
        %7930 = vrot.lane.b32.xlu0 %v7821, 32
        %v7931 = vpop.permute.xlu0 %7930
        %7934 = vrot.lane.b32.xlu0 %v7841, 96
        %v7935 = vpop.permute.xlu0 %7934
        %7937 = vrot.lane.b32.xlu0 %v7841, 64
        %v7938 = vpop.permute.xlu0 %7937
        %7940 = vrot.lane.b32.xlu0 %v7841, 32
        %v7941 = vpop.permute.xlu0 %7940
        %7944 = vrot.lane.b32.xlu0 %v7861, 96
        %v7945 = vpop.permute.xlu0 %7944
        %7947 = vrot.lane.b32.xlu0 %v7861, 64
        %v7948 = vpop.permute.xlu0 %7947
        %7950 = vrot.lane.b32.xlu0 %v7861, 32
        %v7951 = vpop.permute.xlu0 %7950
        %7954 = vrot.lane.b32.xlu0 %v7881, 96
        %v7955 = vpop.permute.xlu0 %7954
        %7957 = vrot.lane.b32.xlu0 %v7881, 64
        %v7958 = vpop.permute.xlu0 %7957
        %7960 = vrot.lane.b32.xlu0 %v7881, 32
        %v7961 = vpop.permute.xlu0 %7960
        %v7963 = vrot.slane %v7888, 4
        %v7964 = vsel %vm1105, %v7963, %v7741
        %v7965 = vrot.slane %v7741, 4
        %v7966 = vsel %vm1105, %v7888, %v7965
        %v7968 = vunpack.c.l.s4 1983009808
        %v7969 = vunpack.c.0.s8 %v7968
        %v7970 = vperm.slane %v7964, %v7969
        %v7972 = vunpack.c.l.s4 1983009808
        %v7973 = vunpack.c.0.s8 %v7972
        %v7974 = vperm.slane %v7966, %v7973
        %v7975 = vrot.slane %v7891, 4
        %v7976 = vsel %vm1105, %v7975, %v7885
        %v7977 = vrot.slane %v7885, 4
        %v7978 = vsel %vm1105, %v7891, %v7977
        %v7980 = vunpack.c.l.s4 1983009808
        %v7981 = vunpack.c.0.s8 %v7980
        %v7982 = vperm.slane %v7976, %v7981
        %v7984 = vunpack.c.l.s4 1983009808
        %v7985 = vunpack.c.0.s8 %v7984
        %v7986 = vperm.slane %v7978, %v7985
        %v7987 = vrot.slane %v7898, 4
        %v7988 = vsel %vm1105, %v7987, %v7761
        %v7989 = vrot.slane %v7761, 4
        %v7990 = vsel %vm1105, %v7898, %v7989
        %v7992 = vunpack.c.l.s4 1983009808
        %v7993 = vunpack.c.0.s8 %v7992
        %v7994 = vperm.slane %v7988, %v7993
        %v7996 = vunpack.c.l.s4 1983009808
        %v7997 = vunpack.c.0.s8 %v7996
        %v7998 = vperm.slane %v7990, %v7997
        %v7999 = vrot.slane %v7901, 4
        %v8000 = vsel %vm1105, %v7999, %v7895
        %v8001 = vrot.slane %v7895, 4
        %v8002 = vsel %vm1105, %v7901, %v8001
        %v8004 = vunpack.c.l.s4 1983009808
        %v8005 = vunpack.c.0.s8 %v8004
        %v8006 = vperm.slane %v8000, %v8005
        %v8008 = vunpack.c.l.s4 1983009808
        %v8009 = vunpack.c.0.s8 %v8008
        %v8010 = vperm.slane %v8002, %v8009
        %v8011 = vrot.slane %v7982, 4
        %v8012 = vsel %vm1105, %v8011, %v7970
        %v8013 = vrot.slane %v7970, 4
        %v8014 = vsel %vm1105, %v7982, %v8013
        %v8016 = vunpack.c.l.s4 1934713408
        %v8017 = vunpack.c.0.s8 %v8016
        %v8018 = vperm.slane %v8012, %v8017
        %v8020 = vunpack.c.l.s4 1934713408
        %v8021 = vunpack.c.0.s8 %v8020
        %v8022 = vperm.slane %v8014, %v8021
        %v8023 = vrot.slane %v7986, 4
        %v8024 = vsel %vm1105, %v8023, %v7974
        %v8025 = vrot.slane %v7974, 4
        %v8026 = vsel %vm1105, %v7986, %v8025
        %v8028 = vunpack.c.l.s4 1934713408
        %v8029 = vunpack.c.0.s8 %v8028
        %v8030 = vperm.slane %v8024, %v8029
        %v8032 = vunpack.c.l.s4 1934713408
        %v8033 = vunpack.c.0.s8 %v8032
        %v8034 = vperm.slane %v8026, %v8033
        %v8035 = vrot.slane %v8006, 4
        %v8036 = vsel %vm1105, %v8035, %v7994
        %v8037 = vrot.slane %v7994, 4
        %v8038 = vsel %vm1105, %v8006, %v8037
        %v8040 = vunpack.c.l.s4 1934713408
        %v8041 = vunpack.c.0.s8 %v8040
        %v8042 = vperm.slane %v8036, %v8041
        %v8044 = vunpack.c.l.s4 1934713408
        %v8045 = vunpack.c.0.s8 %v8044
        %v8046 = vperm.slane %v8038, %v8045
        %v8047 = vrot.slane %v8010, 4
        %v8048 = vsel %vm1105, %v8047, %v7998
        %v8049 = vrot.slane %v7998, 4
        %v8050 = vsel %vm1105, %v8010, %v8049
        %v8052 = vunpack.c.l.s4 1934713408
        %v8053 = vunpack.c.0.s8 %v8052
        %v8054 = vperm.slane %v8048, %v8053
        %v8056 = vunpack.c.l.s4 1934713408
        %v8057 = vunpack.c.0.s8 %v8056
        %v8058 = vperm.slane %v8050, %v8057
        %v8059 = vrot.slane %v8042, 4
        %v8060 = vsel %vm1105, %v8059, %v8018
        %v8061 = vrot.slane %v8018, 4
        %v8062 = vsel %vm1105, %v8042, %v8061
        %v8063 = vrot.slane %v8046, 4
        %v8064 = vsel %vm1105, %v8063, %v8022
        %v8065 = vrot.slane %v8022, 4
        %v8066 = vsel %vm1105, %v8046, %v8065
        %v8067 = vrot.slane %v8054, 4
        %v8068 = vsel %vm1105, %v8067, %v8030
        %v8069 = vrot.slane %v8030, 4
        %v8070 = vsel %vm1105, %v8054, %v8069
        %v8071 = vrot.slane %v8058, 4
        %v8072 = vsel %vm1105, %v8071, %v8034
        %v8073 = vrot.slane %v8034, 4
        %v8074 = vsel %vm1105, %v8058, %v8073
        %v8075 = vrot.slane %v7908, 4
        %v8076 = vsel %vm1105, %v8075, %v7781
        %v8077 = vrot.slane %v7781, 4
        %v8078 = vsel %vm1105, %v7908, %v8077
        %v8080 = vunpack.c.l.s4 1983009808
        %v8081 = vunpack.c.0.s8 %v8080
        %v8082 = vperm.slane %v8076, %v8081
        %v8084 = vunpack.c.l.s4 1983009808
        %v8085 = vunpack.c.0.s8 %v8084
        %v8086 = vperm.slane %v8078, %v8085
        %v8087 = vrot.slane %v7911, 4
        %v8088 = vsel %vm1105, %v8087, %v7905
        %v8089 = vrot.slane %v7905, 4
        %v8090 = vsel %vm1105, %v7911, %v8089
        %v8092 = vunpack.c.l.s4 1983009808
        %v8093 = vunpack.c.0.s8 %v8092
        %v8094 = vperm.slane %v8088, %v8093
        %v8096 = vunpack.c.l.s4 1983009808
        %v8097 = vunpack.c.0.s8 %v8096
        %v8098 = vperm.slane %v8090, %v8097
        %v8099 = vrot.slane %v7918, 4
        %v8100 = vsel %vm1105, %v8099, %v7801
        %v8101 = vrot.slane %v7801, 4
        %v8102 = vsel %vm1105, %v7918, %v8101
        %v8104 = vunpack.c.l.s4 1983009808
        %v8105 = vunpack.c.0.s8 %v8104
        %v8106 = vperm.slane %v8100, %v8105
        %v8108 = vunpack.c.l.s4 1983009808
        %v8109 = vunpack.c.0.s8 %v8108
        %v8110 = vperm.slane %v8102, %v8109
        %v8111 = vrot.slane %v7921, 4
        %v8112 = vsel %vm1105, %v8111, %v7915
        %v8113 = vrot.slane %v7915, 4
        %v8114 = vsel %vm1105, %v7921, %v8113
        %v8116 = vunpack.c.l.s4 1983009808
        %v8117 = vunpack.c.0.s8 %v8116
        %v8118 = vperm.slane %v8112, %v8117
        %v8120 = vunpack.c.l.s4 1983009808
        %v8121 = vunpack.c.0.s8 %v8120
        %v8122 = vperm.slane %v8114, %v8121
        %v8123 = vrot.slane %v8094, 4
        %v8124 = vsel %vm1105, %v8123, %v8082
        %v8125 = vrot.slane %v8082, 4
        %v8126 = vsel %vm1105, %v8094, %v8125
        %v8128 = vunpack.c.l.s4 1934713408
        %v8129 = vunpack.c.0.s8 %v8128
        %v8130 = vperm.slane %v8124, %v8129
        %v8132 = vunpack.c.l.s4 1934713408
        %v8133 = vunpack.c.0.s8 %v8132
        %v8134 = vperm.slane %v8126, %v8133
        %v8135 = vrot.slane %v8098, 4
        %v8136 = vsel %vm1105, %v8135, %v8086
        %v8137 = vrot.slane %v8086, 4
        %v8138 = vsel %vm1105, %v8098, %v8137
        %v8140 = vunpack.c.l.s4 1934713408
        %v8141 = vunpack.c.0.s8 %v8140
        %v8142 = vperm.slane %v8136, %v8141
        %v8144 = vunpack.c.l.s4 1934713408
        %v8145 = vunpack.c.0.s8 %v8144
        %v8146 = vperm.slane %v8138, %v8145
        %v8147 = vrot.slane %v8118, 4
        %v8148 = vsel %vm1105, %v8147, %v8106
        %v8149 = vrot.slane %v8106, 4
        %v8150 = vsel %vm1105, %v8118, %v8149
        %v8152 = vunpack.c.l.s4 1934713408
        %v8153 = vunpack.c.0.s8 %v8152
        %v8154 = vperm.slane %v8148, %v8153
        %v8156 = vunpack.c.l.s4 1934713408
        %v8157 = vunpack.c.0.s8 %v8156
        %v8158 = vperm.slane %v8150, %v8157
        %v8159 = vrot.slane %v8122, 4
        %v8160 = vsel %vm1105, %v8159, %v8110
        %v8161 = vrot.slane %v8110, 4
        %v8162 = vsel %vm1105, %v8122, %v8161
        %v8164 = vunpack.c.l.s4 1934713408
        %v8165 = vunpack.c.0.s8 %v8164
        %v8166 = vperm.slane %v8160, %v8165
        %v8168 = vunpack.c.l.s4 1934713408
        %v8169 = vunpack.c.0.s8 %v8168
        %v8170 = vperm.slane %v8162, %v8169
        %v8171 = vrot.slane %v8154, 4
        %v8172 = vsel %vm1105, %v8171, %v8130
        %v8173 = vrot.slane %v8130, 4
        %v8174 = vsel %vm1105, %v8154, %v8173
        %v8175 = vrot.slane %v8158, 4
        %v8176 = vsel %vm1105, %v8175, %v8134
        %v8177 = vrot.slane %v8134, 4
        %v8178 = vsel %vm1105, %v8158, %v8177
        %v8179 = vrot.slane %v8166, 4
        %v8180 = vsel %vm1105, %v8179, %v8142
        %v8181 = vrot.slane %v8142, 4
        %v8182 = vsel %vm1105, %v8166, %v8181
        %v8183 = vrot.slane %v8170, 4
        %v8184 = vsel %vm1105, %v8183, %v8146
        %v8185 = vrot.slane %v8146, 4
        %v8186 = vsel %vm1105, %v8170, %v8185
        %v8187 = vrot.slane %v7928, 4
        %v8188 = vsel %vm1105, %v8187, %v7821
        %v8189 = vrot.slane %v7821, 4
        %v8190 = vsel %vm1105, %v7928, %v8189
        %v8192 = vunpack.c.l.s4 1983009808
        %v8193 = vunpack.c.0.s8 %v8192
        %v8194 = vperm.slane %v8188, %v8193
        %v8196 = vunpack.c.l.s4 1983009808
        %v8197 = vunpack.c.0.s8 %v8196
        %v8198 = vperm.slane %v8190, %v8197
        %v8199 = vrot.slane %v7931, 4
        %v8200 = vsel %vm1105, %v8199, %v7925
        %v8201 = vrot.slane %v7925, 4
        %v8202 = vsel %vm1105, %v7931, %v8201
        %v8204 = vunpack.c.l.s4 1983009808
        %v8205 = vunpack.c.0.s8 %v8204
        %v8206 = vperm.slane %v8200, %v8205
        %v8208 = vunpack.c.l.s4 1983009808
        %v8209 = vunpack.c.0.s8 %v8208
        %v8210 = vperm.slane %v8202, %v8209
        %v8211 = vrot.slane %v7938, 4
        %v8212 = vsel %vm1105, %v8211, %v7841
        %v8213 = vrot.slane %v7841, 4
        %v8214 = vsel %vm1105, %v7938, %v8213
        %v8216 = vunpack.c.l.s4 1983009808
        %v8217 = vunpack.c.0.s8 %v8216
        %v8218 = vperm.slane %v8212, %v8217
        %v8220 = vunpack.c.l.s4 1983009808
        %v8221 = vunpack.c.0.s8 %v8220
        %v8222 = vperm.slane %v8214, %v8221
        %v8223 = vrot.slane %v7941, 4
        %v8224 = vsel %vm1105, %v8223, %v7935
        %v8225 = vrot.slane %v7935, 4
        %v8226 = vsel %vm1105, %v7941, %v8225
        %v8228 = vunpack.c.l.s4 1983009808
        %v8229 = vunpack.c.0.s8 %v8228
        %v8230 = vperm.slane %v8224, %v8229
        %v8232 = vunpack.c.l.s4 1983009808
        %v8233 = vunpack.c.0.s8 %v8232
        %v8234 = vperm.slane %v8226, %v8233
        %v8235 = vrot.slane %v8206, 4
        %v8236 = vsel %vm1105, %v8235, %v8194
        %v8237 = vrot.slane %v8194, 4
        %v8238 = vsel %vm1105, %v8206, %v8237
        %v8240 = vunpack.c.l.s4 1934713408
        %v8241 = vunpack.c.0.s8 %v8240
        %v8242 = vperm.slane %v8236, %v8241
        %v8244 = vunpack.c.l.s4 1934713408
        %v8245 = vunpack.c.0.s8 %v8244
        %v8246 = vperm.slane %v8238, %v8245
        %v8247 = vrot.slane %v8210, 4
        %v8248 = vsel %vm1105, %v8247, %v8198
        %v8249 = vrot.slane %v8198, 4
        %v8250 = vsel %vm1105, %v8210, %v8249
        %v8252 = vunpack.c.l.s4 1934713408
        %v8253 = vunpack.c.0.s8 %v8252
        %v8254 = vperm.slane %v8248, %v8253
        %v8256 = vunpack.c.l.s4 1934713408
        %v8257 = vunpack.c.0.s8 %v8256
        %v8258 = vperm.slane %v8250, %v8257
        %v8259 = vrot.slane %v8230, 4
        %v8260 = vsel %vm1105, %v8259, %v8218
        %v8261 = vrot.slane %v8218, 4
        %v8262 = vsel %vm1105, %v8230, %v8261
        %v8264 = vunpack.c.l.s4 1934713408
        %v8265 = vunpack.c.0.s8 %v8264
        %v8266 = vperm.slane %v8260, %v8265
        %v8268 = vunpack.c.l.s4 1934713408
        %v8269 = vunpack.c.0.s8 %v8268
        %v8270 = vperm.slane %v8262, %v8269
        %v8271 = vrot.slane %v8234, 4
        %v8272 = vsel %vm1105, %v8271, %v8222
        %v8273 = vrot.slane %v8222, 4
        %v8274 = vsel %vm1105, %v8234, %v8273
        %v8276 = vunpack.c.l.s4 1934713408
        %v8277 = vunpack.c.0.s8 %v8276
        %v8278 = vperm.slane %v8272, %v8277
        %v8280 = vunpack.c.l.s4 1934713408
        %v8281 = vunpack.c.0.s8 %v8280
        %v8282 = vperm.slane %v8274, %v8281
        %v8283 = vrot.slane %v8266, 4
        %v8284 = vsel %vm1105, %v8283, %v8242
        %v8285 = vrot.slane %v8242, 4
        %v8286 = vsel %vm1105, %v8266, %v8285
        %v8287 = vrot.slane %v8270, 4
        %v8288 = vsel %vm1105, %v8287, %v8246
        %v8289 = vrot.slane %v8246, 4
        %v8290 = vsel %vm1105, %v8270, %v8289
        %v8291 = vrot.slane %v8278, 4
        %v8292 = vsel %vm1105, %v8291, %v8254
        %v8293 = vrot.slane %v8254, 4
        %v8294 = vsel %vm1105, %v8278, %v8293
        %v8295 = vrot.slane %v8282, 4
        %v8296 = vsel %vm1105, %v8295, %v8258
        %v8297 = vrot.slane %v8258, 4
        %v8298 = vsel %vm1105, %v8282, %v8297
        %v8299 = vrot.slane %v7948, 4
        %v8300 = vsel %vm1105, %v8299, %v7861
        %v8301 = vrot.slane %v7861, 4
        %v8302 = vsel %vm1105, %v7948, %v8301
        %v8304 = vunpack.c.l.s4 1983009808
        %v8305 = vunpack.c.0.s8 %v8304
        %v8306 = vperm.slane %v8300, %v8305
        %v8308 = vunpack.c.l.s4 1983009808
        %v8309 = vunpack.c.0.s8 %v8308
        %v8310 = vperm.slane %v8302, %v8309
        %v8311 = vrot.slane %v7951, 4
        %v8312 = vsel %vm1105, %v8311, %v7945
        %v8313 = vrot.slane %v7945, 4
        %v8314 = vsel %vm1105, %v7951, %v8313
        %v8316 = vunpack.c.l.s4 1983009808
        %v8317 = vunpack.c.0.s8 %v8316
        %v8318 = vperm.slane %v8312, %v8317
        %v8320 = vunpack.c.l.s4 1983009808
        %v8321 = vunpack.c.0.s8 %v8320
        %v8322 = vperm.slane %v8314, %v8321
        %v8323 = vrot.slane %v7958, 4
        %v8324 = vsel %vm1105, %v8323, %v7881
        %v8325 = vrot.slane %v7881, 4
        %v8326 = vsel %vm1105, %v7958, %v8325
        %v8328 = vunpack.c.l.s4 1983009808
        %v8329 = vunpack.c.0.s8 %v8328
        %v8330 = vperm.slane %v8324, %v8329
        %v8332 = vunpack.c.l.s4 1983009808
        %v8333 = vunpack.c.0.s8 %v8332
        %v8334 = vperm.slane %v8326, %v8333
        %v8335 = vrot.slane %v7961, 4
        %v8336 = vsel %vm1105, %v8335, %v7955
        %v8337 = vrot.slane %v7955, 4
        %v8338 = vsel %vm1105, %v7961, %v8337
        %v8340 = vunpack.c.l.s4 1983009808
        %v8341 = vunpack.c.0.s8 %v8340
        %v8342 = vperm.slane %v8336, %v8341
        %v8344 = vunpack.c.l.s4 1983009808
        %v8345 = vunpack.c.0.s8 %v8344
        %v8346 = vperm.slane %v8338, %v8345
        %v8347 = vrot.slane %v8318, 4
        %v8348 = vsel %vm1105, %v8347, %v8306
        %v8349 = vrot.slane %v8306, 4
        %v8350 = vsel %vm1105, %v8318, %v8349
        %v8352 = vunpack.c.l.s4 1934713408
        %v8353 = vunpack.c.0.s8 %v8352
        %v8354 = vperm.slane %v8348, %v8353
        %v8356 = vunpack.c.l.s4 1934713408
        %v8357 = vunpack.c.0.s8 %v8356
        %v8358 = vperm.slane %v8350, %v8357
        %v8359 = vrot.slane %v8322, 4
        %v8360 = vsel %vm1105, %v8359, %v8310
        %v8361 = vrot.slane %v8310, 4
        %v8362 = vsel %vm1105, %v8322, %v8361
        %v8364 = vunpack.c.l.s4 1934713408
        %v8365 = vunpack.c.0.s8 %v8364
        %v8366 = vperm.slane %v8360, %v8365
        %v8368 = vunpack.c.l.s4 1934713408
        %v8369 = vunpack.c.0.s8 %v8368
        %v8370 = vperm.slane %v8362, %v8369
        %v8371 = vrot.slane %v8342, 4
        %v8372 = vsel %vm1105, %v8371, %v8330
        %v8373 = vrot.slane %v8330, 4
        %v8374 = vsel %vm1105, %v8342, %v8373
        %v8376 = vunpack.c.l.s4 1934713408
        %v8377 = vunpack.c.0.s8 %v8376
        %v8378 = vperm.slane %v8372, %v8377
        %v8380 = vunpack.c.l.s4 1934713408
        %v8381 = vunpack.c.0.s8 %v8380
        %v8382 = vperm.slane %v8374, %v8381
        %v8383 = vrot.slane %v8346, 4
        %v8384 = vsel %vm1105, %v8383, %v8334
        %v8385 = vrot.slane %v8334, 4
        %v8386 = vsel %vm1105, %v8346, %v8385
        %v8388 = vunpack.c.l.s4 1934713408
        %v8389 = vunpack.c.0.s8 %v8388
        %v8390 = vperm.slane %v8384, %v8389
        %v8392 = vunpack.c.l.s4 1934713408
        %v8393 = vunpack.c.0.s8 %v8392
        %v8394 = vperm.slane %v8386, %v8393
        %v8395 = vrot.slane %v8378, 4
        %v8396 = vsel %vm1105, %v8395, %v8354
        %v8397 = vrot.slane %v8354, 4
        %v8398 = vsel %vm1105, %v8378, %v8397
        %v8399 = vrot.slane %v8382, 4
        %v8400 = vsel %vm1105, %v8399, %v8358
        %v8401 = vrot.slane %v8358, 4
        %v8402 = vsel %vm1105, %v8382, %v8401
        %v8403 = vrot.slane %v8390, 4
        %v8404 = vsel %vm1105, %v8403, %v8366
        %v8405 = vrot.slane %v8366, 4
        %v8406 = vsel %vm1105, %v8390, %v8405
        %v8407 = vrot.slane %v8394, 4
        %v8408 = vsel %vm1105, %v8407, %v8370
        %v8409 = vrot.slane %v8370, 4
        %v8410 = vsel %vm1105, %v8394, %v8409
        %v8411 = vadd.f32 %v7270, %v8060
        %v8412 = vadd.f32 %v7271, %v8172
        %v8413 = vadd.f32 %v7272, %v8284
        %v8414 = vadd.f32 %v7273, %v8396
        %v8415 = vadd.f32 %v7274, %v8062
        %v8416 = vadd.f32 %v7275, %v8174
        %v8417 = vadd.f32 %v7276, %v8286
        %v8418 = vadd.f32 %v7277, %v8398
        %v8419 = vadd.f32 %v7278, %v8064
        %v8420 = vadd.f32 %v7279, %v8176
        %v8421 = vadd.f32 %v7280, %v8288
        %v8422 = vadd.f32 %v7281, %v8400
        %v8423 = vadd.f32 %v7282, %v8066
        %v8424 = vadd.f32 %v7283, %v8178
        %v8425 = vadd.f32 %v7284, %v8290
        %v8426 = vadd.f32 %v7285, %v8402
        %v8427 = vadd.f32 %v7286, %v8068
        %v8428 = vadd.f32 %v7287, %v8180
        %v8429 = vadd.f32 %v7288, %v8292
        %v8430 = vadd.f32 %v7289, %v8404
        %v8431 = vadd.f32 %v7290, %v8070
        %v8432 = vadd.f32 %v7291, %v8182
        %v8433 = vadd.f32 %v7292, %v8294
        %v8434 = vadd.f32 %v7293, %v8406
        %v8435 = vadd.f32 %v7294, %v8072
        %v8436 = vadd.f32 %v7295, %v8184
        %v8437 = vadd.f32 %v7296, %v8296
        %v8438 = vadd.f32 %v7297, %v8408
        %v8439 = vadd.f32 %v7298, %v8074
        %v8440 = vadd.f32 %v7299, %v8186
        %v8441 = vadd.f32 %v7300, %v8298
        %v8442 = vadd.f32 %v7301, %v8410
        %s8443 = scalar_lea.vmem %s3, 48
        %v8444 = vld [vmem:[%s8443] sm:$0xff]
        %vm8445 = vcmask 1045504
        %v8446 = vrot.slane %v925, 2
        %v8447 = vrot.slane %v926, 2
        %v8448 = vsel %vm8445, %v8446, %v8447
        %v8449 = vrot.slane %v927, 2
        %v8450 = vsel %vm8445, %v8447, %v8449
        %v8451 = vrot.slane %v928, 2
        %v8452 = vsel %vm8445, %v8449, %v8451
        %v8453 = vrot.slane %v929, 2
        %v8454 = vsel %vm8445, %v8451, %v8453
        %v8455 = vrot.slane %v957, 2
        %v8456 = vrot.slane %v958, 2
        %v8457 = vsel %vm8445, %v8455, %v8456
        %v8458 = vrot.slane %v959, 2
        %v8459 = vsel %vm8445, %v8456, %v8458
        %v8460 = vrot.slane %v960, 2
        %v8461 = vsel %vm8445, %v8458, %v8460
        %v8462 = vrot.slane %v961, 2
        %v8463 = vsel %vm8445, %v8460, %v8462
        %v8464 = vrot.slane %v989, 2
        %v8465 = vrot.slane %v990, 2
        %v8466 = vsel %vm8445, %v8464, %v8465
        %v8467 = vrot.slane %v991, 2
        %v8468 = vsel %vm8445, %v8465, %v8467
        %v8469 = vrot.slane %v992, 2
        %v8470 = vsel %vm8445, %v8467, %v8469
        %v8471 = vrot.slane %v993, 2
        %v8472 = vsel %vm8445, %v8469, %v8471
        %v8473 = vrot.slane %v1021, 2
        %v8474 = vrot.slane %v1022, 2
        %v8475 = vsel %vm8445, %v8473, %v8474
        %v8476 = vrot.slane %v1023, 2
        %v8477 = vsel %vm8445, %v8474, %v8476
        %v8478 = vrot.slane %v1024, 2
        %v8479 = vsel %vm8445, %v8476, %v8478
        %v8480 = vrot.slane %v1025, 2
        %v8481 = vsel %vm8445, %v8478, %v8480
        %v8498 = vrot.slane %v8466, 4
        %v8499 = vsel %vm1105, %v8498, %v8448
        %v8500 = vrot.slane %v8448, 4
        %v8501 = vsel %vm1105, %v8466, %v8500
        %v8503 = vunpack.c.l.s4 1983009808
        %v8504 = vunpack.c.0.s8 %v8503
        %v8505 = vperm.slane %v8499, %v8504
        %v8507 = vunpack.c.l.s4 1983009808
        %v8508 = vunpack.c.0.s8 %v8507
        %v8509 = vperm.slane %v8501, %v8508
        %v8510 = vrot.slane %v8475, 4
        %v8511 = vsel %vm1105, %v8510, %v8457
        %v8512 = vrot.slane %v8457, 4
        %v8513 = vsel %vm1105, %v8475, %v8512
        %v8515 = vunpack.c.l.s4 1983009808
        %v8516 = vunpack.c.0.s8 %v8515
        %v8517 = vperm.slane %v8511, %v8516
        %v8519 = vunpack.c.l.s4 1983009808
        %v8520 = vunpack.c.0.s8 %v8519
        %v8521 = vperm.slane %v8513, %v8520
        %v8522 = vrot.slane %v8517, 4
        %v8523 = vsel %vm1105, %v8522, %v8505
        %v8524 = vrot.slane %v8505, 4
        %v8525 = vsel %vm1105, %v8517, %v8524
        %v8527 = vunpack.c.l.s4 1934713408
        %v8528 = vunpack.c.0.s8 %v8527
        %v8529 = vperm.slane %v8523, %v8528
        %v8531 = vunpack.c.l.s4 1934713408
        %v8532 = vunpack.c.0.s8 %v8531
        %v8533 = vperm.slane %v8525, %v8532
        %v8534 = vrot.slane %v8521, 4
        %v8535 = vsel %vm1105, %v8534, %v8509
        %v8536 = vrot.slane %v8509, 4
        %v8537 = vsel %vm1105, %v8521, %v8536
        %v8539 = vunpack.c.l.s4 1934713408
        %v8540 = vunpack.c.0.s8 %v8539
        %v8541 = vperm.slane %v8535, %v8540
        %v8543 = vunpack.c.l.s4 1934713408
        %v8544 = vunpack.c.0.s8 %v8543
        %v8545 = vperm.slane %v8537, %v8544
        %v8546 = vrot.slane %v8529, 4
        %v8547 = vsel %vm1105, 0.0, %v8546
        %v8548 = vrot.slane %v8533, 4
        %v8549 = vsel %vm1105, 0.0, %v8548
        %v8550 = vrot.slane %v8541, 4
        %v8551 = vsel %vm1105, 0.0, %v8550
        %v8552 = vrot.slane %v8545, 4
        %v8553 = vsel %vm1105, 0.0, %v8552
        %v8554 = vrot.slane %v8468, 4
        %v8555 = vsel %vm1105, %v8554, %v8450
        %v8556 = vrot.slane %v8450, 4
        %v8557 = vsel %vm1105, %v8468, %v8556
        %v8559 = vunpack.c.l.s4 1983009808
        %v8560 = vunpack.c.0.s8 %v8559
        %v8561 = vperm.slane %v8555, %v8560
        %v8563 = vunpack.c.l.s4 1983009808
        %v8564 = vunpack.c.0.s8 %v8563
        %v8565 = vperm.slane %v8557, %v8564
        %v8566 = vrot.slane %v8477, 4
        %v8567 = vsel %vm1105, %v8566, %v8459
        %v8568 = vrot.slane %v8459, 4
        %v8569 = vsel %vm1105, %v8477, %v8568
        %v8571 = vunpack.c.l.s4 1983009808
        %v8572 = vunpack.c.0.s8 %v8571
        %v8573 = vperm.slane %v8567, %v8572
        %v8575 = vunpack.c.l.s4 1983009808
        %v8576 = vunpack.c.0.s8 %v8575
        %v8577 = vperm.slane %v8569, %v8576
        %v8578 = vrot.slane %v8573, 4
        %v8579 = vsel %vm1105, %v8578, %v8561
        %v8580 = vrot.slane %v8561, 4
        %v8581 = vsel %vm1105, %v8573, %v8580
        %v8583 = vunpack.c.l.s4 1934713408
        %v8584 = vunpack.c.0.s8 %v8583
        %v8585 = vperm.slane %v8579, %v8584
        %v8587 = vunpack.c.l.s4 1934713408
        %v8588 = vunpack.c.0.s8 %v8587
        %v8589 = vperm.slane %v8581, %v8588
        %v8590 = vrot.slane %v8577, 4
        %v8591 = vsel %vm1105, %v8590, %v8565
        %v8592 = vrot.slane %v8565, 4
        %v8593 = vsel %vm1105, %v8577, %v8592
        %v8595 = vunpack.c.l.s4 1934713408
        %v8596 = vunpack.c.0.s8 %v8595
        %v8597 = vperm.slane %v8591, %v8596
        %v8599 = vunpack.c.l.s4 1934713408
        %v8600 = vunpack.c.0.s8 %v8599
        %v8601 = vperm.slane %v8593, %v8600
        %v8602 = vrot.slane %v8585, 4
        %v8603 = vsel %vm1105, 0.0, %v8602
        %v8604 = vrot.slane %v8589, 4
        %v8605 = vsel %vm1105, 0.0, %v8604
        %v8606 = vrot.slane %v8597, 4
        %v8607 = vsel %vm1105, 0.0, %v8606
        %v8608 = vrot.slane %v8601, 4
        %v8609 = vsel %vm1105, 0.0, %v8608
        %v8610 = vrot.slane %v8470, 4
        %v8611 = vsel %vm1105, %v8610, %v8452
        %v8612 = vrot.slane %v8452, 4
        %v8613 = vsel %vm1105, %v8470, %v8612
        %v8615 = vunpack.c.l.s4 1983009808
        %v8616 = vunpack.c.0.s8 %v8615
        %v8617 = vperm.slane %v8611, %v8616
        %v8619 = vunpack.c.l.s4 1983009808
        %v8620 = vunpack.c.0.s8 %v8619
        %v8621 = vperm.slane %v8613, %v8620
        %v8622 = vrot.slane %v8479, 4
        %v8623 = vsel %vm1105, %v8622, %v8461
        %v8624 = vrot.slane %v8461, 4
        %v8625 = vsel %vm1105, %v8479, %v8624
        %v8627 = vunpack.c.l.s4 1983009808
        %v8628 = vunpack.c.0.s8 %v8627
        %v8629 = vperm.slane %v8623, %v8628
        %v8631 = vunpack.c.l.s4 1983009808
        %v8632 = vunpack.c.0.s8 %v8631
        %v8633 = vperm.slane %v8625, %v8632
        %v8634 = vrot.slane %v8629, 4
        %v8635 = vsel %vm1105, %v8634, %v8617
        %v8636 = vrot.slane %v8617, 4
        %v8637 = vsel %vm1105, %v8629, %v8636
        %v8639 = vunpack.c.l.s4 1934713408
        %v8640 = vunpack.c.0.s8 %v8639
        %v8641 = vperm.slane %v8635, %v8640
        %v8643 = vunpack.c.l.s4 1934713408
        %v8644 = vunpack.c.0.s8 %v8643
        %v8645 = vperm.slane %v8637, %v8644
        %v8646 = vrot.slane %v8633, 4
        %v8647 = vsel %vm1105, %v8646, %v8621
        %v8648 = vrot.slane %v8621, 4
        %v8649 = vsel %vm1105, %v8633, %v8648
        %v8651 = vunpack.c.l.s4 1934713408
        %v8652 = vunpack.c.0.s8 %v8651
        %v8653 = vperm.slane %v8647, %v8652
        %v8655 = vunpack.c.l.s4 1934713408
        %v8656 = vunpack.c.0.s8 %v8655
        %v8657 = vperm.slane %v8649, %v8656
        %v8658 = vrot.slane %v8641, 4
        %v8659 = vsel %vm1105, 0.0, %v8658
        %v8660 = vrot.slane %v8645, 4
        %v8661 = vsel %vm1105, 0.0, %v8660
        %v8662 = vrot.slane %v8653, 4
        %v8663 = vsel %vm1105, 0.0, %v8662
        %v8664 = vrot.slane %v8657, 4
        %v8665 = vsel %vm1105, 0.0, %v8664
        %v8666 = vrot.slane %v8472, 4
        %v8667 = vsel %vm1105, %v8666, %v8454
        %v8668 = vrot.slane %v8454, 4
        %v8669 = vsel %vm1105, %v8472, %v8668
        %v8671 = vunpack.c.l.s4 1983009808
        %v8672 = vunpack.c.0.s8 %v8671
        %v8673 = vperm.slane %v8667, %v8672
        %v8675 = vunpack.c.l.s4 1983009808
        %v8676 = vunpack.c.0.s8 %v8675
        %v8677 = vperm.slane %v8669, %v8676
        %v8678 = vrot.slane %v8481, 4
        %v8679 = vsel %vm1105, %v8678, %v8463
        %v8680 = vrot.slane %v8463, 4
        %v8681 = vsel %vm1105, %v8481, %v8680
        %v8683 = vunpack.c.l.s4 1983009808
        %v8684 = vunpack.c.0.s8 %v8683
        %v8685 = vperm.slane %v8679, %v8684
        %v8687 = vunpack.c.l.s4 1983009808
        %v8688 = vunpack.c.0.s8 %v8687
        %v8689 = vperm.slane %v8681, %v8688
        %v8690 = vrot.slane %v8685, 4
        %v8691 = vsel %vm1105, %v8690, %v8673
        %v8692 = vrot.slane %v8673, 4
        %v8693 = vsel %vm1105, %v8685, %v8692
        %v8695 = vunpack.c.l.s4 1934713408
        %v8696 = vunpack.c.0.s8 %v8695
        %v8697 = vperm.slane %v8691, %v8696
        %v8699 = vunpack.c.l.s4 1934713408
        %v8700 = vunpack.c.0.s8 %v8699
        %v8701 = vperm.slane %v8693, %v8700
        %v8702 = vrot.slane %v8689, 4
        %v8703 = vsel %vm1105, %v8702, %v8677
        %v8704 = vrot.slane %v8677, 4
        %v8705 = vsel %vm1105, %v8689, %v8704
        %v8707 = vunpack.c.l.s4 1934713408
        %v8708 = vunpack.c.0.s8 %v8707
        %v8709 = vperm.slane %v8703, %v8708
        %v8711 = vunpack.c.l.s4 1934713408
        %v8712 = vunpack.c.0.s8 %v8711
        %v8713 = vperm.slane %v8705, %v8712
        %v8714 = vrot.slane %v8697, 4
        %v8715 = vsel %vm1105, 0.0, %v8714
        %v8716 = vrot.slane %v8701, 4
        %v8717 = vsel %vm1105, 0.0, %v8716
        %v8718 = vrot.slane %v8709, 4
        %v8719 = vsel %vm1105, 0.0, %v8718
        %v8720 = vrot.slane %v8713, 4
        %v8721 = vsel %vm1105, 0.0, %v8720
        %8723 = vrot.lane.b32.xlu0 %v8547, 32
        %v8724 = vpop.permute.xlu0 %8723
        %8727 = vrot.lane.b32.xlu0 %v8533, 64
        %v8728 = vpop.permute.xlu0 %8727
        %8731 = vrot.lane.b32.xlu0 %v8549, 96
        %v8732 = vpop.permute.xlu0 %8731
        %8735 = vrot.lane.b32.xlu0 %v8551, 32
        %v8736 = vpop.permute.xlu0 %8735
        %8739 = vrot.lane.b32.xlu0 %v8545, 64
        %v8740 = vpop.permute.xlu0 %8739
        %8743 = vrot.lane.b32.xlu0 %v8553, 96
        %v8744 = vpop.permute.xlu0 %8743
        %8747 = vrot.lane.b32.xlu0 %v8603, 32
        %v8748 = vpop.permute.xlu0 %8747
        %8751 = vrot.lane.b32.xlu0 %v8589, 64
        %v8752 = vpop.permute.xlu0 %8751
        %8755 = vrot.lane.b32.xlu0 %v8605, 96
        %v8756 = vpop.permute.xlu0 %8755
        %8759 = vrot.lane.b32.xlu0 %v8607, 32
        %v8760 = vpop.permute.xlu0 %8759
        %8763 = vrot.lane.b32.xlu0 %v8601, 64
        %v8764 = vpop.permute.xlu0 %8763
        %8767 = vrot.lane.b32.xlu0 %v8609, 96
        %v8768 = vpop.permute.xlu0 %8767
        %8771 = vrot.lane.b32.xlu0 %v8659, 32
        %v8772 = vpop.permute.xlu0 %8771
        %8775 = vrot.lane.b32.xlu0 %v8645, 64
        %v8776 = vpop.permute.xlu0 %8775
        %8779 = vrot.lane.b32.xlu0 %v8661, 96
        %v8780 = vpop.permute.xlu0 %8779
        %8783 = vrot.lane.b32.xlu0 %v8663, 32
        %v8784 = vpop.permute.xlu0 %8783
        %8787 = vrot.lane.b32.xlu0 %v8657, 64
        %v8788 = vpop.permute.xlu0 %8787
        %8791 = vrot.lane.b32.xlu0 %v8665, 96
        %v8792 = vpop.permute.xlu0 %8791
        %8795 = vrot.lane.b32.xlu0 %v8715, 32
        %v8796 = vpop.permute.xlu0 %8795
        %8799 = vrot.lane.b32.xlu0 %v8701, 64
        %v8800 = vpop.permute.xlu0 %8799
        %8803 = vrot.lane.b32.xlu0 %v8717, 96
        %v8804 = vpop.permute.xlu0 %8803
        %8807 = vrot.lane.b32.xlu0 %v8719, 32
        %v8808 = vpop.permute.xlu0 %8807
        %8811 = vrot.lane.b32.xlu0 %v8713, 64
        %v8812 = vpop.permute.xlu0 %8811
        %8815 = vrot.lane.b32.xlu0 %v8721, 96
        %v8816 = vpop.permute.xlu0 %8815
        %v8818 = vsel %vm1425, %v8529, %v8724
        %v8819 = vsel %vm1427, %v8818, %v8728
        %v8820 = vsel %vm1429, %v8819, %v8732
        %v8821 = vsel %vm1425, %v8541, %v8736
        %v8822 = vsel %vm1427, %v8821, %v8740
        %v8823 = vsel %vm1429, %v8822, %v8744
        %v8824 = vsel %vm1425, %v8585, %v8748
        %v8825 = vsel %vm1427, %v8824, %v8752
        %v8826 = vsel %vm1429, %v8825, %v8756
        %v8827 = vsel %vm1425, %v8597, %v8760
        %v8828 = vsel %vm1427, %v8827, %v8764
        %v8829 = vsel %vm1429, %v8828, %v8768
        %v8830 = vsel %vm1425, %v8641, %v8772
        %v8831 = vsel %vm1427, %v8830, %v8776
        %v8832 = vsel %vm1429, %v8831, %v8780
        %v8833 = vsel %vm1425, %v8653, %v8784
        %v8834 = vsel %vm1427, %v8833, %v8788
        %v8835 = vsel %vm1429, %v8834, %v8792
        %v8836 = vsel %vm1425, %v8697, %v8796
        %v8837 = vsel %vm1427, %v8836, %v8800
        %v8838 = vsel %vm1429, %v8837, %v8804
        %v8839 = vsel %vm1425, %v8709, %v8808
        %v8840 = vsel %vm1427, %v8839, %v8812
        %v8841 = vsel %vm1429, %v8840, %v8816
        %v8843 = vsel %vm1526, %v8444, 0
        %v8846 = vsel %vm1530, %v8820, 0
        %v8849 = vsel %vm1530, %v8823, 0
        %v8852 = vsel %vm1530, %v8826, 0
        %v8855 = vsel %vm1530, %v8829, 0
        %v8858 = vsel %vm1530, %v8832, 0
        %v8861 = vsel %vm1530, %v8835, 0
        %v8864 = vsel %vm1530, %v8838, 0
        %v8867 = vsel %vm1530, %v8841, 0
        %8869 = vmatpush.msra.mxu0 0.0
        %8870 = vmatpush.msra.mxu0 0.0
        %8871 = vmatpush.msra.mxu0 0.0
        %8872 = vmatpush.msra.mxu0 0.0
        %8873 = vmatpush.msra.mxu0 0.0
        %8874 = vmatpush.msra.mxu0 0.0
        %8875 = vmatpush.msra.mxu0 0.0
        %8876 = vmatpush.msra.mxu0 0.0
        %8877 = vmatpush.msra.mxu0 0.0
        %8878 = vmatpush.msra.mxu0 0.0
        %8879 = vmatpush.msra.mxu0 0.0
        %8880 = vmatpush.msra.mxu0 0.0
        %8881 = vmatpush.msra.mxu0 0.0
        %8882 = vmatpush.msra.mxu0 0.0
        %8883 = vmatpush.msra.mxu0 0.0
        %8884 = vmatpush.msra.mxu0 %v8846
        %8885 = vmatmul.f32.gmra.mxu0 %v8843
        %v8886 = vpop.f32.mrf.mxu0
        %v8887 = vadd.f32 %v1522, %v8886
        %8888 = vdwg.mxu0
        %8889 = vmatpush.msra.mxu0 0.0
        %8890 = vmatpush.msra.mxu0 0.0
        %8891 = vmatpush.msra.mxu0 0.0
        %8892 = vmatpush.msra.mxu0 0.0
        %8893 = vmatpush.msra.mxu0 0.0
        %8894 = vmatpush.msra.mxu0 0.0
        %8895 = vmatpush.msra.mxu0 0.0
        %8896 = vmatpush.msra.mxu0 0.0
        %8897 = vmatpush.msra.mxu0 0.0
        %8898 = vmatpush.msra.mxu0 0.0
        %8899 = vmatpush.msra.mxu0 0.0
        %8900 = vmatpush.msra.mxu0 0.0
        %8901 = vmatpush.msra.mxu0 0.0
        %8902 = vmatpush.msra.mxu0 0.0
        %8903 = vmatpush.msra.mxu0 0.0
        %8904 = vmatpush.msra.mxu0 %v8849
        %8905 = vmatmul.f32.gmra.mxu0 %v8843
        %v8906 = vpop.f32.mrf.mxu0
        %v8907 = vadd.f32 %v1525, %v8906
        %8908 = vdwg.mxu0
        %8909 = vmatpush.msra.mxu0 0.0
        %8910 = vmatpush.msra.mxu0 0.0
        %8911 = vmatpush.msra.mxu0 0.0
        %8912 = vmatpush.msra.mxu0 0.0
        %8913 = vmatpush.msra.mxu0 0.0
        %8914 = vmatpush.msra.mxu0 0.0
        %8915 = vmatpush.msra.mxu0 0.0
        %8916 = vmatpush.msra.mxu0 0.0
        %8917 = vmatpush.msra.mxu0 0.0
        %8918 = vmatpush.msra.mxu0 0.0
        %8919 = vmatpush.msra.mxu0 0.0
        %8920 = vmatpush.msra.mxu0 0.0
        %8921 = vmatpush.msra.mxu0 0.0
        %8922 = vmatpush.msra.mxu0 0.0
        %8923 = vmatpush.msra.mxu0 0.0
        %8924 = vmatpush.msra.mxu0 %v8852
        %8925 = vmatmul.f32.gmra.mxu0 %v8843
        %v8926 = vpop.f32.mrf.mxu0
        %v8927 = vadd.f32 %v1522, %v8926
        %8928 = vdwg.mxu0
        %8929 = vmatpush.msra.mxu0 0.0
        %8930 = vmatpush.msra.mxu0 0.0
        %8931 = vmatpush.msra.mxu0 0.0
        %8932 = vmatpush.msra.mxu0 0.0
        %8933 = vmatpush.msra.mxu0 0.0
        %8934 = vmatpush.msra.mxu0 0.0
        %8935 = vmatpush.msra.mxu0 0.0
        %8936 = vmatpush.msra.mxu0 0.0
        %8937 = vmatpush.msra.mxu0 0.0
        %8938 = vmatpush.msra.mxu0 0.0
        %8939 = vmatpush.msra.mxu0 0.0
        %8940 = vmatpush.msra.mxu0 0.0
        %8941 = vmatpush.msra.mxu0 0.0
        %8942 = vmatpush.msra.mxu0 0.0
        %8943 = vmatpush.msra.mxu0 0.0
        %8944 = vmatpush.msra.mxu0 %v8855
        %8945 = vmatmul.f32.gmra.mxu0 %v8843
        %v8946 = vpop.f32.mrf.mxu0
        %v8947 = vadd.f32 %v1525, %v8946
        %8948 = vdwg.mxu0
        %8949 = vmatpush.msra.mxu0 0.0
        %8950 = vmatpush.msra.mxu0 0.0
        %8951 = vmatpush.msra.mxu0 0.0
        %8952 = vmatpush.msra.mxu0 0.0
        %8953 = vmatpush.msra.mxu0 0.0
        %8954 = vmatpush.msra.mxu0 0.0
        %8955 = vmatpush.msra.mxu0 0.0
        %8956 = vmatpush.msra.mxu0 0.0
        %8957 = vmatpush.msra.mxu0 0.0
        %8958 = vmatpush.msra.mxu0 0.0
        %8959 = vmatpush.msra.mxu0 0.0
        %8960 = vmatpush.msra.mxu0 0.0
        %8961 = vmatpush.msra.mxu0 0.0
        %8962 = vmatpush.msra.mxu0 0.0
        %8963 = vmatpush.msra.mxu0 0.0
        %8964 = vmatpush.msra.mxu0 %v8858
        %8965 = vmatmul.f32.gmra.mxu0 %v8843
        %v8966 = vpop.f32.mrf.mxu0
        %v8967 = vadd.f32 %v1522, %v8966
        %8968 = vdwg.mxu0
        %8969 = vmatpush.msra.mxu0 0.0
        %8970 = vmatpush.msra.mxu0 0.0
        %8971 = vmatpush.msra.mxu0 0.0
        %8972 = vmatpush.msra.mxu0 0.0
        %8973 = vmatpush.msra.mxu0 0.0
        %8974 = vmatpush.msra.mxu0 0.0
        %8975 = vmatpush.msra.mxu0 0.0
        %8976 = vmatpush.msra.mxu0 0.0
        %8977 = vmatpush.msra.mxu0 0.0
        %8978 = vmatpush.msra.mxu0 0.0
        %8979 = vmatpush.msra.mxu0 0.0
        %8980 = vmatpush.msra.mxu0 0.0
        %8981 = vmatpush.msra.mxu0 0.0
        %8982 = vmatpush.msra.mxu0 0.0
        %8983 = vmatpush.msra.mxu0 0.0
        %8984 = vmatpush.msra.mxu0 %v8861
        %8985 = vmatmul.f32.gmra.mxu0 %v8843
        %v8986 = vpop.f32.mrf.mxu0
        %v8987 = vadd.f32 %v1525, %v8986
        %8988 = vdwg.mxu0
        %8989 = vmatpush.msra.mxu0 0.0
        %8990 = vmatpush.msra.mxu0 0.0
        %8991 = vmatpush.msra.mxu0 0.0
        %8992 = vmatpush.msra.mxu0 0.0
        %8993 = vmatpush.msra.mxu0 0.0
        %8994 = vmatpush.msra.mxu0 0.0
        %8995 = vmatpush.msra.mxu0 0.0
        %8996 = vmatpush.msra.mxu0 0.0
        %8997 = vmatpush.msra.mxu0 0.0
        %8998 = vmatpush.msra.mxu0 0.0
        %8999 = vmatpush.msra.mxu0 0.0
        %9000 = vmatpush.msra.mxu0 0.0
        %9001 = vmatpush.msra.mxu0 0.0
        %9002 = vmatpush.msra.mxu0 0.0
        %9003 = vmatpush.msra.mxu0 0.0
        %9004 = vmatpush.msra.mxu0 %v8864
        %9005 = vmatmul.f32.gmra.mxu0 %v8843
        %v9006 = vpop.f32.mrf.mxu0
        %v9007 = vadd.f32 %v1522, %v9006
        %9008 = vdwg.mxu0
        %9009 = vmatpush.msra.mxu0 0.0
        %9010 = vmatpush.msra.mxu0 0.0
        %9011 = vmatpush.msra.mxu0 0.0
        %9012 = vmatpush.msra.mxu0 0.0
        %9013 = vmatpush.msra.mxu0 0.0
        %9014 = vmatpush.msra.mxu0 0.0
        %9015 = vmatpush.msra.mxu0 0.0
        %9016 = vmatpush.msra.mxu0 0.0
        %9017 = vmatpush.msra.mxu0 0.0
        %9018 = vmatpush.msra.mxu0 0.0
        %9019 = vmatpush.msra.mxu0 0.0
        %9020 = vmatpush.msra.mxu0 0.0
        %9021 = vmatpush.msra.mxu0 0.0
        %9022 = vmatpush.msra.mxu0 0.0
        %9023 = vmatpush.msra.mxu0 0.0
        %9024 = vmatpush.msra.mxu0 %v8867
        %9025 = vmatmul.f32.gmra.mxu0 %v8843
        %v9026 = vpop.f32.mrf.mxu0
        %v9027 = vadd.f32 %v1525, %v9026
        %9028 = vdwg.mxu0
        %9030 = vrot.lane.b32.xlu0 %v8887, 96
        %v9031 = vpop.permute.xlu0 %9030
        %9033 = vrot.lane.b32.xlu0 %v8887, 64
        %v9034 = vpop.permute.xlu0 %9033
        %9036 = vrot.lane.b32.xlu0 %v8887, 32
        %v9037 = vpop.permute.xlu0 %9036
        %9040 = vrot.lane.b32.xlu0 %v8907, 96
        %v9041 = vpop.permute.xlu0 %9040
        %9043 = vrot.lane.b32.xlu0 %v8907, 64
        %v9044 = vpop.permute.xlu0 %9043
        %9046 = vrot.lane.b32.xlu0 %v8907, 32
        %v9047 = vpop.permute.xlu0 %9046
        %9050 = vrot.lane.b32.xlu0 %v8927, 96
        %v9051 = vpop.permute.xlu0 %9050
        %9053 = vrot.lane.b32.xlu0 %v8927, 64
        %v9054 = vpop.permute.xlu0 %9053
        %9056 = vrot.lane.b32.xlu0 %v8927, 32
        %v9057 = vpop.permute.xlu0 %9056
        %9060 = vrot.lane.b32.xlu0 %v8947, 96
        %v9061 = vpop.permute.xlu0 %9060
        %9063 = vrot.lane.b32.xlu0 %v8947, 64
        %v9064 = vpop.permute.xlu0 %9063
        %9066 = vrot.lane.b32.xlu0 %v8947, 32
        %v9067 = vpop.permute.xlu0 %9066
        %9070 = vrot.lane.b32.xlu0 %v8967, 96
        %v9071 = vpop.permute.xlu0 %9070
        %9073 = vrot.lane.b32.xlu0 %v8967, 64
        %v9074 = vpop.permute.xlu0 %9073
        %9076 = vrot.lane.b32.xlu0 %v8967, 32
        %v9077 = vpop.permute.xlu0 %9076
        %9080 = vrot.lane.b32.xlu0 %v8987, 96
        %v9081 = vpop.permute.xlu0 %9080
        %9083 = vrot.lane.b32.xlu0 %v8987, 64
        %v9084 = vpop.permute.xlu0 %9083
        %9086 = vrot.lane.b32.xlu0 %v8987, 32
        %v9087 = vpop.permute.xlu0 %9086
        %9090 = vrot.lane.b32.xlu0 %v9007, 96
        %v9091 = vpop.permute.xlu0 %9090
        %9093 = vrot.lane.b32.xlu0 %v9007, 64
        %v9094 = vpop.permute.xlu0 %9093
        %9096 = vrot.lane.b32.xlu0 %v9007, 32
        %v9097 = vpop.permute.xlu0 %9096
        %9100 = vrot.lane.b32.xlu0 %v9027, 96
        %v9101 = vpop.permute.xlu0 %9100
        %9103 = vrot.lane.b32.xlu0 %v9027, 64
        %v9104 = vpop.permute.xlu0 %9103
        %9106 = vrot.lane.b32.xlu0 %v9027, 32
        %v9107 = vpop.permute.xlu0 %9106
        %v9109 = vrot.slane %v9034, 4
        %v9110 = vsel %vm1105, %v9109, %v8887
        %v9111 = vrot.slane %v8887, 4
        %v9112 = vsel %vm1105, %v9034, %v9111
        %v9114 = vunpack.c.l.s4 1983009808
        %v9115 = vunpack.c.0.s8 %v9114
        %v9116 = vperm.slane %v9110, %v9115
        %v9118 = vunpack.c.l.s4 1983009808
        %v9119 = vunpack.c.0.s8 %v9118
        %v9120 = vperm.slane %v9112, %v9119
        %v9121 = vrot.slane %v9037, 4
        %v9122 = vsel %vm1105, %v9121, %v9031
        %v9123 = vrot.slane %v9031, 4
        %v9124 = vsel %vm1105, %v9037, %v9123
        %v9126 = vunpack.c.l.s4 1983009808
        %v9127 = vunpack.c.0.s8 %v9126
        %v9128 = vperm.slane %v9122, %v9127
        %v9130 = vunpack.c.l.s4 1983009808
        %v9131 = vunpack.c.0.s8 %v9130
        %v9132 = vperm.slane %v9124, %v9131
        %v9133 = vrot.slane %v9044, 4
        %v9134 = vsel %vm1105, %v9133, %v8907
        %v9135 = vrot.slane %v8907, 4
        %v9136 = vsel %vm1105, %v9044, %v9135
        %v9138 = vunpack.c.l.s4 1983009808
        %v9139 = vunpack.c.0.s8 %v9138
        %v9140 = vperm.slane %v9134, %v9139
        %v9142 = vunpack.c.l.s4 1983009808
        %v9143 = vunpack.c.0.s8 %v9142
        %v9144 = vperm.slane %v9136, %v9143
        %v9145 = vrot.slane %v9047, 4
        %v9146 = vsel %vm1105, %v9145, %v9041
        %v9147 = vrot.slane %v9041, 4
        %v9148 = vsel %vm1105, %v9047, %v9147
        %v9150 = vunpack.c.l.s4 1983009808
        %v9151 = vunpack.c.0.s8 %v9150
        %v9152 = vperm.slane %v9146, %v9151
        %v9154 = vunpack.c.l.s4 1983009808
        %v9155 = vunpack.c.0.s8 %v9154
        %v9156 = vperm.slane %v9148, %v9155
        %v9157 = vrot.slane %v9128, 4
        %v9158 = vsel %vm1105, %v9157, %v9116
        %v9159 = vrot.slane %v9116, 4
        %v9160 = vsel %vm1105, %v9128, %v9159
        %v9162 = vunpack.c.l.s4 1934713408
        %v9163 = vunpack.c.0.s8 %v9162
        %v9164 = vperm.slane %v9158, %v9163
        %v9166 = vunpack.c.l.s4 1934713408
        %v9167 = vunpack.c.0.s8 %v9166
        %v9168 = vperm.slane %v9160, %v9167
        %v9169 = vrot.slane %v9132, 4
        %v9170 = vsel %vm1105, %v9169, %v9120
        %v9171 = vrot.slane %v9120, 4
        %v9172 = vsel %vm1105, %v9132, %v9171
        %v9174 = vunpack.c.l.s4 1934713408
        %v9175 = vunpack.c.0.s8 %v9174
        %v9176 = vperm.slane %v9170, %v9175
        %v9178 = vunpack.c.l.s4 1934713408
        %v9179 = vunpack.c.0.s8 %v9178
        %v9180 = vperm.slane %v9172, %v9179
        %v9181 = vrot.slane %v9152, 4
        %v9182 = vsel %vm1105, %v9181, %v9140
        %v9183 = vrot.slane %v9140, 4
        %v9184 = vsel %vm1105, %v9152, %v9183
        %v9186 = vunpack.c.l.s4 1934713408
        %v9187 = vunpack.c.0.s8 %v9186
        %v9188 = vperm.slane %v9182, %v9187
        %v9190 = vunpack.c.l.s4 1934713408
        %v9191 = vunpack.c.0.s8 %v9190
        %v9192 = vperm.slane %v9184, %v9191
        %v9193 = vrot.slane %v9156, 4
        %v9194 = vsel %vm1105, %v9193, %v9144
        %v9195 = vrot.slane %v9144, 4
        %v9196 = vsel %vm1105, %v9156, %v9195
        %v9198 = vunpack.c.l.s4 1934713408
        %v9199 = vunpack.c.0.s8 %v9198
        %v9200 = vperm.slane %v9194, %v9199
        %v9202 = vunpack.c.l.s4 1934713408
        %v9203 = vunpack.c.0.s8 %v9202
        %v9204 = vperm.slane %v9196, %v9203
        %v9205 = vrot.slane %v9188, 4
        %v9206 = vsel %vm1105, %v9205, %v9164
        %v9207 = vrot.slane %v9164, 4
        %v9208 = vsel %vm1105, %v9188, %v9207
        %v9209 = vrot.slane %v9192, 4
        %v9210 = vsel %vm1105, %v9209, %v9168
        %v9211 = vrot.slane %v9168, 4
        %v9212 = vsel %vm1105, %v9192, %v9211
        %v9213 = vrot.slane %v9200, 4
        %v9214 = vsel %vm1105, %v9213, %v9176
        %v9215 = vrot.slane %v9176, 4
        %v9216 = vsel %vm1105, %v9200, %v9215
        %v9217 = vrot.slane %v9204, 4
        %v9218 = vsel %vm1105, %v9217, %v9180
        %v9219 = vrot.slane %v9180, 4
        %v9220 = vsel %vm1105, %v9204, %v9219
        %v9221 = vrot.slane %v9054, 4
        %v9222 = vsel %vm1105, %v9221, %v8927
        %v9223 = vrot.slane %v8927, 4
        %v9224 = vsel %vm1105, %v9054, %v9223
        %v9226 = vunpack.c.l.s4 1983009808
        %v9227 = vunpack.c.0.s8 %v9226
        %v9228 = vperm.slane %v9222, %v9227
        %v9230 = vunpack.c.l.s4 1983009808
        %v9231 = vunpack.c.0.s8 %v9230
        %v9232 = vperm.slane %v9224, %v9231
        %v9233 = vrot.slane %v9057, 4
        %v9234 = vsel %vm1105, %v9233, %v9051
        %v9235 = vrot.slane %v9051, 4
        %v9236 = vsel %vm1105, %v9057, %v9235
        %v9238 = vunpack.c.l.s4 1983009808
        %v9239 = vunpack.c.0.s8 %v9238
        %v9240 = vperm.slane %v9234, %v9239
        %v9242 = vunpack.c.l.s4 1983009808
        %v9243 = vunpack.c.0.s8 %v9242
        %v9244 = vperm.slane %v9236, %v9243
        %v9245 = vrot.slane %v9064, 4
        %v9246 = vsel %vm1105, %v9245, %v8947
        %v9247 = vrot.slane %v8947, 4
        %v9248 = vsel %vm1105, %v9064, %v9247
        %v9250 = vunpack.c.l.s4 1983009808
        %v9251 = vunpack.c.0.s8 %v9250
        %v9252 = vperm.slane %v9246, %v9251
        %v9254 = vunpack.c.l.s4 1983009808
        %v9255 = vunpack.c.0.s8 %v9254
        %v9256 = vperm.slane %v9248, %v9255
        %v9257 = vrot.slane %v9067, 4
        %v9258 = vsel %vm1105, %v9257, %v9061
        %v9259 = vrot.slane %v9061, 4
        %v9260 = vsel %vm1105, %v9067, %v9259
        %v9262 = vunpack.c.l.s4 1983009808
        %v9263 = vunpack.c.0.s8 %v9262
        %v9264 = vperm.slane %v9258, %v9263
        %v9266 = vunpack.c.l.s4 1983009808
        %v9267 = vunpack.c.0.s8 %v9266
        %v9268 = vperm.slane %v9260, %v9267
        %v9269 = vrot.slane %v9240, 4
        %v9270 = vsel %vm1105, %v9269, %v9228
        %v9271 = vrot.slane %v9228, 4
        %v9272 = vsel %vm1105, %v9240, %v9271
        %v9274 = vunpack.c.l.s4 1934713408
        %v9275 = vunpack.c.0.s8 %v9274
        %v9276 = vperm.slane %v9270, %v9275
        %v9278 = vunpack.c.l.s4 1934713408
        %v9279 = vunpack.c.0.s8 %v9278
        %v9280 = vperm.slane %v9272, %v9279
        %v9281 = vrot.slane %v9244, 4
        %v9282 = vsel %vm1105, %v9281, %v9232
        %v9283 = vrot.slane %v9232, 4
        %v9284 = vsel %vm1105, %v9244, %v9283
        %v9286 = vunpack.c.l.s4 1934713408
        %v9287 = vunpack.c.0.s8 %v9286
        %v9288 = vperm.slane %v9282, %v9287
        %v9290 = vunpack.c.l.s4 1934713408
        %v9291 = vunpack.c.0.s8 %v9290
        %v9292 = vperm.slane %v9284, %v9291
        %v9293 = vrot.slane %v9264, 4
        %v9294 = vsel %vm1105, %v9293, %v9252
        %v9295 = vrot.slane %v9252, 4
        %v9296 = vsel %vm1105, %v9264, %v9295
        %v9298 = vunpack.c.l.s4 1934713408
        %v9299 = vunpack.c.0.s8 %v9298
        %v9300 = vperm.slane %v9294, %v9299
        %v9302 = vunpack.c.l.s4 1934713408
        %v9303 = vunpack.c.0.s8 %v9302
        %v9304 = vperm.slane %v9296, %v9303
        %v9305 = vrot.slane %v9268, 4
        %v9306 = vsel %vm1105, %v9305, %v9256
        %v9307 = vrot.slane %v9256, 4
        %v9308 = vsel %vm1105, %v9268, %v9307
        %v9310 = vunpack.c.l.s4 1934713408
        %v9311 = vunpack.c.0.s8 %v9310
        %v9312 = vperm.slane %v9306, %v9311
        %v9314 = vunpack.c.l.s4 1934713408
        %v9315 = vunpack.c.0.s8 %v9314
        %v9316 = vperm.slane %v9308, %v9315
        %v9317 = vrot.slane %v9300, 4
        %v9318 = vsel %vm1105, %v9317, %v9276
        %v9319 = vrot.slane %v9276, 4
        %v9320 = vsel %vm1105, %v9300, %v9319
        %v9321 = vrot.slane %v9304, 4
        %v9322 = vsel %vm1105, %v9321, %v9280
        %v9323 = vrot.slane %v9280, 4
        %v9324 = vsel %vm1105, %v9304, %v9323
        %v9325 = vrot.slane %v9312, 4
        %v9326 = vsel %vm1105, %v9325, %v9288
        %v9327 = vrot.slane %v9288, 4
        %v9328 = vsel %vm1105, %v9312, %v9327
        %v9329 = vrot.slane %v9316, 4
        %v9330 = vsel %vm1105, %v9329, %v9292
        %v9331 = vrot.slane %v9292, 4
        %v9332 = vsel %vm1105, %v9316, %v9331
        %v9333 = vrot.slane %v9074, 4
        %v9334 = vsel %vm1105, %v9333, %v8967
        %v9335 = vrot.slane %v8967, 4
        %v9336 = vsel %vm1105, %v9074, %v9335
        %v9338 = vunpack.c.l.s4 1983009808
        %v9339 = vunpack.c.0.s8 %v9338
        %v9340 = vperm.slane %v9334, %v9339
        %v9342 = vunpack.c.l.s4 1983009808
        %v9343 = vunpack.c.0.s8 %v9342
        %v9344 = vperm.slane %v9336, %v9343
        %v9345 = vrot.slane %v9077, 4
        %v9346 = vsel %vm1105, %v9345, %v9071
        %v9347 = vrot.slane %v9071, 4
        %v9348 = vsel %vm1105, %v9077, %v9347
        %v9350 = vunpack.c.l.s4 1983009808
        %v9351 = vunpack.c.0.s8 %v9350
        %v9352 = vperm.slane %v9346, %v9351
        %v9354 = vunpack.c.l.s4 1983009808
        %v9355 = vunpack.c.0.s8 %v9354
        %v9356 = vperm.slane %v9348, %v9355
        %v9357 = vrot.slane %v9084, 4
        %v9358 = vsel %vm1105, %v9357, %v8987
        %v9359 = vrot.slane %v8987, 4
        %v9360 = vsel %vm1105, %v9084, %v9359
        %v9362 = vunpack.c.l.s4 1983009808
        %v9363 = vunpack.c.0.s8 %v9362
        %v9364 = vperm.slane %v9358, %v9363
        %v9366 = vunpack.c.l.s4 1983009808
        %v9367 = vunpack.c.0.s8 %v9366
        %v9368 = vperm.slane %v9360, %v9367
        %v9369 = vrot.slane %v9087, 4
        %v9370 = vsel %vm1105, %v9369, %v9081
        %v9371 = vrot.slane %v9081, 4
        %v9372 = vsel %vm1105, %v9087, %v9371
        %v9374 = vunpack.c.l.s4 1983009808
        %v9375 = vunpack.c.0.s8 %v9374
        %v9376 = vperm.slane %v9370, %v9375
        %v9378 = vunpack.c.l.s4 1983009808
        %v9379 = vunpack.c.0.s8 %v9378
        %v9380 = vperm.slane %v9372, %v9379
        %v9381 = vrot.slane %v9352, 4
        %v9382 = vsel %vm1105, %v9381, %v9340
        %v9383 = vrot.slane %v9340, 4
        %v9384 = vsel %vm1105, %v9352, %v9383
        %v9386 = vunpack.c.l.s4 1934713408
        %v9387 = vunpack.c.0.s8 %v9386
        %v9388 = vperm.slane %v9382, %v9387
        %v9390 = vunpack.c.l.s4 1934713408
        %v9391 = vunpack.c.0.s8 %v9390
        %v9392 = vperm.slane %v9384, %v9391
        %v9393 = vrot.slane %v9356, 4
        %v9394 = vsel %vm1105, %v9393, %v9344
        %v9395 = vrot.slane %v9344, 4
        %v9396 = vsel %vm1105, %v9356, %v9395
        %v9398 = vunpack.c.l.s4 1934713408
        %v9399 = vunpack.c.0.s8 %v9398
        %v9400 = vperm.slane %v9394, %v9399
        %v9402 = vunpack.c.l.s4 1934713408
        %v9403 = vunpack.c.0.s8 %v9402
        %v9404 = vperm.slane %v9396, %v9403
        %v9405 = vrot.slane %v9376, 4
        %v9406 = vsel %vm1105, %v9405, %v9364
        %v9407 = vrot.slane %v9364, 4
        %v9408 = vsel %vm1105, %v9376, %v9407
        %v9410 = vunpack.c.l.s4 1934713408
        %v9411 = vunpack.c.0.s8 %v9410
        %v9412 = vperm.slane %v9406, %v9411
        %v9414 = vunpack.c.l.s4 1934713408
        %v9415 = vunpack.c.0.s8 %v9414
        %v9416 = vperm.slane %v9408, %v9415
        %v9417 = vrot.slane %v9380, 4
        %v9418 = vsel %vm1105, %v9417, %v9368
        %v9419 = vrot.slane %v9368, 4
        %v9420 = vsel %vm1105, %v9380, %v9419
        %v9422 = vunpack.c.l.s4 1934713408
        %v9423 = vunpack.c.0.s8 %v9422
        %v9424 = vperm.slane %v9418, %v9423
        %v9426 = vunpack.c.l.s4 1934713408
        %v9427 = vunpack.c.0.s8 %v9426
        %v9428 = vperm.slane %v9420, %v9427
        %v9429 = vrot.slane %v9412, 4
        %v9430 = vsel %vm1105, %v9429, %v9388
        %v9431 = vrot.slane %v9388, 4
        %v9432 = vsel %vm1105, %v9412, %v9431
        %v9433 = vrot.slane %v9416, 4
        %v9434 = vsel %vm1105, %v9433, %v9392
        %v9435 = vrot.slane %v9392, 4
        %v9436 = vsel %vm1105, %v9416, %v9435
        %v9437 = vrot.slane %v9424, 4
        %v9438 = vsel %vm1105, %v9437, %v9400
        %v9439 = vrot.slane %v9400, 4
        %v9440 = vsel %vm1105, %v9424, %v9439
        %v9441 = vrot.slane %v9428, 4
        %v9442 = vsel %vm1105, %v9441, %v9404
        %v9443 = vrot.slane %v9404, 4
        %v9444 = vsel %vm1105, %v9428, %v9443
        %v9445 = vrot.slane %v9094, 4
        %v9446 = vsel %vm1105, %v9445, %v9007
        %v9447 = vrot.slane %v9007, 4
        %v9448 = vsel %vm1105, %v9094, %v9447
        %v9450 = vunpack.c.l.s4 1983009808
        %v9451 = vunpack.c.0.s8 %v9450
        %v9452 = vperm.slane %v9446, %v9451
        %v9454 = vunpack.c.l.s4 1983009808
        %v9455 = vunpack.c.0.s8 %v9454
        %v9456 = vperm.slane %v9448, %v9455
        %v9457 = vrot.slane %v9097, 4
        %v9458 = vsel %vm1105, %v9457, %v9091
        %v9459 = vrot.slane %v9091, 4
        %v9460 = vsel %vm1105, %v9097, %v9459
        %v9462 = vunpack.c.l.s4 1983009808
        %v9463 = vunpack.c.0.s8 %v9462
        %v9464 = vperm.slane %v9458, %v9463
        %v9466 = vunpack.c.l.s4 1983009808
        %v9467 = vunpack.c.0.s8 %v9466
        %v9468 = vperm.slane %v9460, %v9467
        %v9469 = vrot.slane %v9104, 4
        %v9470 = vsel %vm1105, %v9469, %v9027
        %v9471 = vrot.slane %v9027, 4
        %v9472 = vsel %vm1105, %v9104, %v9471
        %v9474 = vunpack.c.l.s4 1983009808
        %v9475 = vunpack.c.0.s8 %v9474
        %v9476 = vperm.slane %v9470, %v9475
        %v9478 = vunpack.c.l.s4 1983009808
        %v9479 = vunpack.c.0.s8 %v9478
        %v9480 = vperm.slane %v9472, %v9479
        %v9481 = vrot.slane %v9107, 4
        %v9482 = vsel %vm1105, %v9481, %v9101
        %v9483 = vrot.slane %v9101, 4
        %v9484 = vsel %vm1105, %v9107, %v9483
        %v9486 = vunpack.c.l.s4 1983009808
        %v9487 = vunpack.c.0.s8 %v9486
        %v9488 = vperm.slane %v9482, %v9487
        %v9490 = vunpack.c.l.s4 1983009808
        %v9491 = vunpack.c.0.s8 %v9490
        %v9492 = vperm.slane %v9484, %v9491
        %v9493 = vrot.slane %v9464, 4
        %v9494 = vsel %vm1105, %v9493, %v9452
        %v9495 = vrot.slane %v9452, 4
        %v9496 = vsel %vm1105, %v9464, %v9495
        %v9498 = vunpack.c.l.s4 1934713408
        %v9499 = vunpack.c.0.s8 %v9498
        %v9500 = vperm.slane %v9494, %v9499
        %v9502 = vunpack.c.l.s4 1934713408
        %v9503 = vunpack.c.0.s8 %v9502
        %v9504 = vperm.slane %v9496, %v9503
        %v9505 = vrot.slane %v9468, 4
        %v9506 = vsel %vm1105, %v9505, %v9456
        %v9507 = vrot.slane %v9456, 4
        %v9508 = vsel %vm1105, %v9468, %v9507
        %v9510 = vunpack.c.l.s4 1934713408
        %v9511 = vunpack.c.0.s8 %v9510
        %v9512 = vperm.slane %v9506, %v9511
        %v9514 = vunpack.c.l.s4 1934713408
        %v9515 = vunpack.c.0.s8 %v9514
        %v9516 = vperm.slane %v9508, %v9515
        %v9517 = vrot.slane %v9488, 4
        %v9518 = vsel %vm1105, %v9517, %v9476
        %v9519 = vrot.slane %v9476, 4
        %v9520 = vsel %vm1105, %v9488, %v9519
        %v9522 = vunpack.c.l.s4 1934713408
        %v9523 = vunpack.c.0.s8 %v9522
        %v9524 = vperm.slane %v9518, %v9523
        %v9526 = vunpack.c.l.s4 1934713408
        %v9527 = vunpack.c.0.s8 %v9526
        %v9528 = vperm.slane %v9520, %v9527
        %v9529 = vrot.slane %v9492, 4
        %v9530 = vsel %vm1105, %v9529, %v9480
        %v9531 = vrot.slane %v9480, 4
        %v9532 = vsel %vm1105, %v9492, %v9531
        %v9534 = vunpack.c.l.s4 1934713408
        %v9535 = vunpack.c.0.s8 %v9534
        %v9536 = vperm.slane %v9530, %v9535
        %v9538 = vunpack.c.l.s4 1934713408
        %v9539 = vunpack.c.0.s8 %v9538
        %v9540 = vperm.slane %v9532, %v9539
        %v9541 = vrot.slane %v9524, 4
        %v9542 = vsel %vm1105, %v9541, %v9500
        %v9543 = vrot.slane %v9500, 4
        %v9544 = vsel %vm1105, %v9524, %v9543
        %v9545 = vrot.slane %v9528, 4
        %v9546 = vsel %vm1105, %v9545, %v9504
        %v9547 = vrot.slane %v9504, 4
        %v9548 = vsel %vm1105, %v9528, %v9547
        %v9549 = vrot.slane %v9536, 4
        %v9550 = vsel %vm1105, %v9549, %v9512
        %v9551 = vrot.slane %v9512, 4
        %v9552 = vsel %vm1105, %v9536, %v9551
        %v9553 = vrot.slane %v9540, 4
        %v9554 = vsel %vm1105, %v9553, %v9516
        %v9555 = vrot.slane %v9516, 4
        %v9556 = vsel %vm1105, %v9540, %v9555
        %v9557 = vadd.f32 %v8411, %v9206
        %v9558 = vadd.f32 %v8412, %v9318
        %v9559 = vadd.f32 %v8413, %v9430
        %v9560 = vadd.f32 %v8414, %v9542
        %v9561 = vadd.f32 %v8415, %v9208
        %v9562 = vadd.f32 %v8416, %v9320
        %v9563 = vadd.f32 %v8417, %v9432
        %v9564 = vadd.f32 %v8418, %v9544
        %v9565 = vadd.f32 %v8419, %v9210
        %v9566 = vadd.f32 %v8420, %v9322
        %v9567 = vadd.f32 %v8421, %v9434
        %v9568 = vadd.f32 %v8422, %v9546
        %v9569 = vadd.f32 %v8423, %v9212
        %v9570 = vadd.f32 %v8424, %v9324
        %v9571 = vadd.f32 %v8425, %v9436
        %v9572 = vadd.f32 %v8426, %v9548
        %v9573 = vadd.f32 %v8427, %v9214
        %v9574 = vadd.f32 %v8428, %v9326
        %v9575 = vadd.f32 %v8429, %v9438
        %v9576 = vadd.f32 %v8430, %v9550
        %v9577 = vadd.f32 %v8431, %v9216
        %v9578 = vadd.f32 %v8432, %v9328
        %v9579 = vadd.f32 %v8433, %v9440
        %v9580 = vadd.f32 %v8434, %v9552
        %v9581 = vadd.f32 %v8435, %v9218
        %v9582 = vadd.f32 %v8436, %v9330
        %v9583 = vadd.f32 %v8437, %v9442
        %v9584 = vadd.f32 %v8438, %v9554
        %v9585 = vadd.f32 %v8439, %v9220
        %v9586 = vadd.f32 %v8440, %v9332
        %v9587 = vadd.f32 %v8441, %v9444
        %v9588 = vadd.f32 %v8442, %v9556
        %s9589 = scalar_lea.vmem %s3, 56
        %v9590 = vld [vmem:[%s9589] sm:$0xff]
        %9591 = vrot.lane.b32.xlu0 %v8448, 127
        %v9592 = vpop.permute.xlu0 %9591
        %9593 = vrot.lane.b32.xlu0 %v8450, 127
        %v9594 = vpop.permute.xlu0 %9593
        %9595 = vrot.lane.b32.xlu0 %v8452, 127
        %v9596 = vpop.permute.xlu0 %9595
        %9597 = vrot.lane.b32.xlu0 %v8454, 127
        %v9598 = vpop.permute.xlu0 %9597
        %9599 = vrot.lane.b32.xlu0 %v8457, 127
        %v9600 = vpop.permute.xlu0 %9599
        %9601 = vrot.lane.b32.xlu0 %v8459, 127
        %v9602 = vpop.permute.xlu0 %9601
        %9603 = vrot.lane.b32.xlu0 %v8461, 127
        %v9604 = vpop.permute.xlu0 %9603
        %9605 = vrot.lane.b32.xlu0 %v8463, 127
        %v9606 = vpop.permute.xlu0 %9605
        %9607 = vrot.lane.b32.xlu0 %v8466, 127
        %v9608 = vpop.permute.xlu0 %9607
        %9609 = vrot.lane.b32.xlu0 %v8468, 127
        %v9610 = vpop.permute.xlu0 %9609
        %9611 = vrot.lane.b32.xlu0 %v8470, 127
        %v9612 = vpop.permute.xlu0 %9611
        %9613 = vrot.lane.b32.xlu0 %v8472, 127
        %v9614 = vpop.permute.xlu0 %9613
        %9615 = vrot.lane.b32.xlu0 %v8475, 127
        %v9616 = vpop.permute.xlu0 %9615
        %9617 = vrot.lane.b32.xlu0 %v8477, 127
        %v9618 = vpop.permute.xlu0 %9617
        %9619 = vrot.lane.b32.xlu0 %v8479, 127
        %v9620 = vpop.permute.xlu0 %9619
        %9621 = vrot.lane.b32.xlu0 %v8481, 127
        %v9622 = vpop.permute.xlu0 %9621
        %v9639 = vrot.slane %v9608, 4
        %v9640 = vsel %vm1105, %v9639, %v9592
        %v9641 = vrot.slane %v9592, 4
        %v9642 = vsel %vm1105, %v9608, %v9641
        %v9644 = vunpack.c.l.s4 1983009808
        %v9645 = vunpack.c.0.s8 %v9644
        %v9646 = vperm.slane %v9640, %v9645
        %v9648 = vunpack.c.l.s4 1983009808
        %v9649 = vunpack.c.0.s8 %v9648
        %v9650 = vperm.slane %v9642, %v9649
        %v9651 = vrot.slane %v9616, 4
        %v9652 = vsel %vm1105, %v9651, %v9600
        %v9653 = vrot.slane %v9600, 4
        %v9654 = vsel %vm1105, %v9616, %v9653
        %v9656 = vunpack.c.l.s4 1983009808
        %v9657 = vunpack.c.0.s8 %v9656
        %v9658 = vperm.slane %v9652, %v9657
        %v9660 = vunpack.c.l.s4 1983009808
        %v9661 = vunpack.c.0.s8 %v9660
        %v9662 = vperm.slane %v9654, %v9661
        %v9663 = vrot.slane %v9658, 4
        %v9664 = vsel %vm1105, %v9663, %v9646
        %v9665 = vrot.slane %v9646, 4
        %v9666 = vsel %vm1105, %v9658, %v9665
        %v9668 = vunpack.c.l.s4 1934713408
        %v9669 = vunpack.c.0.s8 %v9668
        %v9670 = vperm.slane %v9664, %v9669
        %v9672 = vunpack.c.l.s4 1934713408
        %v9673 = vunpack.c.0.s8 %v9672
        %v9674 = vperm.slane %v9666, %v9673
        %v9675 = vrot.slane %v9662, 4
        %v9676 = vsel %vm1105, %v9675, %v9650
        %v9677 = vrot.slane %v9650, 4
        %v9678 = vsel %vm1105, %v9662, %v9677
        %v9680 = vunpack.c.l.s4 1934713408
        %v9681 = vunpack.c.0.s8 %v9680
        %v9682 = vperm.slane %v9676, %v9681
        %v9684 = vunpack.c.l.s4 1934713408
        %v9685 = vunpack.c.0.s8 %v9684
        %v9686 = vperm.slane %v9678, %v9685
        %v9687 = vrot.slane %v9670, 4
        %v9688 = vsel %vm1105, 0.0, %v9687
        %v9689 = vrot.slane %v9674, 4
        %v9690 = vsel %vm1105, 0.0, %v9689
        %v9691 = vrot.slane %v9682, 4
        %v9692 = vsel %vm1105, 0.0, %v9691
        %v9693 = vrot.slane %v9686, 4
        %v9694 = vsel %vm1105, 0.0, %v9693
        %v9695 = vrot.slane %v9610, 4
        %v9696 = vsel %vm1105, %v9695, %v9594
        %v9697 = vrot.slane %v9594, 4
        %v9698 = vsel %vm1105, %v9610, %v9697
        %v9700 = vunpack.c.l.s4 1983009808
        %v9701 = vunpack.c.0.s8 %v9700
        %v9702 = vperm.slane %v9696, %v9701
        %v9704 = vunpack.c.l.s4 1983009808
        %v9705 = vunpack.c.0.s8 %v9704
        %v9706 = vperm.slane %v9698, %v9705
        %v9707 = vrot.slane %v9618, 4
        %v9708 = vsel %vm1105, %v9707, %v9602
        %v9709 = vrot.slane %v9602, 4
        %v9710 = vsel %vm1105, %v9618, %v9709
        %v9712 = vunpack.c.l.s4 1983009808
        %v9713 = vunpack.c.0.s8 %v9712
        %v9714 = vperm.slane %v9708, %v9713
        %v9716 = vunpack.c.l.s4 1983009808
        %v9717 = vunpack.c.0.s8 %v9716
        %v9718 = vperm.slane %v9710, %v9717
        %v9719 = vrot.slane %v9714, 4
        %v9720 = vsel %vm1105, %v9719, %v9702
        %v9721 = vrot.slane %v9702, 4
        %v9722 = vsel %vm1105, %v9714, %v9721
        %v9724 = vunpack.c.l.s4 1934713408
        %v9725 = vunpack.c.0.s8 %v9724
        %v9726 = vperm.slane %v9720, %v9725
        %v9728 = vunpack.c.l.s4 1934713408
        %v9729 = vunpack.c.0.s8 %v9728
        %v9730 = vperm.slane %v9722, %v9729
        %v9731 = vrot.slane %v9718, 4
        %v9732 = vsel %vm1105, %v9731, %v9706
        %v9733 = vrot.slane %v9706, 4
        %v9734 = vsel %vm1105, %v9718, %v9733
        %v9736 = vunpack.c.l.s4 1934713408
        %v9737 = vunpack.c.0.s8 %v9736
        %v9738 = vperm.slane %v9732, %v9737
        %v9740 = vunpack.c.l.s4 1934713408
        %v9741 = vunpack.c.0.s8 %v9740
        %v9742 = vperm.slane %v9734, %v9741
        %v9743 = vrot.slane %v9726, 4
        %v9744 = vsel %vm1105, 0.0, %v9743
        %v9745 = vrot.slane %v9730, 4
        %v9746 = vsel %vm1105, 0.0, %v9745
        %v9747 = vrot.slane %v9738, 4
        %v9748 = vsel %vm1105, 0.0, %v9747
        %v9749 = vrot.slane %v9742, 4
        %v9750 = vsel %vm1105, 0.0, %v9749
        %v9751 = vrot.slane %v9612, 4
        %v9752 = vsel %vm1105, %v9751, %v9596
        %v9753 = vrot.slane %v9596, 4
        %v9754 = vsel %vm1105, %v9612, %v9753
        %v9756 = vunpack.c.l.s4 1983009808
        %v9757 = vunpack.c.0.s8 %v9756
        %v9758 = vperm.slane %v9752, %v9757
        %v9760 = vunpack.c.l.s4 1983009808
        %v9761 = vunpack.c.0.s8 %v9760
        %v9762 = vperm.slane %v9754, %v9761
        %v9763 = vrot.slane %v9620, 4
        %v9764 = vsel %vm1105, %v9763, %v9604
        %v9765 = vrot.slane %v9604, 4
        %v9766 = vsel %vm1105, %v9620, %v9765
        %v9768 = vunpack.c.l.s4 1983009808
        %v9769 = vunpack.c.0.s8 %v9768
        %v9770 = vperm.slane %v9764, %v9769
        %v9772 = vunpack.c.l.s4 1983009808
        %v9773 = vunpack.c.0.s8 %v9772
        %v9774 = vperm.slane %v9766, %v9773
        %v9775 = vrot.slane %v9770, 4
        %v9776 = vsel %vm1105, %v9775, %v9758
        %v9777 = vrot.slane %v9758, 4
        %v9778 = vsel %vm1105, %v9770, %v9777
        %v9780 = vunpack.c.l.s4 1934713408
        %v9781 = vunpack.c.0.s8 %v9780
        %v9782 = vperm.slane %v9776, %v9781
        %v9784 = vunpack.c.l.s4 1934713408
        %v9785 = vunpack.c.0.s8 %v9784
        %v9786 = vperm.slane %v9778, %v9785
        %v9787 = vrot.slane %v9774, 4
        %v9788 = vsel %vm1105, %v9787, %v9762
        %v9789 = vrot.slane %v9762, 4
        %v9790 = vsel %vm1105, %v9774, %v9789
        %v9792 = vunpack.c.l.s4 1934713408
        %v9793 = vunpack.c.0.s8 %v9792
        %v9794 = vperm.slane %v9788, %v9793
        %v9796 = vunpack.c.l.s4 1934713408
        %v9797 = vunpack.c.0.s8 %v9796
        %v9798 = vperm.slane %v9790, %v9797
        %v9799 = vrot.slane %v9782, 4
        %v9800 = vsel %vm1105, 0.0, %v9799
        %v9801 = vrot.slane %v9786, 4
        %v9802 = vsel %vm1105, 0.0, %v9801
        %v9803 = vrot.slane %v9794, 4
        %v9804 = vsel %vm1105, 0.0, %v9803
        %v9805 = vrot.slane %v9798, 4
        %v9806 = vsel %vm1105, 0.0, %v9805
        %v9807 = vrot.slane %v9614, 4
        %v9808 = vsel %vm1105, %v9807, %v9598
        %v9809 = vrot.slane %v9598, 4
        %v9810 = vsel %vm1105, %v9614, %v9809
        %v9812 = vunpack.c.l.s4 1983009808
        %v9813 = vunpack.c.0.s8 %v9812
        %v9814 = vperm.slane %v9808, %v9813
        %v9816 = vunpack.c.l.s4 1983009808
        %v9817 = vunpack.c.0.s8 %v9816
        %v9818 = vperm.slane %v9810, %v9817
        %v9819 = vrot.slane %v9622, 4
        %v9820 = vsel %vm1105, %v9819, %v9606
        %v9821 = vrot.slane %v9606, 4
        %v9822 = vsel %vm1105, %v9622, %v9821
        %v9824 = vunpack.c.l.s4 1983009808
        %v9825 = vunpack.c.0.s8 %v9824
        %v9826 = vperm.slane %v9820, %v9825
        %v9828 = vunpack.c.l.s4 1983009808
        %v9829 = vunpack.c.0.s8 %v9828
        %v9830 = vperm.slane %v9822, %v9829
        %v9831 = vrot.slane %v9826, 4
        %v9832 = vsel %vm1105, %v9831, %v9814
        %v9833 = vrot.slane %v9814, 4
        %v9834 = vsel %vm1105, %v9826, %v9833
        %v9836 = vunpack.c.l.s4 1934713408
        %v9837 = vunpack.c.0.s8 %v9836
        %v9838 = vperm.slane %v9832, %v9837
        %v9840 = vunpack.c.l.s4 1934713408
        %v9841 = vunpack.c.0.s8 %v9840
        %v9842 = vperm.slane %v9834, %v9841
        %v9843 = vrot.slane %v9830, 4
        %v9844 = vsel %vm1105, %v9843, %v9818
        %v9845 = vrot.slane %v9818, 4
        %v9846 = vsel %vm1105, %v9830, %v9845
        %v9848 = vunpack.c.l.s4 1934713408
        %v9849 = vunpack.c.0.s8 %v9848
        %v9850 = vperm.slane %v9844, %v9849
        %v9852 = vunpack.c.l.s4 1934713408
        %v9853 = vunpack.c.0.s8 %v9852
        %v9854 = vperm.slane %v9846, %v9853
        %v9855 = vrot.slane %v9838, 4
        %v9856 = vsel %vm1105, 0.0, %v9855
        %v9857 = vrot.slane %v9842, 4
        %v9858 = vsel %vm1105, 0.0, %v9857
        %v9859 = vrot.slane %v9850, 4
        %v9860 = vsel %vm1105, 0.0, %v9859
        %v9861 = vrot.slane %v9854, 4
        %v9862 = vsel %vm1105, 0.0, %v9861
        %9864 = vrot.lane.b32.xlu0 %v9688, 32
        %v9865 = vpop.permute.xlu0 %9864
        %9868 = vrot.lane.b32.xlu0 %v9674, 64
        %v9869 = vpop.permute.xlu0 %9868
        %9872 = vrot.lane.b32.xlu0 %v9690, 96
        %v9873 = vpop.permute.xlu0 %9872
        %9876 = vrot.lane.b32.xlu0 %v9692, 32
        %v9877 = vpop.permute.xlu0 %9876
        %9880 = vrot.lane.b32.xlu0 %v9686, 64
        %v9881 = vpop.permute.xlu0 %9880
        %9884 = vrot.lane.b32.xlu0 %v9694, 96
        %v9885 = vpop.permute.xlu0 %9884
        %9888 = vrot.lane.b32.xlu0 %v9744, 32
        %v9889 = vpop.permute.xlu0 %9888
        %9892 = vrot.lane.b32.xlu0 %v9730, 64
        %v9893 = vpop.permute.xlu0 %9892
        %9896 = vrot.lane.b32.xlu0 %v9746, 96
        %v9897 = vpop.permute.xlu0 %9896
        %9900 = vrot.lane.b32.xlu0 %v9748, 32
        %v9901 = vpop.permute.xlu0 %9900
        %9904 = vrot.lane.b32.xlu0 %v9742, 64
        %v9905 = vpop.permute.xlu0 %9904
        %9908 = vrot.lane.b32.xlu0 %v9750, 96
        %v9909 = vpop.permute.xlu0 %9908
        %9912 = vrot.lane.b32.xlu0 %v9800, 32
        %v9913 = vpop.permute.xlu0 %9912
        %9916 = vrot.lane.b32.xlu0 %v9786, 64
        %v9917 = vpop.permute.xlu0 %9916
        %9920 = vrot.lane.b32.xlu0 %v9802, 96
        %v9921 = vpop.permute.xlu0 %9920
        %9924 = vrot.lane.b32.xlu0 %v9804, 32
        %v9925 = vpop.permute.xlu0 %9924
        %9928 = vrot.lane.b32.xlu0 %v9798, 64
        %v9929 = vpop.permute.xlu0 %9928
        %9932 = vrot.lane.b32.xlu0 %v9806, 96
        %v9933 = vpop.permute.xlu0 %9932
        %9936 = vrot.lane.b32.xlu0 %v9856, 32
        %v9937 = vpop.permute.xlu0 %9936
        %9940 = vrot.lane.b32.xlu0 %v9842, 64
        %v9941 = vpop.permute.xlu0 %9940
        %9944 = vrot.lane.b32.xlu0 %v9858, 96
        %v9945 = vpop.permute.xlu0 %9944
        %9948 = vrot.lane.b32.xlu0 %v9860, 32
        %v9949 = vpop.permute.xlu0 %9948
        %9952 = vrot.lane.b32.xlu0 %v9854, 64
        %v9953 = vpop.permute.xlu0 %9952
        %9956 = vrot.lane.b32.xlu0 %v9862, 96
        %v9957 = vpop.permute.xlu0 %9956
        %v9959 = vsel %vm1425, %v9670, %v9865
        %v9960 = vsel %vm1427, %v9959, %v9869
        %v9961 = vsel %vm1429, %v9960, %v9873
        %v9962 = vsel %vm1425, %v9682, %v9877
        %v9963 = vsel %vm1427, %v9962, %v9881
        %v9964 = vsel %vm1429, %v9963, %v9885
        %v9965 = vsel %vm1425, %v9726, %v9889
        %v9966 = vsel %vm1427, %v9965, %v9893
        %v9967 = vsel %vm1429, %v9966, %v9897
        %v9968 = vsel %vm1425, %v9738, %v9901
        %v9969 = vsel %vm1427, %v9968, %v9905
        %v9970 = vsel %vm1429, %v9969, %v9909
        %v9971 = vsel %vm1425, %v9782, %v9913
        %v9972 = vsel %vm1427, %v9971, %v9917
        %v9973 = vsel %vm1429, %v9972, %v9921
        %v9974 = vsel %vm1425, %v9794, %v9925
        %v9975 = vsel %vm1427, %v9974, %v9929
        %v9976 = vsel %vm1429, %v9975, %v9933
        %v9977 = vsel %vm1425, %v9838, %v9937
        %v9978 = vsel %vm1427, %v9977, %v9941
        %v9979 = vsel %vm1429, %v9978, %v9945
        %v9980 = vsel %vm1425, %v9850, %v9949
        %v9981 = vsel %vm1427, %v9980, %v9953
        %v9982 = vsel %vm1429, %v9981, %v9957
        %v9984 = vsel %vm1526, %v9590, 0
        %v9987 = vsel %vm1530, %v9961, 0
        %v9990 = vsel %vm1530, %v9964, 0
        %v9993 = vsel %vm1530, %v9967, 0
        %v9996 = vsel %vm1530, %v9970, 0
        %v9999 = vsel %vm1530, %v9973, 0
        %v10002 = vsel %vm1530, %v9976, 0
        %v10005 = vsel %vm1530, %v9979, 0
        %v10008 = vsel %vm1530, %v9982, 0
        %10010 = vmatpush.msra.mxu0 0.0
        %10011 = vmatpush.msra.mxu0 0.0
        %10012 = vmatpush.msra.mxu0 0.0
        %10013 = vmatpush.msra.mxu0 0.0
        %10014 = vmatpush.msra.mxu0 0.0
        %10015 = vmatpush.msra.mxu0 0.0
        %10016 = vmatpush.msra.mxu0 0.0
        %10017 = vmatpush.msra.mxu0 0.0
        %10018 = vmatpush.msra.mxu0 0.0
        %10019 = vmatpush.msra.mxu0 0.0
        %10020 = vmatpush.msra.mxu0 0.0
        %10021 = vmatpush.msra.mxu0 0.0
        %10022 = vmatpush.msra.mxu0 0.0
        %10023 = vmatpush.msra.mxu0 0.0
        %10024 = vmatpush.msra.mxu0 0.0
        %10025 = vmatpush.msra.mxu0 %v9987
        %10026 = vmatmul.f32.gmra.mxu0 %v9984
        %v10027 = vpop.f32.mrf.mxu0
        %v10028 = vadd.f32 %v1522, %v10027
        %10029 = vdwg.mxu0
        %10030 = vmatpush.msra.mxu0 0.0
        %10031 = vmatpush.msra.mxu0 0.0
        %10032 = vmatpush.msra.mxu0 0.0
        %10033 = vmatpush.msra.mxu0 0.0
        %10034 = vmatpush.msra.mxu0 0.0
        %10035 = vmatpush.msra.mxu0 0.0
        %10036 = vmatpush.msra.mxu0 0.0
        %10037 = vmatpush.msra.mxu0 0.0
        %10038 = vmatpush.msra.mxu0 0.0
        %10039 = vmatpush.msra.mxu0 0.0
        %10040 = vmatpush.msra.mxu0 0.0
        %10041 = vmatpush.msra.mxu0 0.0
        %10042 = vmatpush.msra.mxu0 0.0
        %10043 = vmatpush.msra.mxu0 0.0
        %10044 = vmatpush.msra.mxu0 0.0
        %10045 = vmatpush.msra.mxu0 %v9990
        %10046 = vmatmul.f32.gmra.mxu0 %v9984
        %v10047 = vpop.f32.mrf.mxu0
        %v10048 = vadd.f32 %v1525, %v10047
        %10049 = vdwg.mxu0
        %10050 = vmatpush.msra.mxu0 0.0
        %10051 = vmatpush.msra.mxu0 0.0
        %10052 = vmatpush.msra.mxu0 0.0
        %10053 = vmatpush.msra.mxu0 0.0
        %10054 = vmatpush.msra.mxu0 0.0
        %10055 = vmatpush.msra.mxu0 0.0
        %10056 = vmatpush.msra.mxu0 0.0
        %10057 = vmatpush.msra.mxu0 0.0
        %10058 = vmatpush.msra.mxu0 0.0
        %10059 = vmatpush.msra.mxu0 0.0
        %10060 = vmatpush.msra.mxu0 0.0
        %10061 = vmatpush.msra.mxu0 0.0
        %10062 = vmatpush.msra.mxu0 0.0
        %10063 = vmatpush.msra.mxu0 0.0
        %10064 = vmatpush.msra.mxu0 0.0
        %10065 = vmatpush.msra.mxu0 %v9993
        %10066 = vmatmul.f32.gmra.mxu0 %v9984
        %v10067 = vpop.f32.mrf.mxu0
        %v10068 = vadd.f32 %v1522, %v10067
        %10069 = vdwg.mxu0
        %10070 = vmatpush.msra.mxu0 0.0
        %10071 = vmatpush.msra.mxu0 0.0
        %10072 = vmatpush.msra.mxu0 0.0
        %10073 = vmatpush.msra.mxu0 0.0
        %10074 = vmatpush.msra.mxu0 0.0
        %10075 = vmatpush.msra.mxu0 0.0
        %10076 = vmatpush.msra.mxu0 0.0
        %10077 = vmatpush.msra.mxu0 0.0
        %10078 = vmatpush.msra.mxu0 0.0
        %10079 = vmatpush.msra.mxu0 0.0
        %10080 = vmatpush.msra.mxu0 0.0
        %10081 = vmatpush.msra.mxu0 0.0
        %10082 = vmatpush.msra.mxu0 0.0
        %10083 = vmatpush.msra.mxu0 0.0
        %10084 = vmatpush.msra.mxu0 0.0
        %10085 = vmatpush.msra.mxu0 %v9996
        %10086 = vmatmul.f32.gmra.mxu0 %v9984
        %v10087 = vpop.f32.mrf.mxu0
        %v10088 = vadd.f32 %v1525, %v10087
        %10089 = vdwg.mxu0
        %10090 = vmatpush.msra.mxu0 0.0
        %10091 = vmatpush.msra.mxu0 0.0
        %10092 = vmatpush.msra.mxu0 0.0
        %10093 = vmatpush.msra.mxu0 0.0
        %10094 = vmatpush.msra.mxu0 0.0
        %10095 = vmatpush.msra.mxu0 0.0
        %10096 = vmatpush.msra.mxu0 0.0
        %10097 = vmatpush.msra.mxu0 0.0
        %10098 = vmatpush.msra.mxu0 0.0
        %10099 = vmatpush.msra.mxu0 0.0
        %10100 = vmatpush.msra.mxu0 0.0
        %10101 = vmatpush.msra.mxu0 0.0
        %10102 = vmatpush.msra.mxu0 0.0
        %10103 = vmatpush.msra.mxu0 0.0
        %10104 = vmatpush.msra.mxu0 0.0
        %10105 = vmatpush.msra.mxu0 %v9999
        %10106 = vmatmul.f32.gmra.mxu0 %v9984
        %v10107 = vpop.f32.mrf.mxu0
        %v10108 = vadd.f32 %v1522, %v10107
        %10109 = vdwg.mxu0
        %10110 = vmatpush.msra.mxu0 0.0
        %10111 = vmatpush.msra.mxu0 0.0
        %10112 = vmatpush.msra.mxu0 0.0
        %10113 = vmatpush.msra.mxu0 0.0
        %10114 = vmatpush.msra.mxu0 0.0
        %10115 = vmatpush.msra.mxu0 0.0
        %10116 = vmatpush.msra.mxu0 0.0
        %10117 = vmatpush.msra.mxu0 0.0
        %10118 = vmatpush.msra.mxu0 0.0
        %10119 = vmatpush.msra.mxu0 0.0
        %10120 = vmatpush.msra.mxu0 0.0
        %10121 = vmatpush.msra.mxu0 0.0
        %10122 = vmatpush.msra.mxu0 0.0
        %10123 = vmatpush.msra.mxu0 0.0
        %10124 = vmatpush.msra.mxu0 0.0
        %10125 = vmatpush.msra.mxu0 %v10002
        %10126 = vmatmul.f32.gmra.mxu0 %v9984
        %v10127 = vpop.f32.mrf.mxu0
        %v10128 = vadd.f32 %v1525, %v10127
        %10129 = vdwg.mxu0
        %10130 = vmatpush.msra.mxu0 0.0
        %10131 = vmatpush.msra.mxu0 0.0
        %10132 = vmatpush.msra.mxu0 0.0
        %10133 = vmatpush.msra.mxu0 0.0
        %10134 = vmatpush.msra.mxu0 0.0
        %10135 = vmatpush.msra.mxu0 0.0
        %10136 = vmatpush.msra.mxu0 0.0
        %10137 = vmatpush.msra.mxu0 0.0
        %10138 = vmatpush.msra.mxu0 0.0
        %10139 = vmatpush.msra.mxu0 0.0
        %10140 = vmatpush.msra.mxu0 0.0
        %10141 = vmatpush.msra.mxu0 0.0
        %10142 = vmatpush.msra.mxu0 0.0
        %10143 = vmatpush.msra.mxu0 0.0
        %10144 = vmatpush.msra.mxu0 0.0
        %10145 = vmatpush.msra.mxu0 %v10005
        %10146 = vmatmul.f32.gmra.mxu0 %v9984
        %v10147 = vpop.f32.mrf.mxu0
        %v10148 = vadd.f32 %v1522, %v10147
        %10149 = vdwg.mxu0
        %10150 = vmatpush.msra.mxu0 0.0
        %10151 = vmatpush.msra.mxu0 0.0
        %10152 = vmatpush.msra.mxu0 0.0
        %10153 = vmatpush.msra.mxu0 0.0
        %10154 = vmatpush.msra.mxu0 0.0
        %10155 = vmatpush.msra.mxu0 0.0
        %10156 = vmatpush.msra.mxu0 0.0
        %10157 = vmatpush.msra.mxu0 0.0
        %10158 = vmatpush.msra.mxu0 0.0
        %10159 = vmatpush.msra.mxu0 0.0
        %10160 = vmatpush.msra.mxu0 0.0
        %10161 = vmatpush.msra.mxu0 0.0
        %10162 = vmatpush.msra.mxu0 0.0
        %10163 = vmatpush.msra.mxu0 0.0
        %10164 = vmatpush.msra.mxu0 0.0
        %10165 = vmatpush.msra.mxu0 %v10008
        %10166 = vmatmul.f32.gmra.mxu0 %v9984
        %v10167 = vpop.f32.mrf.mxu0
        %v10168 = vadd.f32 %v1525, %v10167
        %10169 = vdwg.mxu0
        %10171 = vrot.lane.b32.xlu0 %v10028, 96
        %v10172 = vpop.permute.xlu0 %10171
        %10174 = vrot.lane.b32.xlu0 %v10028, 64
        %v10175 = vpop.permute.xlu0 %10174
        %10177 = vrot.lane.b32.xlu0 %v10028, 32
        %v10178 = vpop.permute.xlu0 %10177
        %10181 = vrot.lane.b32.xlu0 %v10048, 96
        %v10182 = vpop.permute.xlu0 %10181
        %10184 = vrot.lane.b32.xlu0 %v10048, 64
        %v10185 = vpop.permute.xlu0 %10184
        %10187 = vrot.lane.b32.xlu0 %v10048, 32
        %v10188 = vpop.permute.xlu0 %10187
        %10191 = vrot.lane.b32.xlu0 %v10068, 96
        %v10192 = vpop.permute.xlu0 %10191
        %10194 = vrot.lane.b32.xlu0 %v10068, 64
        %v10195 = vpop.permute.xlu0 %10194
        %10197 = vrot.lane.b32.xlu0 %v10068, 32
        %v10198 = vpop.permute.xlu0 %10197
        %10201 = vrot.lane.b32.xlu0 %v10088, 96
        %v10202 = vpop.permute.xlu0 %10201
        %10204 = vrot.lane.b32.xlu0 %v10088, 64
        %v10205 = vpop.permute.xlu0 %10204
        %10207 = vrot.lane.b32.xlu0 %v10088, 32
        %v10208 = vpop.permute.xlu0 %10207
        %10211 = vrot.lane.b32.xlu0 %v10108, 96
        %v10212 = vpop.permute.xlu0 %10211
        %10214 = vrot.lane.b32.xlu0 %v10108, 64
        %v10215 = vpop.permute.xlu0 %10214
        %10217 = vrot.lane.b32.xlu0 %v10108, 32
        %v10218 = vpop.permute.xlu0 %10217
        %10221 = vrot.lane.b32.xlu0 %v10128, 96
        %v10222 = vpop.permute.xlu0 %10221
        %10224 = vrot.lane.b32.xlu0 %v10128, 64
        %v10225 = vpop.permute.xlu0 %10224
        %10227 = vrot.lane.b32.xlu0 %v10128, 32
        %v10228 = vpop.permute.xlu0 %10227
        %10231 = vrot.lane.b32.xlu0 %v10148, 96
        %v10232 = vpop.permute.xlu0 %10231
        %10234 = vrot.lane.b32.xlu0 %v10148, 64
        %v10235 = vpop.permute.xlu0 %10234
        %10237 = vrot.lane.b32.xlu0 %v10148, 32
        %v10238 = vpop.permute.xlu0 %10237
        %10241 = vrot.lane.b32.xlu0 %v10168, 96
        %v10242 = vpop.permute.xlu0 %10241
        %10244 = vrot.lane.b32.xlu0 %v10168, 64
        %v10245 = vpop.permute.xlu0 %10244
        %10247 = vrot.lane.b32.xlu0 %v10168, 32
        %v10248 = vpop.permute.xlu0 %10247
        %v10250 = vrot.slane %v10175, 4
        %v10251 = vsel %vm1105, %v10250, %v10028
        %v10252 = vrot.slane %v10028, 4
        %v10253 = vsel %vm1105, %v10175, %v10252
        %v10255 = vunpack.c.l.s4 1983009808
        %v10256 = vunpack.c.0.s8 %v10255
        %v10257 = vperm.slane %v10251, %v10256
        %v10259 = vunpack.c.l.s4 1983009808
        %v10260 = vunpack.c.0.s8 %v10259
        %v10261 = vperm.slane %v10253, %v10260
        %v10262 = vrot.slane %v10178, 4
        %v10263 = vsel %vm1105, %v10262, %v10172
        %v10264 = vrot.slane %v10172, 4
        %v10265 = vsel %vm1105, %v10178, %v10264
        %v10267 = vunpack.c.l.s4 1983009808
        %v10268 = vunpack.c.0.s8 %v10267
        %v10269 = vperm.slane %v10263, %v10268
        %v10271 = vunpack.c.l.s4 1983009808
        %v10272 = vunpack.c.0.s8 %v10271
        %v10273 = vperm.slane %v10265, %v10272
        %v10274 = vrot.slane %v10185, 4
        %v10275 = vsel %vm1105, %v10274, %v10048
        %v10276 = vrot.slane %v10048, 4
        %v10277 = vsel %vm1105, %v10185, %v10276
        %v10279 = vunpack.c.l.s4 1983009808
        %v10280 = vunpack.c.0.s8 %v10279
        %v10281 = vperm.slane %v10275, %v10280
        %v10283 = vunpack.c.l.s4 1983009808
        %v10284 = vunpack.c.0.s8 %v10283
        %v10285 = vperm.slane %v10277, %v10284
        %v10286 = vrot.slane %v10188, 4
        %v10287 = vsel %vm1105, %v10286, %v10182
        %v10288 = vrot.slane %v10182, 4
        %v10289 = vsel %vm1105, %v10188, %v10288
        %v10291 = vunpack.c.l.s4 1983009808
        %v10292 = vunpack.c.0.s8 %v10291
        %v10293 = vperm.slane %v10287, %v10292
        %v10295 = vunpack.c.l.s4 1983009808
        %v10296 = vunpack.c.0.s8 %v10295
        %v10297 = vperm.slane %v10289, %v10296
        %v10298 = vrot.slane %v10269, 4
        %v10299 = vsel %vm1105, %v10298, %v10257
        %v10300 = vrot.slane %v10257, 4
        %v10301 = vsel %vm1105, %v10269, %v10300
        %v10303 = vunpack.c.l.s4 1934713408
        %v10304 = vunpack.c.0.s8 %v10303
        %v10305 = vperm.slane %v10299, %v10304
        %v10307 = vunpack.c.l.s4 1934713408
        %v10308 = vunpack.c.0.s8 %v10307
        %v10309 = vperm.slane %v10301, %v10308
        %v10310 = vrot.slane %v10273, 4
        %v10311 = vsel %vm1105, %v10310, %v10261
        %v10312 = vrot.slane %v10261, 4
        %v10313 = vsel %vm1105, %v10273, %v10312
        %v10315 = vunpack.c.l.s4 1934713408
        %v10316 = vunpack.c.0.s8 %v10315
        %v10317 = vperm.slane %v10311, %v10316
        %v10319 = vunpack.c.l.s4 1934713408
        %v10320 = vunpack.c.0.s8 %v10319
        %v10321 = vperm.slane %v10313, %v10320
        %v10322 = vrot.slane %v10293, 4
        %v10323 = vsel %vm1105, %v10322, %v10281
        %v10324 = vrot.slane %v10281, 4
        %v10325 = vsel %vm1105, %v10293, %v10324
        %v10327 = vunpack.c.l.s4 1934713408
        %v10328 = vunpack.c.0.s8 %v10327
        %v10329 = vperm.slane %v10323, %v10328
        %v10331 = vunpack.c.l.s4 1934713408
        %v10332 = vunpack.c.0.s8 %v10331
        %v10333 = vperm.slane %v10325, %v10332
        %v10334 = vrot.slane %v10297, 4
        %v10335 = vsel %vm1105, %v10334, %v10285
        %v10336 = vrot.slane %v10285, 4
        %v10337 = vsel %vm1105, %v10297, %v10336
        %v10339 = vunpack.c.l.s4 1934713408
        %v10340 = vunpack.c.0.s8 %v10339
        %v10341 = vperm.slane %v10335, %v10340
        %v10343 = vunpack.c.l.s4 1934713408
        %v10344 = vunpack.c.0.s8 %v10343
        %v10345 = vperm.slane %v10337, %v10344
        %v10346 = vrot.slane %v10329, 4
        %v10347 = vsel %vm1105, %v10346, %v10305
        %v10348 = vrot.slane %v10305, 4
        %v10349 = vsel %vm1105, %v10329, %v10348
        %v10350 = vrot.slane %v10333, 4
        %v10351 = vsel %vm1105, %v10350, %v10309
        %v10352 = vrot.slane %v10309, 4
        %v10353 = vsel %vm1105, %v10333, %v10352
        %v10354 = vrot.slane %v10341, 4
        %v10355 = vsel %vm1105, %v10354, %v10317
        %v10356 = vrot.slane %v10317, 4
        %v10357 = vsel %vm1105, %v10341, %v10356
        %v10358 = vrot.slane %v10345, 4
        %v10359 = vsel %vm1105, %v10358, %v10321
        %v10360 = vrot.slane %v10321, 4
        %v10361 = vsel %vm1105, %v10345, %v10360
        %v10362 = vrot.slane %v10195, 4
        %v10363 = vsel %vm1105, %v10362, %v10068
        %v10364 = vrot.slane %v10068, 4
        %v10365 = vsel %vm1105, %v10195, %v10364
        %v10367 = vunpack.c.l.s4 1983009808
        %v10368 = vunpack.c.0.s8 %v10367
        %v10369 = vperm.slane %v10363, %v10368
        %v10371 = vunpack.c.l.s4 1983009808
        %v10372 = vunpack.c.0.s8 %v10371
        %v10373 = vperm.slane %v10365, %v10372
        %v10374 = vrot.slane %v10198, 4
        %v10375 = vsel %vm1105, %v10374, %v10192
        %v10376 = vrot.slane %v10192, 4
        %v10377 = vsel %vm1105, %v10198, %v10376
        %v10379 = vunpack.c.l.s4 1983009808
        %v10380 = vunpack.c.0.s8 %v10379
        %v10381 = vperm.slane %v10375, %v10380
        %v10383 = vunpack.c.l.s4 1983009808
        %v10384 = vunpack.c.0.s8 %v10383
        %v10385 = vperm.slane %v10377, %v10384
        %v10386 = vrot.slane %v10205, 4
        %v10387 = vsel %vm1105, %v10386, %v10088
        %v10388 = vrot.slane %v10088, 4
        %v10389 = vsel %vm1105, %v10205, %v10388
        %v10391 = vunpack.c.l.s4 1983009808
        %v10392 = vunpack.c.0.s8 %v10391
        %v10393 = vperm.slane %v10387, %v10392
        %v10395 = vunpack.c.l.s4 1983009808
        %v10396 = vunpack.c.0.s8 %v10395
        %v10397 = vperm.slane %v10389, %v10396
        %v10398 = vrot.slane %v10208, 4
        %v10399 = vsel %vm1105, %v10398, %v10202
        %v10400 = vrot.slane %v10202, 4
        %v10401 = vsel %vm1105, %v10208, %v10400
        %v10403 = vunpack.c.l.s4 1983009808
        %v10404 = vunpack.c.0.s8 %v10403
        %v10405 = vperm.slane %v10399, %v10404
        %v10407 = vunpack.c.l.s4 1983009808
        %v10408 = vunpack.c.0.s8 %v10407
        %v10409 = vperm.slane %v10401, %v10408
        %v10410 = vrot.slane %v10381, 4
        %v10411 = vsel %vm1105, %v10410, %v10369
        %v10412 = vrot.slane %v10369, 4
        %v10413 = vsel %vm1105, %v10381, %v10412
        %v10415 = vunpack.c.l.s4 1934713408
        %v10416 = vunpack.c.0.s8 %v10415
        %v10417 = vperm.slane %v10411, %v10416
        %v10419 = vunpack.c.l.s4 1934713408
        %v10420 = vunpack.c.0.s8 %v10419
        %v10421 = vperm.slane %v10413, %v10420
        %v10422 = vrot.slane %v10385, 4
        %v10423 = vsel %vm1105, %v10422, %v10373
        %v10424 = vrot.slane %v10373, 4
        %v10425 = vsel %vm1105, %v10385, %v10424
        %v10427 = vunpack.c.l.s4 1934713408
        %v10428 = vunpack.c.0.s8 %v10427
        %v10429 = vperm.slane %v10423, %v10428
        %v10431 = vunpack.c.l.s4 1934713408
        %v10432 = vunpack.c.0.s8 %v10431
        %v10433 = vperm.slane %v10425, %v10432
        %v10434 = vrot.slane %v10405, 4
        %v10435 = vsel %vm1105, %v10434, %v10393
        %v10436 = vrot.slane %v10393, 4
        %v10437 = vsel %vm1105, %v10405, %v10436
        %v10439 = vunpack.c.l.s4 1934713408
        %v10440 = vunpack.c.0.s8 %v10439
        %v10441 = vperm.slane %v10435, %v10440
        %v10443 = vunpack.c.l.s4 1934713408
        %v10444 = vunpack.c.0.s8 %v10443
        %v10445 = vperm.slane %v10437, %v10444
        %v10446 = vrot.slane %v10409, 4
        %v10447 = vsel %vm1105, %v10446, %v10397
        %v10448 = vrot.slane %v10397, 4
        %v10449 = vsel %vm1105, %v10409, %v10448
        %v10451 = vunpack.c.l.s4 1934713408
        %v10452 = vunpack.c.0.s8 %v10451
        %v10453 = vperm.slane %v10447, %v10452
        %v10455 = vunpack.c.l.s4 1934713408
        %v10456 = vunpack.c.0.s8 %v10455
        %v10457 = vperm.slane %v10449, %v10456
        %v10458 = vrot.slane %v10441, 4
        %v10459 = vsel %vm1105, %v10458, %v10417
        %v10460 = vrot.slane %v10417, 4
        %v10461 = vsel %vm1105, %v10441, %v10460
        %v10462 = vrot.slane %v10445, 4
        %v10463 = vsel %vm1105, %v10462, %v10421
        %v10464 = vrot.slane %v10421, 4
        %v10465 = vsel %vm1105, %v10445, %v10464
        %v10466 = vrot.slane %v10453, 4
        %v10467 = vsel %vm1105, %v10466, %v10429
        %v10468 = vrot.slane %v10429, 4
        %v10469 = vsel %vm1105, %v10453, %v10468
        %v10470 = vrot.slane %v10457, 4
        %v10471 = vsel %vm1105, %v10470, %v10433
        %v10472 = vrot.slane %v10433, 4
        %v10473 = vsel %vm1105, %v10457, %v10472
        %v10474 = vrot.slane %v10215, 4
        %v10475 = vsel %vm1105, %v10474, %v10108
        %v10476 = vrot.slane %v10108, 4
        %v10477 = vsel %vm1105, %v10215, %v10476
        %v10479 = vunpack.c.l.s4 1983009808
        %v10480 = vunpack.c.0.s8 %v10479
        %v10481 = vperm.slane %v10475, %v10480
        %v10483 = vunpack.c.l.s4 1983009808
        %v10484 = vunpack.c.0.s8 %v10483
        %v10485 = vperm.slane %v10477, %v10484
        %v10486 = vrot.slane %v10218, 4
        %v10487 = vsel %vm1105, %v10486, %v10212
        %v10488 = vrot.slane %v10212, 4
        %v10489 = vsel %vm1105, %v10218, %v10488
        %v10491 = vunpack.c.l.s4 1983009808
        %v10492 = vunpack.c.0.s8 %v10491
        %v10493 = vperm.slane %v10487, %v10492
        %v10495 = vunpack.c.l.s4 1983009808
        %v10496 = vunpack.c.0.s8 %v10495
        %v10497 = vperm.slane %v10489, %v10496
        %v10498 = vrot.slane %v10225, 4
        %v10499 = vsel %vm1105, %v10498, %v10128
        %v10500 = vrot.slane %v10128, 4
        %v10501 = vsel %vm1105, %v10225, %v10500
        %v10503 = vunpack.c.l.s4 1983009808
        %v10504 = vunpack.c.0.s8 %v10503
        %v10505 = vperm.slane %v10499, %v10504
        %v10507 = vunpack.c.l.s4 1983009808
        %v10508 = vunpack.c.0.s8 %v10507
        %v10509 = vperm.slane %v10501, %v10508
        %v10510 = vrot.slane %v10228, 4
        %v10511 = vsel %vm1105, %v10510, %v10222
        %v10512 = vrot.slane %v10222, 4
        %v10513 = vsel %vm1105, %v10228, %v10512
        %v10515 = vunpack.c.l.s4 1983009808
        %v10516 = vunpack.c.0.s8 %v10515
        %v10517 = vperm.slane %v10511, %v10516
        %v10519 = vunpack.c.l.s4 1983009808
        %v10520 = vunpack.c.0.s8 %v10519
        %v10521 = vperm.slane %v10513, %v10520
        %v10522 = vrot.slane %v10493, 4
        %v10523 = vsel %vm1105, %v10522, %v10481
        %v10524 = vrot.slane %v10481, 4
        %v10525 = vsel %vm1105, %v10493, %v10524
        %v10527 = vunpack.c.l.s4 1934713408
        %v10528 = vunpack.c.0.s8 %v10527
        %v10529 = vperm.slane %v10523, %v10528
        %v10531 = vunpack.c.l.s4 1934713408
        %v10532 = vunpack.c.0.s8 %v10531
        %v10533 = vperm.slane %v10525, %v10532
        %v10534 = vrot.slane %v10497, 4
        %v10535 = vsel %vm1105, %v10534, %v10485
        %v10536 = vrot.slane %v10485, 4
        %v10537 = vsel %vm1105, %v10497, %v10536
        %v10539 = vunpack.c.l.s4 1934713408
        %v10540 = vunpack.c.0.s8 %v10539
        %v10541 = vperm.slane %v10535, %v10540
        %v10543 = vunpack.c.l.s4 1934713408
        %v10544 = vunpack.c.0.s8 %v10543
        %v10545 = vperm.slane %v10537, %v10544
        %v10546 = vrot.slane %v10517, 4
        %v10547 = vsel %vm1105, %v10546, %v10505
        %v10548 = vrot.slane %v10505, 4
        %v10549 = vsel %vm1105, %v10517, %v10548
        %v10551 = vunpack.c.l.s4 1934713408
        %v10552 = vunpack.c.0.s8 %v10551
        %v10553 = vperm.slane %v10547, %v10552
        %v10555 = vunpack.c.l.s4 1934713408
        %v10556 = vunpack.c.0.s8 %v10555
        %v10557 = vperm.slane %v10549, %v10556
        %v10558 = vrot.slane %v10521, 4
        %v10559 = vsel %vm1105, %v10558, %v10509
        %v10560 = vrot.slane %v10509, 4
        %v10561 = vsel %vm1105, %v10521, %v10560
        %v10563 = vunpack.c.l.s4 1934713408
        %v10564 = vunpack.c.0.s8 %v10563
        %v10565 = vperm.slane %v10559, %v10564
        %v10567 = vunpack.c.l.s4 1934713408
        %v10568 = vunpack.c.0.s8 %v10567
        %v10569 = vperm.slane %v10561, %v10568
        %v10570 = vrot.slane %v10553, 4
        %v10571 = vsel %vm1105, %v10570, %v10529
        %v10572 = vrot.slane %v10529, 4
        %v10573 = vsel %vm1105, %v10553, %v10572
        %v10574 = vrot.slane %v10557, 4
        %v10575 = vsel %vm1105, %v10574, %v10533
        %v10576 = vrot.slane %v10533, 4
        %v10577 = vsel %vm1105, %v10557, %v10576
        %v10578 = vrot.slane %v10565, 4
        %v10579 = vsel %vm1105, %v10578, %v10541
        %v10580 = vrot.slane %v10541, 4
        %v10581 = vsel %vm1105, %v10565, %v10580
        %v10582 = vrot.slane %v10569, 4
        %v10583 = vsel %vm1105, %v10582, %v10545
        %v10584 = vrot.slane %v10545, 4
        %v10585 = vsel %vm1105, %v10569, %v10584
        %v10586 = vrot.slane %v10235, 4
        %v10587 = vsel %vm1105, %v10586, %v10148
        %v10588 = vrot.slane %v10148, 4
        %v10589 = vsel %vm1105, %v10235, %v10588
        %v10591 = vunpack.c.l.s4 1983009808
        %v10592 = vunpack.c.0.s8 %v10591
        %v10593 = vperm.slane %v10587, %v10592
        %v10595 = vunpack.c.l.s4 1983009808
        %v10596 = vunpack.c.0.s8 %v10595
        %v10597 = vperm.slane %v10589, %v10596
        %v10598 = vrot.slane %v10238, 4
        %v10599 = vsel %vm1105, %v10598, %v10232
        %v10600 = vrot.slane %v10232, 4
        %v10601 = vsel %vm1105, %v10238, %v10600
        %v10603 = vunpack.c.l.s4 1983009808
        %v10604 = vunpack.c.0.s8 %v10603
        %v10605 = vperm.slane %v10599, %v10604
        %v10607 = vunpack.c.l.s4 1983009808
        %v10608 = vunpack.c.0.s8 %v10607
        %v10609 = vperm.slane %v10601, %v10608
        %v10610 = vrot.slane %v10245, 4
        %v10611 = vsel %vm1105, %v10610, %v10168
        %v10612 = vrot.slane %v10168, 4
        %v10613 = vsel %vm1105, %v10245, %v10612
        %v10615 = vunpack.c.l.s4 1983009808
        %v10616 = vunpack.c.0.s8 %v10615
        %v10617 = vperm.slane %v10611, %v10616
        %v10619 = vunpack.c.l.s4 1983009808
        %v10620 = vunpack.c.0.s8 %v10619
        %v10621 = vperm.slane %v10613, %v10620
        %v10622 = vrot.slane %v10248, 4
        %v10623 = vsel %vm1105, %v10622, %v10242
        %v10624 = vrot.slane %v10242, 4
        %v10625 = vsel %vm1105, %v10248, %v10624
        %v10627 = vunpack.c.l.s4 1983009808
        %v10628 = vunpack.c.0.s8 %v10627
        %v10629 = vperm.slane %v10623, %v10628
        %v10631 = vunpack.c.l.s4 1983009808
        %v10632 = vunpack.c.0.s8 %v10631
        %v10633 = vperm.slane %v10625, %v10632
        %v10634 = vrot.slane %v10605, 4
        %v10635 = vsel %vm1105, %v10634, %v10593
        %v10636 = vrot.slane %v10593, 4
        %v10637 = vsel %vm1105, %v10605, %v10636
        %v10639 = vunpack.c.l.s4 1934713408
        %v10640 = vunpack.c.0.s8 %v10639
        %v10641 = vperm.slane %v10635, %v10640
        %v10643 = vunpack.c.l.s4 1934713408
        %v10644 = vunpack.c.0.s8 %v10643
        %v10645 = vperm.slane %v10637, %v10644
        %v10646 = vrot.slane %v10609, 4
        %v10647 = vsel %vm1105, %v10646, %v10597
        %v10648 = vrot.slane %v10597, 4
        %v10649 = vsel %vm1105, %v10609, %v10648
        %v10651 = vunpack.c.l.s4 1934713408
        %v10652 = vunpack.c.0.s8 %v10651
        %v10653 = vperm.slane %v10647, %v10652
        %v10655 = vunpack.c.l.s4 1934713408
        %v10656 = vunpack.c.0.s8 %v10655
        %v10657 = vperm.slane %v10649, %v10656
        %v10658 = vrot.slane %v10629, 4
        %v10659 = vsel %vm1105, %v10658, %v10617
        %v10660 = vrot.slane %v10617, 4
        %v10661 = vsel %vm1105, %v10629, %v10660
        %v10663 = vunpack.c.l.s4 1934713408
        %v10664 = vunpack.c.0.s8 %v10663
        %v10665 = vperm.slane %v10659, %v10664
        %v10667 = vunpack.c.l.s4 1934713408
        %v10668 = vunpack.c.0.s8 %v10667
        %v10669 = vperm.slane %v10661, %v10668
        %v10670 = vrot.slane %v10633, 4
        %v10671 = vsel %vm1105, %v10670, %v10621
        %v10672 = vrot.slane %v10621, 4
        %v10673 = vsel %vm1105, %v10633, %v10672
        %v10675 = vunpack.c.l.s4 1934713408
        %v10676 = vunpack.c.0.s8 %v10675
        %v10677 = vperm.slane %v10671, %v10676
        %v10679 = vunpack.c.l.s4 1934713408
        %v10680 = vunpack.c.0.s8 %v10679
        %v10681 = vperm.slane %v10673, %v10680
        %v10682 = vrot.slane %v10665, 4
        %v10683 = vsel %vm1105, %v10682, %v10641
        %v10684 = vrot.slane %v10641, 4
        %v10685 = vsel %vm1105, %v10665, %v10684
        %v10686 = vrot.slane %v10669, 4
        %v10687 = vsel %vm1105, %v10686, %v10645
        %v10688 = vrot.slane %v10645, 4
        %v10689 = vsel %vm1105, %v10669, %v10688
        %v10690 = vrot.slane %v10677, 4
        %v10691 = vsel %vm1105, %v10690, %v10653
        %v10692 = vrot.slane %v10653, 4
        %v10693 = vsel %vm1105, %v10677, %v10692
        %v10694 = vrot.slane %v10681, 4
        %v10695 = vsel %vm1105, %v10694, %v10657
        %v10696 = vrot.slane %v10657, 4
        %v10697 = vsel %vm1105, %v10681, %v10696
        %v10698 = vadd.f32 %v9557, %v10347
        %v10699 = vadd.f32 %v9558, %v10459
        %v10700 = vadd.f32 %v9559, %v10571
        %v10701 = vadd.f32 %v9560, %v10683
        %v10702 = vadd.f32 %v9561, %v10349
        %v10703 = vadd.f32 %v9562, %v10461
        %v10704 = vadd.f32 %v9563, %v10573
        %v10705 = vadd.f32 %v9564, %v10685
        %v10706 = vadd.f32 %v9565, %v10351
        %v10707 = vadd.f32 %v9566, %v10463
        %v10708 = vadd.f32 %v9567, %v10575
        %v10709 = vadd.f32 %v9568, %v10687
        %v10710 = vadd.f32 %v9569, %v10353
        %v10711 = vadd.f32 %v9570, %v10465
        %v10712 = vadd.f32 %v9571, %v10577
        %v10713 = vadd.f32 %v9572, %v10689
        %v10714 = vadd.f32 %v9573, %v10355
        %v10715 = vadd.f32 %v9574, %v10467
        %v10716 = vadd.f32 %v9575, %v10579
        %v10717 = vadd.f32 %v9576, %v10691
        %v10718 = vadd.f32 %v9577, %v10357
        %v10719 = vadd.f32 %v9578, %v10469
        %v10720 = vadd.f32 %v9579, %v10581
        %v10721 = vadd.f32 %v9580, %v10693
        %v10722 = vadd.f32 %v9581, %v10359
        %v10723 = vadd.f32 %v9582, %v10471
        %v10724 = vadd.f32 %v9583, %v10583
        %v10725 = vadd.f32 %v9584, %v10695
        %v10726 = vadd.f32 %v9585, %v10361
        %v10727 = vadd.f32 %v9586, %v10473
        %v10728 = vadd.f32 %v9587, %v10585
        %v10729 = vadd.f32 %v9588, %v10697
        %s10730 = scalar_lea.vmem %s3, 64
        %v10731 = vld [vmem:[%s10730] sm:$0xff]
        %10732 = vrot.lane.b32.xlu0 %v8448, 126
        %v10733 = vpop.permute.xlu0 %10732
        %10734 = vrot.lane.b32.xlu0 %v8450, 126
        %v10735 = vpop.permute.xlu0 %10734
        %10736 = vrot.lane.b32.xlu0 %v8452, 126
        %v10737 = vpop.permute.xlu0 %10736
        %10738 = vrot.lane.b32.xlu0 %v8454, 126
        %v10739 = vpop.permute.xlu0 %10738
        %10740 = vrot.lane.b32.xlu0 %v8457, 126
        %v10741 = vpop.permute.xlu0 %10740
        %10742 = vrot.lane.b32.xlu0 %v8459, 126
        %v10743 = vpop.permute.xlu0 %10742
        %10744 = vrot.lane.b32.xlu0 %v8461, 126
        %v10745 = vpop.permute.xlu0 %10744
        %10746 = vrot.lane.b32.xlu0 %v8463, 126
        %v10747 = vpop.permute.xlu0 %10746
        %10748 = vrot.lane.b32.xlu0 %v8466, 126
        %v10749 = vpop.permute.xlu0 %10748
        %10750 = vrot.lane.b32.xlu0 %v8468, 126
        %v10751 = vpop.permute.xlu0 %10750
        %10752 = vrot.lane.b32.xlu0 %v8470, 126
        %v10753 = vpop.permute.xlu0 %10752
        %10754 = vrot.lane.b32.xlu0 %v8472, 126
        %v10755 = vpop.permute.xlu0 %10754
        %10756 = vrot.lane.b32.xlu0 %v8475, 126
        %v10757 = vpop.permute.xlu0 %10756
        %10758 = vrot.lane.b32.xlu0 %v8477, 126
        %v10759 = vpop.permute.xlu0 %10758
        %10760 = vrot.lane.b32.xlu0 %v8479, 126
        %v10761 = vpop.permute.xlu0 %10760
        %10762 = vrot.lane.b32.xlu0 %v8481, 126
        %v10763 = vpop.permute.xlu0 %10762
        %v10780 = vrot.slane %v10749, 4
        %v10781 = vsel %vm1105, %v10780, %v10733
        %v10782 = vrot.slane %v10733, 4
        %v10783 = vsel %vm1105, %v10749, %v10782
        %v10785 = vunpack.c.l.s4 1983009808
        %v10786 = vunpack.c.0.s8 %v10785
        %v10787 = vperm.slane %v10781, %v10786
        %v10789 = vunpack.c.l.s4 1983009808
        %v10790 = vunpack.c.0.s8 %v10789
        %v10791 = vperm.slane %v10783, %v10790
        %v10792 = vrot.slane %v10757, 4
        %v10793 = vsel %vm1105, %v10792, %v10741
        %v10794 = vrot.slane %v10741, 4
        %v10795 = vsel %vm1105, %v10757, %v10794
        %v10797 = vunpack.c.l.s4 1983009808
        %v10798 = vunpack.c.0.s8 %v10797
        %v10799 = vperm.slane %v10793, %v10798
        %v10801 = vunpack.c.l.s4 1983009808
        %v10802 = vunpack.c.0.s8 %v10801
        %v10803 = vperm.slane %v10795, %v10802
        %v10804 = vrot.slane %v10799, 4
        %v10805 = vsel %vm1105, %v10804, %v10787
        %v10806 = vrot.slane %v10787, 4
        %v10807 = vsel %vm1105, %v10799, %v10806
        %v10809 = vunpack.c.l.s4 1934713408
        %v10810 = vunpack.c.0.s8 %v10809
        %v10811 = vperm.slane %v10805, %v10810
        %v10813 = vunpack.c.l.s4 1934713408
        %v10814 = vunpack.c.0.s8 %v10813
        %v10815 = vperm.slane %v10807, %v10814
        %v10816 = vrot.slane %v10803, 4
        %v10817 = vsel %vm1105, %v10816, %v10791
        %v10818 = vrot.slane %v10791, 4
        %v10819 = vsel %vm1105, %v10803, %v10818
        %v10821 = vunpack.c.l.s4 1934713408
        %v10822 = vunpack.c.0.s8 %v10821
        %v10823 = vperm.slane %v10817, %v10822
        %v10825 = vunpack.c.l.s4 1934713408
        %v10826 = vunpack.c.0.s8 %v10825
        %v10827 = vperm.slane %v10819, %v10826
        %v10828 = vrot.slane %v10811, 4
        %v10829 = vsel %vm1105, 0.0, %v10828
        %v10830 = vrot.slane %v10815, 4
        %v10831 = vsel %vm1105, 0.0, %v10830
        %v10832 = vrot.slane %v10823, 4
        %v10833 = vsel %vm1105, 0.0, %v10832
        %v10834 = vrot.slane %v10827, 4
        %v10835 = vsel %vm1105, 0.0, %v10834
        %v10836 = vrot.slane %v10751, 4
        %v10837 = vsel %vm1105, %v10836, %v10735
        %v10838 = vrot.slane %v10735, 4
        %v10839 = vsel %vm1105, %v10751, %v10838
        %v10841 = vunpack.c.l.s4 1983009808
        %v10842 = vunpack.c.0.s8 %v10841
        %v10843 = vperm.slane %v10837, %v10842
        %v10845 = vunpack.c.l.s4 1983009808
        %v10846 = vunpack.c.0.s8 %v10845
        %v10847 = vperm.slane %v10839, %v10846
        %v10848 = vrot.slane %v10759, 4
        %v10849 = vsel %vm1105, %v10848, %v10743
        %v10850 = vrot.slane %v10743, 4
        %v10851 = vsel %vm1105, %v10759, %v10850
        %v10853 = vunpack.c.l.s4 1983009808
        %v10854 = vunpack.c.0.s8 %v10853
        %v10855 = vperm.slane %v10849, %v10854
        %v10857 = vunpack.c.l.s4 1983009808
        %v10858 = vunpack.c.0.s8 %v10857
        %v10859 = vperm.slane %v10851, %v10858
        %v10860 = vrot.slane %v10855, 4
        %v10861 = vsel %vm1105, %v10860, %v10843
        %v10862 = vrot.slane %v10843, 4
        %v10863 = vsel %vm1105, %v10855, %v10862
        %v10865 = vunpack.c.l.s4 1934713408
        %v10866 = vunpack.c.0.s8 %v10865
        %v10867 = vperm.slane %v10861, %v10866
        %v10869 = vunpack.c.l.s4 1934713408
        %v10870 = vunpack.c.0.s8 %v10869
        %v10871 = vperm.slane %v10863, %v10870
        %v10872 = vrot.slane %v10859, 4
        %v10873 = vsel %vm1105, %v10872, %v10847
        %v10874 = vrot.slane %v10847, 4
        %v10875 = vsel %vm1105, %v10859, %v10874
        %v10877 = vunpack.c.l.s4 1934713408
        %v10878 = vunpack.c.0.s8 %v10877
        %v10879 = vperm.slane %v10873, %v10878
        %v10881 = vunpack.c.l.s4 1934713408
        %v10882 = vunpack.c.0.s8 %v10881
        %v10883 = vperm.slane %v10875, %v10882
        %v10884 = vrot.slane %v10867, 4
        %v10885 = vsel %vm1105, 0.0, %v10884
        %v10886 = vrot.slane %v10871, 4
        %v10887 = vsel %vm1105, 0.0, %v10886
        %v10888 = vrot.slane %v10879, 4
        %v10889 = vsel %vm1105, 0.0, %v10888
        %v10890 = vrot.slane %v10883, 4
        %v10891 = vsel %vm1105, 0.0, %v10890
        %v10892 = vrot.slane %v10753, 4
        %v10893 = vsel %vm1105, %v10892, %v10737
        %v10894 = vrot.slane %v10737, 4
        %v10895 = vsel %vm1105, %v10753, %v10894
        %v10897 = vunpack.c.l.s4 1983009808
        %v10898 = vunpack.c.0.s8 %v10897
        %v10899 = vperm.slane %v10893, %v10898
        %v10901 = vunpack.c.l.s4 1983009808
        %v10902 = vunpack.c.0.s8 %v10901
        %v10903 = vperm.slane %v10895, %v10902
        %v10904 = vrot.slane %v10761, 4
        %v10905 = vsel %vm1105, %v10904, %v10745
        %v10906 = vrot.slane %v10745, 4
        %v10907 = vsel %vm1105, %v10761, %v10906
        %v10909 = vunpack.c.l.s4 1983009808
        %v10910 = vunpack.c.0.s8 %v10909
        %v10911 = vperm.slane %v10905, %v10910
        %v10913 = vunpack.c.l.s4 1983009808
        %v10914 = vunpack.c.0.s8 %v10913
        %v10915 = vperm.slane %v10907, %v10914
        %v10916 = vrot.slane %v10911, 4
        %v10917 = vsel %vm1105, %v10916, %v10899
        %v10918 = vrot.slane %v10899, 4
        %v10919 = vsel %vm1105, %v10911, %v10918
        %v10921 = vunpack.c.l.s4 1934713408
        %v10922 = vunpack.c.0.s8 %v10921
        %v10923 = vperm.slane %v10917, %v10922
        %v10925 = vunpack.c.l.s4 1934713408
        %v10926 = vunpack.c.0.s8 %v10925
        %v10927 = vperm.slane %v10919, %v10926
        %v10928 = vrot.slane %v10915, 4
        %v10929 = vsel %vm1105, %v10928, %v10903
        %v10930 = vrot.slane %v10903, 4
        %v10931 = vsel %vm1105, %v10915, %v10930
        %v10933 = vunpack.c.l.s4 1934713408
        %v10934 = vunpack.c.0.s8 %v10933
        %v10935 = vperm.slane %v10929, %v10934
        %v10937 = vunpack.c.l.s4 1934713408
        %v10938 = vunpack.c.0.s8 %v10937
        %v10939 = vperm.slane %v10931, %v10938
        %v10940 = vrot.slane %v10923, 4
        %v10941 = vsel %vm1105, 0.0, %v10940
        %v10942 = vrot.slane %v10927, 4
        %v10943 = vsel %vm1105, 0.0, %v10942
        %v10944 = vrot.slane %v10935, 4
        %v10945 = vsel %vm1105, 0.0, %v10944
        %v10946 = vrot.slane %v10939, 4
        %v10947 = vsel %vm1105, 0.0, %v10946
        %v10948 = vrot.slane %v10755, 4
        %v10949 = vsel %vm1105, %v10948, %v10739
        %v10950 = vrot.slane %v10739, 4
        %v10951 = vsel %vm1105, %v10755, %v10950
        %v10953 = vunpack.c.l.s4 1983009808
        %v10954 = vunpack.c.0.s8 %v10953
        %v10955 = vperm.slane %v10949, %v10954
        %v10957 = vunpack.c.l.s4 1983009808
        %v10958 = vunpack.c.0.s8 %v10957
        %v10959 = vperm.slane %v10951, %v10958
        %v10960 = vrot.slane %v10763, 4
        %v10961 = vsel %vm1105, %v10960, %v10747
        %v10962 = vrot.slane %v10747, 4
        %v10963 = vsel %vm1105, %v10763, %v10962
        %v10965 = vunpack.c.l.s4 1983009808
        %v10966 = vunpack.c.0.s8 %v10965
        %v10967 = vperm.slane %v10961, %v10966
        %v10969 = vunpack.c.l.s4 1983009808
        %v10970 = vunpack.c.0.s8 %v10969
        %v10971 = vperm.slane %v10963, %v10970
        %v10972 = vrot.slane %v10967, 4
        %v10973 = vsel %vm1105, %v10972, %v10955
        %v10974 = vrot.slane %v10955, 4
        %v10975 = vsel %vm1105, %v10967, %v10974
        %v10977 = vunpack.c.l.s4 1934713408
        %v10978 = vunpack.c.0.s8 %v10977
        %v10979 = vperm.slane %v10973, %v10978
        %v10981 = vunpack.c.l.s4 1934713408
        %v10982 = vunpack.c.0.s8 %v10981
        %v10983 = vperm.slane %v10975, %v10982
        %v10984 = vrot.slane %v10971, 4
        %v10985 = vsel %vm1105, %v10984, %v10959
        %v10986 = vrot.slane %v10959, 4
        %v10987 = vsel %vm1105, %v10971, %v10986
        %v10989 = vunpack.c.l.s4 1934713408
        %v10990 = vunpack.c.0.s8 %v10989
        %v10991 = vperm.slane %v10985, %v10990
        %v10993 = vunpack.c.l.s4 1934713408
        %v10994 = vunpack.c.0.s8 %v10993
        %v10995 = vperm.slane %v10987, %v10994
        %v10996 = vrot.slane %v10979, 4
        %v10997 = vsel %vm1105, 0.0, %v10996
        %v10998 = vrot.slane %v10983, 4
        %v10999 = vsel %vm1105, 0.0, %v10998
        %v11000 = vrot.slane %v10991, 4
        %v11001 = vsel %vm1105, 0.0, %v11000
        %v11002 = vrot.slane %v10995, 4
        %v11003 = vsel %vm1105, 0.0, %v11002
        %11005 = vrot.lane.b32.xlu0 %v10829, 32
        %v11006 = vpop.permute.xlu0 %11005
        %11009 = vrot.lane.b32.xlu0 %v10815, 64
        %v11010 = vpop.permute.xlu0 %11009
        %11013 = vrot.lane.b32.xlu0 %v10831, 96
        %v11014 = vpop.permute.xlu0 %11013
        %11017 = vrot.lane.b32.xlu0 %v10833, 32
        %v11018 = vpop.permute.xlu0 %11017
        %11021 = vrot.lane.b32.xlu0 %v10827, 64
        %v11022 = vpop.permute.xlu0 %11021
        %11025 = vrot.lane.b32.xlu0 %v10835, 96
        %v11026 = vpop.permute.xlu0 %11025
        %11029 = vrot.lane.b32.xlu0 %v10885, 32
        %v11030 = vpop.permute.xlu0 %11029
        %11033 = vrot.lane.b32.xlu0 %v10871, 64
        %v11034 = vpop.permute.xlu0 %11033
        %11037 = vrot.lane.b32.xlu0 %v10887, 96
        %v11038 = vpop.permute.xlu0 %11037
        %11041 = vrot.lane.b32.xlu0 %v10889, 32
        %v11042 = vpop.permute.xlu0 %11041
        %11045 = vrot.lane.b32.xlu0 %v10883, 64
        %v11046 = vpop.permute.xlu0 %11045
        %11049 = vrot.lane.b32.xlu0 %v10891, 96
        %v11050 = vpop.permute.xlu0 %11049
        %11053 = vrot.lane.b32.xlu0 %v10941, 32
        %v11054 = vpop.permute.xlu0 %11053
        %11057 = vrot.lane.b32.xlu0 %v10927, 64
        %v11058 = vpop.permute.xlu0 %11057
        %11061 = vrot.lane.b32.xlu0 %v10943, 96
        %v11062 = vpop.permute.xlu0 %11061
        %11065 = vrot.lane.b32.xlu0 %v10945, 32
        %v11066 = vpop.permute.xlu0 %11065
        %11069 = vrot.lane.b32.xlu0 %v10939, 64
        %v11070 = vpop.permute.xlu0 %11069
        %11073 = vrot.lane.b32.xlu0 %v10947, 96
        %v11074 = vpop.permute.xlu0 %11073
        %11077 = vrot.lane.b32.xlu0 %v10997, 32
        %v11078 = vpop.permute.xlu0 %11077
        %11081 = vrot.lane.b32.xlu0 %v10983, 64
        %v11082 = vpop.permute.xlu0 %11081
        %11085 = vrot.lane.b32.xlu0 %v10999, 96
        %v11086 = vpop.permute.xlu0 %11085
        %11089 = vrot.lane.b32.xlu0 %v11001, 32
        %v11090 = vpop.permute.xlu0 %11089
        %11093 = vrot.lane.b32.xlu0 %v10995, 64
        %v11094 = vpop.permute.xlu0 %11093
        %11097 = vrot.lane.b32.xlu0 %v11003, 96
        %v11098 = vpop.permute.xlu0 %11097
        %v11100 = vsel %vm1425, %v10811, %v11006
        %v11101 = vsel %vm1427, %v11100, %v11010
        %v11102 = vsel %vm1429, %v11101, %v11014
        %v11103 = vsel %vm1425, %v10823, %v11018
        %v11104 = vsel %vm1427, %v11103, %v11022
        %v11105 = vsel %vm1429, %v11104, %v11026
        %v11106 = vsel %vm1425, %v10867, %v11030
        %v11107 = vsel %vm1427, %v11106, %v11034
        %v11108 = vsel %vm1429, %v11107, %v11038
        %v11109 = vsel %vm1425, %v10879, %v11042
        %v11110 = vsel %vm1427, %v11109, %v11046
        %v11111 = vsel %vm1429, %v11110, %v11050
        %v11112 = vsel %vm1425, %v10923, %v11054
        %v11113 = vsel %vm1427, %v11112, %v11058
        %v11114 = vsel %vm1429, %v11113, %v11062
        %v11115 = vsel %vm1425, %v10935, %v11066
        %v11116 = vsel %vm1427, %v11115, %v11070
        %v11117 = vsel %vm1429, %v11116, %v11074
        %v11118 = vsel %vm1425, %v10979, %v11078
        %v11119 = vsel %vm1427, %v11118, %v11082
        %v11120 = vsel %vm1429, %v11119, %v11086
        %v11121 = vsel %vm1425, %v10991, %v11090
        %v11122 = vsel %vm1427, %v11121, %v11094
        %v11123 = vsel %vm1429, %v11122, %v11098
        %v11125 = vsel %vm1526, %v10731, 0
        %v11128 = vsel %vm1530, %v11102, 0
        %v11131 = vsel %vm1530, %v11105, 0
        %v11134 = vsel %vm1530, %v11108, 0
        %v11137 = vsel %vm1530, %v11111, 0
        %v11140 = vsel %vm1530, %v11114, 0
        %v11143 = vsel %vm1530, %v11117, 0
        %v11146 = vsel %vm1530, %v11120, 0
        %v11149 = vsel %vm1530, %v11123, 0
        %11151 = vmatpush.msra.mxu0 0.0
        %11152 = vmatpush.msra.mxu0 0.0
        %11153 = vmatpush.msra.mxu0 0.0
        %11154 = vmatpush.msra.mxu0 0.0
        %11155 = vmatpush.msra.mxu0 0.0
        %11156 = vmatpush.msra.mxu0 0.0
        %11157 = vmatpush.msra.mxu0 0.0
        %11158 = vmatpush.msra.mxu0 0.0
        %11159 = vmatpush.msra.mxu0 0.0
        %11160 = vmatpush.msra.mxu0 0.0
        %11161 = vmatpush.msra.mxu0 0.0
        %11162 = vmatpush.msra.mxu0 0.0
        %11163 = vmatpush.msra.mxu0 0.0
        %11164 = vmatpush.msra.mxu0 0.0
        %11165 = vmatpush.msra.mxu0 0.0
        %11166 = vmatpush.msra.mxu0 %v11128
        %11167 = vmatmul.f32.gmra.mxu0 %v11125
        %v11168 = vpop.f32.mrf.mxu0
        %v11169 = vadd.f32 %v1522, %v11168
        %11170 = vdwg.mxu0
        %11171 = vmatpush.msra.mxu0 0.0
        %11172 = vmatpush.msra.mxu0 0.0
        %11173 = vmatpush.msra.mxu0 0.0
        %11174 = vmatpush.msra.mxu0 0.0
        %11175 = vmatpush.msra.mxu0 0.0
        %11176 = vmatpush.msra.mxu0 0.0
        %11177 = vmatpush.msra.mxu0 0.0
        %11178 = vmatpush.msra.mxu0 0.0
        %11179 = vmatpush.msra.mxu0 0.0
        %11180 = vmatpush.msra.mxu0 0.0
        %11181 = vmatpush.msra.mxu0 0.0
        %11182 = vmatpush.msra.mxu0 0.0
        %11183 = vmatpush.msra.mxu0 0.0
        %11184 = vmatpush.msra.mxu0 0.0
        %11185 = vmatpush.msra.mxu0 0.0
        %11186 = vmatpush.msra.mxu0 %v11131
        %11187 = vmatmul.f32.gmra.mxu0 %v11125
        %v11188 = vpop.f32.mrf.mxu0
        %v11189 = vadd.f32 %v1525, %v11188
        %11190 = vdwg.mxu0
        %11191 = vmatpush.msra.mxu0 0.0
        %11192 = vmatpush.msra.mxu0 0.0
        %11193 = vmatpush.msra.mxu0 0.0
        %11194 = vmatpush.msra.mxu0 0.0
        %11195 = vmatpush.msra.mxu0 0.0
        %11196 = vmatpush.msra.mxu0 0.0
        %11197 = vmatpush.msra.mxu0 0.0
        %11198 = vmatpush.msra.mxu0 0.0
        %11199 = vmatpush.msra.mxu0 0.0
        %11200 = vmatpush.msra.mxu0 0.0
        %11201 = vmatpush.msra.mxu0 0.0
        %11202 = vmatpush.msra.mxu0 0.0
        %11203 = vmatpush.msra.mxu0 0.0
        %11204 = vmatpush.msra.mxu0 0.0
        %11205 = vmatpush.msra.mxu0 0.0
        %11206 = vmatpush.msra.mxu0 %v11134
        %11207 = vmatmul.f32.gmra.mxu0 %v11125
        %v11208 = vpop.f32.mrf.mxu0
        %v11209 = vadd.f32 %v1522, %v11208
        %11210 = vdwg.mxu0
        %11211 = vmatpush.msra.mxu0 0.0
        %11212 = vmatpush.msra.mxu0 0.0
        %11213 = vmatpush.msra.mxu0 0.0
        %11214 = vmatpush.msra.mxu0 0.0
        %11215 = vmatpush.msra.mxu0 0.0
        %11216 = vmatpush.msra.mxu0 0.0
        %11217 = vmatpush.msra.mxu0 0.0
        %11218 = vmatpush.msra.mxu0 0.0
        %11219 = vmatpush.msra.mxu0 0.0
        %11220 = vmatpush.msra.mxu0 0.0
        %11221 = vmatpush.msra.mxu0 0.0
        %11222 = vmatpush.msra.mxu0 0.0
        %11223 = vmatpush.msra.mxu0 0.0
        %11224 = vmatpush.msra.mxu0 0.0
        %11225 = vmatpush.msra.mxu0 0.0
        %11226 = vmatpush.msra.mxu0 %v11137
        %11227 = vmatmul.f32.gmra.mxu0 %v11125
        %v11228 = vpop.f32.mrf.mxu0
        %v11229 = vadd.f32 %v1525, %v11228
        %11230 = vdwg.mxu0
        %11231 = vmatpush.msra.mxu0 0.0
        %11232 = vmatpush.msra.mxu0 0.0
        %11233 = vmatpush.msra.mxu0 0.0
        %11234 = vmatpush.msra.mxu0 0.0
        %11235 = vmatpush.msra.mxu0 0.0
        %11236 = vmatpush.msra.mxu0 0.0
        %11237 = vmatpush.msra.mxu0 0.0
        %11238 = vmatpush.msra.mxu0 0.0
        %11239 = vmatpush.msra.mxu0 0.0
        %11240 = vmatpush.msra.mxu0 0.0
        %11241 = vmatpush.msra.mxu0 0.0
        %11242 = vmatpush.msra.mxu0 0.0
        %11243 = vmatpush.msra.mxu0 0.0
        %11244 = vmatpush.msra.mxu0 0.0
        %11245 = vmatpush.msra.mxu0 0.0
        %11246 = vmatpush.msra.mxu0 %v11140
        %11247 = vmatmul.f32.gmra.mxu0 %v11125
        %v11248 = vpop.f32.mrf.mxu0
        %v11249 = vadd.f32 %v1522, %v11248
        %11250 = vdwg.mxu0
        %11251 = vmatpush.msra.mxu0 0.0
        %11252 = vmatpush.msra.mxu0 0.0
        %11253 = vmatpush.msra.mxu0 0.0
        %11254 = vmatpush.msra.mxu0 0.0
        %11255 = vmatpush.msra.mxu0 0.0
        %11256 = vmatpush.msra.mxu0 0.0
        %11257 = vmatpush.msra.mxu0 0.0
        %11258 = vmatpush.msra.mxu0 0.0
        %11259 = vmatpush.msra.mxu0 0.0
        %11260 = vmatpush.msra.mxu0 0.0
        %11261 = vmatpush.msra.mxu0 0.0
        %11262 = vmatpush.msra.mxu0 0.0
        %11263 = vmatpush.msra.mxu0 0.0
        %11264 = vmatpush.msra.mxu0 0.0
        %11265 = vmatpush.msra.mxu0 0.0
        %11266 = vmatpush.msra.mxu0 %v11143
        %11267 = vmatmul.f32.gmra.mxu0 %v11125
        %v11268 = vpop.f32.mrf.mxu0
        %v11269 = vadd.f32 %v1525, %v11268
        %11270 = vdwg.mxu0
        %11271 = vmatpush.msra.mxu0 0.0
        %11272 = vmatpush.msra.mxu0 0.0
        %11273 = vmatpush.msra.mxu0 0.0
        %11274 = vmatpush.msra.mxu0 0.0
        %11275 = vmatpush.msra.mxu0 0.0
        %11276 = vmatpush.msra.mxu0 0.0
        %11277 = vmatpush.msra.mxu0 0.0
        %11278 = vmatpush.msra.mxu0 0.0
        %11279 = vmatpush.msra.mxu0 0.0
        %11280 = vmatpush.msra.mxu0 0.0
        %11281 = vmatpush.msra.mxu0 0.0
        %11282 = vmatpush.msra.mxu0 0.0
        %11283 = vmatpush.msra.mxu0 0.0
        %11284 = vmatpush.msra.mxu0 0.0
        %11285 = vmatpush.msra.mxu0 0.0
        %11286 = vmatpush.msra.mxu0 %v11146
        %11287 = vmatmul.f32.gmra.mxu0 %v11125
        %v11288 = vpop.f32.mrf.mxu0
        %v11289 = vadd.f32 %v1522, %v11288
        %11290 = vdwg.mxu0
        %11291 = vmatpush.msra.mxu0 0.0
        %11292 = vmatpush.msra.mxu0 0.0
        %11293 = vmatpush.msra.mxu0 0.0
        %11294 = vmatpush.msra.mxu0 0.0
        %11295 = vmatpush.msra.mxu0 0.0
        %11296 = vmatpush.msra.mxu0 0.0
        %11297 = vmatpush.msra.mxu0 0.0
        %11298 = vmatpush.msra.mxu0 0.0
        %11299 = vmatpush.msra.mxu0 0.0
        %11300 = vmatpush.msra.mxu0 0.0
        %11301 = vmatpush.msra.mxu0 0.0
        %11302 = vmatpush.msra.mxu0 0.0
        %11303 = vmatpush.msra.mxu0 0.0
        %11304 = vmatpush.msra.mxu0 0.0
        %11305 = vmatpush.msra.mxu0 0.0
        %11306 = vmatpush.msra.mxu0 %v11149
        %11307 = vmatmul.f32.gmra.mxu0 %v11125
        %v11308 = vpop.f32.mrf.mxu0
        %v11309 = vadd.f32 %v1525, %v11308
        %11310 = vdwg.mxu0
        %11312 = vrot.lane.b32.xlu0 %v11169, 96
        %v11313 = vpop.permute.xlu0 %11312
        %11315 = vrot.lane.b32.xlu0 %v11169, 64
        %v11316 = vpop.permute.xlu0 %11315
        %11318 = vrot.lane.b32.xlu0 %v11169, 32
        %v11319 = vpop.permute.xlu0 %11318
        %11322 = vrot.lane.b32.xlu0 %v11189, 96
        %v11323 = vpop.permute.xlu0 %11322
        %11325 = vrot.lane.b32.xlu0 %v11189, 64
        %v11326 = vpop.permute.xlu0 %11325
        %11328 = vrot.lane.b32.xlu0 %v11189, 32
        %v11329 = vpop.permute.xlu0 %11328
        %11332 = vrot.lane.b32.xlu0 %v11209, 96
        %v11333 = vpop.permute.xlu0 %11332
        %11335 = vrot.lane.b32.xlu0 %v11209, 64
        %v11336 = vpop.permute.xlu0 %11335
        %11338 = vrot.lane.b32.xlu0 %v11209, 32
        %v11339 = vpop.permute.xlu0 %11338
        %11342 = vrot.lane.b32.xlu0 %v11229, 96
        %v11343 = vpop.permute.xlu0 %11342
        %11345 = vrot.lane.b32.xlu0 %v11229, 64
        %v11346 = vpop.permute.xlu0 %11345
        %11348 = vrot.lane.b32.xlu0 %v11229, 32
        %v11349 = vpop.permute.xlu0 %11348
        %11352 = vrot.lane.b32.xlu0 %v11249, 96
        %v11353 = vpop.permute.xlu0 %11352
        %11355 = vrot.lane.b32.xlu0 %v11249, 64
        %v11356 = vpop.permute.xlu0 %11355
        %11358 = vrot.lane.b32.xlu0 %v11249, 32
        %v11359 = vpop.permute.xlu0 %11358
        %11362 = vrot.lane.b32.xlu0 %v11269, 96
        %v11363 = vpop.permute.xlu0 %11362
        %11365 = vrot.lane.b32.xlu0 %v11269, 64
        %v11366 = vpop.permute.xlu0 %11365
        %11368 = vrot.lane.b32.xlu0 %v11269, 32
        %v11369 = vpop.permute.xlu0 %11368
        %11372 = vrot.lane.b32.xlu0 %v11289, 96
        %v11373 = vpop.permute.xlu0 %11372
        %11375 = vrot.lane.b32.xlu0 %v11289, 64
        %v11376 = vpop.permute.xlu0 %11375
        %11378 = vrot.lane.b32.xlu0 %v11289, 32
        %v11379 = vpop.permute.xlu0 %11378
        %11382 = vrot.lane.b32.xlu0 %v11309, 96
        %v11383 = vpop.permute.xlu0 %11382
        %11385 = vrot.lane.b32.xlu0 %v11309, 64
        %v11386 = vpop.permute.xlu0 %11385
        %11388 = vrot.lane.b32.xlu0 %v11309, 32
        %v11389 = vpop.permute.xlu0 %11388
        %v11391 = vrot.slane %v11316, 4
        %v11392 = vsel %vm1105, %v11391, %v11169
        %v11393 = vrot.slane %v11169, 4
        %v11394 = vsel %vm1105, %v11316, %v11393
        %v11396 = vunpack.c.l.s4 1983009808
        %v11397 = vunpack.c.0.s8 %v11396
        %v11398 = vperm.slane %v11392, %v11397
        %v11400 = vunpack.c.l.s4 1983009808
        %v11401 = vunpack.c.0.s8 %v11400
        %v11402 = vperm.slane %v11394, %v11401
        %v11403 = vrot.slane %v11319, 4
        %v11404 = vsel %vm1105, %v11403, %v11313
        %v11405 = vrot.slane %v11313, 4
        %v11406 = vsel %vm1105, %v11319, %v11405
        %v11408 = vunpack.c.l.s4 1983009808
        %v11409 = vunpack.c.0.s8 %v11408
        %v11410 = vperm.slane %v11404, %v11409
        %v11412 = vunpack.c.l.s4 1983009808
        %v11413 = vunpack.c.0.s8 %v11412
        %v11414 = vperm.slane %v11406, %v11413
        %v11415 = vrot.slane %v11326, 4
        %v11416 = vsel %vm1105, %v11415, %v11189
        %v11417 = vrot.slane %v11189, 4
        %v11418 = vsel %vm1105, %v11326, %v11417
        %v11420 = vunpack.c.l.s4 1983009808
        %v11421 = vunpack.c.0.s8 %v11420
        %v11422 = vperm.slane %v11416, %v11421
        %v11424 = vunpack.c.l.s4 1983009808
        %v11425 = vunpack.c.0.s8 %v11424
        %v11426 = vperm.slane %v11418, %v11425
        %v11427 = vrot.slane %v11329, 4
        %v11428 = vsel %vm1105, %v11427, %v11323
        %v11429 = vrot.slane %v11323, 4
        %v11430 = vsel %vm1105, %v11329, %v11429
        %v11432 = vunpack.c.l.s4 1983009808
        %v11433 = vunpack.c.0.s8 %v11432
        %v11434 = vperm.slane %v11428, %v11433
        %v11436 = vunpack.c.l.s4 1983009808
        %v11437 = vunpack.c.0.s8 %v11436
        %v11438 = vperm.slane %v11430, %v11437
        %v11439 = vrot.slane %v11410, 4
        %v11440 = vsel %vm1105, %v11439, %v11398
        %v11441 = vrot.slane %v11398, 4
        %v11442 = vsel %vm1105, %v11410, %v11441
        %v11444 = vunpack.c.l.s4 1934713408
        %v11445 = vunpack.c.0.s8 %v11444
        %v11446 = vperm.slane %v11440, %v11445
        %v11448 = vunpack.c.l.s4 1934713408
        %v11449 = vunpack.c.0.s8 %v11448
        %v11450 = vperm.slane %v11442, %v11449
        %v11451 = vrot.slane %v11414, 4
        %v11452 = vsel %vm1105, %v11451, %v11402
        %v11453 = vrot.slane %v11402, 4
        %v11454 = vsel %vm1105, %v11414, %v11453
        %v11456 = vunpack.c.l.s4 1934713408
        %v11457 = vunpack.c.0.s8 %v11456
        %v11458 = vperm.slane %v11452, %v11457
        %v11460 = vunpack.c.l.s4 1934713408
        %v11461 = vunpack.c.0.s8 %v11460
        %v11462 = vperm.slane %v11454, %v11461
        %v11463 = vrot.slane %v11434, 4
        %v11464 = vsel %vm1105, %v11463, %v11422
        %v11465 = vrot.slane %v11422, 4
        %v11466 = vsel %vm1105, %v11434, %v11465
        %v11468 = vunpack.c.l.s4 1934713408
        %v11469 = vunpack.c.0.s8 %v11468
        %v11470 = vperm.slane %v11464, %v11469
        %v11472 = vunpack.c.l.s4 1934713408
        %v11473 = vunpack.c.0.s8 %v11472
        %v11474 = vperm.slane %v11466, %v11473
        %v11475 = vrot.slane %v11438, 4
        %v11476 = vsel %vm1105, %v11475, %v11426
        %v11477 = vrot.slane %v11426, 4
        %v11478 = vsel %vm1105, %v11438, %v11477
        %v11480 = vunpack.c.l.s4 1934713408
        %v11481 = vunpack.c.0.s8 %v11480
        %v11482 = vperm.slane %v11476, %v11481
        %v11484 = vunpack.c.l.s4 1934713408
        %v11485 = vunpack.c.0.s8 %v11484
        %v11486 = vperm.slane %v11478, %v11485
        %v11487 = vrot.slane %v11470, 4
        %v11488 = vsel %vm1105, %v11487, %v11446
        %v11489 = vrot.slane %v11446, 4
        %v11490 = vsel %vm1105, %v11470, %v11489
        %v11491 = vrot.slane %v11474, 4
        %v11492 = vsel %vm1105, %v11491, %v11450
        %v11493 = vrot.slane %v11450, 4
        %v11494 = vsel %vm1105, %v11474, %v11493
        %v11495 = vrot.slane %v11482, 4
        %v11496 = vsel %vm1105, %v11495, %v11458
        %v11497 = vrot.slane %v11458, 4
        %v11498 = vsel %vm1105, %v11482, %v11497
        %v11499 = vrot.slane %v11486, 4
        %v11500 = vsel %vm1105, %v11499, %v11462
        %v11501 = vrot.slane %v11462, 4
        %v11502 = vsel %vm1105, %v11486, %v11501
        %v11503 = vrot.slane %v11336, 4
        %v11504 = vsel %vm1105, %v11503, %v11209
        %v11505 = vrot.slane %v11209, 4
        %v11506 = vsel %vm1105, %v11336, %v11505
        %v11508 = vunpack.c.l.s4 1983009808
        %v11509 = vunpack.c.0.s8 %v11508
        %v11510 = vperm.slane %v11504, %v11509
        %v11512 = vunpack.c.l.s4 1983009808
        %v11513 = vunpack.c.0.s8 %v11512
        %v11514 = vperm.slane %v11506, %v11513
        %v11515 = vrot.slane %v11339, 4
        %v11516 = vsel %vm1105, %v11515, %v11333
        %v11517 = vrot.slane %v11333, 4
        %v11518 = vsel %vm1105, %v11339, %v11517
        %v11520 = vunpack.c.l.s4 1983009808
        %v11521 = vunpack.c.0.s8 %v11520
        %v11522 = vperm.slane %v11516, %v11521
        %v11524 = vunpack.c.l.s4 1983009808
        %v11525 = vunpack.c.0.s8 %v11524
        %v11526 = vperm.slane %v11518, %v11525
        %v11527 = vrot.slane %v11346, 4
        %v11528 = vsel %vm1105, %v11527, %v11229
        %v11529 = vrot.slane %v11229, 4
        %v11530 = vsel %vm1105, %v11346, %v11529
        %v11532 = vunpack.c.l.s4 1983009808
        %v11533 = vunpack.c.0.s8 %v11532
        %v11534 = vperm.slane %v11528, %v11533
        %v11536 = vunpack.c.l.s4 1983009808
        %v11537 = vunpack.c.0.s8 %v11536
        %v11538 = vperm.slane %v11530, %v11537
        %v11539 = vrot.slane %v11349, 4
        %v11540 = vsel %vm1105, %v11539, %v11343
        %v11541 = vrot.slane %v11343, 4
        %v11542 = vsel %vm1105, %v11349, %v11541
        %v11544 = vunpack.c.l.s4 1983009808
        %v11545 = vunpack.c.0.s8 %v11544
        %v11546 = vperm.slane %v11540, %v11545
        %v11548 = vunpack.c.l.s4 1983009808
        %v11549 = vunpack.c.0.s8 %v11548
        %v11550 = vperm.slane %v11542, %v11549
        %v11551 = vrot.slane %v11522, 4
        %v11552 = vsel %vm1105, %v11551, %v11510
        %v11553 = vrot.slane %v11510, 4
        %v11554 = vsel %vm1105, %v11522, %v11553
        %v11556 = vunpack.c.l.s4 1934713408
        %v11557 = vunpack.c.0.s8 %v11556
        %v11558 = vperm.slane %v11552, %v11557
        %v11560 = vunpack.c.l.s4 1934713408
        %v11561 = vunpack.c.0.s8 %v11560
        %v11562 = vperm.slane %v11554, %v11561
        %v11563 = vrot.slane %v11526, 4
        %v11564 = vsel %vm1105, %v11563, %v11514
        %v11565 = vrot.slane %v11514, 4
        %v11566 = vsel %vm1105, %v11526, %v11565
        %v11568 = vunpack.c.l.s4 1934713408
        %v11569 = vunpack.c.0.s8 %v11568
        %v11570 = vperm.slane %v11564, %v11569
        %v11572 = vunpack.c.l.s4 1934713408
        %v11573 = vunpack.c.0.s8 %v11572
        %v11574 = vperm.slane %v11566, %v11573
        %v11575 = vrot.slane %v11546, 4
        %v11576 = vsel %vm1105, %v11575, %v11534
        %v11577 = vrot.slane %v11534, 4
        %v11578 = vsel %vm1105, %v11546, %v11577
        %v11580 = vunpack.c.l.s4 1934713408
        %v11581 = vunpack.c.0.s8 %v11580
        %v11582 = vperm.slane %v11576, %v11581
        %v11584 = vunpack.c.l.s4 1934713408
        %v11585 = vunpack.c.0.s8 %v11584
        %v11586 = vperm.slane %v11578, %v11585
        %v11587 = vrot.slane %v11550, 4
        %v11588 = vsel %vm1105, %v11587, %v11538
        %v11589 = vrot.slane %v11538, 4
        %v11590 = vsel %vm1105, %v11550, %v11589
        %v11592 = vunpack.c.l.s4 1934713408
        %v11593 = vunpack.c.0.s8 %v11592
        %v11594 = vperm.slane %v11588, %v11593
        %v11596 = vunpack.c.l.s4 1934713408
        %v11597 = vunpack.c.0.s8 %v11596
        %v11598 = vperm.slane %v11590, %v11597
        %v11599 = vrot.slane %v11582, 4
        %v11600 = vsel %vm1105, %v11599, %v11558
        %v11601 = vrot.slane %v11558, 4
        %v11602 = vsel %vm1105, %v11582, %v11601
        %v11603 = vrot.slane %v11586, 4
        %v11604 = vsel %vm1105, %v11603, %v11562
        %v11605 = vrot.slane %v11562, 4
        %v11606 = vsel %vm1105, %v11586, %v11605
        %v11607 = vrot.slane %v11594, 4
        %v11608 = vsel %vm1105, %v11607, %v11570
        %v11609 = vrot.slane %v11570, 4
        %v11610 = vsel %vm1105, %v11594, %v11609
        %v11611 = vrot.slane %v11598, 4
        %v11612 = vsel %vm1105, %v11611, %v11574
        %v11613 = vrot.slane %v11574, 4
        %v11614 = vsel %vm1105, %v11598, %v11613
        %v11615 = vrot.slane %v11356, 4
        %v11616 = vsel %vm1105, %v11615, %v11249
        %v11617 = vrot.slane %v11249, 4
        %v11618 = vsel %vm1105, %v11356, %v11617
        %v11620 = vunpack.c.l.s4 1983009808
        %v11621 = vunpack.c.0.s8 %v11620
        %v11622 = vperm.slane %v11616, %v11621
        %v11624 = vunpack.c.l.s4 1983009808
        %v11625 = vunpack.c.0.s8 %v11624
        %v11626 = vperm.slane %v11618, %v11625
        %v11627 = vrot.slane %v11359, 4
        %v11628 = vsel %vm1105, %v11627, %v11353
        %v11629 = vrot.slane %v11353, 4
        %v11630 = vsel %vm1105, %v11359, %v11629
        %v11632 = vunpack.c.l.s4 1983009808
        %v11633 = vunpack.c.0.s8 %v11632
        %v11634 = vperm.slane %v11628, %v11633
        %v11636 = vunpack.c.l.s4 1983009808
        %v11637 = vunpack.c.0.s8 %v11636
        %v11638 = vperm.slane %v11630, %v11637
        %v11639 = vrot.slane %v11366, 4
        %v11640 = vsel %vm1105, %v11639, %v11269
        %v11641 = vrot.slane %v11269, 4
        %v11642 = vsel %vm1105, %v11366, %v11641
        %v11644 = vunpack.c.l.s4 1983009808
        %v11645 = vunpack.c.0.s8 %v11644
        %v11646 = vperm.slane %v11640, %v11645
        %v11648 = vunpack.c.l.s4 1983009808
        %v11649 = vunpack.c.0.s8 %v11648
        %v11650 = vperm.slane %v11642, %v11649
        %v11651 = vrot.slane %v11369, 4
        %v11652 = vsel %vm1105, %v11651, %v11363
        %v11653 = vrot.slane %v11363, 4
        %v11654 = vsel %vm1105, %v11369, %v11653
        %v11656 = vunpack.c.l.s4 1983009808
        %v11657 = vunpack.c.0.s8 %v11656
        %v11658 = vperm.slane %v11652, %v11657
        %v11660 = vunpack.c.l.s4 1983009808
        %v11661 = vunpack.c.0.s8 %v11660
        %v11662 = vperm.slane %v11654, %v11661
        %v11663 = vrot.slane %v11634, 4
        %v11664 = vsel %vm1105, %v11663, %v11622
        %v11665 = vrot.slane %v11622, 4
        %v11666 = vsel %vm1105, %v11634, %v11665
        %v11668 = vunpack.c.l.s4 1934713408
        %v11669 = vunpack.c.0.s8 %v11668
        %v11670 = vperm.slane %v11664, %v11669
        %v11672 = vunpack.c.l.s4 1934713408
        %v11673 = vunpack.c.0.s8 %v11672
        %v11674 = vperm.slane %v11666, %v11673
        %v11675 = vrot.slane %v11638, 4
        %v11676 = vsel %vm1105, %v11675, %v11626
        %v11677 = vrot.slane %v11626, 4
        %v11678 = vsel %vm1105, %v11638, %v11677
        %v11680 = vunpack.c.l.s4 1934713408
        %v11681 = vunpack.c.0.s8 %v11680
        %v11682 = vperm.slane %v11676, %v11681
        %v11684 = vunpack.c.l.s4 1934713408
        %v11685 = vunpack.c.0.s8 %v11684
        %v11686 = vperm.slane %v11678, %v11685
        %v11687 = vrot.slane %v11658, 4
        %v11688 = vsel %vm1105, %v11687, %v11646
        %v11689 = vrot.slane %v11646, 4
        %v11690 = vsel %vm1105, %v11658, %v11689
        %v11692 = vunpack.c.l.s4 1934713408
        %v11693 = vunpack.c.0.s8 %v11692
        %v11694 = vperm.slane %v11688, %v11693
        %v11696 = vunpack.c.l.s4 1934713408
        %v11697 = vunpack.c.0.s8 %v11696
        %v11698 = vperm.slane %v11690, %v11697
        %v11699 = vrot.slane %v11662, 4
        %v11700 = vsel %vm1105, %v11699, %v11650
        %v11701 = vrot.slane %v11650, 4
        %v11702 = vsel %vm1105, %v11662, %v11701
        %v11704 = vunpack.c.l.s4 1934713408
        %v11705 = vunpack.c.0.s8 %v11704
        %v11706 = vperm.slane %v11700, %v11705
        %v11708 = vunpack.c.l.s4 1934713408
        %v11709 = vunpack.c.0.s8 %v11708
        %v11710 = vperm.slane %v11702, %v11709
        %v11711 = vrot.slane %v11694, 4
        %v11712 = vsel %vm1105, %v11711, %v11670
        %v11713 = vrot.slane %v11670, 4
        %v11714 = vsel %vm1105, %v11694, %v11713
        %v11715 = vrot.slane %v11698, 4
        %v11716 = vsel %vm1105, %v11715, %v11674
        %v11717 = vrot.slane %v11674, 4
        %v11718 = vsel %vm1105, %v11698, %v11717
        %v11719 = vrot.slane %v11706, 4
        %v11720 = vsel %vm1105, %v11719, %v11682
        %v11721 = vrot.slane %v11682, 4
        %v11722 = vsel %vm1105, %v11706, %v11721
        %v11723 = vrot.slane %v11710, 4
        %v11724 = vsel %vm1105, %v11723, %v11686
        %v11725 = vrot.slane %v11686, 4
        %v11726 = vsel %vm1105, %v11710, %v11725
        %v11727 = vrot.slane %v11376, 4
        %v11728 = vsel %vm1105, %v11727, %v11289
        %v11729 = vrot.slane %v11289, 4
        %v11730 = vsel %vm1105, %v11376, %v11729
        %v11732 = vunpack.c.l.s4 1983009808
        %v11733 = vunpack.c.0.s8 %v11732
        %v11734 = vperm.slane %v11728, %v11733
        %v11736 = vunpack.c.l.s4 1983009808
        %v11737 = vunpack.c.0.s8 %v11736
        %v11738 = vperm.slane %v11730, %v11737
        %v11739 = vrot.slane %v11379, 4
        %v11740 = vsel %vm1105, %v11739, %v11373
        %v11741 = vrot.slane %v11373, 4
        %v11742 = vsel %vm1105, %v11379, %v11741
        %v11744 = vunpack.c.l.s4 1983009808
        %v11745 = vunpack.c.0.s8 %v11744
        %v11746 = vperm.slane %v11740, %v11745
        %v11748 = vunpack.c.l.s4 1983009808
        %v11749 = vunpack.c.0.s8 %v11748
        %v11750 = vperm.slane %v11742, %v11749
        %v11751 = vrot.slane %v11386, 4
        %v11752 = vsel %vm1105, %v11751, %v11309
        %v11753 = vrot.slane %v11309, 4
        %v11754 = vsel %vm1105, %v11386, %v11753
        %v11756 = vunpack.c.l.s4 1983009808
        %v11757 = vunpack.c.0.s8 %v11756
        %v11758 = vperm.slane %v11752, %v11757
        %v11760 = vunpack.c.l.s4 1983009808
        %v11761 = vunpack.c.0.s8 %v11760
        %v11762 = vperm.slane %v11754, %v11761
        %v11763 = vrot.slane %v11389, 4
        %v11764 = vsel %vm1105, %v11763, %v11383
        %v11765 = vrot.slane %v11383, 4
        %v11766 = vsel %vm1105, %v11389, %v11765
        %v11768 = vunpack.c.l.s4 1983009808
        %v11769 = vunpack.c.0.s8 %v11768
        %v11770 = vperm.slane %v11764, %v11769
        %v11772 = vunpack.c.l.s4 1983009808
        %v11773 = vunpack.c.0.s8 %v11772
        %v11774 = vperm.slane %v11766, %v11773
        %v11775 = vrot.slane %v11746, 4
        %v11776 = vsel %vm1105, %v11775, %v11734
        %v11777 = vrot.slane %v11734, 4
        %v11778 = vsel %vm1105, %v11746, %v11777
        %v11780 = vunpack.c.l.s4 1934713408
        %v11781 = vunpack.c.0.s8 %v11780
        %v11782 = vperm.slane %v11776, %v11781
        %v11784 = vunpack.c.l.s4 1934713408
        %v11785 = vunpack.c.0.s8 %v11784
        %v11786 = vperm.slane %v11778, %v11785
        %v11787 = vrot.slane %v11750, 4
        %v11788 = vsel %vm1105, %v11787, %v11738
        %v11789 = vrot.slane %v11738, 4
        %v11790 = vsel %vm1105, %v11750, %v11789
        %v11792 = vunpack.c.l.s4 1934713408
        %v11793 = vunpack.c.0.s8 %v11792
        %v11794 = vperm.slane %v11788, %v11793
        %v11796 = vunpack.c.l.s4 1934713408
        %v11797 = vunpack.c.0.s8 %v11796
        %v11798 = vperm.slane %v11790, %v11797
        %v11799 = vrot.slane %v11770, 4
        %v11800 = vsel %vm1105, %v11799, %v11758
        %v11801 = vrot.slane %v11758, 4
        %v11802 = vsel %vm1105, %v11770, %v11801
        %v11804 = vunpack.c.l.s4 1934713408
        %v11805 = vunpack.c.0.s8 %v11804
        %v11806 = vperm.slane %v11800, %v11805
        %v11808 = vunpack.c.l.s4 1934713408
        %v11809 = vunpack.c.0.s8 %v11808
        %v11810 = vperm.slane %v11802, %v11809
        %v11811 = vrot.slane %v11774, 4
        %v11812 = vsel %vm1105, %v11811, %v11762
        %v11813 = vrot.slane %v11762, 4
        %v11814 = vsel %vm1105, %v11774, %v11813
        %v11816 = vunpack.c.l.s4 1934713408
        %v11817 = vunpack.c.0.s8 %v11816
        %v11818 = vperm.slane %v11812, %v11817
        %v11820 = vunpack.c.l.s4 1934713408
        %v11821 = vunpack.c.0.s8 %v11820
        %v11822 = vperm.slane %v11814, %v11821
        %v11823 = vrot.slane %v11806, 4
        %v11824 = vsel %vm1105, %v11823, %v11782
        %v11825 = vrot.slane %v11782, 4
        %v11826 = vsel %vm1105, %v11806, %v11825
        %v11827 = vrot.slane %v11810, 4
        %v11828 = vsel %vm1105, %v11827, %v11786
        %v11829 = vrot.slane %v11786, 4
        %v11830 = vsel %vm1105, %v11810, %v11829
        %v11831 = vrot.slane %v11818, 4
        %v11832 = vsel %vm1105, %v11831, %v11794
        %v11833 = vrot.slane %v11794, 4
        %v11834 = vsel %vm1105, %v11818, %v11833
        %v11835 = vrot.slane %v11822, 4
        %v11836 = vsel %vm1105, %v11835, %v11798
        %v11837 = vrot.slane %v11798, 4
        %v11838 = vsel %vm1105, %v11822, %v11837
        %v11839 = vadd.f32 %v10698, %v11488
        %v11840 = vadd.f32 %v10699, %v11600
        %v11841 = vadd.f32 %v10700, %v11712
        %v11842 = vadd.f32 %v10701, %v11824
        %v11843 = vadd.f32 %v10702, %v11490
        %v11844 = vadd.f32 %v10703, %v11602
        %v11845 = vadd.f32 %v10704, %v11714
        %v11846 = vadd.f32 %v10705, %v11826
        %v11847 = vadd.f32 %v10706, %v11492
        %v11848 = vadd.f32 %v10707, %v11604
        %v11849 = vadd.f32 %v10708, %v11716
        %v11850 = vadd.f32 %v10709, %v11828
        %v11851 = vadd.f32 %v10710, %v11494
        %v11852 = vadd.f32 %v10711, %v11606
        %v11853 = vadd.f32 %v10712, %v11718
        %v11854 = vadd.f32 %v10713, %v11830
        %v11855 = vadd.f32 %v10714, %v11496
        %v11856 = vadd.f32 %v10715, %v11608
        %v11857 = vadd.f32 %v10716, %v11720
        %v11858 = vadd.f32 %v10717, %v11832
        %v11859 = vadd.f32 %v10718, %v11498
        %v11860 = vadd.f32 %v10719, %v11610
        %v11861 = vadd.f32 %v10720, %v11722
        %v11862 = vadd.f32 %v10721, %v11834
        %v11863 = vadd.f32 %v10722, %v11500
        %v11864 = vadd.f32 %v10723, %v11612
        %v11865 = vadd.f32 %v10724, %v11724
        %v11866 = vadd.f32 %v10725, %v11836
        %v11867 = vadd.f32 %v10726, %v11502
        %v11868 = vadd.f32 %v10727, %v11614
        %v11869 = vadd.f32 %v10728, %v11726
        %v11870 = vadd.f32 %v10729, %v11838
        %v11871 = vld [vmem:[%s4] sm:$0xff]
        %v11873 = vrot.slane %v11871, 1
        %v11874 = vrot.slane %v11871, 2
        %v11875 = vrot.slane %v11871, 3
        %v11876 = vrot.slane %v11871, 4
        %v11877 = vrot.slane %v11871, 5
        %v11878 = vrot.slane %v11871, 6
        %v11879 = vrot.slane %v11871, 7
        %v11880 = vperm.slane %v11871, 0
        %v11881 = vperm.slane %v11873, 0
        %v11882 = vperm.slane %v11874, 0
        %v11883 = vperm.slane %v11875, 0
        %v11884 = vperm.slane %v11876, 0
        %v11885 = vperm.slane %v11877, 0
        %v11886 = vperm.slane %v11878, 0
        %v11887 = vperm.slane %v11879, 0
        %11888 = vset.pattern.permute.xlu0 0
        %11889 = vperm.xlu0 %11888, %v11880
        %v11890 = vpop.permute.xlu0 %11889
        %11892 = vset.pattern.permute.xlu0 0
        %11893 = vperm.xlu0 %11892, %v11881
        %v11894 = vpop.permute.xlu0 %11893
        %11896 = vset.pattern.permute.xlu0 0
        %11897 = vperm.xlu0 %11896, %v11882
        %v11898 = vpop.permute.xlu0 %11897
        %11900 = vset.pattern.permute.xlu0 0
        %11901 = vperm.xlu0 %11900, %v11883
        %v11902 = vpop.permute.xlu0 %11901
        %11904 = vset.pattern.permute.xlu0 0
        %11905 = vperm.xlu0 %11904, %v11884
        %v11906 = vpop.permute.xlu0 %11905
        %11908 = vset.pattern.permute.xlu0 0
        %11909 = vperm.xlu0 %11908, %v11885
        %v11910 = vpop.permute.xlu0 %11909
        %11912 = vset.pattern.permute.xlu0 0
        %11913 = vperm.xlu0 %11912, %v11886
        %v11914 = vpop.permute.xlu0 %11913
        %11916 = vset.pattern.permute.xlu0 0
        %11917 = vperm.xlu0 %11916, %v11887
        %v11918 = vpop.permute.xlu0 %11917
        %v11920 = vadd.f32 %v11839, %v11890
        %v11921 = vadd.f32 %v11840, %v11890
        %v11922 = vadd.f32 %v11841, %v11890
        %v11923 = vadd.f32 %v11842, %v11890
        %v11924 = vadd.f32 %v11843, %v11894
        %v11925 = vadd.f32 %v11844, %v11894
        %v11926 = vadd.f32 %v11845, %v11894
        %v11927 = vadd.f32 %v11846, %v11894
        %v11928 = vadd.f32 %v11847, %v11898
        %v11929 = vadd.f32 %v11848, %v11898
        %v11930 = vadd.f32 %v11849, %v11898
        %v11931 = vadd.f32 %v11850, %v11898
        %v11932 = vadd.f32 %v11851, %v11902
        %v11933 = vadd.f32 %v11852, %v11902
        %v11934 = vadd.f32 %v11853, %v11902
        %v11935 = vadd.f32 %v11854, %v11902
        %v11936 = vadd.f32 %v11855, %v11906
        %v11937 = vadd.f32 %v11856, %v11906
        %v11938 = vadd.f32 %v11857, %v11906
        %v11939 = vadd.f32 %v11858, %v11906
        %v11940 = vadd.f32 %v11859, %v11910
        %v11941 = vadd.f32 %v11860, %v11910
        %v11942 = vadd.f32 %v11861, %v11910
        %v11943 = vadd.f32 %v11862, %v11910
        %v11944 = vadd.f32 %v11863, %v11914
        %v11945 = vadd.f32 %v11864, %v11914
        %v11946 = vadd.f32 %v11865, %v11914
        %v11947 = vadd.f32 %v11866, %v11914
        %v11948 = vadd.f32 %v11867, %v11918
        %v11949 = vadd.f32 %v11868, %v11918
        %v11950 = vadd.f32 %v11869, %v11918
        %v11951 = vadd.f32 %v11870, %v11918
        %vm11952 = vcmp.ge.f32.partialorder %v11920, 0.0
        %vm11953 = vcmp.ge.f32.partialorder %v11921, 0.0
        %vm11954 = vcmp.ge.f32.partialorder %v11922, 0.0
        %vm11955 = vcmp.ge.f32.partialorder %v11923, 0.0
        %vm11956 = vcmp.ge.f32.partialorder %v11924, 0.0
        %vm11957 = vcmp.ge.f32.partialorder %v11925, 0.0
        %vm11958 = vcmp.ge.f32.partialorder %v11926, 0.0
        %vm11959 = vcmp.ge.f32.partialorder %v11927, 0.0
        %vm11960 = vcmp.ge.f32.partialorder %v11928, 0.0
        %vm11961 = vcmp.ge.f32.partialorder %v11929, 0.0
        %vm11962 = vcmp.ge.f32.partialorder %v11930, 0.0
        %vm11963 = vcmp.ge.f32.partialorder %v11931, 0.0
        %vm11964 = vcmp.ge.f32.partialorder %v11932, 0.0
        %vm11965 = vcmp.ge.f32.partialorder %v11933, 0.0
        %vm11966 = vcmp.ge.f32.partialorder %v11934, 0.0
        %vm11967 = vcmp.ge.f32.partialorder %v11935, 0.0
        %vm11968 = vcmp.ge.f32.partialorder %v11936, 0.0
        %vm11969 = vcmp.ge.f32.partialorder %v11937, 0.0
        %vm11970 = vcmp.ge.f32.partialorder %v11938, 0.0
        %vm11971 = vcmp.ge.f32.partialorder %v11939, 0.0
        %vm11972 = vcmp.ge.f32.partialorder %v11940, 0.0
        %vm11973 = vcmp.ge.f32.partialorder %v11941, 0.0
        %vm11974 = vcmp.ge.f32.partialorder %v11942, 0.0
        %vm11975 = vcmp.ge.f32.partialorder %v11943, 0.0
        %vm11976 = vcmp.ge.f32.partialorder %v11944, 0.0
        %vm11977 = vcmp.ge.f32.partialorder %v11945, 0.0
        %vm11978 = vcmp.ge.f32.partialorder %v11946, 0.0
        %vm11979 = vcmp.ge.f32.partialorder %v11947, 0.0
        %vm11980 = vcmp.ge.f32.partialorder %v11948, 0.0
        %vm11981 = vcmp.ge.f32.partialorder %v11949, 0.0
        %vm11982 = vcmp.ge.f32.partialorder %v11950, 0.0
        %vm11983 = vcmp.ge.f32.partialorder %v11951, 0.0
        %v11984 = vmul.f32 %v11920, 0.2
        %v11985 = vmul.f32 %v11921, 0.2
        %v11986 = vmul.f32 %v11922, 0.2
        %v11987 = vmul.f32 %v11923, 0.2
        %v11988 = vmul.f32 %v11924, 0.2
        %v11989 = vmul.f32 %v11925, 0.2
        %v11990 = vmul.f32 %v11926, 0.2
        %v11991 = vmul.f32 %v11927, 0.2
        %v11992 = vmul.f32 %v11928, 0.2
        %v11993 = vmul.f32 %v11929, 0.2
        %v11994 = vmul.f32 %v11930, 0.2
        %v11995 = vmul.f32 %v11931, 0.2
        %v11996 = vmul.f32 %v11932, 0.2
        %v11997 = vmul.f32 %v11933, 0.2
        %v11998 = vmul.f32 %v11934, 0.2
        %v11999 = vmul.f32 %v11935, 0.2
        %v12000 = vmul.f32 %v11936, 0.2
        %v12001 = vmul.f32 %v11937, 0.2
        %v12002 = vmul.f32 %v11938, 0.2
        %v12003 = vmul.f32 %v11939, 0.2
        %v12004 = vmul.f32 %v11940, 0.2
        %v12005 = vmul.f32 %v11941, 0.2
        %v12006 = vmul.f32 %v11942, 0.2
        %v12007 = vmul.f32 %v11943, 0.2
        %v12008 = vmul.f32 %v11944, 0.2
        %v12009 = vmul.f32 %v11945, 0.2
        %v12010 = vmul.f32 %v11946, 0.2
        %v12011 = vmul.f32 %v11947, 0.2
        %v12012 = vmul.f32 %v11948, 0.2
        %v12013 = vmul.f32 %v11949, 0.2
        %v12014 = vmul.f32 %v11950, 0.2
        %v12015 = vmul.f32 %v11951, 0.2
        %v12016 = vsel %vm11952, %v11920, %v11984
        %v12017 = vsel %vm11953, %v11921, %v11985
        %v12018 = vsel %vm11954, %v11922, %v11986
        %v12019 = vsel %vm11955, %v11923, %v11987
        %v12020 = vsel %vm11956, %v11924, %v11988
        %v12021 = vsel %vm11957, %v11925, %v11989
        %v12022 = vsel %vm11958, %v11926, %v11990
        %v12023 = vsel %vm11959, %v11927, %v11991
        %v12024 = vsel %vm11960, %v11928, %v11992
        %v12025 = vsel %vm11961, %v11929, %v11993
        %v12026 = vsel %vm11962, %v11930, %v11994
        %v12027 = vsel %vm11963, %v11931, %v11995
        %v12028 = vsel %vm11964, %v11932, %v11996
        %v12029 = vsel %vm11965, %v11933, %v11997
        %v12030 = vsel %vm11966, %v11934, %v11998
        %v12031 = vsel %vm11967, %v11935, %v11999
        %v12032 = vsel %vm11968, %v11936, %v12000
        %v12033 = vsel %vm11969, %v11937, %v12001
        %v12034 = vsel %vm11970, %v11938, %v12002
        %v12035 = vsel %vm11971, %v11939, %v12003
        %v12036 = vsel %vm11972, %v11940, %v12004
        %v12037 = vsel %vm11973, %v11941, %v12005
        %v12038 = vsel %vm11974, %v11942, %v12006
        %v12039 = vsel %vm11975, %v11943, %v12007
        %v12040 = vsel %vm11976, %v11944, %v12008
        %v12041 = vsel %vm11977, %v11945, %v12009
        %v12042 = vsel %vm11978, %v11946, %v12010
        %v12043 = vsel %vm11979, %v11947, %v12011
        %v12044 = vsel %vm11980, %v11948, %v12012
        %v12045 = vsel %vm11981, %v11949, %v12013
        %v12046 = vsel %vm11982, %v11950, %v12014
        %v12047 = vsel %vm11983, %v11951, %v12015
        %v12048 = vmul.f32 %v12016, 1.4142135
        %v12049 = vmul.f32 %v12017, 1.4142135
        %v12050 = vmul.f32 %v12018, 1.4142135
        %v12051 = vmul.f32 %v12019, 1.4142135
        %v12052 = vmul.f32 %v12020, 1.4142135
        %v12053 = vmul.f32 %v12021, 1.4142135
        %v12054 = vmul.f32 %v12022, 1.4142135
        %v12055 = vmul.f32 %v12023, 1.4142135
        %v12056 = vmul.f32 %v12024, 1.4142135
        %v12057 = vmul.f32 %v12025, 1.4142135
        %v12058 = vmul.f32 %v12026, 1.4142135
        %v12059 = vmul.f32 %v12027, 1.4142135
        %v12060 = vmul.f32 %v12028, 1.4142135
        %v12061 = vmul.f32 %v12029, 1.4142135
        %v12062 = vmul.f32 %v12030, 1.4142135
        %v12063 = vmul.f32 %v12031, 1.4142135
        %v12064 = vmul.f32 %v12032, 1.4142135
        %v12065 = vmul.f32 %v12033, 1.4142135
        %v12066 = vmul.f32 %v12034, 1.4142135
        %v12067 = vmul.f32 %v12035, 1.4142135
        %v12068 = vmul.f32 %v12036, 1.4142135
        %v12069 = vmul.f32 %v12037, 1.4142135
        %v12070 = vmul.f32 %v12038, 1.4142135
        %v12071 = vmul.f32 %v12039, 1.4142135
        %v12072 = vmul.f32 %v12040, 1.4142135
        %v12073 = vmul.f32 %v12041, 1.4142135
        %v12074 = vmul.f32 %v12042, 1.4142135
        %v12075 = vmul.f32 %v12043, 1.4142135
        %v12076 = vmul.f32 %v12044, 1.4142135
        %v12077 = vmul.f32 %v12045, 1.4142135
        %v12078 = vmul.f32 %v12046, 1.4142135
        %v12079 = vmul.f32 %v12047, 1.4142135
        %12080 = vst.msk [vmem:[%s234] sm:$0xff] %vm1425, %v12048
        %12081 = vst.msk [vmem:[%s234 + $0x8] sm:$0xff] %vm1425, %v12049
        %12082 = vst.msk [vmem:[%s234 + $0x10] sm:$0xff] %vm1425, %v12050
        %12083 = vst.msk [vmem:[%s234 + $0x18] sm:$0xff] %vm1425, %v12051
        %12084 = vst.msk [vmem:[%s234 + $0x20] sm:$0xff] %vm1425, %v12052
        %12085 = vst.msk [vmem:[%s234 + $0x28] sm:$0xff] %vm1425, %v12053
        %12086 = vst.msk [vmem:[%s234 + $0x30] sm:$0xff] %vm1425, %v12054
        %12087 = vst.msk [vmem:[%s234 + $0x38] sm:$0xff] %vm1425, %v12055
        %12088 = vst.msk [vmem:[%s234 + $0x40] sm:$0xff] %vm1425, %v12056
        %12089 = vst.msk [vmem:[%s234 + $0x48] sm:$0xff] %vm1425, %v12057
        %12090 = vst.msk [vmem:[%s234 + $0x50] sm:$0xff] %vm1425, %v12058
        %12091 = vst.msk [vmem:[%s234 + $0x58] sm:$0xff] %vm1425, %v12059
        %12092 = vst.msk [vmem:[%s234 + $0x60] sm:$0xff] %vm1425, %v12060
        %12093 = vst.msk [vmem:[%s234 + $0x68] sm:$0xff] %vm1425, %v12061
        %12094 = vst.msk [vmem:[%s234 + $0x70] sm:$0xff] %vm1425, %v12062
        %12095 = vst.msk [vmem:[%s234 + $0x78] sm:$0xff] %vm1425, %v12063
        %12096 = vst.msk [vmem:[%s234 + $0x80] sm:$0xff] %vm1425, %v12064
        %12097 = vst.msk [vmem:[%s234 + $0x88] sm:$0xff] %vm1425, %v12065
        %12098 = vst.msk [vmem:[%s234 + $0x90] sm:$0xff] %vm1425, %v12066
        %12099 = vst.msk [vmem:[%s234 + $0x98] sm:$0xff] %vm1425, %v12067
        %12100 = vst.msk [vmem:[%s234 + $0xa0] sm:$0xff] %vm1425, %v12068
        %12101 = vst.msk [vmem:[%s234 + $0xa8] sm:$0xff] %vm1425, %v12069
        %12102 = vst.msk [vmem:[%s234 + $0xb0] sm:$0xff] %vm1425, %v12070
        %12103 = vst.msk [vmem:[%s234 + $0xb8] sm:$0xff] %vm1425, %v12071
        %12104 = vst.msk [vmem:[%s234 + $0xc0] sm:$0xff] %vm1425, %v12072
        %12105 = vst.msk [vmem:[%s234 + $0xc8] sm:$0xff] %vm1425, %v12073
        %12106 = vst.msk [vmem:[%s234 + $0xd0] sm:$0xff] %vm1425, %v12074
        %12107 = vst.msk [vmem:[%s234 + $0xd8] sm:$0xff] %vm1425, %v12075
        %12108 = vst.msk [vmem:[%s234 + $0xe0] sm:$0xff] %vm1425, %v12076
        %12109 = vst.msk [vmem:[%s234 + $0xe8] sm:$0xff] %vm1425, %v12077
        %12110 = vst.msk [vmem:[%s234 + $0xf0] sm:$0xff] %vm1425, %v12078
        %12111 = vst.msk [vmem:[%s234 + $0xf8] sm:$0xff] %vm1425, %v12079
        %s12112 = sand.u32 %s138, 1
        %s12113 = scalar_lea.sflag [#allocation4], %s12112
        %s12114 = sand.u32 %s138, 1
        %s12115 = smul.addr %s12114, 256
        %s12116 = scalar_lea.vmem [#allocation5], %s12115
        // Predicated region
        $region45: #{tpu_custom_call.1} parent=39 // pred_check
          %p12117 = pneg %p148
        $region46: #{tpu_custom_call.1} parent=39 // pred_check_branch
          %12119 = sbr.rel (%p12117) target = $region48
        $region47: #{tpu_custom_call.1} parent=39 // pred_region
          %12121 = vsyncadd %s12113, 0
          %s12122 = smul.addr %s20, 32
          %s12123 = smul.addr %s12122, 8
          %s12124 = scalar_lea.hbm %s5, %s12123
          %s12125 = sshll.u32 %s12116, 4
          %s12126 = int_to_ptr.vmem [resolvable:$true] %s12125
          %s12127 = sshll.u32 %s12124, 4
          %s12128 = int_to_ptr.hbm [resolvable:$true] %s12127
          %12133 = dma.vmem_to_hbm [thread:$0]  %s12126, 4096, %s12128, %s12113, 128, 128, 8
        $region48: #{tpu_custom_call.1} parent=39 // pred_fallthru
          _
      $region40: #{tpu_custom_call.1} parent=5 // pred_fallthru
        _
      %p12134 = scmp.le.s32.totalorder 2, %s15
      // Predicated region
      $region49: #{tpu_custom_call.1} parent=5 // pred_check
        %p12135 = pneg %p12134
      $region50: #{tpu_custom_call.1} parent=5 // pred_check_branch
        %12137 = sbr.rel (%p12135) target = $region52
      $region51: #{tpu_custom_call.1} parent=5 // pred_region
        %s12138 = ssub.s32 %s15, 2
        // Predicated region
        $region53: #{tpu_custom_call.1} parent=51 // pred_check
          %p12139 = pneg %p154
        $region54: #{tpu_custom_call.1} parent=51 // pred_check_branch
          %12141 = sbr.rel (%p12139) target = $region56
        $region55: #{tpu_custom_call.1} parent=51 // pred_region
          %s12142 = sand.u32 %s139, 1
          %s12143 = scalar_lea.sflag [#allocation4], %s12142
          %s12144 = sand.u32 %s139, 1
          %s12145 = smul.addr %s12144, 256
          %s12146 = scalar_lea.vmem [#allocation5], %s12145
          %12148 = dma.done %s12143, 4096
        $region56: #{tpu_custom_call.1} parent=51 // pred_fallthru
          _
      $region52: #{tpu_custom_call.1} parent=5 // pred_fallthru
        _
    $region6: #{tpu_custom_call.1} parent=1 // loop_footer
      %s19 = sadd.s32 1, %s15
    $region7: #{tpu_custom_call.1} parent=1 // loop_footer_branch
      %14 = sbr.rel target = $region3
    $region8: #{tpu_custom_call.1} parent=1 // loop_exit
      _
    %12149 = vsyncpa [#allocation3], 1
    %s12150 = scalar_lea.sflag [#allocation3], 1
    %12151 = vsyncpa %s12150, 1
    %12152 = vsyncpa [#allocation4], 1
    %s12153 = scalar_lea.sflag [#allocation4], 1
    %12154 = vsyncpa %s12153, 1

</llo_original>
